<compile_context>
chip_gen: v5e
topology: v5e:2x2
jax: 0.10.0
libtpu: 0.0.40
codegen_flags: <defaults>
</compile_context>

<pallas_src>
import functools

import numpy as np
import jax
import jax.numpy as jnp
from jax import lax
from jax.experimental import pallas as pl
from jax.experimental.pallas import tpu as pltpu


# ----------------------- gather ("im2col-as-matmul") matrices -----------------------

def _conv_gather_mats(H, W, k, stride, pad):
    """S[t, i, j] = 1 iff input pixel i feeds tap t of output pixel j (standard conv)."""
    Ho = (H + 2 * pad - k) // stride + 1
    Wo = (W + 2 * pad - k) // stride + 1
    S = np.zeros((k * k, H * W, Ho * Wo), np.float32)
    for kh in range(k):
        for kw in range(k):
            t = kh * k + kw
            for ho in range(Ho):
                hi = ho * stride + kh - pad
                if not (0 <= hi < H):
                    continue
                for wo in range(Wo):
                    wi = wo * stride + kw - pad
                    if 0 <= wi < W:
                        S[t, hi * W + wi, ho * Wo + wo] = 1.0
    return S


def _convT_gather_mats(H, W, k, stride, pad):
    """Same for ConvTranspose2d: zero-insertion / stride / padding folded in, so no
    dilated intermediate and no structurally-zero patches are ever formed."""
    Ho = (H - 1) * stride - 2 * pad + k
    Wo = (W - 1) * stride - 2 * pad + k
    S = np.zeros((k * k, H * W, Ho * Wo), np.float32)
    for kh in range(k):
        for kw in range(k):
            t = kh * k + kw
            for ho in range(Ho):
                nh = ho + pad - kh
                if nh % stride != 0:
                    continue
                hi = nh // stride
                if not (0 <= hi < H):
                    continue
                for wo in range(Wo):
                    nw = wo + pad - kw
                    if nw % stride != 0:
                        continue
                    wi = nw // stride
                    if 0 <= wi < W:
                        S[t, hi * W + wi, ho * Wo + wo] = 1.0
    return S


def _conv_w_stack(w):
    """PyTorch Conv2d weight (Cout,Cin,kh,kw) -> per-tap stacked (k*k*Cout, Cin)."""
    Cout, Cin, k, _ = w.shape
    return jnp.transpose(w, (2, 3, 0, 1)).reshape(k * k * Cout, Cin)


def _convT_w_stack(w):
    """PyTorch ConvTranspose2d weight (Cin,Cout,kh,kw) -> per-tap stacked (k*k*Cout, Cin)."""
    Cin, Cout, k, _ = w.shape
    return jnp.transpose(w, (2, 3, 1, 0)).reshape(k * k * Cout, Cin)


# --------------------------------- fused kernel --------------------------------------

def _ker_adp_fused_kernel(
        feat_ref, para_ref,
        w1t_ref, b1_ref, w2t_ref, b2_ref, w3bt_ref, b3b_ref, w3gt_ref, b3g_ref,
        wd1_ref, bd1_ref, sd1_ref,
        wd2_ref, bd2_ref, sd2_ref,
        wu1_ref, bu1_ref, su1_ref,
        wu2_ref, bu2_ref, su2_ref,
        wf_ref, bf_ref, sf_ref,
        out_ref, *, nf, eps):

    def lrelu(v):
        return jnp.where(v >= 0, v, 0.2 * v)

    def mm(a, b):
        return jnp.dot(a, b, preferred_element_type=jnp.float32)

    def conv(x, w_ref, b_ref, s_ref, cout, taps):
        # x: (Cin, HWin) channel-major (spatial on lanes).
        # w_ref: (taps*cout, Cin) stacked per tap; s_ref: (taps, HWin, HWout) gather mats.
        z = mm(w_ref[...], x)                                   # (taps*cout, HWin)
        acc = mm(z[0:cout, :], s_ref[0])
        for t in range(1, taps):                                # unrolled, all MXU
            acc = acc + mm(z[t * cout:(t + 1) * cout, :], s_ref[t])
        return acc + b_ref[...]                                 # bias (cout, 1)

    # ---------- MLP 289 -> 256 -> 256 -> 8*nf (column-oriented: no transposes) --------
    p = para_ref[0]                                             # (289, 1)
    h = lrelu(mm(w1t_ref[...], p) + b1_ref[...])                # (256, 1)
    h = lrelu(mm(w2t_ref[...], h) + b2_ref[...])                # (256, 1)
    beta = mm(w3bt_ref[...], h) + b3b_ref[...]                  # (4nf, 1)  AdaIN bias
    gamma = mm(w3gt_ref[...], h) + b3g_ref[...]                 # (4nf, 1)  AdaIN weight

    x0 = feat_ref[0]                                            # (nf, H*W), lane-dense

    # ---------------------------------- down ------------------------------------------
    x = lrelu(conv(x0, wd1_ref, bd1_ref, sd1_ref, 2 * nf, 9))   # (2nf, 64)
    x = conv(x, wd2_ref, bd2_ref, sd2_ref, 4 * nf, 9)           # (4nf, 16)

    # AdaIN (instance norm, biased variance) + LeakyReLU fused in the same kernel
    mean = jnp.mean(x, axis=1, keepdims=True)
    var = jnp.mean((x - mean) ** 2, axis=1, keepdims=True)
    x = (x - mean) * lax.rsqrt(var + eps) * gamma + beta
    x = lrelu(x)

    # ------------------------- up (transposed convs) ----------------------------------
    x = lrelu(conv(x, wu1_ref, bu1_ref, su1_ref, 2 * nf, 16))   # (2nf, 64)
    x = lrelu(conv(x, wu2_ref, bu2_ref, su2_ref, nf, 16))       # (nf, 256)

    # ------------- final: sigmoid(conv_mul(x)) * feat + conv_plus(x), fused -------------
    y = conv(x, wf_ref, bf_ref, sf_ref, 2 * nf, 9)              # (2nf, 256): [mul | plus]
    mul = y[0:nf, :]
    plus = y[nf:2 * nf, :]
    out_ref[0] = (1.0 / (1.0 + jnp.exp(-mul))) * x0 + plus


# ------------------------------- host-side wrapper ------------------------------------

def ker_adp_block_forward(feature_maps_nchw, para_maps, params, nf):
    B, C, H, W = feature_maps_nchw.shape
    assert C == nf
    HW = H * W
    C4 = 4 * nf

    # channel-major per-image layout == flattened NCHW: no boundary transposes needed
    feat = feature_maps_nchw.reshape(B, nf, HW)
    para = para_maps.reshape(B, -1)[:, :, None]                 # (B, 289, 1) columns

    # ---- MLP weights (column orientation) ----
    w1t = params["mlp_w1"].T
    b1 = params["mlp_b1"][:, None]
    w2t = params["mlp_w2"].T
    b2 = params["mlp_b2"][:, None]
    w3, b3 = params["mlp_w3"], params["mlp_b3"]
    w3bt = w3[:, :C4].T
    b3b = b3[:C4][:, None]                                      # AdaIN bias (beta)
    w3gt = w3[:, C4:2 * C4].T
    b3g = b3[C4:2 * C4][:, None]                                # AdaIN weight (gamma)

    # ---- conv weights stacked per tap (taps*Cout, Cin); mul & plus concatenated ----
    wd1 = _conv_w_stack(params["conv_d1_w"]); bd1 = params["conv_d1_b"][:, None]
    wd2 = _conv_w_stack(params["conv_d2_w"]); bd2 = params["conv_d2_b"][:, None]
    wu1 = _convT_w_stack(params["up1_w"]);    bu1 = params["up1_b"][:, None]
    wu2 = _convT_w_stack(params["up2_w"]);    bu2 = params["up2_b"][:, None]
    wf = _conv_w_stack(jnp.concatenate([params["mul_w"], params["plus_w"]], axis=0))
    bf = jnp.concatenate([params["mul_b"], params["plus_b"]])[:, None]

    # ---- constant gather matrices (trace-time numpy) ----
    sd1 = _conv_gather_mats(H, W, 3, 2, 1)                      # (9, 256, 64)
    sd2 = _conv_gather_mats(H // 2, W // 2, 3, 2, 1)            # (9,  64, 16)
    su1 = _convT_gather_mats(H // 4, W // 4, 4, 2, 1)           # (16, 16, 64)
    su2 = _convT_gather_mats(H // 2, W // 2, 4, 2, 1)           # (16, 64, 256)
    sfin = _conv_gather_mats(H, W, 3, 1, 1)                     # (9, 256, 256)

    def full_spec(shape):
        n = len(shape)
        return pl.BlockSpec(tuple(shape), lambda b: (0,) * n)

    def batch_spec(shape):
        n = len(shape)
        return pl.BlockSpec((1,) + tuple(shape[1:]), lambda b: (b,) + (0,) * (n - 1))

    inputs = (feat, para,
              w1t, b1, w2t, b2, w3bt, b3b, w3gt, b3g,
              wd1, bd1, sd1,
              wd2, bd2, sd2,
              wu1, bu1, su1,
              wu2, bu2, su2,
              wf, bf, sfin)
    in_specs = ([batch_spec(np.shape(feat)), batch_spec(np.shape(para))]
                + [full_spec(np.shape(a)) for a in inputs[2:]])

    out = pl.pallas_call(
        functools.partial(_ker_adp_fused_kernel, nf=nf, eps=1e-5),
        out_shape=jax.ShapeDtypeStruct((B, nf, HW), jnp.float32),
        grid=(B,),
        in_specs=in_specs,
        out_specs=pl.BlockSpec((1, nf, HW), lambda b: (b, 0, 0)),
        compiler_params=pltpu.CompilerParams(
            dimension_semantics=("parallel",),        # 2-way across v7x TensorCores
            vmem_limit_bytes=32 * 1024 * 1024,        # ~9 MB live; safe on v5e/v6e/v7x
        ),
    )(*inputs)
    return out.reshape(B, nf, H, W)


# ----------------------------------- parameters ---------------------------------------

def init_params(nf, key):
    s = 0.05
    ks = jax.random.split(key, 18)

    def rn(k, shape):
        return jax.random.normal(k, shape, jnp.float32) * s

    num_adain = 8 * nf  # 2 * (4*nf) AdaIN params
    return {
        "conv_d1_w": rn(ks[0], (2 * nf, nf, 3, 3)), "conv_d1_b": rn(ks[1], (2 * nf,)),
        "conv_d2_w": rn(ks[2], (4 * nf, 2 * nf, 3, 3)), "conv_d2_b": rn(ks[3], (4 * nf,)),
        "up1_w": rn(ks[4], (4 * nf, 2 * nf, 4, 4)), "up1_b": rn(ks[5], (2 * nf,)),
        "up2_w": rn(ks[6], (2 * nf, nf, 4, 4)), "up2_b": rn(ks[7], (nf,)),
        "mul_w": rn(ks[8], (nf, nf, 3, 3)), "mul_b": rn(ks[9], (nf,)),
        "plus_w": rn(ks[10], (nf, nf, 3, 3)), "plus_b": rn(ks[11], (nf,)),
        "mlp_w1": rn(ks[12], (289, 256)), "mlp_b1": rn(ks[13], (256,)),
        "mlp_w2": rn(ks[14], (256, 256)), "mlp_b2": rn(ks[15], (256,)),
        "mlp_w3": rn(ks[16], (256, num_adain)), "mlp_b3": rn(ks[17], (num_adain,)),
    }


# -------------------------- pure-JAX reference (check) --------------------------------

def reference_forward(feat_nchw, para, p, nf):
    B = feat_nchw.shape[0]
    lrelu = lambda v: jnp.where(v >= 0, v, 0.2 * v)
    dn = ("NCHW", "OIHW", "NCHW")
    hp = lax.Precision.HIGHEST

    h = lrelu(jnp.dot(para.reshape(B, -1), p["mlp_w1"], precision=hp) + p["mlp_b1"])
    h = lrelu(jnp.dot(h, p["mlp_w2"], precision=hp) + p["mlp_b2"])
    adain = jnp.dot(h, p["mlp_w3"], precision=hp) + p["mlp_b3"]
    C4 = 4 * nf
    beta, gamma = adain[:, :C4], adain[:, C4:2 * C4]

    def conv(x, w, b, s, pad):
        return lax.conv_general_dilated(x, w, (s, s), ((pad, pad), (pad, pad)),
                                        dimension_numbers=dn,
                                        precision=hp) + b[None, :, None, None]

    def tconv(x, w, b):
        w_eq = jnp.transpose(jnp.flip(w, (2, 3)), (1, 0, 2, 3))
        return lax.conv_general_dilated(x, w_eq, (1, 1), ((2, 2), (2, 2)),
                                        lhs_dilation=(2, 2), dimension_numbers=dn,
                                        precision=hp) + b[None, :, None, None]

    x = lrelu(conv(feat_nchw, p["conv_d1_w"], p["conv_d1_b"], 2, 1))
    x = conv(x, p["conv_d2_w"], p["conv_d2_b"], 2, 1)
    m = x.mean(axis=(2, 3), keepdims=True)
    v = ((x - m) ** 2).mean(axis=(2, 3), keepdims=True)
    x = (x - m) / jnp.sqrt(v + 1e-5) * gamma[:, :, None, None] + beta[:, :, None, None]
    x = lrelu(x)
    x = lrelu(tconv(x, p["up1_w"], p["up1_b"]))
    x = lrelu(tconv(x, p["up2_w"], p["up2_b"]))
    cat_mul = jax.nn.sigmoid(conv(x, p["mul_w"], p["mul_b"], 1, 1))
    cat_plus = conv(x, p["plus_w"], p["plus_b"], 1, 1)
    return cat_mul * feat_nchw + cat_plus


# -------------------------------------- main -------------------------------------------

if __name__ == "__main__":
    nf, B, H, W = 8, 2, 16, 16
    key = jax.random.PRNGKey(0)
    k1, k2, k3 = jax.random.split(key, 3)

    feature_maps = jax.random.normal(k1, (B, nf, H, W), jnp.float32)   # NCHW (PyTorch)
    para_maps = jax.random.normal(k2, (B, 1, 17, 17), jnp.float32)     # 289 params/sample
    params = init_params(nf, k3)

    fwd = jax.jit(functools.partial(ker_adp_block_forward, nf=nf))
    out = jax.block_until_ready(fwd(feature_maps, para_maps, params))
    assert out.shape == (B, nf, H, W)

    ref = jax.block_until_ready(reference_forward(feature_maps, para_maps, params, nf))
    max_diff = float(jnp.max(jnp.abs(out - ref)))
    assert max_diff < 5e-3, f"mismatch vs reference: {max_diff}"

    print("KERNEL_OK")
</pallas_src>

<mosaic_0001>
module attributes {stable_mosaic.version = 11 : i64} {
  func.func @_ker_adp_fused_kernel(%arg0: i32, %arg1: memref<1x8x256xf32, #tpu.memory_space<vmem>>, %arg2: memref<1x289x1xf32, #tpu.memory_space<vmem>>, %arg3: memref<256x289xf32, #tpu.memory_space<vmem>>, %arg4: memref<256x1xf32, #tpu.memory_space<vmem>>, %arg5: memref<256x256xf32, #tpu.memory_space<vmem>>, %arg6: memref<256x1xf32, #tpu.memory_space<vmem>>, %arg7: memref<32x256xf32, #tpu.memory_space<vmem>>, %arg8: memref<32x1xf32, #tpu.memory_space<vmem>>, %arg9: memref<32x256xf32, #tpu.memory_space<vmem>>, %arg10: memref<32x1xf32, #tpu.memory_space<vmem>>, %arg11: memref<144x8xf32, #tpu.memory_space<vmem>>, %arg12: memref<16x1xf32, #tpu.memory_space<vmem>>, %arg13: memref<9x256x64xf32, #tpu.memory_space<vmem>>, %arg14: memref<288x16xf32, #tpu.memory_space<vmem>>, %arg15: memref<32x1xf32, #tpu.memory_space<vmem>>, %arg16: memref<9x64x16xf32, #tpu.memory_space<vmem>>, %arg17: memref<256x32xf32, #tpu.memory_space<vmem>>, %arg18: memref<16x1xf32, #tpu.memory_space<vmem>>, %arg19: memref<16x16x64xf32, #tpu.memory_space<vmem>>, %arg20: memref<128x16xf32, #tpu.memory_space<vmem>>, %arg21: memref<8x1xf32, #tpu.memory_space<vmem>>, %arg22: memref<16x64x256xf32, #tpu.memory_space<vmem>>, %arg23: memref<144x8xf32, #tpu.memory_space<vmem>>, %arg24: memref<16x1xf32, #tpu.memory_space<vmem>>, %arg25: memref<9x256x256xf32, #tpu.memory_space<vmem>>, %arg26: memref<1x8x256xf32, #tpu.memory_space<vmem>>) attributes {dimension_semantics = [#tpu.dimension_semantics<parallel>], iteration_bounds = array<i64: 2>, scalar_prefetch = 0 : i64, scratch_operands = 0 : i64, tpu.core_type = #tpu.core_type<tc>, window_params = [{transform_indices = @transform_0, window_bounds = array<i64: 1, 8, 256>}, {transform_indices = @transform_1, window_bounds = array<i64: 1, 289, 1>}, {pipeline_mode = #tpu.pipeline_mode<synchronous>, transform_indices = @transform_2, window_bounds = array<i64: 256, 289>}, {pipeline_mode = #tpu.pipeline_mode<synchronous>, transform_indices = @transform_3, window_bounds = array<i64: 256, 1>}, {pipeline_mode = #tpu.pipeline_mode<synchronous>, transform_indices = @transform_4, window_bounds = array<i64: 256, 256>}, {pipeline_mode = #tpu.pipeline_mode<synchronous>, transform_indices = @transform_5, window_bounds = array<i64: 256, 1>}, {pipeline_mode = #tpu.pipeline_mode<synchronous>, transform_indices = @transform_6, window_bounds = array<i64: 32, 256>}, {pipeline_mode = #tpu.pipeline_mode<synchronous>, transform_indices = @transform_7, window_bounds = array<i64: 32, 1>}, {pipeline_mode = #tpu.pipeline_mode<synchronous>, transform_indices = @transform_8, window_bounds = array<i64: 32, 256>}, {pipeline_mode = #tpu.pipeline_mode<synchronous>, transform_indices = @transform_9, window_bounds = array<i64: 32, 1>}, {pipeline_mode = #tpu.pipeline_mode<synchronous>, transform_indices = @transform_10, window_bounds = array<i64: 144, 8>}, {pipeline_mode = #tpu.pipeline_mode<synchronous>, transform_indices = @transform_11, window_bounds = array<i64: 16, 1>}, {pipeline_mode = #tpu.pipeline_mode<synchronous>, transform_indices = @transform_12, window_bounds = array<i64: 9, 256, 64>}, {pipeline_mode = #tpu.pipeline_mode<synchronous>, transform_indices = @transform_13, window_bounds = array<i64: 288, 16>}, {pipeline_mode = #tpu.pipeline_mode<synchronous>, transform_indices = @transform_14, window_bounds = array<i64: 32, 1>}, {pipeline_mode = #tpu.pipeline_mode<synchronous>, transform_indices = @transform_15, window_bounds = array<i64: 9, 64, 16>}, {pipeline_mode = #tpu.pipeline_mode<synchronous>, transform_indices = @transform_16, window_bounds = array<i64: 256, 32>}, {pipeline_mode = #tpu.pipeline_mode<synchronous>, transform_indices = @transform_17, window_bounds = array<i64: 16, 1>}, {pipeline_mode = #tpu.pipeline_mode<synchronous>, transform_indices = @transform_18, window_bounds = array<i64: 16, 16, 64>}, {pipeline_mode = #tpu.pipeline_mode<synchronous>, transform_indices = @transform_19, window_bounds = array<i64: 128, 16>}, {pipeline_mode = #tpu.pipeline_mode<synchronous>, transform_indices = @transform_20, window_bounds = array<i64: 8, 1>}, {pipeline_mode = #tpu.pipeline_mode<synchronous>, transform_indices = @transform_21, window_bounds = array<i64: 16, 64, 256>}, {pipeline_mode = #tpu.pipeline_mode<synchronous>, transform_indices = @transform_22, window_bounds = array<i64: 144, 8>}, {pipeline_mode = #tpu.pipeline_mode<synchronous>, transform_indices = @transform_23, window_bounds = array<i64: 16, 1>}, {pipeline_mode = #tpu.pipeline_mode<synchronous>, transform_indices = @transform_24, window_bounds = array<i64: 9, 256, 256>}, {transform_indices = @transform_25, window_bounds = array<i64: 1, 8, 256>}]} {
    %c0 = arith.constant 0 : index
    %c0_0 = arith.constant 0 : index
    %c0_1 = arith.constant 0 : index
    %0 = vector.load %arg2[%c0, %c0_0, %c0_1] : memref<1x289x1xf32, #tpu.memory_space<vmem>>, vector<1x289x1xf32>
    %1 = vector.shape_cast %0 : vector<1x289x1xf32> to vector<289x1xf32>
    %c0_2 = arith.constant 0 : index
    %c0_3 = arith.constant 0 : index
    %2 = vector.load %arg3[%c0_2, %c0_3] : memref<256x289xf32, #tpu.memory_space<vmem>>, vector<256x289xf32>
    %cst = arith.constant dense<0.000000e+00> : vector<256x1xf32>
    %3 = tpu.matmul %2, %1, %cst {dimension_numbers = #tpu.dot_dimension_numbers<[1], [0], [0], [1], [0, 0, 1, 1], [], []>} : vector<256x289xf32>, vector<289x1xf32>, vector<256x1xf32> -> vector<256x1xf32>
    %c0_4 = arith.constant 0 : index
    %c0_5 = arith.constant 0 : index
    %4 = vector.load %arg4[%c0_4, %c0_5] : memref<256x1xf32, #tpu.memory_space<vmem>>, vector<256x1xf32>
    %5 = arith.addf %3, %4 : vector<256x1xf32>
    %cst_6 = arith.constant 0.000000e+00 : f32
    %6 = vector.broadcast %cst_6 : f32 to vector<256x1xf32>
    %7 = arith.cmpf oge, %5, %6 : vector<256x1xf32>
    %cst_7 = arith.constant 2.000000e-01 : f32
    %8 = vector.broadcast %cst_7 : f32 to vector<256x1xf32>
    %9 = arith.mulf %8, %5 : vector<256x1xf32>
    %10 = arith.select %7, %5, %9 : vector<256x1xi1>, vector<256x1xf32>
    %c0_8 = arith.constant 0 : index
    %c0_9 = arith.constant 0 : index
    %11 = vector.load %arg5[%c0_8, %c0_9] : memref<256x256xf32, #tpu.memory_space<vmem>>, vector<256x256xf32>
    %cst_10 = arith.constant dense<0.000000e+00> : vector<256x1xf32>
    %12 = tpu.matmul %11, %10, %cst_10 {dimension_numbers = #tpu.dot_dimension_numbers<[1], [0], [0], [1], [0, 0, 1, 1], [], []>} : vector<256x256xf32>, vector<256x1xf32>, vector<256x1xf32> -> vector<256x1xf32>
    %c0_11 = arith.constant 0 : index
    %c0_12 = arith.constant 0 : index
    %13 = vector.load %arg6[%c0_11, %c0_12] : memref<256x1xf32, #tpu.memory_space<vmem>>, vector<256x1xf32>
    %14 = arith.addf %12, %13 : vector<256x1xf32>
    %cst_13 = arith.constant 0.000000e+00 : f32
    %15 = vector.broadcast %cst_13 : f32 to vector<256x1xf32>
    %16 = arith.cmpf oge, %14, %15 : vector<256x1xf32>
    %cst_14 = arith.constant 2.000000e-01 : f32
    %17 = vector.broadcast %cst_14 : f32 to vector<256x1xf32>
    %18 = arith.mulf %17, %14 : vector<256x1xf32>
    %19 = arith.select %16, %14, %18 : vector<256x1xi1>, vector<256x1xf32>
    %c0_15 = arith.constant 0 : index
    %c0_16 = arith.constant 0 : index
    %20 = vector.load %arg7[%c0_15, %c0_16] : memref<32x256xf32, #tpu.memory_space<vmem>>, vector<32x256xf32>
    %cst_17 = arith.constant dense<0.000000e+00> : vector<32x1xf32>
    %21 = tpu.matmul %20, %19, %cst_17 {dimension_numbers = #tpu.dot_dimension_numbers<[1], [0], [0], [1], [0, 0, 1, 1], [], []>} : vector<32x256xf32>, vector<256x1xf32>, vector<32x1xf32> -> vector<32x1xf32>
    %c0_18 = arith.constant 0 : index
    %c0_19 = arith.constant 0 : index
    %22 = vector.load %arg8[%c0_18, %c0_19] : memref<32x1xf32, #tpu.memory_space<vmem>>, vector<32x1xf32>
    %23 = arith.addf %21, %22 : vector<32x1xf32>
    %c0_20 = arith.constant 0 : index
    %c0_21 = arith.constant 0 : index
    %24 = vector.load %arg9[%c0_20, %c0_21] : memref<32x256xf32, #tpu.memory_space<vmem>>, vector<32x256xf32>
    %cst_22 = arith.constant dense<0.000000e+00> : vector<32x1xf32>
    %25 = tpu.matmul %24, %19, %cst_22 {dimension_numbers = #tpu.dot_dimension_numbers<[1], [0], [0], [1], [0, 0, 1, 1], [], []>} : vector<32x256xf32>, vector<256x1xf32>, vector<32x1xf32> -> vector<32x1xf32>
    %c0_23 = arith.constant 0 : index
    %c0_24 = arith.constant 0 : index
    %26 = vector.load %arg10[%c0_23, %c0_24] : memref<32x1xf32, #tpu.memory_space<vmem>>, vector<32x1xf32>
    %27 = arith.addf %25, %26 : vector<32x1xf32>
    %c0_25 = arith.constant 0 : index
    %c0_26 = arith.constant 0 : index
    %c0_27 = arith.constant 0 : index
    %28 = vector.load %arg1[%c0_25, %c0_26, %c0_27] : memref<1x8x256xf32, #tpu.memory_space<vmem>>, vector<1x8x256xf32>
    %29 = vector.shape_cast %28 : vector<1x8x256xf32> to vector<8x256xf32>
    %c0_28 = arith.constant 0 : index
    %c0_29 = arith.constant 0 : index
    %30 = vector.load %arg11[%c0_28, %c0_29] : memref<144x8xf32, #tpu.memory_space<vmem>>, vector<144x8xf32>
    %cst_30 = arith.constant dense<0.000000e+00> : vector<144x256xf32>
    %31 = tpu.matmul %30, %29, %cst_30 {dimension_numbers = #tpu.dot_dimension_numbers<[1], [0], [0], [1], [0, 0, 1, 1], [], []>} : vector<144x8xf32>, vector<8x256xf32>, vector<144x256xf32> -> vector<144x256xf32>
    %32 = vector.extract_strided_slice %31 {offsets = [0, 0], sizes = [16, 256], strides = [1, 1]} : vector<144x256xf32> to vector<16x256xf32>
    %c0_31 = arith.constant 0 : index
    %c0_32 = arith.constant 0 : index
    %c0_33 = arith.constant 0 : index
    %33 = vector.load %arg13[%c0_31, %c0_32, %c0_33] : memref<9x256x64xf32, #tpu.memory_space<vmem>>, vector<1x256x64xf32>
    %34 = vector.shape_cast %33 : vector<1x256x64xf32> to vector<256x64xf32>
    %cst_34 = arith.constant dense<0.000000e+00> : vector<16x64xf32>
    %35 = tpu.matmul %32, %34, %cst_34 {dimension_numbers = #tpu.dot_dimension_numbers<[1], [0], [0], [1], [0, 0, 1, 1], [], []>} : vector<16x256xf32>, vector<256x64xf32>, vector<16x64xf32> -> vector<16x64xf32>
    %36 = vector.extract_strided_slice %31 {offsets = [16, 0], sizes = [16, 256], strides = [1, 1]} : vector<144x256xf32> to vector<16x256xf32>
    %c1 = arith.constant 1 : index
    %c0_35 = arith.constant 0 : index
    %c0_36 = arith.constant 0 : index
    %37 = vector.load %arg13[%c1, %c0_35, %c0_36] : memref<9x256x64xf32, #tpu.memory_space<vmem>>, vector<1x256x64xf32>
    %38 = vector.shape_cast %37 : vector<1x256x64xf32> to vector<256x64xf32>
    %cst_37 = arith.constant dense<0.000000e+00> : vector<16x64xf32>
    %39 = tpu.matmul %36, %38, %cst_37 {dimension_numbers = #tpu.dot_dimension_numbers<[1], [0], [0], [1], [0, 0, 1, 1], [], []>} : vector<16x256xf32>, vector<256x64xf32>, vector<16x64xf32> -> vector<16x64xf32>
    %40 = arith.addf %35, %39 : vector<16x64xf32>
    %41 = vector.extract_strided_slice %31 {offsets = [32, 0], sizes = [16, 256], strides = [1, 1]} : vector<144x256xf32> to vector<16x256xf32>
    %c2 = arith.constant 2 : index
    %c0_38 = arith.constant 0 : index
    %c0_39 = arith.constant 0 : index
    %42 = vector.load %arg13[%c2, %c0_38, %c0_39] : memref<9x256x64xf32, #tpu.memory_space<vmem>>, vector<1x256x64xf32>
    %43 = vector.shape_cast %42 : vector<1x256x64xf32> to vector<256x64xf32>
    %cst_40 = arith.constant dense<0.000000e+00> : vector<16x64xf32>
    %44 = tpu.matmul %41, %43, %cst_40 {dimension_numbers = #tpu.dot_dimension_numbers<[1], [0], [0], [1], [0, 0, 1, 1], [], []>} : vector<16x256xf32>, vector<256x64xf32>, vector<16x64xf32> -> vector<16x64xf32>
    %45 = arith.addf %40, %44 : vector<16x64xf32>
    %46 = vector.extract_strided_slice %31 {offsets = [48, 0], sizes = [16, 256], strides = [1, 1]} : vector<144x256xf32> to vector<16x256xf32>
    %c3 = arith.constant 3 : index
    %c0_41 = arith.constant 0 : index
    %c0_42 = arith.constant 0 : index
    %47 = vector.load %arg13[%c3, %c0_41, %c0_42] : memref<9x256x64xf32, #tpu.memory_space<vmem>>, vector<1x256x64xf32>
    %48 = vector.shape_cast %47 : vector<1x256x64xf32> to vector<256x64xf32>
    %cst_43 = arith.constant dense<0.000000e+00> : vector<16x64xf32>
    %49 = tpu.matmul %46, %48, %cst_43 {dimension_numbers = #tpu.dot_dimension_numbers<[1], [0], [0], [1], [0, 0, 1, 1], [], []>} : vector<16x256xf32>, vector<256x64xf32>, vector<16x64xf32> -> vector<16x64xf32>
    %50 = arith.addf %45, %49 : vector<16x64xf32>
    %51 = vector.extract_strided_slice %31 {offsets = [64, 0], sizes = [16, 256], strides = [1, 1]} : vector<144x256xf32> to vector<16x256xf32>
    %c4 = arith.constant 4 : index
    %c0_44 = arith.constant 0 : index
    %c0_45 = arith.constant 0 : index
    %52 = vector.load %arg13[%c4, %c0_44, %c0_45] : memref<9x256x64xf32, #tpu.memory_space<vmem>>, vector<1x256x64xf32>
    %53 = vector.shape_cast %52 : vector<1x256x64xf32> to vector<256x64xf32>
    %cst_46 = arith.constant dense<0.000000e+00> : vector<16x64xf32>
    %54 = tpu.matmul %51, %53, %cst_46 {dimension_numbers = #tpu.dot_dimension_numbers<[1], [0], [0], [1], [0, 0, 1, 1], [], []>} : vector<16x256xf32>, vector<256x64xf32>, vector<16x64xf32> -> vector<16x64xf32>
    %55 = arith.addf %50, %54 : vector<16x64xf32>
    %56 = vector.extract_strided_slice %31 {offsets = [80, 0], sizes = [16, 256], strides = [1, 1]} : vector<144x256xf32> to vector<16x256xf32>
    %c5 = arith.constant 5 : index
    %c0_47 = arith.constant 0 : index
    %c0_48 = arith.constant 0 : index
    %57 = vector.load %arg13[%c5, %c0_47, %c0_48] : memref<9x256x64xf32, #tpu.memory_space<vmem>>, vector<1x256x64xf32>
    %58 = vector.shape_cast %57 : vector<1x256x64xf32> to vector<256x64xf32>
    %cst_49 = arith.constant dense<0.000000e+00> : vector<16x64xf32>
    %59 = tpu.matmul %56, %58, %cst_49 {dimension_numbers = #tpu.dot_dimension_numbers<[1], [0], [0], [1], [0, 0, 1, 1], [], []>} : vector<16x256xf32>, vector<256x64xf32>, vector<16x64xf32> -> vector<16x64xf32>
    %60 = arith.addf %55, %59 : vector<16x64xf32>
    %61 = vector.extract_strided_slice %31 {offsets = [96, 0], sizes = [16, 256], strides = [1, 1]} : vector<144x256xf32> to vector<16x256xf32>
    %c6 = arith.constant 6 : index
    %c0_50 = arith.constant 0 : index
    %c0_51 = arith.constant 0 : index
    %62 = vector.load %arg13[%c6, %c0_50, %c0_51] : memref<9x256x64xf32, #tpu.memory_space<vmem>>, vector<1x256x64xf32>
    %63 = vector.shape_cast %62 : vector<1x256x64xf32> to vector<256x64xf32>
    %cst_52 = arith.constant dense<0.000000e+00> : vector<16x64xf32>
    %64 = tpu.matmul %61, %63, %cst_52 {dimension_numbers = #tpu.dot_dimension_numbers<[1], [0], [0], [1], [0, 0, 1, 1], [], []>} : vector<16x256xf32>, vector<256x64xf32>, vector<16x64xf32> -> vector<16x64xf32>
    %65 = arith.addf %60, %64 : vector<16x64xf32>
    %66 = vector.extract_strided_slice %31 {offsets = [112, 0], sizes = [16, 256], strides = [1, 1]} : vector<144x256xf32> to vector<16x256xf32>
    %c7 = arith.constant 7 : index
    %c0_53 = arith.constant 0 : index
    %c0_54 = arith.constant 0 : index
    %67 = vector.load %arg13[%c7, %c0_53, %c0_54] : memref<9x256x64xf32, #tpu.memory_space<vmem>>, vector<1x256x64xf32>
    %68 = vector.shape_cast %67 : vector<1x256x64xf32> to vector<256x64xf32>
    %cst_55 = arith.constant dense<0.000000e+00> : vector<16x64xf32>
    %69 = tpu.matmul %66, %68, %cst_55 {dimension_numbers = #tpu.dot_dimension_numbers<[1], [0], [0], [1], [0, 0, 1, 1], [], []>} : vector<16x256xf32>, vector<256x64xf32>, vector<16x64xf32> -> vector<16x64xf32>
    %70 = arith.addf %65, %69 : vector<16x64xf32>
    %71 = vector.extract_strided_slice %31 {offsets = [128, 0], sizes = [16, 256], strides = [1, 1]} : vector<144x256xf32> to vector<16x256xf32>
    %c8 = arith.constant 8 : index
    %c0_56 = arith.constant 0 : index
    %c0_57 = arith.constant 0 : index
    %72 = vector.load %arg13[%c8, %c0_56, %c0_57] : memref<9x256x64xf32, #tpu.memory_space<vmem>>, vector<1x256x64xf32>
    %73 = vector.shape_cast %72 : vector<1x256x64xf32> to vector<256x64xf32>
    %cst_58 = arith.constant dense<0.000000e+00> : vector<16x64xf32>
    %74 = tpu.matmul %71, %73, %cst_58 {dimension_numbers = #tpu.dot_dimension_numbers<[1], [0], [0], [1], [0, 0, 1, 1], [], []>} : vector<16x256xf32>, vector<256x64xf32>, vector<16x64xf32> -> vector<16x64xf32>
    %75 = arith.addf %70, %74 : vector<16x64xf32>
    %c0_59 = arith.constant 0 : index
    %c0_60 = arith.constant 0 : index
    %76 = vector.load %arg12[%c0_59, %c0_60] : memref<16x1xf32, #tpu.memory_space<vmem>>, vector<16x1xf32>
    %77 = vector.broadcast %76 : vector<16x1xf32> to vector<16x64xf32>
    %78 = arith.addf %75, %77 : vector<16x64xf32>
    %cst_61 = arith.constant 0.000000e+00 : f32
    %79 = vector.broadcast %cst_61 : f32 to vector<16x64xf32>
    %80 = arith.cmpf oge, %78, %79 : vector<16x64xf32>
    %cst_62 = arith.constant 2.000000e-01 : f32
    %81 = vector.broadcast %cst_62 : f32 to vector<16x64xf32>
    %82 = arith.mulf %81, %78 : vector<16x64xf32>
    %83 = arith.select %80, %78, %82 : vector<16x64xi1>, vector<16x64xf32>
    %c0_63 = arith.constant 0 : index
    %c0_64 = arith.constant 0 : index
    %84 = vector.load %arg14[%c0_63, %c0_64] : memref<288x16xf32, #tpu.memory_space<vmem>>, vector<288x16xf32>
    %cst_65 = arith.constant dense<0.000000e+00> : vector<288x64xf32>
    %85 = tpu.matmul %84, %83, %cst_65 {dimension_numbers = #tpu.dot_dimension_numbers<[1], [0], [0], [1], [0, 0, 1, 1], [], []>} : vector<288x16xf32>, vector<16x64xf32>, vector<288x64xf32> -> vector<288x64xf32>
    %86 = vector.extract_strided_slice %85 {offsets = [0, 0], sizes = [32, 64], strides = [1, 1]} : vector<288x64xf32> to vector<32x64xf32>
    %c0_66 = arith.constant 0 : index
    %c0_67 = arith.constant 0 : index
    %c0_68 = arith.constant 0 : index
    %87 = vector.load %arg16[%c0_66, %c0_67, %c0_68] : memref<9x64x16xf32, #tpu.memory_space<vmem>>, vector<1x64x16xf32>
    %88 = vector.shape_cast %87 : vector<1x64x16xf32> to vector<64x16xf32>
    %cst_69 = arith.constant dense<0.000000e+00> : vector<32x16xf32>
    %89 = tpu.matmul %86, %88, %cst_69 {dimension_numbers = #tpu.dot_dimension_numbers<[1], [0], [0], [1], [0, 0, 1, 1], [], []>} : vector<32x64xf32>, vector<64x16xf32>, vector<32x16xf32> -> vector<32x16xf32>
    %90 = vector.extract_strided_slice %85 {offsets = [32, 0], sizes = [32, 64], strides = [1, 1]} : vector<288x64xf32> to vector<32x64xf32>
    %c1_70 = arith.constant 1 : index
    %c0_71 = arith.constant 0 : index
    %c0_72 = arith.constant 0 : index
    %91 = vector.load %arg16[%c1_70, %c0_71, %c0_72] : memref<9x64x16xf32, #tpu.memory_space<vmem>>, vector<1x64x16xf32>
    %92 = vector.shape_cast %91 : vector<1x64x16xf32> to vector<64x16xf32>
    %cst_73 = arith.constant dense<0.000000e+00> : vector<32x16xf32>
    %93 = tpu.matmul %90, %92, %cst_73 {dimension_numbers = #tpu.dot_dimension_numbers<[1], [0], [0], [1], [0, 0, 1, 1], [], []>} : vector<32x64xf32>, vector<64x16xf32>, vector<32x16xf32> -> vector<32x16xf32>
    %94 = arith.addf %89, %93 : vector<32x16xf32>
    %95 = vector.extract_strided_slice %85 {offsets = [64, 0], sizes = [32, 64], strides = [1, 1]} : vector<288x64xf32> to vector<32x64xf32>
    %c2_74 = arith.constant 2 : index
    %c0_75 = arith.constant 0 : index
    %c0_76 = arith.constant 0 : index
    %96 = vector.load %arg16[%c2_74, %c0_75, %c0_76] : memref<9x64x16xf32, #tpu.memory_space<vmem>>, vector<1x64x16xf32>
    %97 = vector.shape_cast %96 : vector<1x64x16xf32> to vector<64x16xf32>
    %cst_77 = arith.constant dense<0.000000e+00> : vector<32x16xf32>
    %98 = tpu.matmul %95, %97, %cst_77 {dimension_numbers = #tpu.dot_dimension_numbers<[1], [0], [0], [1], [0, 0, 1, 1], [], []>} : vector<32x64xf32>, vector<64x16xf32>, vector<32x16xf32> -> vector<32x16xf32>
    %99 = arith.addf %94, %98 : vector<32x16xf32>
    %100 = vector.extract_strided_slice %85 {offsets = [96, 0], sizes = [32, 64], strides = [1, 1]} : vector<288x64xf32> to vector<32x64xf32>
    %c3_78 = arith.constant 3 : index
    %c0_79 = arith.constant 0 : index
    %c0_80 = arith.constant 0 : index
    %101 = vector.load %arg16[%c3_78, %c0_79, %c0_80] : memref<9x64x16xf32, #tpu.memory_space<vmem>>, vector<1x64x16xf32>
    %102 = vector.shape_cast %101 : vector<1x64x16xf32> to vector<64x16xf32>
    %cst_81 = arith.constant dense<0.000000e+00> : vector<32x16xf32>
    %103 = tpu.matmul %100, %102, %cst_81 {dimension_numbers = #tpu.dot_dimension_numbers<[1], [0], [0], [1], [0, 0, 1, 1], [], []>} : vector<32x64xf32>, vector<64x16xf32>, vector<32x16xf32> -> vector<32x16xf32>
    %104 = arith.addf %99, %103 : vector<32x16xf32>
    %105 = vector.extract_strided_slice %85 {offsets = [128, 0], sizes = [32, 64], strides = [1, 1]} : vector<288x64xf32> to vector<32x64xf32>
    %c4_82 = arith.constant 4 : index
    %c0_83 = arith.constant 0 : index
    %c0_84 = arith.constant 0 : index
    %106 = vector.load %arg16[%c4_82, %c0_83, %c0_84] : memref<9x64x16xf32, #tpu.memory_space<vmem>>, vector<1x64x16xf32>
    %107 = vector.shape_cast %106 : vector<1x64x16xf32> to vector<64x16xf32>
    %cst_85 = arith.constant dense<0.000000e+00> : vector<32x16xf32>
    %108 = tpu.matmul %105, %107, %cst_85 {dimension_numbers = #tpu.dot_dimension_numbers<[1], [0], [0], [1], [0, 0, 1, 1], [], []>} : vector<32x64xf32>, vector<64x16xf32>, vector<32x16xf32> -> vector<32x16xf32>
    %109 = arith.addf %104, %108 : vector<32x16xf32>
    %110 = vector.extract_strided_slice %85 {offsets = [160, 0], sizes = [32, 64], strides = [1, 1]} : vector<288x64xf32> to vector<32x64xf32>
    %c5_86 = arith.constant 5 : index
    %c0_87 = arith.constant 0 : index
    %c0_88 = arith.constant 0 : index
    %111 = vector.load %arg16[%c5_86, %c0_87, %c0_88] : memref<9x64x16xf32, #tpu.memory_space<vmem>>, vector<1x64x16xf32>
    %112 = vector.shape_cast %111 : vector<1x64x16xf32> to vector<64x16xf32>
    %cst_89 = arith.constant dense<0.000000e+00> : vector<32x16xf32>
    %113 = tpu.matmul %110, %112, %cst_89 {dimension_numbers = #tpu.dot_dimension_numbers<[1], [0], [0], [1], [0, 0, 1, 1], [], []>} : vector<32x64xf32>, vector<64x16xf32>, vector<32x16xf32> -> vector<32x16xf32>
    %114 = arith.addf %109, %113 : vector<32x16xf32>
    %115 = vector.extract_strided_slice %85 {offsets = [192, 0], sizes = [32, 64], strides = [1, 1]} : vector<288x64xf32> to vector<32x64xf32>
    %c6_90 = arith.constant 6 : index
    %c0_91 = arith.constant 0 : index
    %c0_92 = arith.constant 0 : index
    %116 = vector.load %arg16[%c6_90, %c0_91, %c0_92] : memref<9x64x16xf32, #tpu.memory_space<vmem>>, vector<1x64x16xf32>
    %117 = vector.shape_cast %116 : vector<1x64x16xf32> to vector<64x16xf32>
    %cst_93 = arith.constant dense<0.000000e+00> : vector<32x16xf32>
    %118 = tpu.matmul %115, %117, %cst_93 {dimension_numbers = #tpu.dot_dimension_numbers<[1], [0], [0], [1], [0, 0, 1, 1], [], []>} : vector<32x64xf32>, vector<64x16xf32>, vector<32x16xf32> -> vector<32x16xf32>
    %119 = arith.addf %114, %118 : vector<32x16xf32>
    %120 = vector.extract_strided_slice %85 {offsets = [224, 0], sizes = [32, 64], strides = [1, 1]} : vector<288x64xf32> to vector<32x64xf32>
    %c7_94 = arith.constant 7 : index
    %c0_95 = arith.constant 0 : index
    %c0_96 = arith.constant 0 : index
    %121 = vector.load %arg16[%c7_94, %c0_95, %c0_96] : memref<9x64x16xf32, #tpu.memory_space<vmem>>, vector<1x64x16xf32>
    %122 = vector.shape_cast %121 : vector<1x64x16xf32> to vector<64x16xf32>
    %cst_97 = arith.constant dense<0.000000e+00> : vector<32x16xf32>
    %123 = tpu.matmul %120, %122, %cst_97 {dimension_numbers = #tpu.dot_dimension_numbers<[1], [0], [0], [1], [0, 0, 1, 1], [], []>} : vector<32x64xf32>, vector<64x16xf32>, vector<32x16xf32> -> vector<32x16xf32>
    %124 = arith.addf %119, %123 : vector<32x16xf32>
    %125 = vector.extract_strided_slice %85 {offsets = [256, 0], sizes = [32, 64], strides = [1, 1]} : vector<288x64xf32> to vector<32x64xf32>
    %c8_98 = arith.constant 8 : index
    %c0_99 = arith.constant 0 : index
    %c0_100 = arith.constant 0 : index
    %126 = vector.load %arg16[%c8_98, %c0_99, %c0_100] : memref<9x64x16xf32, #tpu.memory_space<vmem>>, vector<1x64x16xf32>
    %127 = vector.shape_cast %126 : vector<1x64x16xf32> to vector<64x16xf32>
    %cst_101 = arith.constant dense<0.000000e+00> : vector<32x16xf32>
    %128 = tpu.matmul %125, %127, %cst_101 {dimension_numbers = #tpu.dot_dimension_numbers<[1], [0], [0], [1], [0, 0, 1, 1], [], []>} : vector<32x64xf32>, vector<64x16xf32>, vector<32x16xf32> -> vector<32x16xf32>
    %129 = arith.addf %124, %128 : vector<32x16xf32>
    %c0_102 = arith.constant 0 : index
    %c0_103 = arith.constant 0 : index
    %130 = vector.load %arg15[%c0_102, %c0_103] : memref<32x1xf32, #tpu.memory_space<vmem>>, vector<32x1xf32>
    %131 = vector.broadcast %130 : vector<32x1xf32> to vector<32x16xf32>
    %132 = arith.addf %129, %131 : vector<32x16xf32>
    %cst_104 = arith.constant dense<0.000000e+00> : vector<32xf32>
    %133 = vector.multi_reduction <add>, %132, %cst_104 [1] : vector<32x16xf32> to vector<32xf32>
    %134 = vector.shape_cast %133 : vector<32xf32> to vector<32x1xf32>
    %cst_105 = arith.constant 1.600000e+01 : f32
    %135 = vector.broadcast %cst_105 : f32 to vector<32x1xf32>
    %136 = arith.divf %134, %135 : vector<32x1xf32>
    %137 = vector.broadcast %136 : vector<32x1xf32> to vector<32x16xf32>
    %138 = arith.subf %132, %137 : vector<32x16xf32>
    %139 = arith.mulf %138, %138 : vector<32x16xf32>
    %cst_106 = arith.constant dense<0.000000e+00> : vector<32xf32>
    %140 = vector.multi_reduction <add>, %139, %cst_106 [1] : vector<32x16xf32> to vector<32xf32>
    %141 = vector.shape_cast %140 : vector<32xf32> to vector<32x1xf32>
    %cst_107 = arith.constant 1.600000e+01 : f32
    %142 = vector.broadcast %cst_107 : f32 to vector<32x1xf32>
    %143 = arith.divf %141, %142 : vector<32x1xf32>
    %144 = vector.broadcast %136 : vector<32x1xf32> to vector<32x16xf32>
    %145 = arith.subf %132, %144 : vector<32x16xf32>
    %cst_108 = arith.constant 9.99999974E-6 : f32
    %146 = vector.broadcast %cst_108 : f32 to vector<32x1xf32>
    %147 = arith.addf %143, %146 : vector<32x1xf32>
    %148 = math.rsqrt %147 : vector<32x1xf32>
    %149 = vector.broadcast %148 : vector<32x1xf32> to vector<32x16xf32>
    %150 = arith.mulf %145, %149 : vector<32x16xf32>
    %151 = vector.broadcast %27 : vector<32x1xf32> to vector<32x16xf32>
    %152 = arith.mulf %150, %151 : vector<32x16xf32>
    %153 = vector.broadcast %23 : vector<32x1xf32> to vector<32x16xf32>
    %154 = arith.addf %152, %153 : vector<32x16xf32>
    %cst_109 = arith.constant 0.000000e+00 : f32
    %155 = vector.broadcast %cst_109 : f32 to vector<32x16xf32>
    %156 = arith.cmpf oge, %154, %155 : vector<32x16xf32>
    %cst_110 = arith.constant 2.000000e-01 : f32
    %157 = vector.broadcast %cst_110 : f32 to vector<32x16xf32>
    %158 = arith.mulf %157, %154 : vector<32x16xf32>
    %159 = arith.select %156, %154, %158 : vector<32x16xi1>, vector<32x16xf32>
    %c0_111 = arith.constant 0 : index
    %c0_112 = arith.constant 0 : index
    %160 = vector.load %arg17[%c0_111, %c0_112] : memref<256x32xf32, #tpu.memory_space<vmem>>, vector<256x32xf32>
    %cst_113 = arith.constant dense<0.000000e+00> : vector<256x16xf32>
    %161 = tpu.matmul %160, %159, %cst_113 {dimension_numbers = #tpu.dot_dimension_numbers<[1], [0], [0], [1], [0, 0, 1, 1], [], []>} : vector<256x32xf32>, vector<32x16xf32>, vector<256x16xf32> -> vector<256x16xf32>
    %162 = vector.extract_strided_slice %161 {offsets = [0, 0], sizes = [16, 16], strides = [1, 1]} : vector<256x16xf32> to vector<16x16xf32>
    %c0_114 = arith.constant 0 : index
    %c0_115 = arith.constant 0 : index
    %c0_116 = arith.constant 0 : index
    %163 = vector.load %arg19[%c0_114, %c0_115, %c0_116] : memref<16x16x64xf32, #tpu.memory_space<vmem>>, vector<1x16x64xf32>
    %164 = vector.shape_cast %163 : vector<1x16x64xf32> to vector<16x64xf32>
    %cst_117 = arith.constant dense<0.000000e+00> : vector<16x64xf32>
    %165 = tpu.matmul %162, %164, %cst_117 {dimension_numbers = #tpu.dot_dimension_numbers<[1], [0], [0], [1], [0, 0, 1, 1], [], []>} : vector<16x16xf32>, vector<16x64xf32>, vector<16x64xf32> -> vector<16x64xf32>
    %166 = vector.extract_strided_slice %161 {offsets = [16, 0], sizes = [16, 16], strides = [1, 1]} : vector<256x16xf32> to vector<16x16xf32>
    %c1_118 = arith.constant 1 : index
    %c0_119 = arith.constant 0 : index
    %c0_120 = arith.constant 0 : index
    %167 = vector.load %arg19[%c1_118, %c0_119, %c0_120] : memref<16x16x64xf32, #tpu.memory_space<vmem>>, vector<1x16x64xf32>
    %168 = vector.shape_cast %167 : vector<1x16x64xf32> to vector<16x64xf32>
    %cst_121 = arith.constant dense<0.000000e+00> : vector<16x64xf32>
    %169 = tpu.matmul %166, %168, %cst_121 {dimension_numbers = #tpu.dot_dimension_numbers<[1], [0], [0], [1], [0, 0, 1, 1], [], []>} : vector<16x16xf32>, vector<16x64xf32>, vector<16x64xf32> -> vector<16x64xf32>
    %170 = arith.addf %165, %169 : vector<16x64xf32>
    %171 = vector.extract_strided_slice %161 {offsets = [32, 0], sizes = [16, 16], strides = [1, 1]} : vector<256x16xf32> to vector<16x16xf32>
    %c2_122 = arith.constant 2 : index
    %c0_123 = arith.constant 0 : index
    %c0_124 = arith.constant 0 : index
    %172 = vector.load %arg19[%c2_122, %c0_123, %c0_124] : memref<16x16x64xf32, #tpu.memory_space<vmem>>, vector<1x16x64xf32>
    %173 = vector.shape_cast %172 : vector<1x16x64xf32> to vector<16x64xf32>
    %cst_125 = arith.constant dense<0.000000e+00> : vector<16x64xf32>
    %174 = tpu.matmul %171, %173, %cst_125 {dimension_numbers = #tpu.dot_dimension_numbers<[1], [0], [0], [1], [0, 0, 1, 1], [], []>} : vector<16x16xf32>, vector<16x64xf32>, vector<16x64xf32> -> vector<16x64xf32>
    %175 = arith.addf %170, %174 : vector<16x64xf32>
    %176 = vector.extract_strided_slice %161 {offsets = [48, 0], sizes = [16, 16], strides = [1, 1]} : vector<256x16xf32> to vector<16x16xf32>
    %c3_126 = arith.constant 3 : index
    %c0_127 = arith.constant 0 : index
    %c0_128 = arith.constant 0 : index
    %177 = vector.load %arg19[%c3_126, %c0_127, %c0_128] : memref<16x16x64xf32, #tpu.memory_space<vmem>>, vector<1x16x64xf32>
    %178 = vector.shape_cast %177 : vector<1x16x64xf32> to vector<16x64xf32>
    %cst_129 = arith.constant dense<0.000000e+00> : vector<16x64xf32>
    %179 = tpu.matmul %176, %178, %cst_129 {dimension_numbers = #tpu.dot_dimension_numbers<[1], [0], [0], [1], [0, 0, 1, 1], [], []>} : vector<16x16xf32>, vector<16x64xf32>, vector<16x64xf32> -> vector<16x64xf32>
    %180 = arith.addf %175, %179 : vector<16x64xf32>
    %181 = vector.extract_strided_slice %161 {offsets = [64, 0], sizes = [16, 16], strides = [1, 1]} : vector<256x16xf32> to vector<16x16xf32>
    %c4_130 = arith.constant 4 : index
    %c0_131 = arith.constant 0 : index
    %c0_132 = arith.constant 0 : index
    %182 = vector.load %arg19[%c4_130, %c0_131, %c0_132] : memref<16x16x64xf32, #tpu.memory_space<vmem>>, vector<1x16x64xf32>
    %183 = vector.shape_cast %182 : vector<1x16x64xf32> to vector<16x64xf32>
    %cst_133 = arith.constant dense<0.000000e+00> : vector<16x64xf32>
    %184 = tpu.matmul %181, %183, %cst_133 {dimension_numbers = #tpu.dot_dimension_numbers<[1], [0], [0], [1], [0, 0, 1, 1], [], []>} : vector<16x16xf32>, vector<16x64xf32>, vector<16x64xf32> -> vector<16x64xf32>
    %185 = arith.addf %180, %184 : vector<16x64xf32>
    %186 = vector.extract_strided_slice %161 {offsets = [80, 0], sizes = [16, 16], strides = [1, 1]} : vector<256x16xf32> to vector<16x16xf32>
    %c5_134 = arith.constant 5 : index
    %c0_135 = arith.constant 0 : index
    %c0_136 = arith.constant 0 : index
    %187 = vector.load %arg19[%c5_134, %c0_135, %c0_136] : memref<16x16x64xf32, #tpu.memory_space<vmem>>, vector<1x16x64xf32>
    %188 = vector.shape_cast %187 : vector<1x16x64xf32> to vector<16x64xf32>
    %cst_137 = arith.constant dense<0.000000e+00> : vector<16x64xf32>
    %189 = tpu.matmul %186, %188, %cst_137 {dimension_numbers = #tpu.dot_dimension_numbers<[1], [0], [0], [1], [0, 0, 1, 1], [], []>} : vector<16x16xf32>, vector<16x64xf32>, vector<16x64xf32> -> vector<16x64xf32>
    %190 = arith.addf %185, %189 : vector<16x64xf32>
    %191 = vector.extract_strided_slice %161 {offsets = [96, 0], sizes = [16, 16], strides = [1, 1]} : vector<256x16xf32> to vector<16x16xf32>
    %c6_138 = arith.constant 6 : index
    %c0_139 = arith.constant 0 : index
    %c0_140 = arith.constant 0 : index
    %192 = vector.load %arg19[%c6_138, %c0_139, %c0_140] : memref<16x16x64xf32, #tpu.memory_space<vmem>>, vector<1x16x64xf32>
    %193 = vector.shape_cast %192 : vector<1x16x64xf32> to vector<16x64xf32>
    %cst_141 = arith.constant dense<0.000000e+00> : vector<16x64xf32>
    %194 = tpu.matmul %191, %193, %cst_141 {dimension_numbers = #tpu.dot_dimension_numbers<[1], [0], [0], [1], [0, 0, 1, 1], [], []>} : vector<16x16xf32>, vector<16x64xf32>, vector<16x64xf32> -> vector<16x64xf32>
    %195 = arith.addf %190, %194 : vector<16x64xf32>
    %196 = vector.extract_strided_slice %161 {offsets = [112, 0], sizes = [16, 16], strides = [1, 1]} : vector<256x16xf32> to vector<16x16xf32>
    %c7_142 = arith.constant 7 : index
    %c0_143 = arith.constant 0 : index
    %c0_144 = arith.constant 0 : index
    %197 = vector.load %arg19[%c7_142, %c0_143, %c0_144] : memref<16x16x64xf32, #tpu.memory_space<vmem>>, vector<1x16x64xf32>
    %198 = vector.shape_cast %197 : vector<1x16x64xf32> to vector<16x64xf32>
    %cst_145 = arith.constant dense<0.000000e+00> : vector<16x64xf32>
    %199 = tpu.matmul %196, %198, %cst_145 {dimension_numbers = #tpu.dot_dimension_numbers<[1], [0], [0], [1], [0, 0, 1, 1], [], []>} : vector<16x16xf32>, vector<16x64xf32>, vector<16x64xf32> -> vector<16x64xf32>
    %200 = arith.addf %195, %199 : vector<16x64xf32>
    %201 = vector.extract_strided_slice %161 {offsets = [128, 0], sizes = [16, 16], strides = [1, 1]} : vector<256x16xf32> to vector<16x16xf32>
    %c8_146 = arith.constant 8 : index
    %c0_147 = arith.constant 0 : index
    %c0_148 = arith.constant 0 : index
    %202 = vector.load %arg19[%c8_146, %c0_147, %c0_148] : memref<16x16x64xf32, #tpu.memory_space<vmem>>, vector<1x16x64xf32>
    %203 = vector.shape_cast %202 : vector<1x16x64xf32> to vector<16x64xf32>
    %cst_149 = arith.constant dense<0.000000e+00> : vector<16x64xf32>
    %204 = tpu.matmul %201, %203, %cst_149 {dimension_numbers = #tpu.dot_dimension_numbers<[1], [0], [0], [1], [0, 0, 1, 1], [], []>} : vector<16x16xf32>, vector<16x64xf32>, vector<16x64xf32> -> vector<16x64xf32>
    %205 = arith.addf %200, %204 : vector<16x64xf32>
    %206 = vector.extract_strided_slice %161 {offsets = [144, 0], sizes = [16, 16], strides = [1, 1]} : vector<256x16xf32> to vector<16x16xf32>
    %c9 = arith.constant 9 : index
    %c0_150 = arith.constant 0 : index
    %c0_151 = arith.constant 0 : index
    %207 = vector.load %arg19[%c9, %c0_150, %c0_151] : memref<16x16x64xf32, #tpu.memory_space<vmem>>, vector<1x16x64xf32>
    %208 = vector.shape_cast %207 : vector<1x16x64xf32> to vector<16x64xf32>
    %cst_152 = arith.constant dense<0.000000e+00> : vector<16x64xf32>
    %209 = tpu.matmul %206, %208, %cst_152 {dimension_numbers = #tpu.dot_dimension_numbers<[1], [0], [0], [1], [0, 0, 1, 1], [], []>} : vector<16x16xf32>, vector<16x64xf32>, vector<16x64xf32> -> vector<16x64xf32>
    %210 = arith.addf %205, %209 : vector<16x64xf32>
    %211 = vector.extract_strided_slice %161 {offsets = [160, 0], sizes = [16, 16], strides = [1, 1]} : vector<256x16xf32> to vector<16x16xf32>
    %c10 = arith.constant 10 : index
    %c0_153 = arith.constant 0 : index
    %c0_154 = arith.constant 0 : index
    %212 = vector.load %arg19[%c10, %c0_153, %c0_154] : memref<16x16x64xf32, #tpu.memory_space<vmem>>, vector<1x16x64xf32>
    %213 = vector.shape_cast %212 : vector<1x16x64xf32> to vector<16x64xf32>
    %cst_155 = arith.constant dense<0.000000e+00> : vector<16x64xf32>
    %214 = tpu.matmul %211, %213, %cst_155 {dimension_numbers = #tpu.dot_dimension_numbers<[1], [0], [0], [1], [0, 0, 1, 1], [], []>} : vector<16x16xf32>, vector<16x64xf32>, vector<16x64xf32> -> vector<16x64xf32>
    %215 = arith.addf %210, %214 : vector<16x64xf32>
    %216 = vector.extract_strided_slice %161 {offsets = [176, 0], sizes = [16, 16], strides = [1, 1]} : vector<256x16xf32> to vector<16x16xf32>
    %c11 = arith.constant 11 : index
    %c0_156 = arith.constant 0 : index
    %c0_157 = arith.constant 0 : index
    %217 = vector.load %arg19[%c11, %c0_156, %c0_157] : memref<16x16x64xf32, #tpu.memory_space<vmem>>, vector<1x16x64xf32>
    %218 = vector.shape_cast %217 : vector<1x16x64xf32> to vector<16x64xf32>
    %cst_158 = arith.constant dense<0.000000e+00> : vector<16x64xf32>
    %219 = tpu.matmul %216, %218, %cst_158 {dimension_numbers = #tpu.dot_dimension_numbers<[1], [0], [0], [1], [0, 0, 1, 1], [], []>} : vector<16x16xf32>, vector<16x64xf32>, vector<16x64xf32> -> vector<16x64xf32>
    %220 = arith.addf %215, %219 : vector<16x64xf32>
    %221 = vector.extract_strided_slice %161 {offsets = [192, 0], sizes = [16, 16], strides = [1, 1]} : vector<256x16xf32> to vector<16x16xf32>
    %c12 = arith.constant 12 : index
    %c0_159 = arith.constant 0 : index
    %c0_160 = arith.constant 0 : index
    %222 = vector.load %arg19[%c12, %c0_159, %c0_160] : memref<16x16x64xf32, #tpu.memory_space<vmem>>, vector<1x16x64xf32>
    %223 = vector.shape_cast %222 : vector<1x16x64xf32> to vector<16x64xf32>
    %cst_161 = arith.constant dense<0.000000e+00> : vector<16x64xf32>
    %224 = tpu.matmul %221, %223, %cst_161 {dimension_numbers = #tpu.dot_dimension_numbers<[1], [0], [0], [1], [0, 0, 1, 1], [], []>} : vector<16x16xf32>, vector<16x64xf32>, vector<16x64xf32> -> vector<16x64xf32>
    %225 = arith.addf %220, %224 : vector<16x64xf32>
    %226 = vector.extract_strided_slice %161 {offsets = [208, 0], sizes = [16, 16], strides = [1, 1]} : vector<256x16xf32> to vector<16x16xf32>
    %c13 = arith.constant 13 : index
    %c0_162 = arith.constant 0 : index
    %c0_163 = arith.constant 0 : index
    %227 = vector.load %arg19[%c13, %c0_162, %c0_163] : memref<16x16x64xf32, #tpu.memory_space<vmem>>, vector<1x16x64xf32>
    %228 = vector.shape_cast %227 : vector<1x16x64xf32> to vector<16x64xf32>
    %cst_164 = arith.constant dense<0.000000e+00> : vector<16x64xf32>
    %229 = tpu.matmul %226, %228, %cst_164 {dimension_numbers = #tpu.dot_dimension_numbers<[1], [0], [0], [1], [0, 0, 1, 1], [], []>} : vector<16x16xf32>, vector<16x64xf32>, vector<16x64xf32> -> vector<16x64xf32>
    %230 = arith.addf %225, %229 : vector<16x64xf32>
    %231 = vector.extract_strided_slice %161 {offsets = [224, 0], sizes = [16, 16], strides = [1, 1]} : vector<256x16xf32> to vector<16x16xf32>
    %c14 = arith.constant 14 : index
    %c0_165 = arith.constant 0 : index
    %c0_166 = arith.constant 0 : index
    %232 = vector.load %arg19[%c14, %c0_165, %c0_166] : memref<16x16x64xf32, #tpu.memory_space<vmem>>, vector<1x16x64xf32>
    %233 = vector.shape_cast %232 : vector<1x16x64xf32> to vector<16x64xf32>
    %cst_167 = arith.constant dense<0.000000e+00> : vector<16x64xf32>
    %234 = tpu.matmul %231, %233, %cst_167 {dimension_numbers = #tpu.dot_dimension_numbers<[1], [0], [0], [1], [0, 0, 1, 1], [], []>} : vector<16x16xf32>, vector<16x64xf32>, vector<16x64xf32> -> vector<16x64xf32>
    %235 = arith.addf %230, %234 : vector<16x64xf32>
    %236 = vector.extract_strided_slice %161 {offsets = [240, 0], sizes = [16, 16], strides = [1, 1]} : vector<256x16xf32> to vector<16x16xf32>
    %c15 = arith.constant 15 : index
    %c0_168 = arith.constant 0 : index
    %c0_169 = arith.constant 0 : index
    %237 = vector.load %arg19[%c15, %c0_168, %c0_169] : memref<16x16x64xf32, #tpu.memory_space<vmem>>, vector<1x16x64xf32>
    %238 = vector.shape_cast %237 : vector<1x16x64xf32> to vector<16x64xf32>
    %cst_170 = arith.constant dense<0.000000e+00> : vector<16x64xf32>
    %239 = tpu.matmul %236, %238, %cst_170 {dimension_numbers = #tpu.dot_dimension_numbers<[1], [0], [0], [1], [0, 0, 1, 1], [], []>} : vector<16x16xf32>, vector<16x64xf32>, vector<16x64xf32> -> vector<16x64xf32>
    %240 = arith.addf %235, %239 : vector<16x64xf32>
    %c0_171 = arith.constant 0 : index
    %c0_172 = arith.constant 0 : index
    %241 = vector.load %arg18[%c0_171, %c0_172] : memref<16x1xf32, #tpu.memory_space<vmem>>, vector<16x1xf32>
    %242 = vector.broadcast %241 : vector<16x1xf32> to vector<16x64xf32>
    %243 = arith.addf %240, %242 : vector<16x64xf32>
    %cst_173 = arith.constant 0.000000e+00 : f32
    %244 = vector.broadcast %cst_173 : f32 to vector<16x64xf32>
    %245 = arith.cmpf oge, %243, %244 : vector<16x64xf32>
    %cst_174 = arith.constant 2.000000e-01 : f32
    %246 = vector.broadcast %cst_174 : f32 to vector<16x64xf32>
    %247 = arith.mulf %246, %243 : vector<16x64xf32>
    %248 = arith.select %245, %243, %247 : vector<16x64xi1>, vector<16x64xf32>
    %c0_175 = arith.constant 0 : index
    %c0_176 = arith.constant 0 : index
    %249 = vector.load %arg20[%c0_175, %c0_176] : memref<128x16xf32, #tpu.memory_space<vmem>>, vector<128x16xf32>
    %cst_177 = arith.constant dense<0.000000e+00> : vector<128x64xf32>
    %250 = tpu.matmul %249, %248, %cst_177 {dimension_numbers = #tpu.dot_dimension_numbers<[1], [0], [0], [1], [0, 0, 1, 1], [], []>} : vector<128x16xf32>, vector<16x64xf32>, vector<128x64xf32> -> vector<128x64xf32>
    %251 = vector.extract_strided_slice %250 {offsets = [0, 0], sizes = [8, 64], strides = [1, 1]} : vector<128x64xf32> to vector<8x64xf32>
    %c0_178 = arith.constant 0 : index
    %c0_179 = arith.constant 0 : index
    %c0_180 = arith.constant 0 : index
    %252 = vector.load %arg22[%c0_178, %c0_179, %c0_180] : memref<16x64x256xf32, #tpu.memory_space<vmem>>, vector<1x64x256xf32>
    %253 = vector.shape_cast %252 : vector<1x64x256xf32> to vector<64x256xf32>
    %cst_181 = arith.constant dense<0.000000e+00> : vector<8x256xf32>
    %254 = tpu.matmul %251, %253, %cst_181 {dimension_numbers = #tpu.dot_dimension_numbers<[1], [0], [0], [1], [0, 0, 1, 1], [], []>} : vector<8x64xf32>, vector<64x256xf32>, vector<8x256xf32> -> vector<8x256xf32>
    %255 = vector.extract_strided_slice %250 {offsets = [8, 0], sizes = [8, 64], strides = [1, 1]} : vector<128x64xf32> to vector<8x64xf32>
    %c1_182 = arith.constant 1 : index
    %c0_183 = arith.constant 0 : index
    %c0_184 = arith.constant 0 : index
    %256 = vector.load %arg22[%c1_182, %c0_183, %c0_184] : memref<16x64x256xf32, #tpu.memory_space<vmem>>, vector<1x64x256xf32>
    %257 = vector.shape_cast %256 : vector<1x64x256xf32> to vector<64x256xf32>
    %cst_185 = arith.constant dense<0.000000e+00> : vector<8x256xf32>
    %258 = tpu.matmul %255, %257, %cst_185 {dimension_numbers = #tpu.dot_dimension_numbers<[1], [0], [0], [1], [0, 0, 1, 1], [], []>} : vector<8x64xf32>, vector<64x256xf32>, vector<8x256xf32> -> vector<8x256xf32>
    %259 = arith.addf %254, %258 : vector<8x256xf32>
    %260 = vector.extract_strided_slice %250 {offsets = [16, 0], sizes = [8, 64], strides = [1, 1]} : vector<128x64xf32> to vector<8x64xf32>
    %c2_186 = arith.constant 2 : index
    %c0_187 = arith.constant 0 : index
    %c0_188 = arith.constant 0 : index
    %261 = vector.load %arg22[%c2_186, %c0_187, %c0_188] : memref<16x64x256xf32, #tpu.memory_space<vmem>>, vector<1x64x256xf32>
    %262 = vector.shape_cast %261 : vector<1x64x256xf32> to vector<64x256xf32>
    %cst_189 = arith.constant dense<0.000000e+00> : vector<8x256xf32>
    %263 = tpu.matmul %260, %262, %cst_189 {dimension_numbers = #tpu.dot_dimension_numbers<[1], [0], [0], [1], [0, 0, 1, 1], [], []>} : vector<8x64xf32>, vector<64x256xf32>, vector<8x256xf32> -> vector<8x256xf32>
    %264 = arith.addf %259, %263 : vector<8x256xf32>
    %265 = vector.extract_strided_slice %250 {offsets = [24, 0], sizes = [8, 64], strides = [1, 1]} : vector<128x64xf32> to vector<8x64xf32>
    %c3_190 = arith.constant 3 : index
    %c0_191 = arith.constant 0 : index
    %c0_192 = arith.constant 0 : index
    %266 = vector.load %arg22[%c3_190, %c0_191, %c0_192] : memref<16x64x256xf32, #tpu.memory_space<vmem>>, vector<1x64x256xf32>
    %267 = vector.shape_cast %266 : vector<1x64x256xf32> to vector<64x256xf32>
    %cst_193 = arith.constant dense<0.000000e+00> : vector<8x256xf32>
    %268 = tpu.matmul %265, %267, %cst_193 {dimension_numbers = #tpu.dot_dimension_numbers<[1], [0], [0], [1], [0, 0, 1, 1], [], []>} : vector<8x64xf32>, vector<64x256xf32>, vector<8x256xf32> -> vector<8x256xf32>
    %269 = arith.addf %264, %268 : vector<8x256xf32>
    %270 = vector.extract_strided_slice %250 {offsets = [32, 0], sizes = [8, 64], strides = [1, 1]} : vector<128x64xf32> to vector<8x64xf32>
    %c4_194 = arith.constant 4 : index
    %c0_195 = arith.constant 0 : index
    %c0_196 = arith.constant 0 : index
    %271 = vector.load %arg22[%c4_194, %c0_195, %c0_196] : memref<16x64x256xf32, #tpu.memory_space<vmem>>, vector<1x64x256xf32>
    %272 = vector.shape_cast %271 : vector<1x64x256xf32> to vector<64x256xf32>
    %cst_197 = arith.constant dense<0.000000e+00> : vector<8x256xf32>
    %273 = tpu.matmul %270, %272, %cst_197 {dimension_numbers = #tpu.dot_dimension_numbers<[1], [0], [0], [1], [0, 0, 1, 1], [], []>} : vector<8x64xf32>, vector<64x256xf32>, vector<8x256xf32> -> vector<8x256xf32>
    %274 = arith.addf %269, %273 : vector<8x256xf32>
    %275 = vector.extract_strided_slice %250 {offsets = [40, 0], sizes = [8, 64], strides = [1, 1]} : vector<128x64xf32> to vector<8x64xf32>
    %c5_198 = arith.constant 5 : index
    %c0_199 = arith.constant 0 : index
    %c0_200 = arith.constant 0 : index
    %276 = vector.load %arg22[%c5_198, %c0_199, %c0_200] : memref<16x64x256xf32, #tpu.memory_space<vmem>>, vector<1x64x256xf32>
    %277 = vector.shape_cast %276 : vector<1x64x256xf32> to vector<64x256xf32>
    %cst_201 = arith.constant dense<0.000000e+00> : vector<8x256xf32>
    %278 = tpu.matmul %275, %277, %cst_201 {dimension_numbers = #tpu.dot_dimension_numbers<[1], [0], [0], [1], [0, 0, 1, 1], [], []>} : vector<8x64xf32>, vector<64x256xf32>, vector<8x256xf32> -> vector<8x256xf32>
    %279 = arith.addf %274, %278 : vector<8x256xf32>
    %280 = vector.extract_strided_slice %250 {offsets = [48, 0], sizes = [8, 64], strides = [1, 1]} : vector<128x64xf32> to vector<8x64xf32>
    %c6_202 = arith.constant 6 : index
    %c0_203 = arith.constant 0 : index
    %c0_204 = arith.constant 0 : index
    %281 = vector.load %arg22[%c6_202, %c0_203, %c0_204] : memref<16x64x256xf32, #tpu.memory_space<vmem>>, vector<1x64x256xf32>
    %282 = vector.shape_cast %281 : vector<1x64x256xf32> to vector<64x256xf32>
    %cst_205 = arith.constant dense<0.000000e+00> : vector<8x256xf32>
    %283 = tpu.matmul %280, %282, %cst_205 {dimension_numbers = #tpu.dot_dimension_numbers<[1], [0], [0], [1], [0, 0, 1, 1], [], []>} : vector<8x64xf32>, vector<64x256xf32>, vector<8x256xf32> -> vector<8x256xf32>
    %284 = arith.addf %279, %283 : vector<8x256xf32>
    %285 = vector.extract_strided_slice %250 {offsets = [56, 0], sizes = [8, 64], strides = [1, 1]} : vector<128x64xf32> to vector<8x64xf32>
    %c7_206 = arith.constant 7 : index
    %c0_207 = arith.constant 0 : index
    %c0_208 = arith.constant 0 : index
    %286 = vector.load %arg22[%c7_206, %c0_207, %c0_208] : memref<16x64x256xf32, #tpu.memory_space<vmem>>, vector<1x64x256xf32>
    %287 = vector.shape_cast %286 : vector<1x64x256xf32> to vector<64x256xf32>
    %cst_209 = arith.constant dense<0.000000e+00> : vector<8x256xf32>
    %288 = tpu.matmul %285, %287, %cst_209 {dimension_numbers = #tpu.dot_dimension_numbers<[1], [0], [0], [1], [0, 0, 1, 1], [], []>} : vector<8x64xf32>, vector<64x256xf32>, vector<8x256xf32> -> vector<8x256xf32>
    %289 = arith.addf %284, %288 : vector<8x256xf32>
    %290 = vector.extract_strided_slice %250 {offsets = [64, 0], sizes = [8, 64], strides = [1, 1]} : vector<128x64xf32> to vector<8x64xf32>
    %c8_210 = arith.constant 8 : index
    %c0_211 = arith.constant 0 : index
    %c0_212 = arith.constant 0 : index
    %291 = vector.load %arg22[%c8_210, %c0_211, %c0_212] : memref<16x64x256xf32, #tpu.memory_space<vmem>>, vector<1x64x256xf32>
    %292 = vector.shape_cast %291 : vector<1x64x256xf32> to vector<64x256xf32>
    %cst_213 = arith.constant dense<0.000000e+00> : vector<8x256xf32>
    %293 = tpu.matmul %290, %292, %cst_213 {dimension_numbers = #tpu.dot_dimension_numbers<[1], [0], [0], [1], [0, 0, 1, 1], [], []>} : vector<8x64xf32>, vector<64x256xf32>, vector<8x256xf32> -> vector<8x256xf32>
    %294 = arith.addf %289, %293 : vector<8x256xf32>
    %295 = vector.extract_strided_slice %250 {offsets = [72, 0], sizes = [8, 64], strides = [1, 1]} : vector<128x64xf32> to vector<8x64xf32>
    %c9_214 = arith.constant 9 : index
    %c0_215 = arith.constant 0 : index
    %c0_216 = arith.constant 0 : index
    %296 = vector.load %arg22[%c9_214, %c0_215, %c0_216] : memref<16x64x256xf32, #tpu.memory_space<vmem>>, vector<1x64x256xf32>
    %297 = vector.shape_cast %296 : vector<1x64x256xf32> to vector<64x256xf32>
    %cst_217 = arith.constant dense<0.000000e+00> : vector<8x256xf32>
    %298 = tpu.matmul %295, %297, %cst_217 {dimension_numbers = #tpu.dot_dimension_numbers<[1], [0], [0], [1], [0, 0, 1, 1], [], []>} : vector<8x64xf32>, vector<64x256xf32>, vector<8x256xf32> -> vector<8x256xf32>
    %299 = arith.addf %294, %298 : vector<8x256xf32>
    %300 = vector.extract_strided_slice %250 {offsets = [80, 0], sizes = [8, 64], strides = [1, 1]} : vector<128x64xf32> to vector<8x64xf32>
    %c10_218 = arith.constant 10 : index
    %c0_219 = arith.constant 0 : index
    %c0_220 = arith.constant 0 : index
    %301 = vector.load %arg22[%c10_218, %c0_219, %c0_220] : memref<16x64x256xf32, #tpu.memory_space<vmem>>, vector<1x64x256xf32>
    %302 = vector.shape_cast %301 : vector<1x64x256xf32> to vector<64x256xf32>
    %cst_221 = arith.constant dense<0.000000e+00> : vector<8x256xf32>
    %303 = tpu.matmul %300, %302, %cst_221 {dimension_numbers = #tpu.dot_dimension_numbers<[1], [0], [0], [1], [0, 0, 1, 1], [], []>} : vector<8x64xf32>, vector<64x256xf32>, vector<8x256xf32> -> vector<8x256xf32>
    %304 = arith.addf %299, %303 : vector<8x256xf32>
    %305 = vector.extract_strided_slice %250 {offsets = [88, 0], sizes = [8, 64], strides = [1, 1]} : vector<128x64xf32> to vector<8x64xf32>
    %c11_222 = arith.constant 11 : index
    %c0_223 = arith.constant 0 : index
    %c0_224 = arith.constant 0 : index
    %306 = vector.load %arg22[%c11_222, %c0_223, %c0_224] : memref<16x64x256xf32, #tpu.memory_space<vmem>>, vector<1x64x256xf32>
    %307 = vector.shape_cast %306 : vector<1x64x256xf32> to vector<64x256xf32>
    %cst_225 = arith.constant dense<0.000000e+00> : vector<8x256xf32>
    %308 = tpu.matmul %305, %307, %cst_225 {dimension_numbers = #tpu.dot_dimension_numbers<[1], [0], [0], [1], [0, 0, 1, 1], [], []>} : vector<8x64xf32>, vector<64x256xf32>, vector<8x256xf32> -> vector<8x256xf32>
    %309 = arith.addf %304, %308 : vector<8x256xf32>
    %310 = vector.extract_strided_slice %250 {offsets = [96, 0], sizes = [8, 64], strides = [1, 1]} : vector<128x64xf32> to vector<8x64xf32>
    %c12_226 = arith.constant 12 : index
    %c0_227 = arith.constant 0 : index
    %c0_228 = arith.constant 0 : index
    %311 = vector.load %arg22[%c12_226, %c0_227, %c0_228] : memref<16x64x256xf32, #tpu.memory_space<vmem>>, vector<1x64x256xf32>
    %312 = vector.shape_cast %311 : vector<1x64x256xf32> to vector<64x256xf32>
    %cst_229 = arith.constant dense<0.000000e+00> : vector<8x256xf32>
    %313 = tpu.matmul %310, %312, %cst_229 {dimension_numbers = #tpu.dot_dimension_numbers<[1], [0], [0], [1], [0, 0, 1, 1], [], []>} : vector<8x64xf32>, vector<64x256xf32>, vector<8x256xf32> -> vector<8x256xf32>
    %314 = arith.addf %309, %313 : vector<8x256xf32>
    %315 = vector.extract_strided_slice %250 {offsets = [104, 0], sizes = [8, 64], strides = [1, 1]} : vector<128x64xf32> to vector<8x64xf32>
    %c13_230 = arith.constant 13 : index
    %c0_231 = arith.constant 0 : index
    %c0_232 = arith.constant 0 : index
    %316 = vector.load %arg22[%c13_230, %c0_231, %c0_232] : memref<16x64x256xf32, #tpu.memory_space<vmem>>, vector<1x64x256xf32>
    %317 = vector.shape_cast %316 : vector<1x64x256xf32> to vector<64x256xf32>
    %cst_233 = arith.constant dense<0.000000e+00> : vector<8x256xf32>
    %318 = tpu.matmul %315, %317, %cst_233 {dimension_numbers = #tpu.dot_dimension_numbers<[1], [0], [0], [1], [0, 0, 1, 1], [], []>} : vector<8x64xf32>, vector<64x256xf32>, vector<8x256xf32> -> vector<8x256xf32>
    %319 = arith.addf %314, %318 : vector<8x256xf32>
    %320 = vector.extract_strided_slice %250 {offsets = [112, 0], sizes = [8, 64], strides = [1, 1]} : vector<128x64xf32> to vector<8x64xf32>
    %c14_234 = arith.constant 14 : index
    %c0_235 = arith.constant 0 : index
    %c0_236 = arith.constant 0 : index
    %321 = vector.load %arg22[%c14_234, %c0_235, %c0_236] : memref<16x64x256xf32, #tpu.memory_space<vmem>>, vector<1x64x256xf32>
    %322 = vector.shape_cast %321 : vector<1x64x256xf32> to vector<64x256xf32>
    %cst_237 = arith.constant dense<0.000000e+00> : vector<8x256xf32>
    %323 = tpu.matmul %320, %322, %cst_237 {dimension_numbers = #tpu.dot_dimension_numbers<[1], [0], [0], [1], [0, 0, 1, 1], [], []>} : vector<8x64xf32>, vector<64x256xf32>, vector<8x256xf32> -> vector<8x256xf32>
    %324 = arith.addf %319, %323 : vector<8x256xf32>
    %325 = vector.extract_strided_slice %250 {offsets = [120, 0], sizes = [8, 64], strides = [1, 1]} : vector<128x64xf32> to vector<8x64xf32>
    %c15_238 = arith.constant 15 : index
    %c0_239 = arith.constant 0 : index
    %c0_240 = arith.constant 0 : index
    %326 = vector.load %arg22[%c15_238, %c0_239, %c0_240] : memref<16x64x256xf32, #tpu.memory_space<vmem>>, vector<1x64x256xf32>
    %327 = vector.shape_cast %326 : vector<1x64x256xf32> to vector<64x256xf32>
    %cst_241 = arith.constant dense<0.000000e+00> : vector<8x256xf32>
    %328 = tpu.matmul %325, %327, %cst_241 {dimension_numbers = #tpu.dot_dimension_numbers<[1], [0], [0], [1], [0, 0, 1, 1], [], []>} : vector<8x64xf32>, vector<64x256xf32>, vector<8x256xf32> -> vector<8x256xf32>
    %329 = arith.addf %324, %328 : vector<8x256xf32>
    %c0_242 = arith.constant 0 : index
    %c0_243 = arith.constant 0 : index
    %330 = vector.load %arg21[%c0_242, %c0_243] : memref<8x1xf32, #tpu.memory_space<vmem>>, vector<8x1xf32>
    %331 = vector.broadcast %330 : vector<8x1xf32> to vector<8x256xf32>
    %332 = arith.addf %329, %331 : vector<8x256xf32>
    %cst_244 = arith.constant 0.000000e+00 : f32
    %333 = vector.broadcast %cst_244 : f32 to vector<8x256xf32>
    %334 = arith.cmpf oge, %332, %333 : vector<8x256xf32>
    %cst_245 = arith.constant 2.000000e-01 : f32
    %335 = vector.broadcast %cst_245 : f32 to vector<8x256xf32>
    %336 = arith.mulf %335, %332 : vector<8x256xf32>
    %337 = arith.select %334, %332, %336 : vector<8x256xi1>, vector<8x256xf32>
    %c0_246 = arith.constant 0 : index
    %c0_247 = arith.constant 0 : index
    %338 = vector.load %arg23[%c0_246, %c0_247] : memref<144x8xf32, #tpu.memory_space<vmem>>, vector<144x8xf32>
    %cst_248 = arith.constant dense<0.000000e+00> : vector<144x256xf32>
    %339 = tpu.matmul %338, %337, %cst_248 {dimension_numbers = #tpu.dot_dimension_numbers<[1], [0], [0], [1], [0, 0, 1, 1], [], []>} : vector<144x8xf32>, vector<8x256xf32>, vector<144x256xf32> -> vector<144x256xf32>
    %340 = vector.extract_strided_slice %339 {offsets = [0, 0], sizes = [16, 256], strides = [1, 1]} : vector<144x256xf32> to vector<16x256xf32>
    %c0_249 = arith.constant 0 : index
    %c0_250 = arith.constant 0 : index
    %c0_251 = arith.constant 0 : index
    %341 = vector.load %arg25[%c0_249, %c0_250, %c0_251] : memref<9x256x256xf32, #tpu.memory_space<vmem>>, vector<1x256x256xf32>
    %342 = vector.shape_cast %341 : vector<1x256x256xf32> to vector<256x256xf32>
    %cst_252 = arith.constant dense<0.000000e+00> : vector<16x256xf32>
    %343 = tpu.matmul %340, %342, %cst_252 {dimension_numbers = #tpu.dot_dimension_numbers<[1], [0], [0], [1], [0, 0, 1, 1], [], []>} : vector<16x256xf32>, vector<256x256xf32>, vector<16x256xf32> -> vector<16x256xf32>
    %344 = vector.extract_strided_slice %339 {offsets = [16, 0], sizes = [16, 256], strides = [1, 1]} : vector<144x256xf32> to vector<16x256xf32>
    %c1_253 = arith.constant 1 : index
    %c0_254 = arith.constant 0 : index
    %c0_255 = arith.constant 0 : index
    %345 = vector.load %arg25[%c1_253, %c0_254, %c0_255] : memref<9x256x256xf32, #tpu.memory_space<vmem>>, vector<1x256x256xf32>
    %346 = vector.shape_cast %345 : vector<1x256x256xf32> to vector<256x256xf32>
    %cst_256 = arith.constant dense<0.000000e+00> : vector<16x256xf32>
    %347 = tpu.matmul %344, %346, %cst_256 {dimension_numbers = #tpu.dot_dimension_numbers<[1], [0], [0], [1], [0, 0, 1, 1], [], []>} : vector<16x256xf32>, vector<256x256xf32>, vector<16x256xf32> -> vector<16x256xf32>
    %348 = arith.addf %343, %347 : vector<16x256xf32>
    %349 = vector.extract_strided_slice %339 {offsets = [32, 0], sizes = [16, 256], strides = [1, 1]} : vector<144x256xf32> to vector<16x256xf32>
    %c2_257 = arith.constant 2 : index
    %c0_258 = arith.constant 0 : index
    %c0_259 = arith.constant 0 : index
    %350 = vector.load %arg25[%c2_257, %c0_258, %c0_259] : memref<9x256x256xf32, #tpu.memory_space<vmem>>, vector<1x256x256xf32>
    %351 = vector.shape_cast %350 : vector<1x256x256xf32> to vector<256x256xf32>
    %cst_260 = arith.constant dense<0.000000e+00> : vector<16x256xf32>
    %352 = tpu.matmul %349, %351, %cst_260 {dimension_numbers = #tpu.dot_dimension_numbers<[1], [0], [0], [1], [0, 0, 1, 1], [], []>} : vector<16x256xf32>, vector<256x256xf32>, vector<16x256xf32> -> vector<16x256xf32>
    %353 = arith.addf %348, %352 : vector<16x256xf32>
    %354 = vector.extract_strided_slice %339 {offsets = [48, 0], sizes = [16, 256], strides = [1, 1]} : vector<144x256xf32> to vector<16x256xf32>
    %c3_261 = arith.constant 3 : index
    %c0_262 = arith.constant 0 : index
    %c0_263 = arith.constant 0 : index
    %355 = vector.load %arg25[%c3_261, %c0_262, %c0_263] : memref<9x256x256xf32, #tpu.memory_space<vmem>>, vector<1x256x256xf32>
    %356 = vector.shape_cast %355 : vector<1x256x256xf32> to vector<256x256xf32>
    %cst_264 = arith.constant dense<0.000000e+00> : vector<16x256xf32>
    %357 = tpu.matmul %354, %356, %cst_264 {dimension_numbers = #tpu.dot_dimension_numbers<[1], [0], [0], [1], [0, 0, 1, 1], [], []>} : vector<16x256xf32>, vector<256x256xf32>, vector<16x256xf32> -> vector<16x256xf32>
    %358 = arith.addf %353, %357 : vector<16x256xf32>
    %359 = vector.extract_strided_slice %339 {offsets = [64, 0], sizes = [16, 256], strides = [1, 1]} : vector<144x256xf32> to vector<16x256xf32>
    %c4_265 = arith.constant 4 : index
    %c0_266 = arith.constant 0 : index
    %c0_267 = arith.constant 0 : index
    %360 = vector.load %arg25[%c4_265, %c0_266, %c0_267] : memref<9x256x256xf32, #tpu.memory_space<vmem>>, vector<1x256x256xf32>
    %361 = vector.shape_cast %360 : vector<1x256x256xf32> to vector<256x256xf32>
    %cst_268 = arith.constant dense<0.000000e+00> : vector<16x256xf32>
    %362 = tpu.matmul %359, %361, %cst_268 {dimension_numbers = #tpu.dot_dimension_numbers<[1], [0], [0], [1], [0, 0, 1, 1], [], []>} : vector<16x256xf32>, vector<256x256xf32>, vector<16x256xf32> -> vector<16x256xf32>
    %363 = arith.addf %358, %362 : vector<16x256xf32>
    %364 = vector.extract_strided_slice %339 {offsets = [80, 0], sizes = [16, 256], strides = [1, 1]} : vector<144x256xf32> to vector<16x256xf32>
    %c5_269 = arith.constant 5 : index
    %c0_270 = arith.constant 0 : index
    %c0_271 = arith.constant 0 : index
    %365 = vector.load %arg25[%c5_269, %c0_270, %c0_271] : memref<9x256x256xf32, #tpu.memory_space<vmem>>, vector<1x256x256xf32>
    %366 = vector.shape_cast %365 : vector<1x256x256xf32> to vector<256x256xf32>
    %cst_272 = arith.constant dense<0.000000e+00> : vector<16x256xf32>
    %367 = tpu.matmul %364, %366, %cst_272 {dimension_numbers = #tpu.dot_dimension_numbers<[1], [0], [0], [1], [0, 0, 1, 1], [], []>} : vector<16x256xf32>, vector<256x256xf32>, vector<16x256xf32> -> vector<16x256xf32>
    %368 = arith.addf %363, %367 : vector<16x256xf32>
    %369 = vector.extract_strided_slice %339 {offsets = [96, 0], sizes = [16, 256], strides = [1, 1]} : vector<144x256xf32> to vector<16x256xf32>
    %c6_273 = arith.constant 6 : index
    %c0_274 = arith.constant 0 : index
    %c0_275 = arith.constant 0 : index
    %370 = vector.load %arg25[%c6_273, %c0_274, %c0_275] : memref<9x256x256xf32, #tpu.memory_space<vmem>>, vector<1x256x256xf32>
    %371 = vector.shape_cast %370 : vector<1x256x256xf32> to vector<256x256xf32>
    %cst_276 = arith.constant dense<0.000000e+00> : vector<16x256xf32>
    %372 = tpu.matmul %369, %371, %cst_276 {dimension_numbers = #tpu.dot_dimension_numbers<[1], [0], [0], [1], [0, 0, 1, 1], [], []>} : vector<16x256xf32>, vector<256x256xf32>, vector<16x256xf32> -> vector<16x256xf32>
    %373 = arith.addf %368, %372 : vector<16x256xf32>
    %374 = vector.extract_strided_slice %339 {offsets = [112, 0], sizes = [16, 256], strides = [1, 1]} : vector<144x256xf32> to vector<16x256xf32>
    %c7_277 = arith.constant 7 : index
    %c0_278 = arith.constant 0 : index
    %c0_279 = arith.constant 0 : index
    %375 = vector.load %arg25[%c7_277, %c0_278, %c0_279] : memref<9x256x256xf32, #tpu.memory_space<vmem>>, vector<1x256x256xf32>
    %376 = vector.shape_cast %375 : vector<1x256x256xf32> to vector<256x256xf32>
    %cst_280 = arith.constant dense<0.000000e+00> : vector<16x256xf32>
    %377 = tpu.matmul %374, %376, %cst_280 {dimension_numbers = #tpu.dot_dimension_numbers<[1], [0], [0], [1], [0, 0, 1, 1], [], []>} : vector<16x256xf32>, vector<256x256xf32>, vector<16x256xf32> -> vector<16x256xf32>
    %378 = arith.addf %373, %377 : vector<16x256xf32>
    %379 = vector.extract_strided_slice %339 {offsets = [128, 0], sizes = [16, 256], strides = [1, 1]} : vector<144x256xf32> to vector<16x256xf32>
    %c8_281 = arith.constant 8 : index
    %c0_282 = arith.constant 0 : index
    %c0_283 = arith.constant 0 : index
    %380 = vector.load %arg25[%c8_281, %c0_282, %c0_283] : memref<9x256x256xf32, #tpu.memory_space<vmem>>, vector<1x256x256xf32>
    %381 = vector.shape_cast %380 : vector<1x256x256xf32> to vector<256x256xf32>
    %cst_284 = arith.constant dense<0.000000e+00> : vector<16x256xf32>
    %382 = tpu.matmul %379, %381, %cst_284 {dimension_numbers = #tpu.dot_dimension_numbers<[1], [0], [0], [1], [0, 0, 1, 1], [], []>} : vector<16x256xf32>, vector<256x256xf32>, vector<16x256xf32> -> vector<16x256xf32>
    %383 = arith.addf %378, %382 : vector<16x256xf32>
    %c0_285 = arith.constant 0 : index
    %c0_286 = arith.constant 0 : index
    %384 = vector.load %arg24[%c0_285, %c0_286] : memref<16x1xf32, #tpu.memory_space<vmem>>, vector<16x1xf32>
    %385 = vector.broadcast %384 : vector<16x1xf32> to vector<16x256xf32>
    %386 = arith.addf %383, %385 : vector<16x256xf32>
    %387 = vector.extract_strided_slice %386 {offsets = [0, 0], sizes = [8, 256], strides = [1, 1]} : vector<16x256xf32> to vector<8x256xf32>
    %388 = vector.extract_strided_slice %386 {offsets = [8, 0], sizes = [8, 256], strides = [1, 1]} : vector<16x256xf32> to vector<8x256xf32>
    %cst_287 = arith.constant 0.000000e+00 : f32
    %389 = vector.broadcast %cst_287 : f32 to vector<8x256xf32>
    %390 = arith.subf %389, %387 : vector<8x256xf32>
    %391 = math.exp %390 : vector<8x256xf32>
    %cst_288 = arith.constant 1.000000e+00 : f32
    %392 = vector.broadcast %cst_288 : f32 to vector<8x256xf32>
    %393 = arith.addf %392, %391 : vector<8x256xf32>
    %cst_289 = arith.constant 1.000000e+00 : f32
    %394 = vector.broadcast %cst_289 : f32 to vector<8x256xf32>
    %395 = arith.divf %394, %393 : vector<8x256xf32>
    %396 = arith.mulf %395, %29 : vector<8x256xf32>
    %397 = arith.addf %396, %388 : vector<8x256xf32>
    %c0_290 = arith.constant 0 : index
    %c0_291 = arith.constant 0 : index
    %c0_292 = arith.constant 0 : index
    %398 = vector.load %arg26[%c0_290, %c0_291, %c0_292] : memref<1x8x256xf32, #tpu.memory_space<vmem>>, vector<1x8x256xf32>
    %399 = vector.shape_cast %398 : vector<1x8x256xf32> to vector<8x256xf32>
    %400 = vector.shape_cast %397 : vector<8x256xf32> to vector<1x8x256xf32>
    tpu.vector_store %arg26[%c0_290, %c0_291, %c0_292], %400 {strides = array<i32>} : memref<1x8x256xf32, #tpu.memory_space<vmem>>, vector<1x8x256xf32>,
    return
  }
  func.func @transform_0(%arg0: i32) -> (i32, i32, i32) {
    %c0_i32 = arith.constant 0 : i32
    %c0_i32_0 = arith.constant 0 : i32
    %c0_i32_1 = arith.constant 0 : i32
    return %arg0, %c0_i32, %c0_i32_0 : i32, i32, i32
  }
  func.func @transform_1(%arg0: i32) -> (i32, i32, i32) {
    %c0_i32 = arith.constant 0 : i32
    %c0_i32_0 = arith.constant 0 : i32
    %c0_i32_1 = arith.constant 0 : i32
    return %arg0, %c0_i32, %c0_i32_0 : i32, i32, i32
  }
  func.func @transform_2(%arg0: i32) -> (i32, i32) {
    %c0_i32 = arith.constant 0 : i32
    %c0_i32_0 = arith.constant 0 : i32
    %c0_i32_1 = arith.constant 0 : i32
    return %c0_i32, %c0_i32_0 : i32, i32
  }
  func.func @transform_3(%arg0: i32) -> (i32, i32) {
    %c0_i32 = arith.constant 0 : i32
    %c0_i32_0 = arith.constant 0 : i32
    %c0_i32_1 = arith.constant 0 : i32
    return %c0_i32, %c0_i32_0 : i32, i32
  }
  func.func @transform_4(%arg0: i32) -> (i32, i32) {
    %c0_i32 = arith.constant 0 : i32
    %c0_i32_0 = arith.constant 0 : i32
    %c0_i32_1 = arith.constant 0 : i32
    return %c0_i32, %c0_i32_0 : i32, i32
  }
  func.func @transform_5(%arg0: i32) -> (i32, i32) {
    %c0_i32 = arith.constant 0 : i32
    %c0_i32_0 = arith.constant 0 : i32
    %c0_i32_1 = arith.constant 0 : i32
    return %c0_i32, %c0_i32_0 : i32, i32
  }
  func.func @transform_6(%arg0: i32) -> (i32, i32) {
    %c0_i32 = arith.constant 0 : i32
    %c0_i32_0 = arith.constant 0 : i32
    %c0_i32_1 = arith.constant 0 : i32
    return %c0_i32, %c0_i32_0 : i32, i32
  }
  func.func @transform_7(%arg0: i32) -> (i32, i32) {
    %c0_i32 = arith.constant 0 : i32
    %c0_i32_0 = arith.constant 0 : i32
    %c0_i32_1 = arith.constant 0 : i32
    return %c0_i32, %c0_i32_0 : i32, i32
  }
  func.func @transform_8(%arg0: i32) -> (i32, i32) {
    %c0_i32 = arith.constant 0 : i32
    %c0_i32_0 = arith.constant 0 : i32
    %c0_i32_1 = arith.constant 0 : i32
    return %c0_i32, %c0_i32_0 : i32, i32
  }
  func.func @transform_9(%arg0: i32) -> (i32, i32) {
    %c0_i32 = arith.constant 0 : i32
    %c0_i32_0 = arith.constant 0 : i32
    %c0_i32_1 = arith.constant 0 : i32
    return %c0_i32, %c0_i32_0 : i32, i32
  }
  func.func @transform_10(%arg0: i32) -> (i32, i32) {
    %c0_i32 = arith.constant 0 : i32
    %c0_i32_0 = arith.constant 0 : i32
    %c0_i32_1 = arith.constant 0 : i32
    return %c0_i32, %c0_i32_0 : i32, i32
  }
  func.func @transform_11(%arg0: i32) -> (i32, i32) {
    %c0_i32 = arith.constant 0 : i32
    %c0_i32_0 = arith.constant 0 : i32
    %c0_i32_1 = arith.constant 0 : i32
    return %c0_i32, %c0_i32_0 : i32, i32
  }
  func.func @transform_12(%arg0: i32) -> (i32, i32, i32) {
    %c0_i32 = arith.constant 0 : i32
    %c0_i32_0 = arith.constant 0 : i32
    %c0_i32_1 = arith.constant 0 : i32
    %c0_i32_2 = arith.constant 0 : i32
    return %c0_i32, %c0_i32_0, %c0_i32_1 : i32, i32, i32
  }
  func.func @transform_13(%arg0: i32) -> (i32, i32) {
    %c0_i32 = arith.constant 0 : i32
    %c0_i32_0 = arith.constant 0 : i32
    %c0_i32_1 = arith.constant 0 : i32
    return %c0_i32, %c0_i32_0 : i32, i32
  }
  func.func @transform_14(%arg0: i32) -> (i32, i32) {
    %c0_i32 = arith.constant 0 : i32
    %c0_i32_0 = arith.constant 0 : i32
    %c0_i32_1 = arith.constant 0 : i32
    return %c0_i32, %c0_i32_0 : i32, i32
  }
  func.func @transform_15(%arg0: i32) -> (i32, i32, i32) {
    %c0_i32 = arith.constant 0 : i32
    %c0_i32_0 = arith.constant 0 : i32
    %c0_i32_1 = arith.constant 0 : i32
    %c0_i32_2 = arith.constant 0 : i32
    return %c0_i32, %c0_i32_0, %c0_i32_1 : i32, i32, i32
  }
  func.func @transform_16(%arg0: i32) -> (i32, i32) {
    %c0_i32 = arith.constant 0 : i32
    %c0_i32_0 = arith.constant 0 : i32
    %c0_i32_1 = arith.constant 0 : i32
    return %c0_i32, %c0_i32_0 : i32, i32
  }
  func.func @transform_17(%arg0: i32) -> (i32, i32) {
    %c0_i32 = arith.constant 0 : i32
    %c0_i32_0 = arith.constant 0 : i32
    %c0_i32_1 = arith.constant 0 : i32
    return %c0_i32, %c0_i32_0 : i32, i32
  }
  func.func @transform_18(%arg0: i32) -> (i32, i32, i32) {
    %c0_i32 = arith.constant 0 : i32
    %c0_i32_0 = arith.constant 0 : i32
    %c0_i32_1 = arith.constant 0 : i32
    %c0_i32_2 = arith.constant 0 : i32
    return %c0_i32, %c0_i32_0, %c0_i32_1 : i32, i32, i32
  }
  func.func @transform_19(%arg0: i32) -> (i32, i32) {
    %c0_i32 = arith.constant 0 : i32
    %c0_i32_0 = arith.constant 0 : i32
    %c0_i32_1 = arith.constant 0 : i32
    return %c0_i32, %c0_i32_0 : i32, i32
  }
  func.func @transform_20(%arg0: i32) -> (i32, i32) {
    %c0_i32 = arith.constant 0 : i32
    %c0_i32_0 = arith.constant 0 : i32
    %c0_i32_1 = arith.constant 0 : i32
    return %c0_i32, %c0_i32_0 : i32, i32
  }
  func.func @transform_21(%arg0: i32) -> (i32, i32, i32) {
    %c0_i32 = arith.constant 0 : i32
    %c0_i32_0 = arith.constant 0 : i32
    %c0_i32_1 = arith.constant 0 : i32
    %c0_i32_2 = arith.constant 0 : i32
    return %c0_i32, %c0_i32_0, %c0_i32_1 : i32, i32, i32
  }
  func.func @transform_22(%arg0: i32) -> (i32, i32) {
    %c0_i32 = arith.constant 0 : i32
    %c0_i32_0 = arith.constant 0 : i32
    %c0_i32_1 = arith.constant 0 : i32
    return %c0_i32, %c0_i32_0 : i32, i32
  }
  func.func @transform_23(%arg0: i32) -> (i32, i32) {
    %c0_i32 = arith.constant 0 : i32
    %c0_i32_0 = arith.constant 0 : i32
    %c0_i32_1 = arith.constant 0 : i32
    return %c0_i32, %c0_i32_0 : i32, i32
  }
  func.func @transform_24(%arg0: i32) -> (i32, i32, i32) {
    %c0_i32 = arith.constant 0 : i32
    %c0_i32_0 = arith.constant 0 : i32
    %c0_i32_1 = arith.constant 0 : i32
    %c0_i32_2 = arith.constant 0 : i32
    return %c0_i32, %c0_i32_0, %c0_i32_1 : i32, i32, i32
  }
  func.func @transform_25(%arg0: i32) -> (i32, i32, i32) {
    %c0_i32 = arith.constant 0 : i32
    %c0_i32_0 = arith.constant 0 : i32
    %c0_i32_1 = arith.constant 0 : i32
    return %arg0, %c0_i32, %c0_i32_0 : i32, i32, i32
  }
}

</mosaic_0001>

<llo_original>
// kernel: ker_adp_block_forward.1
$region0: #{ker_adp_block_forward.1}
  #allocation0 [shape = 'u32[]', space=smem, size = 0x4, offset = 0x4, fixed_abs, tag = 'smem constant byte address 0x4 - core index']
  #allocation1 [shape = 'u32[72,128]{1,0:T(1,128)}', space=vmem, size = 0x9000, scoped, tag = 'internal scratch']
  %s0 = inlined_call_operand.vmem [shape: f32[2,8,256], index: 0, kind: input, shape index: {}]
  %s1 = inlined_call_operand.vmem [shape: f32[2,289,1], index: 1, kind: input, shape index: {}]
  %s2 = inlined_call_operand.vmem [shape: f32[256,289], index: 2, kind: input, shape index: {}]
  %s3 = inlined_call_operand.vmem [shape: f32[256,1], index: 3, kind: input, shape index: {}]
  %s4 = inlined_call_operand.vmem [shape: f32[256,256], index: 4, kind: input, shape index: {}]
  %s5 = inlined_call_operand.vmem [shape: f32[256,1], index: 5, kind: input, shape index: {}]
  %s6 = inlined_call_operand.vmem [shape: f32[32,256], index: 6, kind: input, shape index: {}]
  %s7 = inlined_call_operand.vmem [shape: f32[32,1], index: 7, kind: input, shape index: {}]
  %s8 = inlined_call_operand.vmem [shape: f32[32,256], index: 8, kind: input, shape index: {}]
  %s9 = inlined_call_operand.vmem [shape: f32[32,1], index: 9, kind: input, shape index: {}]
  %s10 = inlined_call_operand.vmem [shape: f32[144,8], index: 10, kind: input, shape index: {}]
  %s11 = inlined_call_operand.vmem [shape: f32[16,1], index: 11, kind: input, shape index: {}]
  %s12 = inlined_call_operand.hbm [shape: f32[9,256,64], index: 12, kind: input, shape index: {}]
  %s13 = inlined_call_operand.vmem [shape: f32[288,16], index: 13, kind: input, shape index: {}]
  %s14 = inlined_call_operand.vmem [shape: f32[32,1], index: 14, kind: input, shape index: {}]
  %s15 = inlined_call_operand.vmem [shape: f32[9,64,16], index: 15, kind: input, shape index: {}]
  %s16 = inlined_call_operand.vmem [shape: f32[256,32], index: 16, kind: input, shape index: {}]
  %s17 = inlined_call_operand.vmem [shape: f32[16,1], index: 17, kind: input, shape index: {}]
  %s18 = inlined_call_operand.vmem [shape: f32[16,16,64], index: 18, kind: input, shape index: {}]
  %s19 = inlined_call_operand.vmem [shape: f32[128,16], index: 19, kind: input, shape index: {}]
  %s20 = inlined_call_operand.vmem [shape: f32[8,1], index: 20, kind: input, shape index: {}]
  %s21 = inlined_call_operand.hbm [shape: f32[16,64,256], index: 21, kind: input, shape index: {}]
  %s22 = inlined_call_operand.vmem [shape: f32[144,8], index: 22, kind: input, shape index: {}]
  %s23 = inlined_call_operand.vmem [shape: f32[16,1], index: 23, kind: input, shape index: {}]
  %s24 = inlined_call_operand.vmem [shape: f32[9,256,256], index: 24, kind: input, shape index: {}]
  %s25 = inlined_call_operand.vmem [shape: f32[2,8,256], index: 25, kind: output, shape index: {}]
  %s26 = sld [smem:[#allocation0]]
  $region141: #{ker_adp_block_forward.1} parent=0
    _
  %s28 = ssub.s32 1, %s26
  %s29 = scalar_select 0, %s28, %s26
  $region1: #{ker_adp_block_forward.1} parent=0
    #allocation2 [shape = 'u8[1179648]{0}', space=vmem, size = 0x120000, scoped, tag = 'input window, operand 12, single buffered']
    #allocation3 [shape = 's32[2]{0}', space=sflag, size = 0x8, scoped, tag = 'scoped memory for ker_adp_block_forward.1']
    #allocation4 [shape = 'u8[1048576]{0}', space=vmem, size = 0x100000, scoped, tag = 'input window, operand 21, single buffered']
    #allocation5 [shape = 's32[1]{0}', space=sflag, size = 0x4, scoped, tag = 'scoped memory for ker_adp_block_forward.1']
    %30 = vsyncpa [#allocation3], 0
    %31 = vsyncpa [#allocation5], 0
    loop: start=0, step=1, limit=4
    $region2: #{ker_adp_block_forward.1} parent=1 // loop_pre_header
      _
    $region3: #{ker_adp_block_forward.1} parent=1 // loop_header
      %s33 = sphi 0, %s37
      %p34 = scmp.ge.s32.totalorder %s33, 4
      %s43 = sphi 0, %s45
      %s46 = sphi 0, %s43
      %s47 = sphi 0, %s46
      %s63 = sphi 0, %s47
      %s69 = sphi 0, %s71
      %s72 = sphi 0, %s69
      %s73 = sphi 0, %s72
      %s89 = sphi 0, %s73
      %s93 = sphi 0, %s93
      %s95 = sphi 0, %s93
      %s96 = sphi 0, %s95
      %s110 = sphi 0, %s96
      %s114 = sphi 0, %s114
      %s116 = sphi 0, %s114
      %s117 = sphi 0, %s116
      %s131 = sphi 0, %s117
      %s135 = sphi 0, %s135
      %s137 = sphi 0, %s135
      %s138 = sphi 0, %s137
      %s152 = sphi 0, %s138
      %s156 = sphi 0, %s156
      %s158 = sphi 0, %s156
      %s159 = sphi 0, %s158
      %s173 = sphi 0, %s159
      %s177 = sphi 0, %s177
      %s179 = sphi 0, %s177
      %s180 = sphi 0, %s179
      %s194 = sphi 0, %s180
      %s198 = sphi 0, %s198
      %s200 = sphi 0, %s198
      %s201 = sphi 0, %s200
      %s215 = sphi 0, %s201
      %s219 = sphi 0, %s219
      %s221 = sphi 0, %s219
      %s222 = sphi 0, %s221
      %s236 = sphi 0, %s222
      %s240 = sphi 0, %s240
      %s242 = sphi 0, %s240
      %s243 = sphi 0, %s242
      %s257 = sphi 0, %s243
      %s261 = sphi 0, %s261
      %s263 = sphi 0, %s261
      %s264 = sphi 0, %s263
      %s278 = sphi 0, %s264
      %s282 = sphi 0, %s282
      %s284 = sphi 0, %s282
      %s285 = sphi 0, %s284
      %s299 = sphi 0, %s285
      %s303 = sphi 0, %s303
      %s305 = sphi 0, %s303
      %s306 = sphi 0, %s305
      %s320 = sphi 0, %s306
      %s324 = sphi 0, %s324
      %s326 = sphi 0, %s324
      %s327 = sphi 0, %s326
      %s341 = sphi 0, %s327
      %s345 = sphi 0, %s345
      %s347 = sphi 0, %s345
      %s348 = sphi 0, %s347
      %s362 = sphi 0, %s348
      %s366 = sphi 0, %s366
      %s368 = sphi 0, %s366
      %s369 = sphi 0, %s368
      %s383 = sphi 0, %s369
      %s387 = sphi 0, %s387
      %s389 = sphi 0, %s387
      %s390 = sphi 0, %s389
      %s404 = sphi 0, %s390
      %s408 = sphi 0, %s408
      %s410 = sphi 0, %s408
      %s411 = sphi 0, %s410
      %s425 = sphi 0, %s411
      %s429 = sphi 0, %s429
      %s431 = sphi 0, %s429
      %s432 = sphi 0, %s431
      %s446 = sphi 0, %s432
      %s450 = sphi 0, %s450
      %s452 = sphi 0, %s450
      %s453 = sphi 0, %s452
      %s467 = sphi 0, %s453
      %s471 = sphi 0, %s471
      %s473 = sphi 0, %s471
      %s474 = sphi 0, %s473
      %s488 = sphi 0, %s474
      %s492 = sphi 0, %s492
      %s494 = sphi 0, %s492
      %s495 = sphi 0, %s494
      %s509 = sphi 0, %s495
      %s513 = sphi 0, %s513
      %s515 = sphi 0, %s513
      %s516 = sphi 0, %s515
      %s530 = sphi 0, %s516
      %s534 = sphi 0, %s534
      %s536 = sphi 0, %s534
      %s537 = sphi 0, %s536
      %s551 = sphi 0, %s537
      %s555 = sphi 0, %s555
      %s557 = sphi 0, %s555
      %s558 = sphi 0, %s557
      %s572 = sphi 0, %s558
      %s578 = sphi 0, %s580
      %s581 = sphi 0, %s578
      %s582 = sphi 0, %s581
      %s598 = sphi 0, %s582
    $region4: #{ker_adp_block_forward.1} parent=1 // loop_header_branch
      %36 = sbr.rel (%p34) target = $region8
    $region5: #{ker_adp_block_forward.1} parent=1 // loop_body
      %s38 = ssub.s32 %s33, 1
      %s39 = ssub.s32 %s33, 2
      %s40 = sadd.s32 %s33, 1
      %s41 = ssub.s32 %s33, %s40
      %p42 = scmp.eq.s32.totalorder %s41, 0
      %s44 = sadd.s32 %s43, 1
      %s45 = scalar_select %p42, %s43, %s44
      %p48 = pneg %p42
      %p49 = scmp.eq.s32.totalorder %s33, 1
      %p50 = por %p48, %p49
      %p51 = scmp.ne.s32.totalorder %s43, %s46
      %p52 = scmp.eq.s32.totalorder %s33, 0
      %p53 = por %p51, %p52
      %p54 = scmp.ne.s32.totalorder %s43, %s46
      %p55 = scmp.eq.s32.totalorder %s38, 1
      %p56 = por %p54, %p55
      %p57 = scmp.ne.s32.totalorder %s46, %s47
      %p58 = scmp.eq.s32.totalorder %s38, 0
      %p59 = por %p57, %p58
      %p60 = scmp.ne.s32.totalorder %s46, %s47
      %p61 = scmp.eq.s32.totalorder %s39, 1
      %p62 = por %p60, %p61
      %p64 = scmp.ne.s32.totalorder %s47, %s63
      %p65 = scmp.eq.s32.totalorder %s39, 0
      %p66 = por %p64, %p65
      %s67 = ssub.s32 %s33, %s40
      %p68 = scmp.eq.s32.totalorder %s67, 0
      %s70 = sadd.s32 %s69, 1
      %s71 = scalar_select %p68, %s69, %s70
      %p74 = pneg %p68
      %p75 = scmp.eq.s32.totalorder %s33, 1
      %p76 = por %p74, %p75
      %p77 = scmp.ne.s32.totalorder %s69, %s72
      %p78 = scmp.eq.s32.totalorder %s33, 0
      %p79 = por %p77, %p78
      %p80 = scmp.ne.s32.totalorder %s69, %s72
      %p81 = scmp.eq.s32.totalorder %s38, 1
      %p82 = por %p80, %p81
      %p83 = scmp.ne.s32.totalorder %s72, %s73
      %p84 = scmp.eq.s32.totalorder %s38, 0
      %p85 = por %p83, %p84
      %p86 = scmp.ne.s32.totalorder %s72, %s73
      %p87 = scmp.eq.s32.totalorder %s39, 1
      %p88 = por %p86, %p87
      %p90 = scmp.ne.s32.totalorder %s73, %s89
      %p91 = scmp.eq.s32.totalorder %s39, 0
      %p92 = por %p90, %p91
      %s94 = sadd.s32 %s93, 1
      %p97 = scmp.eq.s32.totalorder %s33, 1
      %p98 = scmp.ne.s32.totalorder %s93, %s95
      %p99 = scmp.eq.s32.totalorder %s33, 0
      %p100 = por %p98, %p99
      %p101 = scmp.ne.s32.totalorder %s93, %s95
      %p102 = scmp.eq.s32.totalorder %s38, 1
      %p103 = por %p101, %p102
      %p104 = scmp.ne.s32.totalorder %s95, %s96
      %p105 = scmp.eq.s32.totalorder %s38, 0
      %p106 = por %p104, %p105
      %p107 = scmp.ne.s32.totalorder %s95, %s96
      %p108 = scmp.eq.s32.totalorder %s39, 1
      %p109 = por %p107, %p108
      %p111 = scmp.ne.s32.totalorder %s96, %s110
      %p112 = scmp.eq.s32.totalorder %s39, 0
      %p113 = por %p111, %p112
      %s115 = sadd.s32 %s114, 1
      %p118 = scmp.eq.s32.totalorder %s33, 1
      %p119 = scmp.ne.s32.totalorder %s114, %s116
      %p120 = scmp.eq.s32.totalorder %s33, 0
      %p121 = por %p119, %p120
      %p122 = scmp.ne.s32.totalorder %s114, %s116
      %p123 = scmp.eq.s32.totalorder %s38, 1
      %p124 = por %p122, %p123
      %p125 = scmp.ne.s32.totalorder %s116, %s117
      %p126 = scmp.eq.s32.totalorder %s38, 0
      %p127 = por %p125, %p126
      %p128 = scmp.ne.s32.totalorder %s116, %s117
      %p129 = scmp.eq.s32.totalorder %s39, 1
      %p130 = por %p128, %p129
      %p132 = scmp.ne.s32.totalorder %s117, %s131
      %p133 = scmp.eq.s32.totalorder %s39, 0
      %p134 = por %p132, %p133
      %s136 = sadd.s32 %s135, 1
      %p139 = scmp.eq.s32.totalorder %s33, 1
      %p140 = scmp.ne.s32.totalorder %s135, %s137
      %p141 = scmp.eq.s32.totalorder %s33, 0
      %p142 = por %p140, %p141
      %p143 = scmp.ne.s32.totalorder %s135, %s137
      %p144 = scmp.eq.s32.totalorder %s38, 1
      %p145 = por %p143, %p144
      %p146 = scmp.ne.s32.totalorder %s137, %s138
      %p147 = scmp.eq.s32.totalorder %s38, 0
      %p148 = por %p146, %p147
      %p149 = scmp.ne.s32.totalorder %s137, %s138
      %p150 = scmp.eq.s32.totalorder %s39, 1
      %p151 = por %p149, %p150
      %p153 = scmp.ne.s32.totalorder %s138, %s152
      %p154 = scmp.eq.s32.totalorder %s39, 0
      %p155 = por %p153, %p154
      %s157 = sadd.s32 %s156, 1
      %p160 = scmp.eq.s32.totalorder %s33, 1
      %p161 = scmp.ne.s32.totalorder %s156, %s158
      %p162 = scmp.eq.s32.totalorder %s33, 0
      %p163 = por %p161, %p162
      %p164 = scmp.ne.s32.totalorder %s156, %s158
      %p165 = scmp.eq.s32.totalorder %s38, 1
      %p166 = por %p164, %p165
      %p167 = scmp.ne.s32.totalorder %s158, %s159
      %p168 = scmp.eq.s32.totalorder %s38, 0
      %p169 = por %p167, %p168
      %p170 = scmp.ne.s32.totalorder %s158, %s159
      %p171 = scmp.eq.s32.totalorder %s39, 1
      %p172 = por %p170, %p171
      %p174 = scmp.ne.s32.totalorder %s159, %s173
      %p175 = scmp.eq.s32.totalorder %s39, 0
      %p176 = por %p174, %p175
      %s178 = sadd.s32 %s177, 1
      %p181 = scmp.eq.s32.totalorder %s33, 1
      %p182 = scmp.ne.s32.totalorder %s177, %s179
      %p183 = scmp.eq.s32.totalorder %s33, 0
      %p184 = por %p182, %p183
      %p185 = scmp.ne.s32.totalorder %s177, %s179
      %p186 = scmp.eq.s32.totalorder %s38, 1
      %p187 = por %p185, %p186
      %p188 = scmp.ne.s32.totalorder %s179, %s180
      %p189 = scmp.eq.s32.totalorder %s38, 0
      %p190 = por %p188, %p189
      %p191 = scmp.ne.s32.totalorder %s179, %s180
      %p192 = scmp.eq.s32.totalorder %s39, 1
      %p193 = por %p191, %p192
      %p195 = scmp.ne.s32.totalorder %s180, %s194
      %p196 = scmp.eq.s32.totalorder %s39, 0
      %p197 = por %p195, %p196
      %s199 = sadd.s32 %s198, 1
      %p202 = scmp.eq.s32.totalorder %s33, 1
      %p203 = scmp.ne.s32.totalorder %s198, %s200
      %p204 = scmp.eq.s32.totalorder %s33, 0
      %p205 = por %p203, %p204
      %p206 = scmp.ne.s32.totalorder %s198, %s200
      %p207 = scmp.eq.s32.totalorder %s38, 1
      %p208 = por %p206, %p207
      %p209 = scmp.ne.s32.totalorder %s200, %s201
      %p210 = scmp.eq.s32.totalorder %s38, 0
      %p211 = por %p209, %p210
      %p212 = scmp.ne.s32.totalorder %s200, %s201
      %p213 = scmp.eq.s32.totalorder %s39, 1
      %p214 = por %p212, %p213
      %p216 = scmp.ne.s32.totalorder %s201, %s215
      %p217 = scmp.eq.s32.totalorder %s39, 0
      %p218 = por %p216, %p217
      %s220 = sadd.s32 %s219, 1
      %p223 = scmp.eq.s32.totalorder %s33, 1
      %p224 = scmp.ne.s32.totalorder %s219, %s221
      %p225 = scmp.eq.s32.totalorder %s33, 0
      %p226 = por %p224, %p225
      %p227 = scmp.ne.s32.totalorder %s219, %s221
      %p228 = scmp.eq.s32.totalorder %s38, 1
      %p229 = por %p227, %p228
      %p230 = scmp.ne.s32.totalorder %s221, %s222
      %p231 = scmp.eq.s32.totalorder %s38, 0
      %p232 = por %p230, %p231
      %p233 = scmp.ne.s32.totalorder %s221, %s222
      %p234 = scmp.eq.s32.totalorder %s39, 1
      %p235 = por %p233, %p234
      %p237 = scmp.ne.s32.totalorder %s222, %s236
      %p238 = scmp.eq.s32.totalorder %s39, 0
      %p239 = por %p237, %p238
      %s241 = sadd.s32 %s240, 1
      %p244 = scmp.eq.s32.totalorder %s33, 1
      %p245 = scmp.ne.s32.totalorder %s240, %s242
      %p246 = scmp.eq.s32.totalorder %s33, 0
      %p247 = por %p245, %p246
      %p248 = scmp.ne.s32.totalorder %s240, %s242
      %p249 = scmp.eq.s32.totalorder %s38, 1
      %p250 = por %p248, %p249
      %p251 = scmp.ne.s32.totalorder %s242, %s243
      %p252 = scmp.eq.s32.totalorder %s38, 0
      %p253 = por %p251, %p252
      %p254 = scmp.ne.s32.totalorder %s242, %s243
      %p255 = scmp.eq.s32.totalorder %s39, 1
      %p256 = por %p254, %p255
      %p258 = scmp.ne.s32.totalorder %s243, %s257
      %p259 = scmp.eq.s32.totalorder %s39, 0
      %p260 = por %p258, %p259
      %s262 = sadd.s32 %s261, 1
      %p265 = scmp.eq.s32.totalorder %s33, 1
      %p266 = scmp.ne.s32.totalorder %s261, %s263
      %p267 = scmp.eq.s32.totalorder %s33, 0
      %p268 = por %p266, %p267
      %p269 = scmp.ne.s32.totalorder %s261, %s263
      %p270 = scmp.eq.s32.totalorder %s38, 1
      %p271 = por %p269, %p270
      %p272 = scmp.ne.s32.totalorder %s263, %s264
      %p273 = scmp.eq.s32.totalorder %s38, 0
      %p274 = por %p272, %p273
      %p275 = scmp.ne.s32.totalorder %s263, %s264
      %p276 = scmp.eq.s32.totalorder %s39, 1
      %p277 = por %p275, %p276
      %p279 = scmp.ne.s32.totalorder %s264, %s278
      %p280 = scmp.eq.s32.totalorder %s39, 0
      %p281 = por %p279, %p280
      %s283 = sadd.s32 %s282, 1
      %p286 = scmp.eq.s32.totalorder %s33, 1
      %p287 = scmp.ne.s32.totalorder %s282, %s284
      %p288 = scmp.eq.s32.totalorder %s33, 0
      %p289 = por %p287, %p288
      %p290 = scmp.ne.s32.totalorder %s282, %s284
      %p291 = scmp.eq.s32.totalorder %s38, 1
      %p292 = por %p290, %p291
      %p293 = scmp.ne.s32.totalorder %s284, %s285
      %p294 = scmp.eq.s32.totalorder %s38, 0
      %p295 = por %p293, %p294
      %p296 = scmp.ne.s32.totalorder %s284, %s285
      %p297 = scmp.eq.s32.totalorder %s39, 1
      %p298 = por %p296, %p297
      %p300 = scmp.ne.s32.totalorder %s285, %s299
      %p301 = scmp.eq.s32.totalorder %s39, 0
      %p302 = por %p300, %p301
      %s304 = sadd.s32 %s303, 1
      %p307 = scmp.eq.s32.totalorder %s33, 1
      %p308 = scmp.ne.s32.totalorder %s303, %s305
      %p309 = scmp.eq.s32.totalorder %s33, 0
      %p310 = por %p308, %p309
      %p311 = scmp.ne.s32.totalorder %s303, %s305
      %p312 = scmp.eq.s32.totalorder %s38, 1
      %p313 = por %p311, %p312
      %p314 = scmp.ne.s32.totalorder %s305, %s306
      %p315 = scmp.eq.s32.totalorder %s38, 0
      %p316 = por %p314, %p315
      %p317 = scmp.ne.s32.totalorder %s305, %s306
      %p318 = scmp.eq.s32.totalorder %s39, 1
      %p319 = por %p317, %p318
      %p321 = scmp.ne.s32.totalorder %s306, %s320
      %p322 = scmp.eq.s32.totalorder %s39, 0
      %p323 = por %p321, %p322
      %s325 = sadd.s32 %s324, 1
      %p328 = scmp.eq.s32.totalorder %s33, 1
      %p329 = scmp.ne.s32.totalorder %s324, %s326
      %p330 = scmp.eq.s32.totalorder %s33, 0
      %p331 = por %p329, %p330
      %p332 = scmp.ne.s32.totalorder %s324, %s326
      %p333 = scmp.eq.s32.totalorder %s38, 1
      %p334 = por %p332, %p333
      %p335 = scmp.ne.s32.totalorder %s326, %s327
      %p336 = scmp.eq.s32.totalorder %s38, 0
      %p337 = por %p335, %p336
      %p338 = scmp.ne.s32.totalorder %s326, %s327
      %p339 = scmp.eq.s32.totalorder %s39, 1
      %p340 = por %p338, %p339
      %p342 = scmp.ne.s32.totalorder %s327, %s341
      %p343 = scmp.eq.s32.totalorder %s39, 0
      %p344 = por %p342, %p343
      %s346 = sadd.s32 %s345, 1
      %p349 = scmp.eq.s32.totalorder %s33, 1
      %p350 = scmp.ne.s32.totalorder %s345, %s347
      %p351 = scmp.eq.s32.totalorder %s33, 0
      %p352 = por %p350, %p351
      %p353 = scmp.ne.s32.totalorder %s345, %s347
      %p354 = scmp.eq.s32.totalorder %s38, 1
      %p355 = por %p353, %p354
      %p356 = scmp.ne.s32.totalorder %s347, %s348
      %p357 = scmp.eq.s32.totalorder %s38, 0
      %p358 = por %p356, %p357
      %p359 = scmp.ne.s32.totalorder %s347, %s348
      %p360 = scmp.eq.s32.totalorder %s39, 1
      %p361 = por %p359, %p360
      %p363 = scmp.ne.s32.totalorder %s348, %s362
      %p364 = scmp.eq.s32.totalorder %s39, 0
      %p365 = por %p363, %p364
      %s367 = sadd.s32 %s366, 1
      %p370 = scmp.eq.s32.totalorder %s33, 1
      %p371 = scmp.ne.s32.totalorder %s366, %s368
      %p372 = scmp.eq.s32.totalorder %s33, 0
      %p373 = por %p371, %p372
      %p374 = scmp.ne.s32.totalorder %s366, %s368
      %p375 = scmp.eq.s32.totalorder %s38, 1
      %p376 = por %p374, %p375
      %p377 = scmp.ne.s32.totalorder %s368, %s369
      %p378 = scmp.eq.s32.totalorder %s38, 0
      %p379 = por %p377, %p378
      %p380 = scmp.ne.s32.totalorder %s368, %s369
      %p381 = scmp.eq.s32.totalorder %s39, 1
      %p382 = por %p380, %p381
      %p384 = scmp.ne.s32.totalorder %s369, %s383
      %p385 = scmp.eq.s32.totalorder %s39, 0
      %p386 = por %p384, %p385
      %s388 = sadd.s32 %s387, 1
      %p391 = scmp.eq.s32.totalorder %s33, 1
      %p392 = scmp.ne.s32.totalorder %s387, %s389
      %p393 = scmp.eq.s32.totalorder %s33, 0
      %p394 = por %p392, %p393
      %p395 = scmp.ne.s32.totalorder %s387, %s389
      %p396 = scmp.eq.s32.totalorder %s38, 1
      %p397 = por %p395, %p396
      %p398 = scmp.ne.s32.totalorder %s389, %s390
      %p399 = scmp.eq.s32.totalorder %s38, 0
      %p400 = por %p398, %p399
      %p401 = scmp.ne.s32.totalorder %s389, %s390
      %p402 = scmp.eq.s32.totalorder %s39, 1
      %p403 = por %p401, %p402
      %p405 = scmp.ne.s32.totalorder %s390, %s404
      %p406 = scmp.eq.s32.totalorder %s39, 0
      %p407 = por %p405, %p406
      %s409 = sadd.s32 %s408, 1
      %p412 = scmp.eq.s32.totalorder %s33, 1
      %p413 = scmp.ne.s32.totalorder %s408, %s410
      %p414 = scmp.eq.s32.totalorder %s33, 0
      %p415 = por %p413, %p414
      %p416 = scmp.ne.s32.totalorder %s408, %s410
      %p417 = scmp.eq.s32.totalorder %s38, 1
      %p418 = por %p416, %p417
      %p419 = scmp.ne.s32.totalorder %s410, %s411
      %p420 = scmp.eq.s32.totalorder %s38, 0
      %p421 = por %p419, %p420
      %p422 = scmp.ne.s32.totalorder %s410, %s411
      %p423 = scmp.eq.s32.totalorder %s39, 1
      %p424 = por %p422, %p423
      %p426 = scmp.ne.s32.totalorder %s411, %s425
      %p427 = scmp.eq.s32.totalorder %s39, 0
      %p428 = por %p426, %p427
      %s430 = sadd.s32 %s429, 1
      %p433 = scmp.eq.s32.totalorder %s33, 1
      %p434 = scmp.ne.s32.totalorder %s429, %s431
      %p435 = scmp.eq.s32.totalorder %s33, 0
      %p436 = por %p434, %p435
      %p437 = scmp.ne.s32.totalorder %s429, %s431
      %p438 = scmp.eq.s32.totalorder %s38, 1
      %p439 = por %p437, %p438
      %p440 = scmp.ne.s32.totalorder %s431, %s432
      %p441 = scmp.eq.s32.totalorder %s38, 0
      %p442 = por %p440, %p441
      %p443 = scmp.ne.s32.totalorder %s431, %s432
      %p444 = scmp.eq.s32.totalorder %s39, 1
      %p445 = por %p443, %p444
      %p447 = scmp.ne.s32.totalorder %s432, %s446
      %p448 = scmp.eq.s32.totalorder %s39, 0
      %p449 = por %p447, %p448
      %s451 = sadd.s32 %s450, 1
      %p454 = scmp.eq.s32.totalorder %s33, 1
      %p455 = scmp.ne.s32.totalorder %s450, %s452
      %p456 = scmp.eq.s32.totalorder %s33, 0
      %p457 = por %p455, %p456
      %p458 = scmp.ne.s32.totalorder %s450, %s452
      %p459 = scmp.eq.s32.totalorder %s38, 1
      %p460 = por %p458, %p459
      %p461 = scmp.ne.s32.totalorder %s452, %s453
      %p462 = scmp.eq.s32.totalorder %s38, 0
      %p463 = por %p461, %p462
      %p464 = scmp.ne.s32.totalorder %s452, %s453
      %p465 = scmp.eq.s32.totalorder %s39, 1
      %p466 = por %p464, %p465
      %p468 = scmp.ne.s32.totalorder %s453, %s467
      %p469 = scmp.eq.s32.totalorder %s39, 0
      %p470 = por %p468, %p469
      %s472 = sadd.s32 %s471, 1
      %p475 = scmp.eq.s32.totalorder %s33, 1
      %p476 = scmp.ne.s32.totalorder %s471, %s473
      %p477 = scmp.eq.s32.totalorder %s33, 0
      %p478 = por %p476, %p477
      %p479 = scmp.ne.s32.totalorder %s471, %s473
      %p480 = scmp.eq.s32.totalorder %s38, 1
      %p481 = por %p479, %p480
      %p482 = scmp.ne.s32.totalorder %s473, %s474
      %p483 = scmp.eq.s32.totalorder %s38, 0
      %p484 = por %p482, %p483
      %p485 = scmp.ne.s32.totalorder %s473, %s474
      %p486 = scmp.eq.s32.totalorder %s39, 1
      %p487 = por %p485, %p486
      %p489 = scmp.ne.s32.totalorder %s474, %s488
      %p490 = scmp.eq.s32.totalorder %s39, 0
      %p491 = por %p489, %p490
      %s493 = sadd.s32 %s492, 1
      %p496 = scmp.eq.s32.totalorder %s33, 1
      %p497 = scmp.ne.s32.totalorder %s492, %s494
      %p498 = scmp.eq.s32.totalorder %s33, 0
      %p499 = por %p497, %p498
      %p500 = scmp.ne.s32.totalorder %s492, %s494
      %p501 = scmp.eq.s32.totalorder %s38, 1
      %p502 = por %p500, %p501
      %p503 = scmp.ne.s32.totalorder %s494, %s495
      %p504 = scmp.eq.s32.totalorder %s38, 0
      %p505 = por %p503, %p504
      %p506 = scmp.ne.s32.totalorder %s494, %s495
      %p507 = scmp.eq.s32.totalorder %s39, 1
      %p508 = por %p506, %p507
      %p510 = scmp.ne.s32.totalorder %s495, %s509
      %p511 = scmp.eq.s32.totalorder %s39, 0
      %p512 = por %p510, %p511
      %s514 = sadd.s32 %s513, 1
      %p517 = scmp.eq.s32.totalorder %s33, 1
      %p518 = scmp.ne.s32.totalorder %s513, %s515
      %p519 = scmp.eq.s32.totalorder %s33, 0
      %p520 = por %p518, %p519
      %p521 = scmp.ne.s32.totalorder %s513, %s515
      %p522 = scmp.eq.s32.totalorder %s38, 1
      %p523 = por %p521, %p522
      %p524 = scmp.ne.s32.totalorder %s515, %s516
      %p525 = scmp.eq.s32.totalorder %s38, 0
      %p526 = por %p524, %p525
      %p527 = scmp.ne.s32.totalorder %s515, %s516
      %p528 = scmp.eq.s32.totalorder %s39, 1
      %p529 = por %p527, %p528
      %p531 = scmp.ne.s32.totalorder %s516, %s530
      %p532 = scmp.eq.s32.totalorder %s39, 0
      %p533 = por %p531, %p532
      %s535 = sadd.s32 %s534, 1
      %p538 = scmp.eq.s32.totalorder %s33, 1
      %p539 = scmp.ne.s32.totalorder %s534, %s536
      %p540 = scmp.eq.s32.totalorder %s33, 0
      %p541 = por %p539, %p540
      %p542 = scmp.ne.s32.totalorder %s534, %s536
      %p543 = scmp.eq.s32.totalorder %s38, 1
      %p544 = por %p542, %p543
      %p545 = scmp.ne.s32.totalorder %s536, %s537
      %p546 = scmp.eq.s32.totalorder %s38, 0
      %p547 = por %p545, %p546
      %p548 = scmp.ne.s32.totalorder %s536, %s537
      %p549 = scmp.eq.s32.totalorder %s39, 1
      %p550 = por %p548, %p549
      %p552 = scmp.ne.s32.totalorder %s537, %s551
      %p553 = scmp.eq.s32.totalorder %s39, 0
      %p554 = por %p552, %p553
      %s556 = sadd.s32 %s555, 1
      %p559 = scmp.eq.s32.totalorder %s33, 1
      %p560 = scmp.ne.s32.totalorder %s555, %s557
      %p561 = scmp.eq.s32.totalorder %s33, 0
      %p562 = por %p560, %p561
      %p563 = scmp.ne.s32.totalorder %s555, %s557
      %p564 = scmp.eq.s32.totalorder %s38, 1
      %p565 = por %p563, %p564
      %p566 = scmp.ne.s32.totalorder %s557, %s558
      %p567 = scmp.eq.s32.totalorder %s38, 0
      %p568 = por %p566, %p567
      %p569 = scmp.ne.s32.totalorder %s557, %s558
      %p570 = scmp.eq.s32.totalorder %s39, 1
      %p571 = por %p569, %p570
      %p573 = scmp.ne.s32.totalorder %s558, %s572
      %p574 = scmp.eq.s32.totalorder %s39, 0
      %p575 = por %p573, %p574
      %s576 = ssub.s32 %s33, %s40
      %p577 = scmp.eq.s32.totalorder %s576, 0
      %s579 = sadd.s32 %s578, 1
      %s580 = scalar_select %p577, %s578, %s579
      %p583 = pneg %p577
      %p584 = scmp.eq.s32.totalorder %s33, 1
      %p585 = por %p583, %p584
      %p586 = scmp.ne.s32.totalorder %s578, %s581
      %p587 = scmp.eq.s32.totalorder %s33, 0
      %p588 = por %p586, %p587
      %p589 = scmp.ne.s32.totalorder %s578, %s581
      %p590 = scmp.eq.s32.totalorder %s38, 1
      %p591 = por %p589, %p590
      %p592 = scmp.ne.s32.totalorder %s581, %s582
      %p593 = scmp.eq.s32.totalorder %s38, 0
      %p594 = por %p592, %p593
      %p595 = scmp.ne.s32.totalorder %s581, %s582
      %p596 = scmp.eq.s32.totalorder %s39, 1
      %p597 = por %p595, %p596
      %p599 = scmp.ne.s32.totalorder %s582, %s598
      %p600 = scmp.eq.s32.totalorder %s39, 0
      %p601 = por %p599, %p600
      %p602 = scmp.le.s32.totalorder 1, %s33
      %p603 = scmp.lt.s32.totalorder %s33, 3
      %p604 = pnand %p602, %p603
      %p605 = pneg %p604
      // Predicated region
      $region9: #{ker_adp_block_forward.1} parent=5 // pred_check
        _
      $region10: #{ker_adp_block_forward.1} parent=5 // pred_check_branch
        %607 = sbr.rel (%p604) target = $region12
      $region11: #{ker_adp_block_forward.1} parent=5 // pred_region
        %s608 = ssub.s32 %s33, 1
        // Predicated region
        $region13: #{ker_adp_block_forward.1} parent=11 // pred_check
          %p609 = pneg %p106
        $region14: #{ker_adp_block_forward.1} parent=11 // pred_check_branch
          %611 = sbr.rel (%p609) target = $region16
        $region15: #{ker_adp_block_forward.1} parent=11 // pred_region
          _
        $region16: #{ker_adp_block_forward.1} parent=11 // pred_fallthru
          _
        // Predicated region
        $region17: #{ker_adp_block_forward.1} parent=11 // pred_check
          %p612 = pneg %p127
        $region18: #{ker_adp_block_forward.1} parent=11 // pred_check_branch
          %614 = sbr.rel (%p612) target = $region20
        $region19: #{ker_adp_block_forward.1} parent=11 // pred_region
          _
        $region20: #{ker_adp_block_forward.1} parent=11 // pred_fallthru
          _
        // Predicated region
        $region21: #{ker_adp_block_forward.1} parent=11 // pred_check
          %p615 = pneg %p148
        $region22: #{ker_adp_block_forward.1} parent=11 // pred_check_branch
          %617 = sbr.rel (%p615) target = $region24
        $region23: #{ker_adp_block_forward.1} parent=11 // pred_region
          _
        $region24: #{ker_adp_block_forward.1} parent=11 // pred_fallthru
          _
        // Predicated region
        $region25: #{ker_adp_block_forward.1} parent=11 // pred_check
          %p618 = pneg %p169
        $region26: #{ker_adp_block_forward.1} parent=11 // pred_check_branch
          %620 = sbr.rel (%p618) target = $region28
        $region27: #{ker_adp_block_forward.1} parent=11 // pred_region
          _
        $region28: #{ker_adp_block_forward.1} parent=11 // pred_fallthru
          _
        // Predicated region
        $region29: #{ker_adp_block_forward.1} parent=11 // pred_check
          %p621 = pneg %p190
        $region30: #{ker_adp_block_forward.1} parent=11 // pred_check_branch
          %623 = sbr.rel (%p621) target = $region32
        $region31: #{ker_adp_block_forward.1} parent=11 // pred_region
          _
        $region32: #{ker_adp_block_forward.1} parent=11 // pred_fallthru
          _
        // Predicated region
        $region33: #{ker_adp_block_forward.1} parent=11 // pred_check
          %p624 = pneg %p211
        $region34: #{ker_adp_block_forward.1} parent=11 // pred_check_branch
          %626 = sbr.rel (%p624) target = $region36
        $region35: #{ker_adp_block_forward.1} parent=11 // pred_region
          _
        $region36: #{ker_adp_block_forward.1} parent=11 // pred_fallthru
          _
        // Predicated region
        $region37: #{ker_adp_block_forward.1} parent=11 // pred_check
          %p627 = pneg %p232
        $region38: #{ker_adp_block_forward.1} parent=11 // pred_check_branch
          %629 = sbr.rel (%p627) target = $region40
        $region39: #{ker_adp_block_forward.1} parent=11 // pred_region
          _
        $region40: #{ker_adp_block_forward.1} parent=11 // pred_fallthru
          _
        // Predicated region
        $region41: #{ker_adp_block_forward.1} parent=11 // pred_check
          %p630 = pneg %p253
        $region42: #{ker_adp_block_forward.1} parent=11 // pred_check_branch
          %632 = sbr.rel (%p630) target = $region44
        $region43: #{ker_adp_block_forward.1} parent=11 // pred_region
          _
        $region44: #{ker_adp_block_forward.1} parent=11 // pred_fallthru
          _
        // Predicated region
        $region45: #{ker_adp_block_forward.1} parent=11 // pred_check
          %p633 = pneg %p274
        $region46: #{ker_adp_block_forward.1} parent=11 // pred_check_branch
          %635 = sbr.rel (%p633) target = $region48
        $region47: #{ker_adp_block_forward.1} parent=11 // pred_region
          _
        $region48: #{ker_adp_block_forward.1} parent=11 // pred_fallthru
          _
        // Predicated region
        $region49: #{ker_adp_block_forward.1} parent=11 // pred_check
          %p636 = pneg %p295
        $region50: #{ker_adp_block_forward.1} parent=11 // pred_check_branch
          %638 = sbr.rel (%p636) target = $region52
        $region51: #{ker_adp_block_forward.1} parent=11 // pred_region
          _
        $region52: #{ker_adp_block_forward.1} parent=11 // pred_fallthru
          _
        // Predicated region
        $region53: #{ker_adp_block_forward.1} parent=11 // pred_check
          %p639 = pneg %p316
        $region54: #{ker_adp_block_forward.1} parent=11 // pred_check_branch
          %641 = sbr.rel (%p639) target = $region56
        $region55: #{ker_adp_block_forward.1} parent=11 // pred_region
          %643 = vsyncadd [#allocation3], 0
          %s644 = sshll.u32 %s12, 4
          %s645 = int_to_ptr.hbm [resolvable:$true] %s644
          %s646 = sshll.u32 [#allocation2], 4
          %s647 = int_to_ptr.vmem [resolvable:$true] %s646
          %652 = dma.hbm_to_vmem [thread:$0]  %s645, 36864, %s647, [#allocation3], 128, 128, 8
        $region56: #{ker_adp_block_forward.1} parent=11 // pred_fallthru
          _
        // Predicated region
        $region57: #{ker_adp_block_forward.1} parent=11 // pred_check
          %p653 = pneg %p337
        $region58: #{ker_adp_block_forward.1} parent=11 // pred_check_branch
          %655 = sbr.rel (%p653) target = $region60
        $region59: #{ker_adp_block_forward.1} parent=11 // pred_region
          _
        $region60: #{ker_adp_block_forward.1} parent=11 // pred_fallthru
          _
        // Predicated region
        $region61: #{ker_adp_block_forward.1} parent=11 // pred_check
          %p656 = pneg %p358
        $region62: #{ker_adp_block_forward.1} parent=11 // pred_check_branch
          %658 = sbr.rel (%p656) target = $region64
        $region63: #{ker_adp_block_forward.1} parent=11 // pred_region
          _
        $region64: #{ker_adp_block_forward.1} parent=11 // pred_fallthru
          _
        // Predicated region
        $region65: #{ker_adp_block_forward.1} parent=11 // pred_check
          %p659 = pneg %p379
        $region66: #{ker_adp_block_forward.1} parent=11 // pred_check_branch
          %661 = sbr.rel (%p659) target = $region68
        $region67: #{ker_adp_block_forward.1} parent=11 // pred_region
          _
        $region68: #{ker_adp_block_forward.1} parent=11 // pred_fallthru
          _
        // Predicated region
        $region69: #{ker_adp_block_forward.1} parent=11 // pred_check
          %p662 = pneg %p400
        $region70: #{ker_adp_block_forward.1} parent=11 // pred_check_branch
          %664 = sbr.rel (%p662) target = $region72
        $region71: #{ker_adp_block_forward.1} parent=11 // pred_region
          _
        $region72: #{ker_adp_block_forward.1} parent=11 // pred_fallthru
          _
        // Predicated region
        $region73: #{ker_adp_block_forward.1} parent=11 // pred_check
          %p665 = pneg %p421
        $region74: #{ker_adp_block_forward.1} parent=11 // pred_check_branch
          %667 = sbr.rel (%p665) target = $region76
        $region75: #{ker_adp_block_forward.1} parent=11 // pred_region
          _
        $region76: #{ker_adp_block_forward.1} parent=11 // pred_fallthru
          _
        // Predicated region
        $region77: #{ker_adp_block_forward.1} parent=11 // pred_check
          %p668 = pneg %p442
        $region78: #{ker_adp_block_forward.1} parent=11 // pred_check_branch
          %670 = sbr.rel (%p668) target = $region80
        $region79: #{ker_adp_block_forward.1} parent=11 // pred_region
          _
        $region80: #{ker_adp_block_forward.1} parent=11 // pred_fallthru
          _
        // Predicated region
        $region81: #{ker_adp_block_forward.1} parent=11 // pred_check
          %p671 = pneg %p463
        $region82: #{ker_adp_block_forward.1} parent=11 // pred_check_branch
          %673 = sbr.rel (%p671) target = $region84
        $region83: #{ker_adp_block_forward.1} parent=11 // pred_region
          _
        $region84: #{ker_adp_block_forward.1} parent=11 // pred_fallthru
          _
        // Predicated region
        $region85: #{ker_adp_block_forward.1} parent=11 // pred_check
          %p674 = pneg %p484
        $region86: #{ker_adp_block_forward.1} parent=11 // pred_check_branch
          %676 = sbr.rel (%p674) target = $region88
        $region87: #{ker_adp_block_forward.1} parent=11 // pred_region
          _
        $region88: #{ker_adp_block_forward.1} parent=11 // pred_fallthru
          _
        // Predicated region
        $region89: #{ker_adp_block_forward.1} parent=11 // pred_check
          %p677 = pneg %p505
        $region90: #{ker_adp_block_forward.1} parent=11 // pred_check_branch
          %679 = sbr.rel (%p677) target = $region92
        $region91: #{ker_adp_block_forward.1} parent=11 // pred_region
          %681 = vsyncadd [#allocation5], 0
          %s682 = sshll.u32 %s21, 4
          %s683 = int_to_ptr.hbm [resolvable:$true] %s682
          %s684 = sshll.u32 [#allocation4], 4
          %s685 = int_to_ptr.vmem [resolvable:$true] %s684
          %690 = dma.hbm_to_vmem [thread:$0]  %s683, 32768, %s685, [#allocation5], 256, 256, 16
        $region92: #{ker_adp_block_forward.1} parent=11 // pred_fallthru
          _
        // Predicated region
        $region93: #{ker_adp_block_forward.1} parent=11 // pred_check
          %p691 = pneg %p526
        $region94: #{ker_adp_block_forward.1} parent=11 // pred_check_branch
          %693 = sbr.rel (%p691) target = $region96
        $region95: #{ker_adp_block_forward.1} parent=11 // pred_region
          _
        $region96: #{ker_adp_block_forward.1} parent=11 // pred_fallthru
          _
        // Predicated region
        $region97: #{ker_adp_block_forward.1} parent=11 // pred_check
          %p694 = pneg %p547
        $region98: #{ker_adp_block_forward.1} parent=11 // pred_check_branch
          %696 = sbr.rel (%p694) target = $region100
        $region99: #{ker_adp_block_forward.1} parent=11 // pred_region
          _
        $region100: #{ker_adp_block_forward.1} parent=11 // pred_fallthru
          _
        // Predicated region
        $region101: #{ker_adp_block_forward.1} parent=11 // pred_check
          %p697 = pneg %p568
        $region102: #{ker_adp_block_forward.1} parent=11 // pred_check_branch
          %699 = sbr.rel (%p697) target = $region104
        $region103: #{ker_adp_block_forward.1} parent=11 // pred_region
          _
        $region104: #{ker_adp_block_forward.1} parent=11 // pred_fallthru
          _
      $region12: #{ker_adp_block_forward.1} parent=5 // pred_fallthru
        _
      %p700 = scmp.lt.s32.totalorder %s33, 2
      // Predicated region
      $region105: #{ker_adp_block_forward.1} parent=5 // pred_check
        %p701 = pneg %p700
      $region106: #{ker_adp_block_forward.1} parent=5 // pred_check_branch
        %703 = sbr.rel (%p701) target = $region108
      $region107: #{ker_adp_block_forward.1} parent=5 // pred_region
        // Predicated region
        $region109: #{ker_adp_block_forward.1} parent=107 // pred_check
          %p704 = pneg %p53
        $region110: #{ker_adp_block_forward.1} parent=107 // pred_check_branch
          %706 = sbr.rel (%p704) target = $region112
        $region111: #{ker_adp_block_forward.1} parent=107 // pred_region
          %p707 = scmp.lt.s32.totalorder %s33, 1
          %s708 = scalar_select %p707, %s33, 1
          %s709 = smul.addr %s708, 2
          %s710 = smul.addr %s709, 8
          %s711 = scalar_lea.vmem %s0, %s710
        $region112: #{ker_adp_block_forward.1} parent=107 // pred_fallthru
          _
        // Predicated region
        $region113: #{ker_adp_block_forward.1} parent=107 // pred_check
          %p712 = pneg %p79
        $region114: #{ker_adp_block_forward.1} parent=107 // pred_check_branch
          %714 = sbr.rel (%p712) target = $region116
        $region115: #{ker_adp_block_forward.1} parent=107 // pred_region
          %p715 = scmp.lt.s32.totalorder %s33, 1
          %s716 = scalar_select %p715, %s33, 1
          %s717 = smul.addr %s716, 37
          %s718 = smul.addr %s717, 8
          %s719 = scalar_lea.vmem %s1, %s718
        $region116: #{ker_adp_block_forward.1} parent=107 // pred_fallthru
          _
      $region108: #{ker_adp_block_forward.1} parent=5 // pred_fallthru
        _
      %p720 = scmp.le.s32.totalorder 1, %s33
      %p721 = scmp.lt.s32.totalorder %s33, 3
      %p722 = pnand %p720, %p721
      %p723 = pneg %p722
      // Predicated region
      $region117: #{ker_adp_block_forward.1} parent=5 // pred_check
        _
      $region118: #{ker_adp_block_forward.1} parent=5 // pred_check_branch
        %725 = sbr.rel (%p722) target = $region120
      $region119: #{ker_adp_block_forward.1} parent=5 // pred_region
        %s726 = ssub.s32 %s33, 1
        // Predicated region
        $region121: #{ker_adp_block_forward.1} parent=119 // pred_check
          %p727 = pneg %p316
        $region122: #{ker_adp_block_forward.1} parent=119 // pred_check_branch
          %729 = sbr.rel (%p727) target = $region124
        $region123: #{ker_adp_block_forward.1} parent=119 // pred_region
          %731 = dma.done [#allocation3], 36864
        $region124: #{ker_adp_block_forward.1} parent=119 // pred_fallthru
          _
        // Predicated region
        $region125: #{ker_adp_block_forward.1} parent=119 // pred_check
          %p732 = pneg %p505
        $region126: #{ker_adp_block_forward.1} parent=119 // pred_check_branch
          %734 = sbr.rel (%p732) target = $region128
        $region127: #{ker_adp_block_forward.1} parent=119 // pred_region
          %736 = dma.done [#allocation5], 32768
        $region128: #{ker_adp_block_forward.1} parent=119 // pred_fallthru
          _
        %p737 = scmp.lt.s32.totalorder %s38, 1
        %s738 = scalar_select %p737, %s38, 1
        %s739 = smul.addr %s738, 2
        %s740 = smul.addr %s739, 8
        %s741 = scalar_lea.vmem %s0, %s740
        %p742 = pneg %p59
        %p743 = pneg %p56
        %p744 = scmp.lt.s32.totalorder %s38, 1
        %s745 = scalar_select %p744, %s38, 1
        %s746 = smul.addr %s745, 37
        %s747 = smul.addr %s746, 8
        %s748 = scalar_lea.vmem %s1, %s747
        %p749 = pneg %p85
        %p750 = pneg %p82
        %p751 = pneg %p106
        %p752 = pneg %p103
        %p753 = pneg %p127
        %p754 = pneg %p124
        %p755 = pneg %p148
        %p756 = pneg %p145
        %p757 = pneg %p169
        %p758 = pneg %p166
        %p759 = pneg %p190
        %p760 = pneg %p187
        %p761 = pneg %p211
        %p762 = pneg %p208
        %p763 = pneg %p232
        %p764 = pneg %p229
        %p765 = pneg %p253
        %p766 = pneg %p250
        %p767 = pneg %p274
        %p768 = pneg %p271
        %p769 = pneg %p295
        %p770 = pneg %p292
        %p771 = pneg %p316
        %p772 = pneg %p313
        %p773 = pneg %p337
        %p774 = pneg %p334
        %p775 = pneg %p358
        %p776 = pneg %p355
        %p777 = pneg %p379
        %p778 = pneg %p376
        %p779 = pneg %p400
        %p780 = pneg %p397
        %p781 = pneg %p421
        %p782 = pneg %p418
        %p783 = pneg %p442
        %p784 = pneg %p439
        %p785 = pneg %p463
        %p786 = pneg %p460
        %p787 = pneg %p484
        %p788 = pneg %p481
        %p789 = pneg %p505
        %p790 = pneg %p502
        %p791 = pneg %p526
        %p792 = pneg %p523
        %p793 = pneg %p547
        %p794 = pneg %p544
        %p795 = pneg %p568
        %p796 = pneg %p565
        %p797 = pneg %p594
        %p798 = pneg %p591
        %p799 = scmp.lt.s32.totalorder %s38, 1
        %s800 = scalar_select %p799, %s38, 1
        %s801 = smul.addr %s800, 2
        %s802 = smul.addr %s801, 8
        %s803 = scalar_lea.vmem %s25, %s802
        %p804 = scmp.lt.s32.totalorder %s38, 1
        %s805 = scalar_select %p804, %s38, 1
        %s806 = smul.addr %s805, 2
        %s807 = smul.addr %s806, 8
        %s808 = scalar_lea.vmem %s0, %s807
        %p809 = scmp.lt.s32.totalorder %s38, 1
        %s810 = scalar_select %p809, %s38, 1
        %s811 = smul.addr %s810, 37
        %s812 = smul.addr %s811, 8
        %s813 = scalar_lea.vmem %s1, %s812
        %p814 = scmp.lt.s32.totalorder %s38, 1
        %s815 = scalar_select %p814, %s38, 1
        %s816 = smul.addr %s815, 2
        %s817 = smul.addr %s816, 8
        %s818 = scalar_lea.vmem %s25, %s817
        %v819 = vld [vmem:[%s813] sm:$0xff]
        %v820 = vld [vmem:[%s813 + $0x8] sm:$0xff]
        %v821 = vld [vmem:[%s813 + $0x10] sm:$0xff]
        %v822 = vld [vmem:[%s813 + $0x18] sm:$0xff]
        %v823 = vld [vmem:[%s813 + $0x20] sm:$0xff]
        %v824 = vld [vmem:[%s813 + $0x28] sm:$0xff]
        %v825 = vld [vmem:[%s813 + $0x30] sm:$0xff]
        %v826 = vld [vmem:[%s813 + $0x38] sm:$0xff]
        %v827 = vld [vmem:[%s813 + $0x40] sm:$0xff]
        %v828 = vld [vmem:[%s813 + $0x48] sm:$0xff]
        %v829 = vld [vmem:[%s813 + $0x50] sm:$0xff]
        %v830 = vld [vmem:[%s813 + $0x58] sm:$0xff]
        %v831 = vld [vmem:[%s813 + $0x60] sm:$0xff]
        %v832 = vld [vmem:[%s813 + $0x68] sm:$0xff]
        %v833 = vld [vmem:[%s813 + $0x70] sm:$0xff]
        %v834 = vld [vmem:[%s813 + $0x78] sm:$0xff]
        %v835 = vld [vmem:[%s813 + $0x80] sm:$0xff]
        %v836 = vld [vmem:[%s813 + $0x88] sm:$0xff]
        %v837 = vld [vmem:[%s813 + $0x90] sm:$0xff]
        %v838 = vld [vmem:[%s813 + $0x98] sm:$0xff]
        %v839 = vld [vmem:[%s813 + $0xa0] sm:$0xff]
        %v840 = vld [vmem:[%s813 + $0xa8] sm:$0xff]
        %v841 = vld [vmem:[%s813 + $0xb0] sm:$0xff]
        %v842 = vld [vmem:[%s813 + $0xb8] sm:$0xff]
        %v843 = vld [vmem:[%s813 + $0xc0] sm:$0xff]
        %v844 = vld [vmem:[%s813 + $0xc8] sm:$0xff]
        %v845 = vld [vmem:[%s813 + $0xd0] sm:$0xff]
        %v846 = vld [vmem:[%s813 + $0xd8] sm:$0xff]
        %v847 = vld [vmem:[%s813 + $0xe0] sm:$0xff]
        %v848 = vld [vmem:[%s813 + $0xe8] sm:$0xff]
        %v849 = vld [vmem:[%s813 + $0xf0] sm:$0xff]
        %v850 = vld [vmem:[%s813 + $0xf8] sm:$0xff]
        %v851 = vld [vmem:[%s813 + $0x100] sm:$0xff]
        %v852 = vld [vmem:[%s813 + $0x108] sm:$0xff]
        %v853 = vld [vmem:[%s813 + $0x110] sm:$0xff]
        %v854 = vld [vmem:[%s813 + $0x118] sm:$0xff]
        %v855 = vld [vmem:[%s813 + $0x120] sm:$0x1]
        %v856 = vld [vmem:[%s2] sm:$0xff]
        %v857 = vld [vmem:[%s2 + $0x8] sm:$0xff]
        %v858 = vld [vmem:[%s2 + $0x10] sm:$0xff]
        %v859 = vld [vmem:[%s2 + $0x18] sm:$0xff]
        %v860 = vld [vmem:[%s2 + $0x20] sm:$0xff]
        %v861 = vld [vmem:[%s2 + $0x28] sm:$0xff]
        %v862 = vld [vmem:[%s2 + $0x30] sm:$0xff]
        %v863 = vld [vmem:[%s2 + $0x38] sm:$0xff]
        %v864 = vld [vmem:[%s2 + $0x40] sm:$0xff]
        %v865 = vld [vmem:[%s2 + $0x48] sm:$0xff]
        %v866 = vld [vmem:[%s2 + $0x50] sm:$0xff]
        %v867 = vld [vmem:[%s2 + $0x58] sm:$0xff]
        %v868 = vld [vmem:[%s2 + $0x60] sm:$0xff]
        %v869 = vld [vmem:[%s2 + $0x68] sm:$0xff]
        %v870 = vld [vmem:[%s2 + $0x70] sm:$0xff]
        %v871 = vld [vmem:[%s2 + $0x78] sm:$0xff]
        %v872 = vld [vmem:[%s2 + $0x80] sm:$0xff]
        %v873 = vld [vmem:[%s2 + $0x88] sm:$0xff]
        %v874 = vld [vmem:[%s2 + $0x90] sm:$0xff]
        %v875 = vld [vmem:[%s2 + $0x98] sm:$0xff]
        %v876 = vld [vmem:[%s2 + $0xa0] sm:$0xff]
        %v877 = vld [vmem:[%s2 + $0xa8] sm:$0xff]
        %v878 = vld [vmem:[%s2 + $0xb0] sm:$0xff]
        %v879 = vld [vmem:[%s2 + $0xb8] sm:$0xff]
        %v880 = vld [vmem:[%s2 + $0xc0] sm:$0xff]
        %v881 = vld [vmem:[%s2 + $0xc8] sm:$0xff]
        %v882 = vld [vmem:[%s2 + $0xd0] sm:$0xff]
        %v883 = vld [vmem:[%s2 + $0xd8] sm:$0xff]
        %v884 = vld [vmem:[%s2 + $0xe0] sm:$0xff]
        %v885 = vld [vmem:[%s2 + $0xe8] sm:$0xff]
        %v886 = vld [vmem:[%s2 + $0xf0] sm:$0xff]
        %v887 = vld [vmem:[%s2 + $0xf8] sm:$0xff]
        %v888 = vld [vmem:[%s2 + $0x100] sm:$0xff]
        %v889 = vld [vmem:[%s2 + $0x108] sm:$0xff]
        %v890 = vld [vmem:[%s2 + $0x110] sm:$0xff]
        %v891 = vld [vmem:[%s2 + $0x118] sm:$0xff]
        %v892 = vld [vmem:[%s2 + $0x120] sm:$0xff]
        %v893 = vld [vmem:[%s2 + $0x128] sm:$0xff]
        %v894 = vld [vmem:[%s2 + $0x130] sm:$0xff]
        %v895 = vld [vmem:[%s2 + $0x138] sm:$0xff]
        %v896 = vld [vmem:[%s2 + $0x140] sm:$0xff]
        %v897 = vld [vmem:[%s2 + $0x148] sm:$0xff]
        %v898 = vld [vmem:[%s2 + $0x150] sm:$0xff]
        %v899 = vld [vmem:[%s2 + $0x158] sm:$0xff]
        %v900 = vld [vmem:[%s2 + $0x160] sm:$0xff]
        %v901 = vld [vmem:[%s2 + $0x168] sm:$0xff]
        %v902 = vld [vmem:[%s2 + $0x170] sm:$0xff]
        %v903 = vld [vmem:[%s2 + $0x178] sm:$0xff]
        %v904 = vld [vmem:[%s2 + $0x180] sm:$0xff]
        %v905 = vld [vmem:[%s2 + $0x188] sm:$0xff]
        %v906 = vld [vmem:[%s2 + $0x190] sm:$0xff]
        %v907 = vld [vmem:[%s2 + $0x198] sm:$0xff]
        %v908 = vld [vmem:[%s2 + $0x1a0] sm:$0xff]
        %v909 = vld [vmem:[%s2 + $0x1a8] sm:$0xff]
        %v910 = vld [vmem:[%s2 + $0x1b0] sm:$0xff]
        %v911 = vld [vmem:[%s2 + $0x1b8] sm:$0xff]
        %v912 = vld [vmem:[%s2 + $0x1c0] sm:$0xff]
        %v913 = vld [vmem:[%s2 + $0x1c8] sm:$0xff]
        %v914 = vld [vmem:[%s2 + $0x1d0] sm:$0xff]
        %v915 = vld [vmem:[%s2 + $0x1d8] sm:$0xff]
        %v916 = vld [vmem:[%s2 + $0x1e0] sm:$0xff]
        %v917 = vld [vmem:[%s2 + $0x1e8] sm:$0xff]
        %v918 = vld [vmem:[%s2 + $0x1f0] sm:$0xff]
        %v919 = vld [vmem:[%s2 + $0x1f8] sm:$0xff]
        %v920 = vld [vmem:[%s2 + $0x200] sm:$0xff]
        %v921 = vld [vmem:[%s2 + $0x208] sm:$0xff]
        %v922 = vld [vmem:[%s2 + $0x210] sm:$0xff]
        %v923 = vld [vmem:[%s2 + $0x218] sm:$0xff]
        %v924 = vld [vmem:[%s2 + $0x220] sm:$0xff]
        %v925 = vld [vmem:[%s2 + $0x228] sm:$0xff]
        %v926 = vld [vmem:[%s2 + $0x230] sm:$0xff]
        %v927 = vld [vmem:[%s2 + $0x238] sm:$0xff]
        %v928 = vld [vmem:[%s2 + $0x240] sm:$0xff]
        %v929 = vld [vmem:[%s2 + $0x248] sm:$0xff]
        %v930 = vld [vmem:[%s2 + $0x250] sm:$0xff]
        %v931 = vld [vmem:[%s2 + $0x258] sm:$0xff]
        %v932 = vld [vmem:[%s2 + $0x260] sm:$0xff]
        %v933 = vld [vmem:[%s2 + $0x268] sm:$0xff]
        %v934 = vld [vmem:[%s2 + $0x270] sm:$0xff]
        %v935 = vld [vmem:[%s2 + $0x278] sm:$0xff]
        %v936 = vld [vmem:[%s2 + $0x280] sm:$0xff]
        %v937 = vld [vmem:[%s2 + $0x288] sm:$0xff]
        %v938 = vld [vmem:[%s2 + $0x290] sm:$0xff]
        %v939 = vld [vmem:[%s2 + $0x298] sm:$0xff]
        %v940 = vld [vmem:[%s2 + $0x2a0] sm:$0xff]
        %v941 = vld [vmem:[%s2 + $0x2a8] sm:$0xff]
        %v942 = vld [vmem:[%s2 + $0x2b0] sm:$0xff]
        %v943 = vld [vmem:[%s2 + $0x2b8] sm:$0xff]
        %v944 = vld [vmem:[%s2 + $0x2c0] sm:$0xff]
        %v945 = vld [vmem:[%s2 + $0x2c8] sm:$0xff]
        %v946 = vld [vmem:[%s2 + $0x2d0] sm:$0xff]
        %v947 = vld [vmem:[%s2 + $0x2d8] sm:$0xff]
        %v948 = vld [vmem:[%s2 + $0x2e0] sm:$0xff]
        %v949 = vld [vmem:[%s2 + $0x2e8] sm:$0xff]
        %v950 = vld [vmem:[%s2 + $0x2f0] sm:$0xff]
        %v951 = vld [vmem:[%s2 + $0x2f8] sm:$0xff]
        %v952 = vld [vmem:[%s3] sm:$0xff]
        %v953 = vld [vmem:[%s3 + $0x8] sm:$0xff]
        %v954 = vld [vmem:[%s3 + $0x10] sm:$0xff]
        %v955 = vld [vmem:[%s3 + $0x18] sm:$0xff]
        %v956 = vld [vmem:[%s3 + $0x20] sm:$0xff]
        %v957 = vld [vmem:[%s3 + $0x28] sm:$0xff]
        %v958 = vld [vmem:[%s3 + $0x30] sm:$0xff]
        %v959 = vld [vmem:[%s3 + $0x38] sm:$0xff]
        %v960 = vld [vmem:[%s3 + $0x40] sm:$0xff]
        %v961 = vld [vmem:[%s3 + $0x48] sm:$0xff]
        %v962 = vld [vmem:[%s3 + $0x50] sm:$0xff]
        %v963 = vld [vmem:[%s3 + $0x58] sm:$0xff]
        %v964 = vld [vmem:[%s3 + $0x60] sm:$0xff]
        %v965 = vld [vmem:[%s3 + $0x68] sm:$0xff]
        %v966 = vld [vmem:[%s3 + $0x70] sm:$0xff]
        %v967 = vld [vmem:[%s3 + $0x78] sm:$0xff]
        %v968 = vld [vmem:[%s3 + $0x80] sm:$0xff]
        %v969 = vld [vmem:[%s3 + $0x88] sm:$0xff]
        %v970 = vld [vmem:[%s3 + $0x90] sm:$0xff]
        %v971 = vld [vmem:[%s3 + $0x98] sm:$0xff]
        %v972 = vld [vmem:[%s3 + $0xa0] sm:$0xff]
        %v973 = vld [vmem:[%s3 + $0xa8] sm:$0xff]
        %v974 = vld [vmem:[%s3 + $0xb0] sm:$0xff]
        %v975 = vld [vmem:[%s3 + $0xb8] sm:$0xff]
        %v976 = vld [vmem:[%s3 + $0xc0] sm:$0xff]
        %v977 = vld [vmem:[%s3 + $0xc8] sm:$0xff]
        %v978 = vld [vmem:[%s3 + $0xd0] sm:$0xff]
        %v979 = vld [vmem:[%s3 + $0xd8] sm:$0xff]
        %v980 = vld [vmem:[%s3 + $0xe0] sm:$0xff]
        %v981 = vld [vmem:[%s3 + $0xe8] sm:$0xff]
        %v982 = vld [vmem:[%s3 + $0xf0] sm:$0xff]
        %v983 = vld [vmem:[%s3 + $0xf8] sm:$0xff]
        %vm984 = vcmask 269312
        %v986 = vsel %vm984, %v858, 0
        %v989 = vsel %vm984, %v861, 0
        %v992 = vsel %vm984, %v864, 0
        %v995 = vsel %vm984, %v867, 0
        %v998 = vsel %vm984, %v870, 0
        %v1001 = vsel %vm984, %v873, 0
        %v1004 = vsel %vm984, %v876, 0
        %v1007 = vsel %vm984, %v879, 0
        %v1010 = vsel %vm984, %v882, 0
        %v1013 = vsel %vm984, %v885, 0
        %v1016 = vsel %vm984, %v888, 0
        %v1019 = vsel %vm984, %v891, 0
        %v1022 = vsel %vm984, %v894, 0
        %v1025 = vsel %vm984, %v897, 0
        %v1028 = vsel %vm984, %v900, 0
        %v1031 = vsel %vm984, %v903, 0
        %v1034 = vsel %vm984, %v906, 0
        %v1037 = vsel %vm984, %v909, 0
        %v1040 = vsel %vm984, %v912, 0
        %v1043 = vsel %vm984, %v915, 0
        %v1046 = vsel %vm984, %v918, 0
        %v1049 = vsel %vm984, %v921, 0
        %v1052 = vsel %vm984, %v924, 0
        %v1055 = vsel %vm984, %v927, 0
        %v1058 = vsel %vm984, %v930, 0
        %v1061 = vsel %vm984, %v933, 0
        %v1064 = vsel %vm984, %v936, 0
        %v1067 = vsel %vm984, %v939, 0
        %v1070 = vsel %vm984, %v942, 0
        %v1073 = vsel %vm984, %v945, 0
        %v1076 = vsel %vm984, %v948, 0
        %v1079 = vsel %vm984, %v951, 0
        %vm1081 = vcmask 1040384
        %v1083 = vsel %vm1081, %v855, 0
        %1085 = vmatpush.msra.mxu0 %v834
        %1086 = vmatpush.msra.mxu0 %v833
        %1087 = vmatpush.msra.mxu0 %v832
        %1088 = vmatpush.msra.mxu0 %v831
        %1089 = vmatpush.msra.mxu0 %v830
        %1090 = vmatpush.msra.mxu0 %v829
        %1091 = vmatpush.msra.mxu0 %v828
        %1092 = vmatpush.msra.mxu0 %v827
        %1093 = vmatpush.msra.mxu0 %v826
        %1094 = vmatpush.msra.mxu0 %v825
        %1095 = vmatpush.msra.mxu0 %v824
        %1096 = vmatpush.msra.mxu0 %v823
        %1097 = vmatpush.msra.mxu0 %v822
        %1098 = vmatpush.msra.mxu0 %v821
        %1099 = vmatpush.msra.mxu0 %v820
        %1100 = vmatpush.msra.mxu0 %v819
        %1101 = vmatmul.f32.gmra.mxu0 %v856
        %v1102 = vpop.f32.mrf.mxu0
        %v1103 = vadd.f32 %v952, %v1102
        %1104 = vmatmul.f32.gmra.mxu0 %v859
        %v1105 = vpop.f32.mrf.mxu0
        %v1106 = vadd.f32 %v953, %v1105
        %1107 = vmatmul.f32.gmra.mxu0 %v862
        %v1108 = vpop.f32.mrf.mxu0
        %v1109 = vadd.f32 %v954, %v1108
        %1110 = vmatmul.f32.gmra.mxu0 %v865
        %v1111 = vpop.f32.mrf.mxu0
        %v1112 = vadd.f32 %v955, %v1111
        %1113 = vmatmul.f32.gmra.mxu0 %v868
        %v1114 = vpop.f32.mrf.mxu0
        %v1115 = vadd.f32 %v956, %v1114
        %1116 = vmatmul.f32.gmra.mxu0 %v871
        %v1117 = vpop.f32.mrf.mxu0
        %v1118 = vadd.f32 %v957, %v1117
        %1119 = vmatmul.f32.gmra.mxu0 %v874
        %v1120 = vpop.f32.mrf.mxu0
        %v1121 = vadd.f32 %v958, %v1120
        %1122 = vmatmul.f32.gmra.mxu0 %v877
        %v1123 = vpop.f32.mrf.mxu0
        %v1124 = vadd.f32 %v959, %v1123
        %1125 = vmatmul.f32.gmra.mxu0 %v880
        %v1126 = vpop.f32.mrf.mxu0
        %v1127 = vadd.f32 %v960, %v1126
        %1128 = vmatmul.f32.gmra.mxu0 %v883
        %v1129 = vpop.f32.mrf.mxu0
        %v1130 = vadd.f32 %v961, %v1129
        %1131 = vmatmul.f32.gmra.mxu0 %v886
        %v1132 = vpop.f32.mrf.mxu0
        %v1133 = vadd.f32 %v962, %v1132
        %1134 = vmatmul.f32.gmra.mxu0 %v889
        %v1135 = vpop.f32.mrf.mxu0
        %v1136 = vadd.f32 %v963, %v1135
        %1137 = vmatmul.f32.gmra.mxu0 %v892
        %v1138 = vpop.f32.mrf.mxu0
        %v1139 = vadd.f32 %v964, %v1138
        %1140 = vmatmul.f32.gmra.mxu0 %v895
        %v1141 = vpop.f32.mrf.mxu0
        %v1142 = vadd.f32 %v965, %v1141
        %1143 = vmatmul.f32.gmra.mxu0 %v898
        %v1144 = vpop.f32.mrf.mxu0
        %v1145 = vadd.f32 %v966, %v1144
        %1146 = vmatmul.f32.gmra.mxu0 %v901
        %v1147 = vpop.f32.mrf.mxu0
        %v1148 = vadd.f32 %v967, %v1147
        %1149 = vmatmul.f32.gmra.mxu0 %v904
        %v1150 = vpop.f32.mrf.mxu0
        %v1151 = vadd.f32 %v968, %v1150
        %1152 = vmatmul.f32.gmra.mxu0 %v907
        %v1153 = vpop.f32.mrf.mxu0
        %v1154 = vadd.f32 %v969, %v1153
        %1155 = vmatmul.f32.gmra.mxu0 %v910
        %v1156 = vpop.f32.mrf.mxu0
        %v1157 = vadd.f32 %v970, %v1156
        %1158 = vmatmul.f32.gmra.mxu0 %v913
        %v1159 = vpop.f32.mrf.mxu0
        %v1160 = vadd.f32 %v971, %v1159
        %1161 = vmatmul.f32.gmra.mxu0 %v916
        %v1162 = vpop.f32.mrf.mxu0
        %v1163 = vadd.f32 %v972, %v1162
        %1164 = vmatmul.f32.gmra.mxu0 %v919
        %v1165 = vpop.f32.mrf.mxu0
        %v1166 = vadd.f32 %v973, %v1165
        %1167 = vmatmul.f32.gmra.mxu0 %v922
        %v1168 = vpop.f32.mrf.mxu0
        %v1169 = vadd.f32 %v974, %v1168
        %1170 = vmatmul.f32.gmra.mxu0 %v925
        %v1171 = vpop.f32.mrf.mxu0
        %v1172 = vadd.f32 %v975, %v1171
        %1173 = vmatmul.f32.gmra.mxu0 %v928
        %v1174 = vpop.f32.mrf.mxu0
        %v1175 = vadd.f32 %v976, %v1174
        %1176 = vmatmul.f32.gmra.mxu0 %v931
        %v1177 = vpop.f32.mrf.mxu0
        %v1178 = vadd.f32 %v977, %v1177
        %1179 = vmatmul.f32.gmra.mxu0 %v934
        %v1180 = vpop.f32.mrf.mxu0
        %v1181 = vadd.f32 %v978, %v1180
        %1182 = vmatmul.f32.gmra.mxu0 %v937
        %v1183 = vpop.f32.mrf.mxu0
        %v1184 = vadd.f32 %v979, %v1183
        %1185 = vmatmul.f32.gmra.mxu0 %v940
        %v1186 = vpop.f32.mrf.mxu0
        %v1187 = vadd.f32 %v980, %v1186
        %1188 = vmatmul.f32.gmra.mxu0 %v943
        %v1189 = vpop.f32.mrf.mxu0
        %v1190 = vadd.f32 %v981, %v1189
        %1191 = vmatmul.f32.gmra.mxu0 %v946
        %v1192 = vpop.f32.mrf.mxu0
        %v1193 = vadd.f32 %v982, %v1192
        %1194 = vmatmul.f32.gmra.mxu0 %v949
        %v1195 = vpop.f32.mrf.mxu0
        %v1196 = vadd.f32 %v983, %v1195
        %1197 = vdwg.mxu0
        %1198 = vmatpush.msra.mxu0 %v850
        %1199 = vmatpush.msra.mxu0 %v849
        %1200 = vmatpush.msra.mxu0 %v848
        %1201 = vmatpush.msra.mxu0 %v847
        %1202 = vmatpush.msra.mxu0 %v846
        %1203 = vmatpush.msra.mxu0 %v845
        %1204 = vmatpush.msra.mxu0 %v844
        %1205 = vmatpush.msra.mxu0 %v843
        %1206 = vmatpush.msra.mxu0 %v842
        %1207 = vmatpush.msra.mxu0 %v841
        %1208 = vmatpush.msra.mxu0 %v840
        %1209 = vmatpush.msra.mxu0 %v839
        %1210 = vmatpush.msra.mxu0 %v838
        %1211 = vmatpush.msra.mxu0 %v837
        %1212 = vmatpush.msra.mxu0 %v836
        %1213 = vmatpush.msra.mxu0 %v835
        %1214 = vmatmul.f32.gmra.mxu0 %v857
        %v1215 = vpop.f32.mrf.mxu0
        %v1216 = vadd.f32 %v1103, %v1215
        %1217 = vmatmul.f32.gmra.mxu0 %v860
        %v1218 = vpop.f32.mrf.mxu0
        %v1219 = vadd.f32 %v1106, %v1218
        %1220 = vmatmul.f32.gmra.mxu0 %v863
        %v1221 = vpop.f32.mrf.mxu0
        %v1222 = vadd.f32 %v1109, %v1221
        %1223 = vmatmul.f32.gmra.mxu0 %v866
        %v1224 = vpop.f32.mrf.mxu0
        %v1225 = vadd.f32 %v1112, %v1224
        %1226 = vmatmul.f32.gmra.mxu0 %v869
        %v1227 = vpop.f32.mrf.mxu0
        %v1228 = vadd.f32 %v1115, %v1227
        %1229 = vmatmul.f32.gmra.mxu0 %v872
        %v1230 = vpop.f32.mrf.mxu0
        %v1231 = vadd.f32 %v1118, %v1230
        %1232 = vmatmul.f32.gmra.mxu0 %v875
        %v1233 = vpop.f32.mrf.mxu0
        %v1234 = vadd.f32 %v1121, %v1233
        %1235 = vmatmul.f32.gmra.mxu0 %v878
        %v1236 = vpop.f32.mrf.mxu0
        %v1237 = vadd.f32 %v1124, %v1236
        %1238 = vmatmul.f32.gmra.mxu0 %v881
        %v1239 = vpop.f32.mrf.mxu0
        %v1240 = vadd.f32 %v1127, %v1239
        %1241 = vmatmul.f32.gmra.mxu0 %v884
        %v1242 = vpop.f32.mrf.mxu0
        %v1243 = vadd.f32 %v1130, %v1242
        %1244 = vmatmul.f32.gmra.mxu0 %v887
        %v1245 = vpop.f32.mrf.mxu0
        %v1246 = vadd.f32 %v1133, %v1245
        %1247 = vmatmul.f32.gmra.mxu0 %v890
        %v1248 = vpop.f32.mrf.mxu0
        %v1249 = vadd.f32 %v1136, %v1248
        %1250 = vmatmul.f32.gmra.mxu0 %v893
        %v1251 = vpop.f32.mrf.mxu0
        %v1252 = vadd.f32 %v1139, %v1251
        %1253 = vmatmul.f32.gmra.mxu0 %v896
        %v1254 = vpop.f32.mrf.mxu0
        %v1255 = vadd.f32 %v1142, %v1254
        %1256 = vmatmul.f32.gmra.mxu0 %v899
        %v1257 = vpop.f32.mrf.mxu0
        %v1258 = vadd.f32 %v1145, %v1257
        %1259 = vmatmul.f32.gmra.mxu0 %v902
        %v1260 = vpop.f32.mrf.mxu0
        %v1261 = vadd.f32 %v1148, %v1260
        %1262 = vmatmul.f32.gmra.mxu0 %v905
        %v1263 = vpop.f32.mrf.mxu0
        %v1264 = vadd.f32 %v1151, %v1263
        %1265 = vmatmul.f32.gmra.mxu0 %v908
        %v1266 = vpop.f32.mrf.mxu0
        %v1267 = vadd.f32 %v1154, %v1266
        %1268 = vmatmul.f32.gmra.mxu0 %v911
        %v1269 = vpop.f32.mrf.mxu0
        %v1270 = vadd.f32 %v1157, %v1269
        %1271 = vmatmul.f32.gmra.mxu0 %v914
        %v1272 = vpop.f32.mrf.mxu0
        %v1273 = vadd.f32 %v1160, %v1272
        %1274 = vmatmul.f32.gmra.mxu0 %v917
        %v1275 = vpop.f32.mrf.mxu0
        %v1276 = vadd.f32 %v1163, %v1275
        %1277 = vmatmul.f32.gmra.mxu0 %v920
        %v1278 = vpop.f32.mrf.mxu0
        %v1279 = vadd.f32 %v1166, %v1278
        %1280 = vmatmul.f32.gmra.mxu0 %v923
        %v1281 = vpop.f32.mrf.mxu0
        %v1282 = vadd.f32 %v1169, %v1281
        %1283 = vmatmul.f32.gmra.mxu0 %v926
        %v1284 = vpop.f32.mrf.mxu0
        %v1285 = vadd.f32 %v1172, %v1284
        %1286 = vmatmul.f32.gmra.mxu0 %v929
        %v1287 = vpop.f32.mrf.mxu0
        %v1288 = vadd.f32 %v1175, %v1287
        %1289 = vmatmul.f32.gmra.mxu0 %v932
        %v1290 = vpop.f32.mrf.mxu0
        %v1291 = vadd.f32 %v1178, %v1290
        %1292 = vmatmul.f32.gmra.mxu0 %v935
        %v1293 = vpop.f32.mrf.mxu0
        %v1294 = vadd.f32 %v1181, %v1293
        %1295 = vmatmul.f32.gmra.mxu0 %v938
        %v1296 = vpop.f32.mrf.mxu0
        %v1297 = vadd.f32 %v1184, %v1296
        %1298 = vmatmul.f32.gmra.mxu0 %v941
        %v1299 = vpop.f32.mrf.mxu0
        %v1300 = vadd.f32 %v1187, %v1299
        %1301 = vmatmul.f32.gmra.mxu0 %v944
        %v1302 = vpop.f32.mrf.mxu0
        %v1303 = vadd.f32 %v1190, %v1302
        %1304 = vmatmul.f32.gmra.mxu0 %v947
        %v1305 = vpop.f32.mrf.mxu0
        %v1306 = vadd.f32 %v1193, %v1305
        %1307 = vmatmul.f32.gmra.mxu0 %v950
        %v1308 = vpop.f32.mrf.mxu0
        %v1309 = vadd.f32 %v1196, %v1308
        %1310 = vdwg.mxu0
        %1311 = vmatpush.msra.mxu0 0.0
        %1312 = vmatpush.msra.mxu0 0.0
        %1313 = vmatpush.msra.mxu0 0.0
        %1314 = vmatpush.msra.mxu0 0.0
        %1315 = vmatpush.msra.mxu0 0.0
        %1316 = vmatpush.msra.mxu0 0.0
        %1317 = vmatpush.msra.mxu0 0.0
        %1318 = vmatpush.msra.mxu0 0.0
        %1319 = vmatpush.msra.mxu0 0.0
        %1320 = vmatpush.msra.mxu0 0.0
        %1321 = vmatpush.msra.mxu0 0.0
        %1322 = vmatpush.msra.mxu0 %v1083
        %1323 = vmatpush.msra.mxu0 %v854
        %1324 = vmatpush.msra.mxu0 %v853
        %1325 = vmatpush.msra.mxu0 %v852
        %1326 = vmatpush.msra.mxu0 %v851
        %1327 = vmatmul.f32.gmra.mxu0 %v986
        %v1328 = vpop.f32.mrf.mxu0
        %v1329 = vadd.f32 %v1216, %v1328
        %1330 = vmatmul.f32.gmra.mxu0 %v989
        %v1331 = vpop.f32.mrf.mxu0
        %v1332 = vadd.f32 %v1219, %v1331
        %1333 = vmatmul.f32.gmra.mxu0 %v992
        %v1334 = vpop.f32.mrf.mxu0
        %v1335 = vadd.f32 %v1222, %v1334
        %1336 = vmatmul.f32.gmra.mxu0 %v995
        %v1337 = vpop.f32.mrf.mxu0
        %v1338 = vadd.f32 %v1225, %v1337
        %1339 = vmatmul.f32.gmra.mxu0 %v998
        %v1340 = vpop.f32.mrf.mxu0
        %v1341 = vadd.f32 %v1228, %v1340
        %1342 = vmatmul.f32.gmra.mxu0 %v1001
        %v1343 = vpop.f32.mrf.mxu0
        %v1344 = vadd.f32 %v1231, %v1343
        %1345 = vmatmul.f32.gmra.mxu0 %v1004
        %v1346 = vpop.f32.mrf.mxu0
        %v1347 = vadd.f32 %v1234, %v1346
        %1348 = vmatmul.f32.gmra.mxu0 %v1007
        %v1349 = vpop.f32.mrf.mxu0
        %v1350 = vadd.f32 %v1237, %v1349
        %1351 = vmatmul.f32.gmra.mxu0 %v1010
        %v1352 = vpop.f32.mrf.mxu0
        %v1353 = vadd.f32 %v1240, %v1352
        %1354 = vmatmul.f32.gmra.mxu0 %v1013
        %v1355 = vpop.f32.mrf.mxu0
        %v1356 = vadd.f32 %v1243, %v1355
        %1357 = vmatmul.f32.gmra.mxu0 %v1016
        %v1358 = vpop.f32.mrf.mxu0
        %v1359 = vadd.f32 %v1246, %v1358
        %1360 = vmatmul.f32.gmra.mxu0 %v1019
        %v1361 = vpop.f32.mrf.mxu0
        %v1362 = vadd.f32 %v1249, %v1361
        %1363 = vmatmul.f32.gmra.mxu0 %v1022
        %v1364 = vpop.f32.mrf.mxu0
        %v1365 = vadd.f32 %v1252, %v1364
        %1366 = vmatmul.f32.gmra.mxu0 %v1025
        %v1367 = vpop.f32.mrf.mxu0
        %v1368 = vadd.f32 %v1255, %v1367
        %1369 = vmatmul.f32.gmra.mxu0 %v1028
        %v1370 = vpop.f32.mrf.mxu0
        %v1371 = vadd.f32 %v1258, %v1370
        %1372 = vmatmul.f32.gmra.mxu0 %v1031
        %v1373 = vpop.f32.mrf.mxu0
        %v1374 = vadd.f32 %v1261, %v1373
        %1375 = vmatmul.f32.gmra.mxu0 %v1034
        %v1376 = vpop.f32.mrf.mxu0
        %v1377 = vadd.f32 %v1264, %v1376
        %1378 = vmatmul.f32.gmra.mxu0 %v1037
        %v1379 = vpop.f32.mrf.mxu0
        %v1380 = vadd.f32 %v1267, %v1379
        %1381 = vmatmul.f32.gmra.mxu0 %v1040
        %v1382 = vpop.f32.mrf.mxu0
        %v1383 = vadd.f32 %v1270, %v1382
        %1384 = vmatmul.f32.gmra.mxu0 %v1043
        %v1385 = vpop.f32.mrf.mxu0
        %v1386 = vadd.f32 %v1273, %v1385
        %1387 = vmatmul.f32.gmra.mxu0 %v1046
        %v1388 = vpop.f32.mrf.mxu0
        %v1389 = vadd.f32 %v1276, %v1388
        %1390 = vmatmul.f32.gmra.mxu0 %v1049
        %v1391 = vpop.f32.mrf.mxu0
        %v1392 = vadd.f32 %v1279, %v1391
        %1393 = vmatmul.f32.gmra.mxu0 %v1052
        %v1394 = vpop.f32.mrf.mxu0
        %v1395 = vadd.f32 %v1282, %v1394
        %1396 = vmatmul.f32.gmra.mxu0 %v1055
        %v1397 = vpop.f32.mrf.mxu0
        %v1398 = vadd.f32 %v1285, %v1397
        %1399 = vmatmul.f32.gmra.mxu0 %v1058
        %v1400 = vpop.f32.mrf.mxu0
        %v1401 = vadd.f32 %v1288, %v1400
        %1402 = vmatmul.f32.gmra.mxu0 %v1061
        %v1403 = vpop.f32.mrf.mxu0
        %v1404 = vadd.f32 %v1291, %v1403
        %1405 = vmatmul.f32.gmra.mxu0 %v1064
        %v1406 = vpop.f32.mrf.mxu0
        %v1407 = vadd.f32 %v1294, %v1406
        %1408 = vmatmul.f32.gmra.mxu0 %v1067
        %v1409 = vpop.f32.mrf.mxu0
        %v1410 = vadd.f32 %v1297, %v1409
        %1411 = vmatmul.f32.gmra.mxu0 %v1070
        %v1412 = vpop.f32.mrf.mxu0
        %v1413 = vadd.f32 %v1300, %v1412
        %1414 = vmatmul.f32.gmra.mxu0 %v1073
        %v1415 = vpop.f32.mrf.mxu0
        %v1416 = vadd.f32 %v1303, %v1415
        %1417 = vmatmul.f32.gmra.mxu0 %v1076
        %v1418 = vpop.f32.mrf.mxu0
        %v1419 = vadd.f32 %v1306, %v1418
        %1420 = vmatmul.f32.gmra.mxu0 %v1079
        %v1421 = vpop.f32.mrf.mxu0
        %v1422 = vadd.f32 %v1309, %v1421
        %1423 = vdwg.mxu0
        %vm1424 = vcmp.ge.f32.partialorder %v1329, 0.0
        %vm1425 = vcmp.ge.f32.partialorder %v1332, 0.0
        %vm1426 = vcmp.ge.f32.partialorder %v1335, 0.0
        %vm1427 = vcmp.ge.f32.partialorder %v1338, 0.0
        %vm1428 = vcmp.ge.f32.partialorder %v1341, 0.0
        %vm1429 = vcmp.ge.f32.partialorder %v1344, 0.0
        %vm1430 = vcmp.ge.f32.partialorder %v1347, 0.0
        %vm1431 = vcmp.ge.f32.partialorder %v1350, 0.0
        %vm1432 = vcmp.ge.f32.partialorder %v1353, 0.0
        %vm1433 = vcmp.ge.f32.partialorder %v1356, 0.0
        %vm1434 = vcmp.ge.f32.partialorder %v1359, 0.0
        %vm1435 = vcmp.ge.f32.partialorder %v1362, 0.0
        %vm1436 = vcmp.ge.f32.partialorder %v1365, 0.0
        %vm1437 = vcmp.ge.f32.partialorder %v1368, 0.0
        %vm1438 = vcmp.ge.f32.partialorder %v1371, 0.0
        %vm1439 = vcmp.ge.f32.partialorder %v1374, 0.0
        %vm1440 = vcmp.ge.f32.partialorder %v1377, 0.0
        %vm1441 = vcmp.ge.f32.partialorder %v1380, 0.0
        %vm1442 = vcmp.ge.f32.partialorder %v1383, 0.0
        %vm1443 = vcmp.ge.f32.partialorder %v1386, 0.0
        %vm1444 = vcmp.ge.f32.partialorder %v1389, 0.0
        %vm1445 = vcmp.ge.f32.partialorder %v1392, 0.0
        %vm1446 = vcmp.ge.f32.partialorder %v1395, 0.0
        %vm1447 = vcmp.ge.f32.partialorder %v1398, 0.0
        %vm1448 = vcmp.ge.f32.partialorder %v1401, 0.0
        %vm1449 = vcmp.ge.f32.partialorder %v1404, 0.0
        %vm1450 = vcmp.ge.f32.partialorder %v1407, 0.0
        %vm1451 = vcmp.ge.f32.partialorder %v1410, 0.0
        %vm1452 = vcmp.ge.f32.partialorder %v1413, 0.0
        %vm1453 = vcmp.ge.f32.partialorder %v1416, 0.0
        %vm1454 = vcmp.ge.f32.partialorder %v1419, 0.0
        %vm1455 = vcmp.ge.f32.partialorder %v1422, 0.0
        %v1456 = vmul.f32 %v1329, 0.2
        %v1457 = vmul.f32 %v1332, 0.2
        %v1458 = vmul.f32 %v1335, 0.2
        %v1459 = vmul.f32 %v1338, 0.2
        %v1460 = vmul.f32 %v1341, 0.2
        %v1461 = vmul.f32 %v1344, 0.2
        %v1462 = vmul.f32 %v1347, 0.2
        %v1463 = vmul.f32 %v1350, 0.2
        %v1464 = vmul.f32 %v1353, 0.2
        %v1465 = vmul.f32 %v1356, 0.2
        %v1466 = vmul.f32 %v1359, 0.2
        %v1467 = vmul.f32 %v1362, 0.2
        %v1468 = vmul.f32 %v1365, 0.2
        %v1469 = vmul.f32 %v1368, 0.2
        %v1470 = vmul.f32 %v1371, 0.2
        %v1471 = vmul.f32 %v1374, 0.2
        %v1472 = vmul.f32 %v1377, 0.2
        %v1473 = vmul.f32 %v1380, 0.2
        %v1474 = vmul.f32 %v1383, 0.2
        %v1475 = vmul.f32 %v1386, 0.2
        %v1476 = vmul.f32 %v1389, 0.2
        %v1477 = vmul.f32 %v1392, 0.2
        %v1478 = vmul.f32 %v1395, 0.2
        %v1479 = vmul.f32 %v1398, 0.2
        %v1480 = vmul.f32 %v1401, 0.2
        %v1481 = vmul.f32 %v1404, 0.2
        %v1482 = vmul.f32 %v1407, 0.2
        %v1483 = vmul.f32 %v1410, 0.2
        %v1484 = vmul.f32 %v1413, 0.2
        %v1485 = vmul.f32 %v1416, 0.2
        %v1486 = vmul.f32 %v1419, 0.2
        %v1487 = vmul.f32 %v1422, 0.2
        %v1488 = vsel %vm1424, %v1329, %v1456
        %v1489 = vsel %vm1425, %v1332, %v1457
        %v1490 = vsel %vm1426, %v1335, %v1458
        %v1491 = vsel %vm1427, %v1338, %v1459
        %v1492 = vsel %vm1428, %v1341, %v1460
        %v1493 = vsel %vm1429, %v1344, %v1461
        %v1494 = vsel %vm1430, %v1347, %v1462
        %v1495 = vsel %vm1431, %v1350, %v1463
        %v1496 = vsel %vm1432, %v1353, %v1464
        %v1497 = vsel %vm1433, %v1356, %v1465
        %v1498 = vsel %vm1434, %v1359, %v1466
        %v1499 = vsel %vm1435, %v1362, %v1467
        %v1500 = vsel %vm1436, %v1365, %v1468
        %v1501 = vsel %vm1437, %v1368, %v1469
        %v1502 = vsel %vm1438, %v1371, %v1470
        %v1503 = vsel %vm1439, %v1374, %v1471
        %v1504 = vsel %vm1440, %v1377, %v1472
        %v1505 = vsel %vm1441, %v1380, %v1473
        %v1506 = vsel %vm1442, %v1383, %v1474
        %v1507 = vsel %vm1443, %v1386, %v1475
        %v1508 = vsel %vm1444, %v1389, %v1476
        %v1509 = vsel %vm1445, %v1392, %v1477
        %v1510 = vsel %vm1446, %v1395, %v1478
        %v1511 = vsel %vm1447, %v1398, %v1479
        %v1512 = vsel %vm1448, %v1401, %v1480
        %v1513 = vsel %vm1449, %v1404, %v1481
        %v1514 = vsel %vm1450, %v1407, %v1482
        %v1515 = vsel %vm1451, %v1410, %v1483
        %v1516 = vsel %vm1452, %v1413, %v1484
        %v1517 = vsel %vm1453, %v1416, %v1485
        %v1518 = vsel %vm1454, %v1419, %v1486
        %v1519 = vsel %vm1455, %v1422, %v1487
        %v1520 = vld [vmem:[%s4] sm:$0xff]
        %v1521 = vld [vmem:[%s4 + $0x8] sm:$0xff]
        %v1522 = vld [vmem:[%s4 + $0x10] sm:$0xff]
        %v1523 = vld [vmem:[%s4 + $0x18] sm:$0xff]
        %v1524 = vld [vmem:[%s4 + $0x20] sm:$0xff]
        %v1525 = vld [vmem:[%s4 + $0x28] sm:$0xff]
        %v1526 = vld [vmem:[%s4 + $0x30] sm:$0xff]
        %v1527 = vld [vmem:[%s4 + $0x38] sm:$0xff]
        %v1528 = vld [vmem:[%s4 + $0x40] sm:$0xff]
        %v1529 = vld [vmem:[%s4 + $0x48] sm:$0xff]
        %v1530 = vld [vmem:[%s4 + $0x50] sm:$0xff]
        %v1531 = vld [vmem:[%s4 + $0x58] sm:$0xff]
        %v1532 = vld [vmem:[%s4 + $0x60] sm:$0xff]
        %v1533 = vld [vmem:[%s4 + $0x68] sm:$0xff]
        %v1534 = vld [vmem:[%s4 + $0x70] sm:$0xff]
        %v1535 = vld [vmem:[%s4 + $0x78] sm:$0xff]
        %v1536 = vld [vmem:[%s4 + $0x80] sm:$0xff]
        %v1537 = vld [vmem:[%s4 + $0x88] sm:$0xff]
        %v1538 = vld [vmem:[%s4 + $0x90] sm:$0xff]
        %v1539 = vld [vmem:[%s4 + $0x98] sm:$0xff]
        %v1540 = vld [vmem:[%s4 + $0xa0] sm:$0xff]
        %v1541 = vld [vmem:[%s4 + $0xa8] sm:$0xff]
        %v1542 = vld [vmem:[%s4 + $0xb0] sm:$0xff]
        %v1543 = vld [vmem:[%s4 + $0xb8] sm:$0xff]
        %v1544 = vld [vmem:[%s4 + $0xc0] sm:$0xff]
        %v1545 = vld [vmem:[%s4 + $0xc8] sm:$0xff]
        %v1546 = vld [vmem:[%s4 + $0xd0] sm:$0xff]
        %v1547 = vld [vmem:[%s4 + $0xd8] sm:$0xff]
        %v1548 = vld [vmem:[%s4 + $0xe0] sm:$0xff]
        %v1549 = vld [vmem:[%s4 + $0xe8] sm:$0xff]
        %v1550 = vld [vmem:[%s4 + $0xf0] sm:$0xff]
        %v1551 = vld [vmem:[%s4 + $0xf8] sm:$0xff]
        %v1552 = vld [vmem:[%s4 + $0x100] sm:$0xff]
        %v1553 = vld [vmem:[%s4 + $0x108] sm:$0xff]
        %v1554 = vld [vmem:[%s4 + $0x110] sm:$0xff]
        %v1555 = vld [vmem:[%s4 + $0x118] sm:$0xff]
        %v1556 = vld [vmem:[%s4 + $0x120] sm:$0xff]
        %v1557 = vld [vmem:[%s4 + $0x128] sm:$0xff]
        %v1558 = vld [vmem:[%s4 + $0x130] sm:$0xff]
        %v1559 = vld [vmem:[%s4 + $0x138] sm:$0xff]
        %v1560 = vld [vmem:[%s4 + $0x140] sm:$0xff]
        %v1561 = vld [vmem:[%s4 + $0x148] sm:$0xff]
        %v1562 = vld [vmem:[%s4 + $0x150] sm:$0xff]
        %v1563 = vld [vmem:[%s4 + $0x158] sm:$0xff]
        %v1564 = vld [vmem:[%s4 + $0x160] sm:$0xff]
        %v1565 = vld [vmem:[%s4 + $0x168] sm:$0xff]
        %v1566 = vld [vmem:[%s4 + $0x170] sm:$0xff]
        %v1567 = vld [vmem:[%s4 + $0x178] sm:$0xff]
        %v1568 = vld [vmem:[%s4 + $0x180] sm:$0xff]
        %v1569 = vld [vmem:[%s4 + $0x188] sm:$0xff]
        %v1570 = vld [vmem:[%s4 + $0x190] sm:$0xff]
        %v1571 = vld [vmem:[%s4 + $0x198] sm:$0xff]
        %v1572 = vld [vmem:[%s4 + $0x1a0] sm:$0xff]
        %v1573 = vld [vmem:[%s4 + $0x1a8] sm:$0xff]
        %v1574 = vld [vmem:[%s4 + $0x1b0] sm:$0xff]
        %v1575 = vld [vmem:[%s4 + $0x1b8] sm:$0xff]
        %v1576 = vld [vmem:[%s4 + $0x1c0] sm:$0xff]
        %v1577 = vld [vmem:[%s4 + $0x1c8] sm:$0xff]
        %v1578 = vld [vmem:[%s4 + $0x1d0] sm:$0xff]
        %v1579 = vld [vmem:[%s4 + $0x1d8] sm:$0xff]
        %v1580 = vld [vmem:[%s4 + $0x1e0] sm:$0xff]
        %v1581 = vld [vmem:[%s4 + $0x1e8] sm:$0xff]
        %v1582 = vld [vmem:[%s4 + $0x1f0] sm:$0xff]
        %v1583 = vld [vmem:[%s4 + $0x1f8] sm:$0xff]
        %v1584 = vld [vmem:[%s5] sm:$0xff]
        %v1585 = vld [vmem:[%s5 + $0x8] sm:$0xff]
        %v1586 = vld [vmem:[%s5 + $0x10] sm:$0xff]
        %v1587 = vld [vmem:[%s5 + $0x18] sm:$0xff]
        %v1588 = vld [vmem:[%s5 + $0x20] sm:$0xff]
        %v1589 = vld [vmem:[%s5 + $0x28] sm:$0xff]
        %v1590 = vld [vmem:[%s5 + $0x30] sm:$0xff]
        %v1591 = vld [vmem:[%s5 + $0x38] sm:$0xff]
        %v1592 = vld [vmem:[%s5 + $0x40] sm:$0xff]
        %v1593 = vld [vmem:[%s5 + $0x48] sm:$0xff]
        %v1594 = vld [vmem:[%s5 + $0x50] sm:$0xff]
        %v1595 = vld [vmem:[%s5 + $0x58] sm:$0xff]
        %v1596 = vld [vmem:[%s5 + $0x60] sm:$0xff]
        %v1597 = vld [vmem:[%s5 + $0x68] sm:$0xff]
        %v1598 = vld [vmem:[%s5 + $0x70] sm:$0xff]
        %v1599 = vld [vmem:[%s5 + $0x78] sm:$0xff]
        %v1600 = vld [vmem:[%s5 + $0x80] sm:$0xff]
        %v1601 = vld [vmem:[%s5 + $0x88] sm:$0xff]
        %v1602 = vld [vmem:[%s5 + $0x90] sm:$0xff]
        %v1603 = vld [vmem:[%s5 + $0x98] sm:$0xff]
        %v1604 = vld [vmem:[%s5 + $0xa0] sm:$0xff]
        %v1605 = vld [vmem:[%s5 + $0xa8] sm:$0xff]
        %v1606 = vld [vmem:[%s5 + $0xb0] sm:$0xff]
        %v1607 = vld [vmem:[%s5 + $0xb8] sm:$0xff]
        %v1608 = vld [vmem:[%s5 + $0xc0] sm:$0xff]
        %v1609 = vld [vmem:[%s5 + $0xc8] sm:$0xff]
        %v1610 = vld [vmem:[%s5 + $0xd0] sm:$0xff]
        %v1611 = vld [vmem:[%s5 + $0xd8] sm:$0xff]
        %v1612 = vld [vmem:[%s5 + $0xe0] sm:$0xff]
        %v1613 = vld [vmem:[%s5 + $0xe8] sm:$0xff]
        %v1614 = vld [vmem:[%s5 + $0xf0] sm:$0xff]
        %v1615 = vld [vmem:[%s5 + $0xf8] sm:$0xff]
        %1616 = vmatpush.msra.mxu0 %v1503
        %1617 = vmatpush.msra.mxu0 %v1502
        %1618 = vmatpush.msra.mxu0 %v1501
        %1619 = vmatpush.msra.mxu0 %v1500
        %1620 = vmatpush.msra.mxu0 %v1499
        %1621 = vmatpush.msra.mxu0 %v1498
        %1622 = vmatpush.msra.mxu0 %v1497
        %1623 = vmatpush.msra.mxu0 %v1496
        %1624 = vmatpush.msra.mxu0 %v1495
        %1625 = vmatpush.msra.mxu0 %v1494
        %1626 = vmatpush.msra.mxu0 %v1493
        %1627 = vmatpush.msra.mxu0 %v1492
        %1628 = vmatpush.msra.mxu0 %v1491
        %1629 = vmatpush.msra.mxu0 %v1490
        %1630 = vmatpush.msra.mxu0 %v1489
        %1631 = vmatpush.msra.mxu0 %v1488
        %1632 = vmatmul.f32.gmra.mxu0 %v1520
        %v1633 = vpop.f32.mrf.mxu0
        %v1634 = vadd.f32 %v1584, %v1633
        %1635 = vmatmul.f32.gmra.mxu0 %v1522
        %v1636 = vpop.f32.mrf.mxu0
        %v1637 = vadd.f32 %v1585, %v1636
        %1638 = vmatmul.f32.gmra.mxu0 %v1524
        %v1639 = vpop.f32.mrf.mxu0
        %v1640 = vadd.f32 %v1586, %v1639
        %1641 = vmatmul.f32.gmra.mxu0 %v1526
        %v1642 = vpop.f32.mrf.mxu0
        %v1643 = vadd.f32 %v1587, %v1642
        %1644 = vmatmul.f32.gmra.mxu0 %v1528
        %v1645 = vpop.f32.mrf.mxu0
        %v1646 = vadd.f32 %v1588, %v1645
        %1647 = vmatmul.f32.gmra.mxu0 %v1530
        %v1648 = vpop.f32.mrf.mxu0
        %v1649 = vadd.f32 %v1589, %v1648
        %1650 = vmatmul.f32.gmra.mxu0 %v1532
        %v1651 = vpop.f32.mrf.mxu0
        %v1652 = vadd.f32 %v1590, %v1651
        %1653 = vmatmul.f32.gmra.mxu0 %v1534
        %v1654 = vpop.f32.mrf.mxu0
        %v1655 = vadd.f32 %v1591, %v1654
        %1656 = vmatmul.f32.gmra.mxu0 %v1536
        %v1657 = vpop.f32.mrf.mxu0
        %v1658 = vadd.f32 %v1592, %v1657
        %1659 = vmatmul.f32.gmra.mxu0 %v1538
        %v1660 = vpop.f32.mrf.mxu0
        %v1661 = vadd.f32 %v1593, %v1660
        %1662 = vmatmul.f32.gmra.mxu0 %v1540
        %v1663 = vpop.f32.mrf.mxu0
        %v1664 = vadd.f32 %v1594, %v1663
        %1665 = vmatmul.f32.gmra.mxu0 %v1542
        %v1666 = vpop.f32.mrf.mxu0
        %v1667 = vadd.f32 %v1595, %v1666
        %1668 = vmatmul.f32.gmra.mxu0 %v1544
        %v1669 = vpop.f32.mrf.mxu0
        %v1670 = vadd.f32 %v1596, %v1669
        %1671 = vmatmul.f32.gmra.mxu0 %v1546
        %v1672 = vpop.f32.mrf.mxu0
        %v1673 = vadd.f32 %v1597, %v1672
        %1674 = vmatmul.f32.gmra.mxu0 %v1548
        %v1675 = vpop.f32.mrf.mxu0
        %v1676 = vadd.f32 %v1598, %v1675
        %1677 = vmatmul.f32.gmra.mxu0 %v1550
        %v1678 = vpop.f32.mrf.mxu0
        %v1679 = vadd.f32 %v1599, %v1678
        %1680 = vmatmul.f32.gmra.mxu0 %v1552
        %v1681 = vpop.f32.mrf.mxu0
        %v1682 = vadd.f32 %v1600, %v1681
        %1683 = vmatmul.f32.gmra.mxu0 %v1554
        %v1684 = vpop.f32.mrf.mxu0
        %v1685 = vadd.f32 %v1601, %v1684
        %1686 = vmatmul.f32.gmra.mxu0 %v1556
        %v1687 = vpop.f32.mrf.mxu0
        %v1688 = vadd.f32 %v1602, %v1687
        %1689 = vmatmul.f32.gmra.mxu0 %v1558
        %v1690 = vpop.f32.mrf.mxu0
        %v1691 = vadd.f32 %v1603, %v1690
        %1692 = vmatmul.f32.gmra.mxu0 %v1560
        %v1693 = vpop.f32.mrf.mxu0
        %v1694 = vadd.f32 %v1604, %v1693
        %1695 = vmatmul.f32.gmra.mxu0 %v1562
        %v1696 = vpop.f32.mrf.mxu0
        %v1697 = vadd.f32 %v1605, %v1696
        %1698 = vmatmul.f32.gmra.mxu0 %v1564
        %v1699 = vpop.f32.mrf.mxu0
        %v1700 = vadd.f32 %v1606, %v1699
        %1701 = vmatmul.f32.gmra.mxu0 %v1566
        %v1702 = vpop.f32.mrf.mxu0
        %v1703 = vadd.f32 %v1607, %v1702
        %1704 = vmatmul.f32.gmra.mxu0 %v1568
        %v1705 = vpop.f32.mrf.mxu0
        %v1706 = vadd.f32 %v1608, %v1705
        %1707 = vmatmul.f32.gmra.mxu0 %v1570
        %v1708 = vpop.f32.mrf.mxu0
        %v1709 = vadd.f32 %v1609, %v1708
        %1710 = vmatmul.f32.gmra.mxu0 %v1572
        %v1711 = vpop.f32.mrf.mxu0
        %v1712 = vadd.f32 %v1610, %v1711
        %1713 = vmatmul.f32.gmra.mxu0 %v1574
        %v1714 = vpop.f32.mrf.mxu0
        %v1715 = vadd.f32 %v1611, %v1714
        %1716 = vmatmul.f32.gmra.mxu0 %v1576
        %v1717 = vpop.f32.mrf.mxu0
        %v1718 = vadd.f32 %v1612, %v1717
        %1719 = vmatmul.f32.gmra.mxu0 %v1578
        %v1720 = vpop.f32.mrf.mxu0
        %v1721 = vadd.f32 %v1613, %v1720
        %1722 = vmatmul.f32.gmra.mxu0 %v1580
        %v1723 = vpop.f32.mrf.mxu0
        %v1724 = vadd.f32 %v1614, %v1723
        %1725 = vmatmul.f32.gmra.mxu0 %v1582
        %v1726 = vpop.f32.mrf.mxu0
        %v1727 = vadd.f32 %v1615, %v1726
        %1728 = vdwg.mxu0
        %1729 = vmatpush.msra.mxu0 %v1519
        %1730 = vmatpush.msra.mxu0 %v1518
        %1731 = vmatpush.msra.mxu0 %v1517
        %1732 = vmatpush.msra.mxu0 %v1516
        %1733 = vmatpush.msra.mxu0 %v1515
        %1734 = vmatpush.msra.mxu0 %v1514
        %1735 = vmatpush.msra.mxu0 %v1513
        %1736 = vmatpush.msra.mxu0 %v1512
        %1737 = vmatpush.msra.mxu0 %v1511
        %1738 = vmatpush.msra.mxu0 %v1510
        %1739 = vmatpush.msra.mxu0 %v1509
        %1740 = vmatpush.msra.mxu0 %v1508
        %1741 = vmatpush.msra.mxu0 %v1507
        %1742 = vmatpush.msra.mxu0 %v1506
        %1743 = vmatpush.msra.mxu0 %v1505
        %1744 = vmatpush.msra.mxu0 %v1504
        %1745 = vmatmul.f32.gmra.mxu0 %v1521
        %v1746 = vpop.f32.mrf.mxu0
        %v1747 = vadd.f32 %v1634, %v1746
        %1748 = vmatmul.f32.gmra.mxu0 %v1523
        %v1749 = vpop.f32.mrf.mxu0
        %v1750 = vadd.f32 %v1637, %v1749
        %1751 = vmatmul.f32.gmra.mxu0 %v1525
        %v1752 = vpop.f32.mrf.mxu0
        %v1753 = vadd.f32 %v1640, %v1752
        %1754 = vmatmul.f32.gmra.mxu0 %v1527
        %v1755 = vpop.f32.mrf.mxu0
        %v1756 = vadd.f32 %v1643, %v1755
        %1757 = vmatmul.f32.gmra.mxu0 %v1529
        %v1758 = vpop.f32.mrf.mxu0
        %v1759 = vadd.f32 %v1646, %v1758
        %1760 = vmatmul.f32.gmra.mxu0 %v1531
        %v1761 = vpop.f32.mrf.mxu0
        %v1762 = vadd.f32 %v1649, %v1761
        %1763 = vmatmul.f32.gmra.mxu0 %v1533
        %v1764 = vpop.f32.mrf.mxu0
        %v1765 = vadd.f32 %v1652, %v1764
        %1766 = vmatmul.f32.gmra.mxu0 %v1535
        %v1767 = vpop.f32.mrf.mxu0
        %v1768 = vadd.f32 %v1655, %v1767
        %1769 = vmatmul.f32.gmra.mxu0 %v1537
        %v1770 = vpop.f32.mrf.mxu0
        %v1771 = vadd.f32 %v1658, %v1770
        %1772 = vmatmul.f32.gmra.mxu0 %v1539
        %v1773 = vpop.f32.mrf.mxu0
        %v1774 = vadd.f32 %v1661, %v1773
        %1775 = vmatmul.f32.gmra.mxu0 %v1541
        %v1776 = vpop.f32.mrf.mxu0
        %v1777 = vadd.f32 %v1664, %v1776
        %1778 = vmatmul.f32.gmra.mxu0 %v1543
        %v1779 = vpop.f32.mrf.mxu0
        %v1780 = vadd.f32 %v1667, %v1779
        %1781 = vmatmul.f32.gmra.mxu0 %v1545
        %v1782 = vpop.f32.mrf.mxu0
        %v1783 = vadd.f32 %v1670, %v1782
        %1784 = vmatmul.f32.gmra.mxu0 %v1547
        %v1785 = vpop.f32.mrf.mxu0
        %v1786 = vadd.f32 %v1673, %v1785
        %1787 = vmatmul.f32.gmra.mxu0 %v1549
        %v1788 = vpop.f32.mrf.mxu0
        %v1789 = vadd.f32 %v1676, %v1788
        %1790 = vmatmul.f32.gmra.mxu0 %v1551
        %v1791 = vpop.f32.mrf.mxu0
        %v1792 = vadd.f32 %v1679, %v1791
        %1793 = vmatmul.f32.gmra.mxu0 %v1553
        %v1794 = vpop.f32.mrf.mxu0
        %v1795 = vadd.f32 %v1682, %v1794
        %1796 = vmatmul.f32.gmra.mxu0 %v1555
        %v1797 = vpop.f32.mrf.mxu0
        %v1798 = vadd.f32 %v1685, %v1797
        %1799 = vmatmul.f32.gmra.mxu0 %v1557
        %v1800 = vpop.f32.mrf.mxu0
        %v1801 = vadd.f32 %v1688, %v1800
        %1802 = vmatmul.f32.gmra.mxu0 %v1559
        %v1803 = vpop.f32.mrf.mxu0
        %v1804 = vadd.f32 %v1691, %v1803
        %1805 = vmatmul.f32.gmra.mxu0 %v1561
        %v1806 = vpop.f32.mrf.mxu0
        %v1807 = vadd.f32 %v1694, %v1806
        %1808 = vmatmul.f32.gmra.mxu0 %v1563
        %v1809 = vpop.f32.mrf.mxu0
        %v1810 = vadd.f32 %v1697, %v1809
        %1811 = vmatmul.f32.gmra.mxu0 %v1565
        %v1812 = vpop.f32.mrf.mxu0
        %v1813 = vadd.f32 %v1700, %v1812
        %1814 = vmatmul.f32.gmra.mxu0 %v1567
        %v1815 = vpop.f32.mrf.mxu0
        %v1816 = vadd.f32 %v1703, %v1815
        %1817 = vmatmul.f32.gmra.mxu0 %v1569
        %v1818 = vpop.f32.mrf.mxu0
        %v1819 = vadd.f32 %v1706, %v1818
        %1820 = vmatmul.f32.gmra.mxu0 %v1571
        %v1821 = vpop.f32.mrf.mxu0
        %v1822 = vadd.f32 %v1709, %v1821
        %1823 = vmatmul.f32.gmra.mxu0 %v1573
        %v1824 = vpop.f32.mrf.mxu0
        %v1825 = vadd.f32 %v1712, %v1824
        %1826 = vmatmul.f32.gmra.mxu0 %v1575
        %v1827 = vpop.f32.mrf.mxu0
        %v1828 = vadd.f32 %v1715, %v1827
        %1829 = vmatmul.f32.gmra.mxu0 %v1577
        %v1830 = vpop.f32.mrf.mxu0
        %v1831 = vadd.f32 %v1718, %v1830
        %1832 = vmatmul.f32.gmra.mxu0 %v1579
        %v1833 = vpop.f32.mrf.mxu0
        %v1834 = vadd.f32 %v1721, %v1833
        %1835 = vmatmul.f32.gmra.mxu0 %v1581
        %v1836 = vpop.f32.mrf.mxu0
        %v1837 = vadd.f32 %v1724, %v1836
        %1838 = vmatmul.f32.gmra.mxu0 %v1583
        %v1839 = vpop.f32.mrf.mxu0
        %v1840 = vadd.f32 %v1727, %v1839
        %1841 = vdwg.mxu0
        %vm1842 = vcmp.ge.f32.partialorder %v1747, 0.0
        %vm1843 = vcmp.ge.f32.partialorder %v1750, 0.0
        %vm1844 = vcmp.ge.f32.partialorder %v1753, 0.0
        %vm1845 = vcmp.ge.f32.partialorder %v1756, 0.0
        %vm1846 = vcmp.ge.f32.partialorder %v1759, 0.0
        %vm1847 = vcmp.ge.f32.partialorder %v1762, 0.0
        %vm1848 = vcmp.ge.f32.partialorder %v1765, 0.0
        %vm1849 = vcmp.ge.f32.partialorder %v1768, 0.0
        %vm1850 = vcmp.ge.f32.partialorder %v1771, 0.0
        %vm1851 = vcmp.ge.f32.partialorder %v1774, 0.0
        %vm1852 = vcmp.ge.f32.partialorder %v1777, 0.0
        %vm1853 = vcmp.ge.f32.partialorder %v1780, 0.0
        %vm1854 = vcmp.ge.f32.partialorder %v1783, 0.0
        %vm1855 = vcmp.ge.f32.partialorder %v1786, 0.0
        %vm1856 = vcmp.ge.f32.partialorder %v1789, 0.0
        %vm1857 = vcmp.ge.f32.partialorder %v1792, 0.0
        %vm1858 = vcmp.ge.f32.partialorder %v1795, 0.0
        %vm1859 = vcmp.ge.f32.partialorder %v1798, 0.0
        %vm1860 = vcmp.ge.f32.partialorder %v1801, 0.0
        %vm1861 = vcmp.ge.f32.partialorder %v1804, 0.0
        %vm1862 = vcmp.ge.f32.partialorder %v1807, 0.0
        %vm1863 = vcmp.ge.f32.partialorder %v1810, 0.0
        %vm1864 = vcmp.ge.f32.partialorder %v1813, 0.0
        %vm1865 = vcmp.ge.f32.partialorder %v1816, 0.0
        %vm1866 = vcmp.ge.f32.partialorder %v1819, 0.0
        %vm1867 = vcmp.ge.f32.partialorder %v1822, 0.0
        %vm1868 = vcmp.ge.f32.partialorder %v1825, 0.0
        %vm1869 = vcmp.ge.f32.partialorder %v1828, 0.0
        %vm1870 = vcmp.ge.f32.partialorder %v1831, 0.0
        %vm1871 = vcmp.ge.f32.partialorder %v1834, 0.0
        %vm1872 = vcmp.ge.f32.partialorder %v1837, 0.0
        %vm1873 = vcmp.ge.f32.partialorder %v1840, 0.0
        %v1874 = vmul.f32 %v1747, 0.2
        %v1875 = vmul.f32 %v1750, 0.2
        %v1876 = vmul.f32 %v1753, 0.2
        %v1877 = vmul.f32 %v1756, 0.2
        %v1878 = vmul.f32 %v1759, 0.2
        %v1879 = vmul.f32 %v1762, 0.2
        %v1880 = vmul.f32 %v1765, 0.2
        %v1881 = vmul.f32 %v1768, 0.2
        %v1882 = vmul.f32 %v1771, 0.2
        %v1883 = vmul.f32 %v1774, 0.2
        %v1884 = vmul.f32 %v1777, 0.2
        %v1885 = vmul.f32 %v1780, 0.2
        %v1886 = vmul.f32 %v1783, 0.2
        %v1887 = vmul.f32 %v1786, 0.2
        %v1888 = vmul.f32 %v1789, 0.2
        %v1889 = vmul.f32 %v1792, 0.2
        %v1890 = vmul.f32 %v1795, 0.2
        %v1891 = vmul.f32 %v1798, 0.2
        %v1892 = vmul.f32 %v1801, 0.2
        %v1893 = vmul.f32 %v1804, 0.2
        %v1894 = vmul.f32 %v1807, 0.2
        %v1895 = vmul.f32 %v1810, 0.2
        %v1896 = vmul.f32 %v1813, 0.2
        %v1897 = vmul.f32 %v1816, 0.2
        %v1898 = vmul.f32 %v1819, 0.2
        %v1899 = vmul.f32 %v1822, 0.2
        %v1900 = vmul.f32 %v1825, 0.2
        %v1901 = vmul.f32 %v1828, 0.2
        %v1902 = vmul.f32 %v1831, 0.2
        %v1903 = vmul.f32 %v1834, 0.2
        %v1904 = vmul.f32 %v1837, 0.2
        %v1905 = vmul.f32 %v1840, 0.2
        %v1906 = vsel %vm1842, %v1747, %v1874
        %v1907 = vsel %vm1843, %v1750, %v1875
        %v1908 = vsel %vm1844, %v1753, %v1876
        %v1909 = vsel %vm1845, %v1756, %v1877
        %v1910 = vsel %vm1846, %v1759, %v1878
        %v1911 = vsel %vm1847, %v1762, %v1879
        %v1912 = vsel %vm1848, %v1765, %v1880
        %v1913 = vsel %vm1849, %v1768, %v1881
        %v1914 = vsel %vm1850, %v1771, %v1882
        %v1915 = vsel %vm1851, %v1774, %v1883
        %v1916 = vsel %vm1852, %v1777, %v1884
        %v1917 = vsel %vm1853, %v1780, %v1885
        %v1918 = vsel %vm1854, %v1783, %v1886
        %v1919 = vsel %vm1855, %v1786, %v1887
        %v1920 = vsel %vm1856, %v1789, %v1888
        %v1921 = vsel %vm1857, %v1792, %v1889
        %v1922 = vsel %vm1858, %v1795, %v1890
        %v1923 = vsel %vm1859, %v1798, %v1891
        %v1924 = vsel %vm1860, %v1801, %v1892
        %v1925 = vsel %vm1861, %v1804, %v1893
        %v1926 = vsel %vm1862, %v1807, %v1894
        %v1927 = vsel %vm1863, %v1810, %v1895
        %v1928 = vsel %vm1864, %v1813, %v1896
        %v1929 = vsel %vm1865, %v1816, %v1897
        %v1930 = vsel %vm1866, %v1819, %v1898
        %v1931 = vsel %vm1867, %v1822, %v1899
        %v1932 = vsel %vm1868, %v1825, %v1900
        %v1933 = vsel %vm1869, %v1828, %v1901
        %v1934 = vsel %vm1870, %v1831, %v1902
        %v1935 = vsel %vm1871, %v1834, %v1903
        %v1936 = vsel %vm1872, %v1837, %v1904
        %v1937 = vsel %vm1873, %v1840, %v1905
        %v1938 = vld [vmem:[%s6] sm:$0xff]
        %v1939 = vld [vmem:[%s6 + $0x8] sm:$0xff]
        %v1940 = vld [vmem:[%s6 + $0x10] sm:$0xff]
        %v1941 = vld [vmem:[%s6 + $0x18] sm:$0xff]
        %v1942 = vld [vmem:[%s6 + $0x20] sm:$0xff]
        %v1943 = vld [vmem:[%s6 + $0x28] sm:$0xff]
        %v1944 = vld [vmem:[%s6 + $0x30] sm:$0xff]
        %v1945 = vld [vmem:[%s6 + $0x38] sm:$0xff]
        %v1946 = vld [vmem:[%s7] sm:$0xff]
        %v1947 = vld [vmem:[%s7 + $0x8] sm:$0xff]
        %v1948 = vld [vmem:[%s7 + $0x10] sm:$0xff]
        %v1949 = vld [vmem:[%s7 + $0x18] sm:$0xff]
        %1950 = vmatpush.msra.mxu0 %v1921
        %1951 = vmatpush.msra.mxu0 %v1920
        %1952 = vmatpush.msra.mxu0 %v1919
        %1953 = vmatpush.msra.mxu0 %v1918
        %1954 = vmatpush.msra.mxu0 %v1917
        %1955 = vmatpush.msra.mxu0 %v1916
        %1956 = vmatpush.msra.mxu0 %v1915
        %1957 = vmatpush.msra.mxu0 %v1914
        %1958 = vmatpush.msra.mxu0 %v1913
        %1959 = vmatpush.msra.mxu0 %v1912
        %1960 = vmatpush.msra.mxu0 %v1911
        %1961 = vmatpush.msra.mxu0 %v1910
        %1962 = vmatpush.msra.mxu0 %v1909
        %1963 = vmatpush.msra.mxu0 %v1908
        %1964 = vmatpush.msra.mxu0 %v1907
        %1965 = vmatpush.msra.mxu0 %v1906
        %1966 = vmatmul.f32.gmra.mxu0 %v1938
        %v1967 = vpop.f32.mrf.mxu0
        %v1968 = vadd.f32 %v1946, %v1967
        %1969 = vmatmul.f32.gmra.mxu0 %v1940
        %v1970 = vpop.f32.mrf.mxu0
        %v1971 = vadd.f32 %v1947, %v1970
        %1972 = vmatmul.f32.gmra.mxu0 %v1942
        %v1973 = vpop.f32.mrf.mxu0
        %v1974 = vadd.f32 %v1948, %v1973
        %1975 = vmatmul.f32.gmra.mxu0 %v1944
        %v1976 = vpop.f32.mrf.mxu0
        %v1977 = vadd.f32 %v1949, %v1976
        %1978 = vdwg.mxu0
        %1979 = vmatpush.msra.mxu0 %v1937
        %1980 = vmatpush.msra.mxu0 %v1936
        %1981 = vmatpush.msra.mxu0 %v1935
        %1982 = vmatpush.msra.mxu0 %v1934
        %1983 = vmatpush.msra.mxu0 %v1933
        %1984 = vmatpush.msra.mxu0 %v1932
        %1985 = vmatpush.msra.mxu0 %v1931
        %1986 = vmatpush.msra.mxu0 %v1930
        %1987 = vmatpush.msra.mxu0 %v1929
        %1988 = vmatpush.msra.mxu0 %v1928
        %1989 = vmatpush.msra.mxu0 %v1927
        %1990 = vmatpush.msra.mxu0 %v1926
        %1991 = vmatpush.msra.mxu0 %v1925
        %1992 = vmatpush.msra.mxu0 %v1924
        %1993 = vmatpush.msra.mxu0 %v1923
        %1994 = vmatpush.msra.mxu0 %v1922
        %1995 = vmatmul.f32.gmra.mxu0 %v1939
        %v1996 = vpop.f32.mrf.mxu0
        %v1997 = vadd.f32 %v1968, %v1996
        %1998 = vmatmul.f32.gmra.mxu0 %v1941
        %v1999 = vpop.f32.mrf.mxu0
        %v2000 = vadd.f32 %v1971, %v1999
        %2001 = vmatmul.f32.gmra.mxu0 %v1943
        %v2002 = vpop.f32.mrf.mxu0
        %v2003 = vadd.f32 %v1974, %v2002
        %2004 = vmatmul.f32.gmra.mxu0 %v1945
        %v2005 = vpop.f32.mrf.mxu0
        %v2006 = vadd.f32 %v1977, %v2005
        %2007 = vdwg.mxu0
        %v2008 = vld [vmem:[%s8] sm:$0xff]
        %v2009 = vld [vmem:[%s8 + $0x8] sm:$0xff]
        %v2010 = vld [vmem:[%s8 + $0x10] sm:$0xff]
        %v2011 = vld [vmem:[%s8 + $0x18] sm:$0xff]
        %v2012 = vld [vmem:[%s8 + $0x20] sm:$0xff]
        %v2013 = vld [vmem:[%s8 + $0x28] sm:$0xff]
        %v2014 = vld [vmem:[%s8 + $0x30] sm:$0xff]
        %v2015 = vld [vmem:[%s8 + $0x38] sm:$0xff]
        %v2016 = vld [vmem:[%s9] sm:$0xff]
        %v2017 = vld [vmem:[%s9 + $0x8] sm:$0xff]
        %v2018 = vld [vmem:[%s9 + $0x10] sm:$0xff]
        %v2019 = vld [vmem:[%s9 + $0x18] sm:$0xff]
        %2020 = vmatpush.msra.mxu0 %v1921
        %2021 = vmatpush.msra.mxu0 %v1920
        %2022 = vmatpush.msra.mxu0 %v1919
        %2023 = vmatpush.msra.mxu0 %v1918
        %2024 = vmatpush.msra.mxu0 %v1917
        %2025 = vmatpush.msra.mxu0 %v1916
        %2026 = vmatpush.msra.mxu0 %v1915
        %2027 = vmatpush.msra.mxu0 %v1914
        %2028 = vmatpush.msra.mxu0 %v1913
        %2029 = vmatpush.msra.mxu0 %v1912
        %2030 = vmatpush.msra.mxu0 %v1911
        %2031 = vmatpush.msra.mxu0 %v1910
        %2032 = vmatpush.msra.mxu0 %v1909
        %2033 = vmatpush.msra.mxu0 %v1908
        %2034 = vmatpush.msra.mxu0 %v1907
        %2035 = vmatpush.msra.mxu0 %v1906
        %2036 = vmatmul.f32.gmra.mxu0 %v2008
        %v2037 = vpop.f32.mrf.mxu0
        %v2038 = vadd.f32 %v2016, %v2037
        %2039 = vmatmul.f32.gmra.mxu0 %v2010
        %v2040 = vpop.f32.mrf.mxu0
        %v2041 = vadd.f32 %v2017, %v2040
        %2042 = vmatmul.f32.gmra.mxu0 %v2012
        %v2043 = vpop.f32.mrf.mxu0
        %v2044 = vadd.f32 %v2018, %v2043
        %2045 = vmatmul.f32.gmra.mxu0 %v2014
        %v2046 = vpop.f32.mrf.mxu0
        %v2047 = vadd.f32 %v2019, %v2046
        %2048 = vdwg.mxu0
        %2049 = vmatpush.msra.mxu0 %v1937
        %2050 = vmatpush.msra.mxu0 %v1936
        %2051 = vmatpush.msra.mxu0 %v1935
        %2052 = vmatpush.msra.mxu0 %v1934
        %2053 = vmatpush.msra.mxu0 %v1933
        %2054 = vmatpush.msra.mxu0 %v1932
        %2055 = vmatpush.msra.mxu0 %v1931
        %2056 = vmatpush.msra.mxu0 %v1930
        %2057 = vmatpush.msra.mxu0 %v1929
        %2058 = vmatpush.msra.mxu0 %v1928
        %2059 = vmatpush.msra.mxu0 %v1927
        %2060 = vmatpush.msra.mxu0 %v1926
        %2061 = vmatpush.msra.mxu0 %v1925
        %2062 = vmatpush.msra.mxu0 %v1924
        %2063 = vmatpush.msra.mxu0 %v1923
        %2064 = vmatpush.msra.mxu0 %v1922
        %2065 = vmatmul.f32.gmra.mxu0 %v2009
        %v2066 = vpop.f32.mrf.mxu0
        %v2067 = vadd.f32 %v2038, %v2066
        %2068 = vmatmul.f32.gmra.mxu0 %v2011
        %v2069 = vpop.f32.mrf.mxu0
        %v2070 = vadd.f32 %v2041, %v2069
        %2071 = vmatmul.f32.gmra.mxu0 %v2013
        %v2072 = vpop.f32.mrf.mxu0
        %v2073 = vadd.f32 %v2044, %v2072
        %2074 = vmatmul.f32.gmra.mxu0 %v2015
        %v2075 = vpop.f32.mrf.mxu0
        %v2076 = vadd.f32 %v2047, %v2075
        %2077 = vdwg.mxu0
        %v2078 = vld [vmem:[%s808] sm:$0xff]
        %v2079 = vld [vmem:[%s808 + $0x8] sm:$0xff]
        %v2080 = vld [vmem:[%s10] sm:$0xff]
        %v2081 = vld [vmem:[%s10 + $0x8] sm:$0xff]
        %v2082 = vld [vmem:[%s10 + $0x10] sm:$0xff]
        %v2083 = vld [vmem:[%s10 + $0x18] sm:$0xff]
        %v2084 = vld [vmem:[%s10 + $0x20] sm:$0xff]
        %v2085 = vld [vmem:[%s10 + $0x28] sm:$0xff]
        %v2086 = vld [vmem:[%s10 + $0x30] sm:$0xff]
        %v2087 = vld [vmem:[%s10 + $0x38] sm:$0xff]
        %v2088 = vld [vmem:[%s10 + $0x40] sm:$0xff]
        %v2089 = vld [vmem:[%s10 + $0x48] sm:$0xff]
        %v2090 = vld [vmem:[%s10 + $0x50] sm:$0xff]
        %v2091 = vld [vmem:[%s10 + $0x58] sm:$0xff]
        %v2092 = vld [vmem:[%s10 + $0x60] sm:$0xff]
        %v2093 = vld [vmem:[%s10 + $0x68] sm:$0xff]
        %v2094 = vld [vmem:[%s10 + $0x70] sm:$0xff]
        %v2095 = vld [vmem:[%s10 + $0x78] sm:$0xff]
        %v2096 = vld [vmem:[%s10 + $0x80] sm:$0xff]
        %v2097 = vld [vmem:[%s10 + $0x88] sm:$0xff]
        %vm2098 = vcmask 64512
        %v2100 = vsel %vm2098, %v2080, 0
        %v2103 = vsel %vm2098, %v2081, 0
        %v2106 = vsel %vm2098, %v2082, 0
        %v2109 = vsel %vm2098, %v2083, 0
        %v2112 = vsel %vm2098, %v2084, 0
        %v2115 = vsel %vm2098, %v2085, 0
        %v2118 = vsel %vm2098, %v2086, 0
        %v2121 = vsel %vm2098, %v2087, 0
        %v2124 = vsel %vm2098, %v2088, 0
        %v2127 = vsel %vm2098, %v2089, 0
        %v2130 = vsel %vm2098, %v2090, 0
        %v2133 = vsel %vm2098, %v2091, 0
        %v2136 = vsel %vm2098, %v2092, 0
        %v2139 = vsel %vm2098, %v2093, 0
        %v2142 = vsel %vm2098, %v2094, 0
        %v2145 = vsel %vm2098, %v2095, 0
        %v2148 = vsel %vm2098, %v2096, 0
        %v2151 = vsel %vm2098, %v2097, 0
        %2153 = vmatpush.msra.mxu0 0.0
        %2154 = vmatpush.msra.mxu0 0.0
        %2155 = vmatpush.msra.mxu0 0.0
        %2156 = vmatpush.msra.mxu0 0.0
        %2157 = vmatpush.msra.mxu0 0.0
        %2158 = vmatpush.msra.mxu0 0.0
        %2159 = vmatpush.msra.mxu0 0.0
        %2160 = vmatpush.msra.mxu0 0.0
        %2161 = vmatpush.msra.mxu0 0.0
        %2162 = vmatpush.msra.mxu0 0.0
        %2163 = vmatpush.msra.mxu0 0.0
        %2164 = vmatpush.msra.mxu0 0.0
        %2165 = vmatpush.msra.mxu0 0.0
        %2166 = vmatpush.msra.mxu0 0.0
        %2167 = vmatpush.msra.mxu0 0.0
        %2168 = vmatpush.msra.mxu0 %v2078
        %2169 = vmatmul.f32.gmra.mxu0 %v2100
        %v2170 = vpop.f32.mrf.mxu0
        %v2171 = vadd.f32 0.0, %v2170
        %2172 = vmatmul.f32.gmra.mxu0 %v2103
        %v2173 = vpop.f32.mrf.mxu0
        %v2174 = vadd.f32 0.0, %v2173
        %2175 = vmatmul.f32.gmra.mxu0 %v2106
        %v2176 = vpop.f32.mrf.mxu0
        %v2177 = vadd.f32 0.0, %v2176
        %2178 = vmatmul.f32.gmra.mxu0 %v2109
        %v2179 = vpop.f32.mrf.mxu0
        %v2180 = vadd.f32 0.0, %v2179
        %2181 = vmatmul.f32.gmra.mxu0 %v2112
        %v2182 = vpop.f32.mrf.mxu0
        %v2183 = vadd.f32 0.0, %v2182
        %2184 = vmatmul.f32.gmra.mxu0 %v2115
        %v2185 = vpop.f32.mrf.mxu0
        %v2186 = vadd.f32 0.0, %v2185
        %2187 = vmatmul.f32.gmra.mxu0 %v2118
        %v2188 = vpop.f32.mrf.mxu0
        %v2189 = vadd.f32 0.0, %v2188
        %2190 = vmatmul.f32.gmra.mxu0 %v2121
        %v2191 = vpop.f32.mrf.mxu0
        %v2192 = vadd.f32 0.0, %v2191
        %2193 = vmatmul.f32.gmra.mxu0 %v2124
        %v2194 = vpop.f32.mrf.mxu0
        %v2195 = vadd.f32 0.0, %v2194
        %2196 = vmatmul.f32.gmra.mxu0 %v2127
        %v2197 = vpop.f32.mrf.mxu0
        %v2198 = vadd.f32 0.0, %v2197
        %2199 = vmatmul.f32.gmra.mxu0 %v2130
        %v2200 = vpop.f32.mrf.mxu0
        %v2201 = vadd.f32 0.0, %v2200
        %2202 = vmatmul.f32.gmra.mxu0 %v2133
        %v2203 = vpop.f32.mrf.mxu0
        %v2204 = vadd.f32 0.0, %v2203
        %2205 = vmatmul.f32.gmra.mxu0 %v2136
        %v2206 = vpop.f32.mrf.mxu0
        %v2207 = vadd.f32 0.0, %v2206
        %2208 = vmatmul.f32.gmra.mxu0 %v2139
        %v2209 = vpop.f32.mrf.mxu0
        %v2210 = vadd.f32 0.0, %v2209
        %2211 = vmatmul.f32.gmra.mxu0 %v2142
        %v2212 = vpop.f32.mrf.mxu0
        %v2213 = vadd.f32 0.0, %v2212
        %2214 = vmatmul.f32.gmra.mxu0 %v2145
        %v2215 = vpop.f32.mrf.mxu0
        %v2216 = vadd.f32 0.0, %v2215
        %2217 = vmatmul.f32.gmra.mxu0 %v2148
        %v2218 = vpop.f32.mrf.mxu0
        %v2219 = vadd.f32 0.0, %v2218
        %2220 = vmatmul.f32.gmra.mxu0 %v2151
        %v2221 = vpop.f32.mrf.mxu0
        %v2222 = vadd.f32 0.0, %v2221
        %2223 = vdwg.mxu0
        %2224 = vmatpush.msra.mxu0 0.0
        %2225 = vmatpush.msra.mxu0 0.0
        %2226 = vmatpush.msra.mxu0 0.0
        %2227 = vmatpush.msra.mxu0 0.0
        %2228 = vmatpush.msra.mxu0 0.0
        %2229 = vmatpush.msra.mxu0 0.0
        %2230 = vmatpush.msra.mxu0 0.0
        %2231 = vmatpush.msra.mxu0 0.0
        %2232 = vmatpush.msra.mxu0 0.0
        %2233 = vmatpush.msra.mxu0 0.0
        %2234 = vmatpush.msra.mxu0 0.0
        %2235 = vmatpush.msra.mxu0 0.0
        %2236 = vmatpush.msra.mxu0 0.0
        %2237 = vmatpush.msra.mxu0 0.0
        %2238 = vmatpush.msra.mxu0 0.0
        %2239 = vmatpush.msra.mxu0 %v2079
        %2240 = vmatmul.f32.gmra.mxu0 %v2100
        %v2241 = vpop.f32.mrf.mxu0
        %v2242 = vadd.f32 0.0, %v2241
        %2243 = vmatmul.f32.gmra.mxu0 %v2103
        %v2244 = vpop.f32.mrf.mxu0
        %v2245 = vadd.f32 0.0, %v2244
        %2246 = vmatmul.f32.gmra.mxu0 %v2106
        %v2247 = vpop.f32.mrf.mxu0
        %v2248 = vadd.f32 0.0, %v2247
        %2249 = vmatmul.f32.gmra.mxu0 %v2109
        %v2250 = vpop.f32.mrf.mxu0
        %v2251 = vadd.f32 0.0, %v2250
        %2252 = vmatmul.f32.gmra.mxu0 %v2112
        %v2253 = vpop.f32.mrf.mxu0
        %v2254 = vadd.f32 0.0, %v2253
        %2255 = vmatmul.f32.gmra.mxu0 %v2115
        %v2256 = vpop.f32.mrf.mxu0
        %v2257 = vadd.f32 0.0, %v2256
        %2258 = vmatmul.f32.gmra.mxu0 %v2118
        %v2259 = vpop.f32.mrf.mxu0
        %v2260 = vadd.f32 0.0, %v2259
        %2261 = vmatmul.f32.gmra.mxu0 %v2121
        %v2262 = vpop.f32.mrf.mxu0
        %v2263 = vadd.f32 0.0, %v2262
        %2264 = vmatmul.f32.gmra.mxu0 %v2124
        %v2265 = vpop.f32.mrf.mxu0
        %v2266 = vadd.f32 0.0, %v2265
        %2267 = vmatmul.f32.gmra.mxu0 %v2127
        %v2268 = vpop.f32.mrf.mxu0
        %v2269 = vadd.f32 0.0, %v2268
        %2270 = vmatmul.f32.gmra.mxu0 %v2130
        %v2271 = vpop.f32.mrf.mxu0
        %v2272 = vadd.f32 0.0, %v2271
        %2273 = vmatmul.f32.gmra.mxu0 %v2133
        %v2274 = vpop.f32.mrf.mxu0
        %v2275 = vadd.f32 0.0, %v2274
        %2276 = vmatmul.f32.gmra.mxu0 %v2136
        %v2277 = vpop.f32.mrf.mxu0
        %v2278 = vadd.f32 0.0, %v2277
        %2279 = vmatmul.f32.gmra.mxu0 %v2139
        %v2280 = vpop.f32.mrf.mxu0
        %v2281 = vadd.f32 0.0, %v2280
        %2282 = vmatmul.f32.gmra.mxu0 %v2142
        %v2283 = vpop.f32.mrf.mxu0
        %v2284 = vadd.f32 0.0, %v2283
        %2285 = vmatmul.f32.gmra.mxu0 %v2145
        %v2286 = vpop.f32.mrf.mxu0
        %v2287 = vadd.f32 0.0, %v2286
        %2288 = vmatmul.f32.gmra.mxu0 %v2148
        %v2289 = vpop.f32.mrf.mxu0
        %v2290 = vadd.f32 0.0, %v2289
        %2291 = vmatmul.f32.gmra.mxu0 %v2151
        %v2292 = vpop.f32.mrf.mxu0
        %v2293 = vadd.f32 0.0, %v2292
        %2294 = vdwg.mxu0
        %v2295 = vld [vmem:[#allocation2] sm:$0xff]
        %v2296 = vld [vmem:[#allocation2 + $0x8] sm:$0xff]
        %v2297 = vld [vmem:[#allocation2 + $0x10] sm:$0xff]
        %v2298 = vld [vmem:[#allocation2 + $0x18] sm:$0xff]
        %v2299 = vld [vmem:[#allocation2 + $0x20] sm:$0xff]
        %v2300 = vld [vmem:[#allocation2 + $0x28] sm:$0xff]
        %v2301 = vld [vmem:[#allocation2 + $0x30] sm:$0xff]
        %v2302 = vld [vmem:[#allocation2 + $0x38] sm:$0xff]
        %v2303 = vld [vmem:[#allocation2 + $0x40] sm:$0xff]
        %v2304 = vld [vmem:[#allocation2 + $0x48] sm:$0xff]
        %v2305 = vld [vmem:[#allocation2 + $0x50] sm:$0xff]
        %v2306 = vld [vmem:[#allocation2 + $0x58] sm:$0xff]
        %v2307 = vld [vmem:[#allocation2 + $0x60] sm:$0xff]
        %v2308 = vld [vmem:[#allocation2 + $0x68] sm:$0xff]
        %v2309 = vld [vmem:[#allocation2 + $0x70] sm:$0xff]
        %v2310 = vld [vmem:[#allocation2 + $0x78] sm:$0xff]
        %v2311 = vld [vmem:[#allocation2 + $0x80] sm:$0xff]
        %v2312 = vld [vmem:[#allocation2 + $0x88] sm:$0xff]
        %v2313 = vld [vmem:[#allocation2 + $0x90] sm:$0xff]
        %v2314 = vld [vmem:[#allocation2 + $0x98] sm:$0xff]
        %v2315 = vld [vmem:[#allocation2 + $0xa0] sm:$0xff]
        %v2316 = vld [vmem:[#allocation2 + $0xa8] sm:$0xff]
        %v2317 = vld [vmem:[#allocation2 + $0xb0] sm:$0xff]
        %v2318 = vld [vmem:[#allocation2 + $0xb8] sm:$0xff]
        %v2319 = vld [vmem:[#allocation2 + $0xc0] sm:$0xff]
        %v2320 = vld [vmem:[#allocation2 + $0xc8] sm:$0xff]
        %v2321 = vld [vmem:[#allocation2 + $0xd0] sm:$0xff]
        %v2322 = vld [vmem:[#allocation2 + $0xd8] sm:$0xff]
        %v2323 = vld [vmem:[#allocation2 + $0xe0] sm:$0xff]
        %v2324 = vld [vmem:[#allocation2 + $0xe8] sm:$0xff]
        %v2325 = vld [vmem:[#allocation2 + $0xf0] sm:$0xff]
        %v2326 = vld [vmem:[#allocation2 + $0xf8] sm:$0xff]
        %s2327 = scalar_lea.vmem [#allocation2], 256
        %v2328 = vld [vmem:[%s2327] sm:$0xff]
        %v2329 = vld [vmem:[%s2327 + $0x8] sm:$0xff]
        %v2330 = vld [vmem:[%s2327 + $0x10] sm:$0xff]
        %v2331 = vld [vmem:[%s2327 + $0x18] sm:$0xff]
        %v2332 = vld [vmem:[%s2327 + $0x20] sm:$0xff]
        %v2333 = vld [vmem:[%s2327 + $0x28] sm:$0xff]
        %v2334 = vld [vmem:[%s2327 + $0x30] sm:$0xff]
        %v2335 = vld [vmem:[%s2327 + $0x38] sm:$0xff]
        %v2336 = vld [vmem:[%s2327 + $0x40] sm:$0xff]
        %v2337 = vld [vmem:[%s2327 + $0x48] sm:$0xff]
        %v2338 = vld [vmem:[%s2327 + $0x50] sm:$0xff]
        %v2339 = vld [vmem:[%s2327 + $0x58] sm:$0xff]
        %v2340 = vld [vmem:[%s2327 + $0x60] sm:$0xff]
        %v2341 = vld [vmem:[%s2327 + $0x68] sm:$0xff]
        %v2342 = vld [vmem:[%s2327 + $0x70] sm:$0xff]
        %v2343 = vld [vmem:[%s2327 + $0x78] sm:$0xff]
        %v2344 = vld [vmem:[%s2327 + $0x80] sm:$0xff]
        %v2345 = vld [vmem:[%s2327 + $0x88] sm:$0xff]
        %v2346 = vld [vmem:[%s2327 + $0x90] sm:$0xff]
        %v2347 = vld [vmem:[%s2327 + $0x98] sm:$0xff]
        %v2348 = vld [vmem:[%s2327 + $0xa0] sm:$0xff]
        %v2349 = vld [vmem:[%s2327 + $0xa8] sm:$0xff]
        %v2350 = vld [vmem:[%s2327 + $0xb0] sm:$0xff]
        %v2351 = vld [vmem:[%s2327 + $0xb8] sm:$0xff]
        %v2352 = vld [vmem:[%s2327 + $0xc0] sm:$0xff]
        %v2353 = vld [vmem:[%s2327 + $0xc8] sm:$0xff]
        %v2354 = vld [vmem:[%s2327 + $0xd0] sm:$0xff]
        %v2355 = vld [vmem:[%s2327 + $0xd8] sm:$0xff]
        %v2356 = vld [vmem:[%s2327 + $0xe0] sm:$0xff]
        %v2357 = vld [vmem:[%s2327 + $0xe8] sm:$0xff]
        %v2358 = vld [vmem:[%s2327 + $0xf0] sm:$0xff]
        %v2359 = vld [vmem:[%s2327 + $0xf8] sm:$0xff]
        %2360 = vmatpush.msra.mxu0 %v2343
        %2361 = vmatpush.msra.mxu0 %v2342
        %2362 = vmatpush.msra.mxu0 %v2341
        %2363 = vmatpush.msra.mxu0 %v2340
        %2364 = vmatpush.msra.mxu0 %v2339
        %2365 = vmatpush.msra.mxu0 %v2338
        %2366 = vmatpush.msra.mxu0 %v2337
        %2367 = vmatpush.msra.mxu0 %v2336
        %2368 = vmatpush.msra.mxu0 %v2335
        %2369 = vmatpush.msra.mxu0 %v2334
        %2370 = vmatpush.msra.mxu0 %v2333
        %2371 = vmatpush.msra.mxu0 %v2332
        %2372 = vmatpush.msra.mxu0 %v2331
        %2373 = vmatpush.msra.mxu0 %v2330
        %2374 = vmatpush.msra.mxu0 %v2329
        %2375 = vmatpush.msra.mxu0 %v2328
        %2376 = vmatmul.f32.gmra.mxu0 %v2177
        %v2377 = vpop.f32.mrf.mxu0
        %v2378 = vadd.f32 0.0, %v2377
        %2379 = vmatmul.f32.gmra.mxu0 %v2180
        %v2380 = vpop.f32.mrf.mxu0
        %v2381 = vadd.f32 0.0, %v2380
        %2382 = vdwg.mxu0
        %2383 = vmatpush.msra.mxu0 %v2359
        %2384 = vmatpush.msra.mxu0 %v2358
        %2385 = vmatpush.msra.mxu0 %v2357
        %2386 = vmatpush.msra.mxu0 %v2356
        %2387 = vmatpush.msra.mxu0 %v2355
        %2388 = vmatpush.msra.mxu0 %v2354
        %2389 = vmatpush.msra.mxu0 %v2353
        %2390 = vmatpush.msra.mxu0 %v2352
        %2391 = vmatpush.msra.mxu0 %v2351
        %2392 = vmatpush.msra.mxu0 %v2350
        %2393 = vmatpush.msra.mxu0 %v2349
        %2394 = vmatpush.msra.mxu0 %v2348
        %2395 = vmatpush.msra.mxu0 %v2347
        %2396 = vmatpush.msra.mxu0 %v2346
        %2397 = vmatpush.msra.mxu0 %v2345
        %2398 = vmatpush.msra.mxu0 %v2344
        %2399 = vmatmul.f32.gmra.mxu0 %v2248
        %v2400 = vpop.f32.mrf.mxu0
        %v2401 = vadd.f32 %v2378, %v2400
        %2402 = vmatmul.f32.gmra.mxu0 %v2251
        %v2403 = vpop.f32.mrf.mxu0
        %v2404 = vadd.f32 %v2381, %v2403
        %2405 = vdwg.mxu0
        %2406 = vmatpush.msra.mxu0 %v2310
        %2407 = vmatpush.msra.mxu0 %v2309
        %2408 = vmatpush.msra.mxu0 %v2308
        %2409 = vmatpush.msra.mxu0 %v2307
        %2410 = vmatpush.msra.mxu0 %v2306
        %2411 = vmatpush.msra.mxu0 %v2305
        %2412 = vmatpush.msra.mxu0 %v2304
        %2413 = vmatpush.msra.mxu0 %v2303
        %2414 = vmatpush.msra.mxu0 %v2302
        %2415 = vmatpush.msra.mxu0 %v2301
        %2416 = vmatpush.msra.mxu0 %v2300
        %2417 = vmatpush.msra.mxu0 %v2299
        %2418 = vmatpush.msra.mxu0 %v2298
        %2419 = vmatpush.msra.mxu0 %v2297
        %2420 = vmatpush.msra.mxu0 %v2296
        %2421 = vmatpush.msra.mxu0 %v2295
        %2422 = vmatmul.f32.gmra.mxu0 %v2171
        %v2423 = vpop.f32.mrf.mxu0
        %v2424 = vadd.f32 %v2401, %v2423
        %2425 = vmatmul.f32.gmra.mxu0 %v2174
        %v2426 = vpop.f32.mrf.mxu0
        %v2427 = vadd.f32 %v2404, %v2426
        %2428 = vdwg.mxu0
        %2429 = vmatpush.msra.mxu0 %v2326
        %2430 = vmatpush.msra.mxu0 %v2325
        %2431 = vmatpush.msra.mxu0 %v2324
        %2432 = vmatpush.msra.mxu0 %v2323
        %2433 = vmatpush.msra.mxu0 %v2322
        %2434 = vmatpush.msra.mxu0 %v2321
        %2435 = vmatpush.msra.mxu0 %v2320
        %2436 = vmatpush.msra.mxu0 %v2319
        %2437 = vmatpush.msra.mxu0 %v2318
        %2438 = vmatpush.msra.mxu0 %v2317
        %2439 = vmatpush.msra.mxu0 %v2316
        %2440 = vmatpush.msra.mxu0 %v2315
        %2441 = vmatpush.msra.mxu0 %v2314
        %2442 = vmatpush.msra.mxu0 %v2313
        %2443 = vmatpush.msra.mxu0 %v2312
        %2444 = vmatpush.msra.mxu0 %v2311
        %2445 = vmatmul.f32.gmra.mxu0 %v2242
        %v2446 = vpop.f32.mrf.mxu0
        %v2447 = vadd.f32 %v2424, %v2446
        %2448 = vmatmul.f32.gmra.mxu0 %v2245
        %v2449 = vpop.f32.mrf.mxu0
        %v2450 = vadd.f32 %v2427, %v2449
        %2451 = vdwg.mxu0
        %s2452 = scalar_lea.vmem [#allocation2], 512
        %v2453 = vld [vmem:[%s2452] sm:$0xff]
        %v2454 = vld [vmem:[%s2452 + $0x8] sm:$0xff]
        %v2455 = vld [vmem:[%s2452 + $0x10] sm:$0xff]
        %v2456 = vld [vmem:[%s2452 + $0x18] sm:$0xff]
        %v2457 = vld [vmem:[%s2452 + $0x20] sm:$0xff]
        %v2458 = vld [vmem:[%s2452 + $0x28] sm:$0xff]
        %v2459 = vld [vmem:[%s2452 + $0x30] sm:$0xff]
        %v2460 = vld [vmem:[%s2452 + $0x38] sm:$0xff]
        %v2461 = vld [vmem:[%s2452 + $0x40] sm:$0xff]
        %v2462 = vld [vmem:[%s2452 + $0x48] sm:$0xff]
        %v2463 = vld [vmem:[%s2452 + $0x50] sm:$0xff]
        %v2464 = vld [vmem:[%s2452 + $0x58] sm:$0xff]
        %v2465 = vld [vmem:[%s2452 + $0x60] sm:$0xff]
        %v2466 = vld [vmem:[%s2452 + $0x68] sm:$0xff]
        %v2467 = vld [vmem:[%s2452 + $0x70] sm:$0xff]
        %v2468 = vld [vmem:[%s2452 + $0x78] sm:$0xff]
        %v2469 = vld [vmem:[%s2452 + $0x80] sm:$0xff]
        %v2470 = vld [vmem:[%s2452 + $0x88] sm:$0xff]
        %v2471 = vld [vmem:[%s2452 + $0x90] sm:$0xff]
        %v2472 = vld [vmem:[%s2452 + $0x98] sm:$0xff]
        %v2473 = vld [vmem:[%s2452 + $0xa0] sm:$0xff]
        %v2474 = vld [vmem:[%s2452 + $0xa8] sm:$0xff]
        %v2475 = vld [vmem:[%s2452 + $0xb0] sm:$0xff]
        %v2476 = vld [vmem:[%s2452 + $0xb8] sm:$0xff]
        %v2477 = vld [vmem:[%s2452 + $0xc0] sm:$0xff]
        %v2478 = vld [vmem:[%s2452 + $0xc8] sm:$0xff]
        %v2479 = vld [vmem:[%s2452 + $0xd0] sm:$0xff]
        %v2480 = vld [vmem:[%s2452 + $0xd8] sm:$0xff]
        %v2481 = vld [vmem:[%s2452 + $0xe0] sm:$0xff]
        %v2482 = vld [vmem:[%s2452 + $0xe8] sm:$0xff]
        %v2483 = vld [vmem:[%s2452 + $0xf0] sm:$0xff]
        %v2484 = vld [vmem:[%s2452 + $0xf8] sm:$0xff]
        %2485 = vmatpush.msra.mxu0 %v2468
        %2486 = vmatpush.msra.mxu0 %v2467
        %2487 = vmatpush.msra.mxu0 %v2466
        %2488 = vmatpush.msra.mxu0 %v2465
        %2489 = vmatpush.msra.mxu0 %v2464
        %2490 = vmatpush.msra.mxu0 %v2463
        %2491 = vmatpush.msra.mxu0 %v2462
        %2492 = vmatpush.msra.mxu0 %v2461
        %2493 = vmatpush.msra.mxu0 %v2460
        %2494 = vmatpush.msra.mxu0 %v2459
        %2495 = vmatpush.msra.mxu0 %v2458
        %2496 = vmatpush.msra.mxu0 %v2457
        %2497 = vmatpush.msra.mxu0 %v2456
        %2498 = vmatpush.msra.mxu0 %v2455
        %2499 = vmatpush.msra.mxu0 %v2454
        %2500 = vmatpush.msra.mxu0 %v2453
        %2501 = vmatmul.f32.gmra.mxu0 %v2183
        %v2502 = vpop.f32.mrf.mxu0
        %v2503 = vadd.f32 0.0, %v2502
        %2504 = vmatmul.f32.gmra.mxu0 %v2186
        %v2505 = vpop.f32.mrf.mxu0
        %v2506 = vadd.f32 0.0, %v2505
        %2507 = vdwg.mxu0
        %2508 = vmatpush.msra.mxu0 %v2484
        %2509 = vmatpush.msra.mxu0 %v2483
        %2510 = vmatpush.msra.mxu0 %v2482
        %2511 = vmatpush.msra.mxu0 %v2481
        %2512 = vmatpush.msra.mxu0 %v2480
        %2513 = vmatpush.msra.mxu0 %v2479
        %2514 = vmatpush.msra.mxu0 %v2478
        %2515 = vmatpush.msra.mxu0 %v2477
        %2516 = vmatpush.msra.mxu0 %v2476
        %2517 = vmatpush.msra.mxu0 %v2475
        %2518 = vmatpush.msra.mxu0 %v2474
        %2519 = vmatpush.msra.mxu0 %v2473
        %2520 = vmatpush.msra.mxu0 %v2472
        %2521 = vmatpush.msra.mxu0 %v2471
        %2522 = vmatpush.msra.mxu0 %v2470
        %2523 = vmatpush.msra.mxu0 %v2469
        %2524 = vmatmul.f32.gmra.mxu0 %v2254
        %v2525 = vpop.f32.mrf.mxu0
        %v2526 = vadd.f32 %v2503, %v2525
        %2527 = vmatmul.f32.gmra.mxu0 %v2257
        %v2528 = vpop.f32.mrf.mxu0
        %v2529 = vadd.f32 %v2506, %v2528
        %2530 = vdwg.mxu0
        %v2531 = vadd.f32 %v2447, %v2526
        %v2532 = vadd.f32 %v2450, %v2529
        %s2533 = scalar_lea.vmem [#allocation2], 768
        %v2534 = vld [vmem:[%s2533] sm:$0xff]
        %v2535 = vld [vmem:[%s2533 + $0x8] sm:$0xff]
        %v2536 = vld [vmem:[%s2533 + $0x10] sm:$0xff]
        %v2537 = vld [vmem:[%s2533 + $0x18] sm:$0xff]
        %v2538 = vld [vmem:[%s2533 + $0x20] sm:$0xff]
        %v2539 = vld [vmem:[%s2533 + $0x28] sm:$0xff]
        %v2540 = vld [vmem:[%s2533 + $0x30] sm:$0xff]
        %v2541 = vld [vmem:[%s2533 + $0x38] sm:$0xff]
        %v2542 = vld [vmem:[%s2533 + $0x40] sm:$0xff]
        %v2543 = vld [vmem:[%s2533 + $0x48] sm:$0xff]
        %v2544 = vld [vmem:[%s2533 + $0x50] sm:$0xff]
        %v2545 = vld [vmem:[%s2533 + $0x58] sm:$0xff]
        %v2546 = vld [vmem:[%s2533 + $0x60] sm:$0xff]
        %v2547 = vld [vmem:[%s2533 + $0x68] sm:$0xff]
        %v2548 = vld [vmem:[%s2533 + $0x70] sm:$0xff]
        %v2549 = vld [vmem:[%s2533 + $0x78] sm:$0xff]
        %v2550 = vld [vmem:[%s2533 + $0x80] sm:$0xff]
        %v2551 = vld [vmem:[%s2533 + $0x88] sm:$0xff]
        %v2552 = vld [vmem:[%s2533 + $0x90] sm:$0xff]
        %v2553 = vld [vmem:[%s2533 + $0x98] sm:$0xff]
        %v2554 = vld [vmem:[%s2533 + $0xa0] sm:$0xff]
        %v2555 = vld [vmem:[%s2533 + $0xa8] sm:$0xff]
        %v2556 = vld [vmem:[%s2533 + $0xb0] sm:$0xff]
        %v2557 = vld [vmem:[%s2533 + $0xb8] sm:$0xff]
        %v2558 = vld [vmem:[%s2533 + $0xc0] sm:$0xff]
        %v2559 = vld [vmem:[%s2533 + $0xc8] sm:$0xff]
        %v2560 = vld [vmem:[%s2533 + $0xd0] sm:$0xff]
        %v2561 = vld [vmem:[%s2533 + $0xd8] sm:$0xff]
        %v2562 = vld [vmem:[%s2533 + $0xe0] sm:$0xff]
        %v2563 = vld [vmem:[%s2533 + $0xe8] sm:$0xff]
        %v2564 = vld [vmem:[%s2533 + $0xf0] sm:$0xff]
        %v2565 = vld [vmem:[%s2533 + $0xf8] sm:$0xff]
        %2566 = vmatpush.msra.mxu0 %v2549
        %2567 = vmatpush.msra.mxu0 %v2548
        %2568 = vmatpush.msra.mxu0 %v2547
        %2569 = vmatpush.msra.mxu0 %v2546
        %2570 = vmatpush.msra.mxu0 %v2545
        %2571 = vmatpush.msra.mxu0 %v2544
        %2572 = vmatpush.msra.mxu0 %v2543
        %2573 = vmatpush.msra.mxu0 %v2542
        %2574 = vmatpush.msra.mxu0 %v2541
        %2575 = vmatpush.msra.mxu0 %v2540
        %2576 = vmatpush.msra.mxu0 %v2539
        %2577 = vmatpush.msra.mxu0 %v2538
        %2578 = vmatpush.msra.mxu0 %v2537
        %2579 = vmatpush.msra.mxu0 %v2536
        %2580 = vmatpush.msra.mxu0 %v2535
        %2581 = vmatpush.msra.mxu0 %v2534
        %2582 = vmatmul.f32.gmra.mxu0 %v2189
        %v2583 = vpop.f32.mrf.mxu0
        %v2584 = vadd.f32 0.0, %v2583
        %2585 = vmatmul.f32.gmra.mxu0 %v2192
        %v2586 = vpop.f32.mrf.mxu0
        %v2587 = vadd.f32 0.0, %v2586
        %2588 = vdwg.mxu0
        %2589 = vmatpush.msra.mxu0 %v2565
        %2590 = vmatpush.msra.mxu0 %v2564
        %2591 = vmatpush.msra.mxu0 %v2563
        %2592 = vmatpush.msra.mxu0 %v2562
        %2593 = vmatpush.msra.mxu0 %v2561
        %2594 = vmatpush.msra.mxu0 %v2560
        %2595 = vmatpush.msra.mxu0 %v2559
        %2596 = vmatpush.msra.mxu0 %v2558
        %2597 = vmatpush.msra.mxu0 %v2557
        %2598 = vmatpush.msra.mxu0 %v2556
        %2599 = vmatpush.msra.mxu0 %v2555
        %2600 = vmatpush.msra.mxu0 %v2554
        %2601 = vmatpush.msra.mxu0 %v2553
        %2602 = vmatpush.msra.mxu0 %v2552
        %2603 = vmatpush.msra.mxu0 %v2551
        %2604 = vmatpush.msra.mxu0 %v2550
        %2605 = vmatmul.f32.gmra.mxu0 %v2260
        %v2606 = vpop.f32.mrf.mxu0
        %v2607 = vadd.f32 %v2584, %v2606
        %2608 = vmatmul.f32.gmra.mxu0 %v2263
        %v2609 = vpop.f32.mrf.mxu0
        %v2610 = vadd.f32 %v2587, %v2609
        %2611 = vdwg.mxu0
        %v2612 = vadd.f32 %v2531, %v2607
        %v2613 = vadd.f32 %v2532, %v2610
        %s2614 = scalar_lea.vmem [#allocation2], 1024
        %v2615 = vld [vmem:[%s2614] sm:$0xff]
        %v2616 = vld [vmem:[%s2614 + $0x8] sm:$0xff]
        %v2617 = vld [vmem:[%s2614 + $0x10] sm:$0xff]
        %v2618 = vld [vmem:[%s2614 + $0x18] sm:$0xff]
        %v2619 = vld [vmem:[%s2614 + $0x20] sm:$0xff]
        %v2620 = vld [vmem:[%s2614 + $0x28] sm:$0xff]
        %v2621 = vld [vmem:[%s2614 + $0x30] sm:$0xff]
        %v2622 = vld [vmem:[%s2614 + $0x38] sm:$0xff]
        %v2623 = vld [vmem:[%s2614 + $0x40] sm:$0xff]
        %v2624 = vld [vmem:[%s2614 + $0x48] sm:$0xff]
        %v2625 = vld [vmem:[%s2614 + $0x50] sm:$0xff]
        %v2626 = vld [vmem:[%s2614 + $0x58] sm:$0xff]
        %v2627 = vld [vmem:[%s2614 + $0x60] sm:$0xff]
        %v2628 = vld [vmem:[%s2614 + $0x68] sm:$0xff]
        %v2629 = vld [vmem:[%s2614 + $0x70] sm:$0xff]
        %v2630 = vld [vmem:[%s2614 + $0x78] sm:$0xff]
        %v2631 = vld [vmem:[%s2614 + $0x80] sm:$0xff]
        %v2632 = vld [vmem:[%s2614 + $0x88] sm:$0xff]
        %v2633 = vld [vmem:[%s2614 + $0x90] sm:$0xff]
        %v2634 = vld [vmem:[%s2614 + $0x98] sm:$0xff]
        %v2635 = vld [vmem:[%s2614 + $0xa0] sm:$0xff]
        %v2636 = vld [vmem:[%s2614 + $0xa8] sm:$0xff]
        %v2637 = vld [vmem:[%s2614 + $0xb0] sm:$0xff]
        %v2638 = vld [vmem:[%s2614 + $0xb8] sm:$0xff]
        %v2639 = vld [vmem:[%s2614 + $0xc0] sm:$0xff]
        %v2640 = vld [vmem:[%s2614 + $0xc8] sm:$0xff]
        %v2641 = vld [vmem:[%s2614 + $0xd0] sm:$0xff]
        %v2642 = vld [vmem:[%s2614 + $0xd8] sm:$0xff]
        %v2643 = vld [vmem:[%s2614 + $0xe0] sm:$0xff]
        %v2644 = vld [vmem:[%s2614 + $0xe8] sm:$0xff]
        %v2645 = vld [vmem:[%s2614 + $0xf0] sm:$0xff]
        %v2646 = vld [vmem:[%s2614 + $0xf8] sm:$0xff]
        %2647 = vmatpush.msra.mxu0 %v2630
        %2648 = vmatpush.msra.mxu0 %v2629
        %2649 = vmatpush.msra.mxu0 %v2628
        %2650 = vmatpush.msra.mxu0 %v2627
        %2651 = vmatpush.msra.mxu0 %v2626
        %2652 = vmatpush.msra.mxu0 %v2625
        %2653 = vmatpush.msra.mxu0 %v2624
        %2654 = vmatpush.msra.mxu0 %v2623
        %2655 = vmatpush.msra.mxu0 %v2622
        %2656 = vmatpush.msra.mxu0 %v2621
        %2657 = vmatpush.msra.mxu0 %v2620
        %2658 = vmatpush.msra.mxu0 %v2619
        %2659 = vmatpush.msra.mxu0 %v2618
        %2660 = vmatpush.msra.mxu0 %v2617
        %2661 = vmatpush.msra.mxu0 %v2616
        %2662 = vmatpush.msra.mxu0 %v2615
        %2663 = vmatmul.f32.gmra.mxu0 %v2195
        %v2664 = vpop.f32.mrf.mxu0
        %v2665 = vadd.f32 0.0, %v2664
        %2666 = vmatmul.f32.gmra.mxu0 %v2198
        %v2667 = vpop.f32.mrf.mxu0
        %v2668 = vadd.f32 0.0, %v2667
        %2669 = vdwg.mxu0
        %2670 = vmatpush.msra.mxu0 %v2646
        %2671 = vmatpush.msra.mxu0 %v2645
        %2672 = vmatpush.msra.mxu0 %v2644
        %2673 = vmatpush.msra.mxu0 %v2643
        %2674 = vmatpush.msra.mxu0 %v2642
        %2675 = vmatpush.msra.mxu0 %v2641
        %2676 = vmatpush.msra.mxu0 %v2640
        %2677 = vmatpush.msra.mxu0 %v2639
        %2678 = vmatpush.msra.mxu0 %v2638
        %2679 = vmatpush.msra.mxu0 %v2637
        %2680 = vmatpush.msra.mxu0 %v2636
        %2681 = vmatpush.msra.mxu0 %v2635
        %2682 = vmatpush.msra.mxu0 %v2634
        %2683 = vmatpush.msra.mxu0 %v2633
        %2684 = vmatpush.msra.mxu0 %v2632
        %2685 = vmatpush.msra.mxu0 %v2631
        %2686 = vmatmul.f32.gmra.mxu0 %v2266
        %v2687 = vpop.f32.mrf.mxu0
        %v2688 = vadd.f32 %v2665, %v2687
        %2689 = vmatmul.f32.gmra.mxu0 %v2269
        %v2690 = vpop.f32.mrf.mxu0
        %v2691 = vadd.f32 %v2668, %v2690
        %2692 = vdwg.mxu0
        %v2693 = vadd.f32 %v2612, %v2688
        %v2694 = vadd.f32 %v2613, %v2691
        %s2695 = scalar_lea.vmem [#allocation2], 1280
        %v2696 = vld [vmem:[%s2695] sm:$0xff]
        %v2697 = vld [vmem:[%s2695 + $0x8] sm:$0xff]
        %v2698 = vld [vmem:[%s2695 + $0x10] sm:$0xff]
        %v2699 = vld [vmem:[%s2695 + $0x18] sm:$0xff]
        %v2700 = vld [vmem:[%s2695 + $0x20] sm:$0xff]
        %v2701 = vld [vmem:[%s2695 + $0x28] sm:$0xff]
        %v2702 = vld [vmem:[%s2695 + $0x30] sm:$0xff]
        %v2703 = vld [vmem:[%s2695 + $0x38] sm:$0xff]
        %v2704 = vld [vmem:[%s2695 + $0x40] sm:$0xff]
        %v2705 = vld [vmem:[%s2695 + $0x48] sm:$0xff]
        %v2706 = vld [vmem:[%s2695 + $0x50] sm:$0xff]
        %v2707 = vld [vmem:[%s2695 + $0x58] sm:$0xff]
        %v2708 = vld [vmem:[%s2695 + $0x60] sm:$0xff]
        %v2709 = vld [vmem:[%s2695 + $0x68] sm:$0xff]
        %v2710 = vld [vmem:[%s2695 + $0x70] sm:$0xff]
        %v2711 = vld [vmem:[%s2695 + $0x78] sm:$0xff]
        %v2712 = vld [vmem:[%s2695 + $0x80] sm:$0xff]
        %v2713 = vld [vmem:[%s2695 + $0x88] sm:$0xff]
        %v2714 = vld [vmem:[%s2695 + $0x90] sm:$0xff]
        %v2715 = vld [vmem:[%s2695 + $0x98] sm:$0xff]
        %v2716 = vld [vmem:[%s2695 + $0xa0] sm:$0xff]
        %v2717 = vld [vmem:[%s2695 + $0xa8] sm:$0xff]
        %v2718 = vld [vmem:[%s2695 + $0xb0] sm:$0xff]
        %v2719 = vld [vmem:[%s2695 + $0xb8] sm:$0xff]
        %v2720 = vld [vmem:[%s2695 + $0xc0] sm:$0xff]
        %v2721 = vld [vmem:[%s2695 + $0xc8] sm:$0xff]
        %v2722 = vld [vmem:[%s2695 + $0xd0] sm:$0xff]
        %v2723 = vld [vmem:[%s2695 + $0xd8] sm:$0xff]
        %v2724 = vld [vmem:[%s2695 + $0xe0] sm:$0xff]
        %v2725 = vld [vmem:[%s2695 + $0xe8] sm:$0xff]
        %v2726 = vld [vmem:[%s2695 + $0xf0] sm:$0xff]
        %v2727 = vld [vmem:[%s2695 + $0xf8] sm:$0xff]
        %2728 = vmatpush.msra.mxu0 %v2711
        %2729 = vmatpush.msra.mxu0 %v2710
        %2730 = vmatpush.msra.mxu0 %v2709
        %2731 = vmatpush.msra.mxu0 %v2708
        %2732 = vmatpush.msra.mxu0 %v2707
        %2733 = vmatpush.msra.mxu0 %v2706
        %2734 = vmatpush.msra.mxu0 %v2705
        %2735 = vmatpush.msra.mxu0 %v2704
        %2736 = vmatpush.msra.mxu0 %v2703
        %2737 = vmatpush.msra.mxu0 %v2702
        %2738 = vmatpush.msra.mxu0 %v2701
        %2739 = vmatpush.msra.mxu0 %v2700
        %2740 = vmatpush.msra.mxu0 %v2699
        %2741 = vmatpush.msra.mxu0 %v2698
        %2742 = vmatpush.msra.mxu0 %v2697
        %2743 = vmatpush.msra.mxu0 %v2696
        %2744 = vmatmul.f32.gmra.mxu0 %v2201
        %v2745 = vpop.f32.mrf.mxu0
        %v2746 = vadd.f32 0.0, %v2745
        %2747 = vmatmul.f32.gmra.mxu0 %v2204
        %v2748 = vpop.f32.mrf.mxu0
        %v2749 = vadd.f32 0.0, %v2748
        %2750 = vdwg.mxu0
        %2751 = vmatpush.msra.mxu0 %v2727
        %2752 = vmatpush.msra.mxu0 %v2726
        %2753 = vmatpush.msra.mxu0 %v2725
        %2754 = vmatpush.msra.mxu0 %v2724
        %2755 = vmatpush.msra.mxu0 %v2723
        %2756 = vmatpush.msra.mxu0 %v2722
        %2757 = vmatpush.msra.mxu0 %v2721
        %2758 = vmatpush.msra.mxu0 %v2720
        %2759 = vmatpush.msra.mxu0 %v2719
        %2760 = vmatpush.msra.mxu0 %v2718
        %2761 = vmatpush.msra.mxu0 %v2717
        %2762 = vmatpush.msra.mxu0 %v2716
        %2763 = vmatpush.msra.mxu0 %v2715
        %2764 = vmatpush.msra.mxu0 %v2714
        %2765 = vmatpush.msra.mxu0 %v2713
        %2766 = vmatpush.msra.mxu0 %v2712
        %2767 = vmatmul.f32.gmra.mxu0 %v2272
        %v2768 = vpop.f32.mrf.mxu0
        %v2769 = vadd.f32 %v2746, %v2768
        %2770 = vmatmul.f32.gmra.mxu0 %v2275
        %v2771 = vpop.f32.mrf.mxu0
        %v2772 = vadd.f32 %v2749, %v2771
        %2773 = vdwg.mxu0
        %v2774 = vadd.f32 %v2693, %v2769
        %v2775 = vadd.f32 %v2694, %v2772
        %s2776 = scalar_lea.vmem [#allocation2], 1536
        %v2777 = vld [vmem:[%s2776] sm:$0xff]
        %v2778 = vld [vmem:[%s2776 + $0x8] sm:$0xff]
        %v2779 = vld [vmem:[%s2776 + $0x10] sm:$0xff]
        %v2780 = vld [vmem:[%s2776 + $0x18] sm:$0xff]
        %v2781 = vld [vmem:[%s2776 + $0x20] sm:$0xff]
        %v2782 = vld [vmem:[%s2776 + $0x28] sm:$0xff]
        %v2783 = vld [vmem:[%s2776 + $0x30] sm:$0xff]
        %v2784 = vld [vmem:[%s2776 + $0x38] sm:$0xff]
        %v2785 = vld [vmem:[%s2776 + $0x40] sm:$0xff]
        %v2786 = vld [vmem:[%s2776 + $0x48] sm:$0xff]
        %v2787 = vld [vmem:[%s2776 + $0x50] sm:$0xff]
        %v2788 = vld [vmem:[%s2776 + $0x58] sm:$0xff]
        %v2789 = vld [vmem:[%s2776 + $0x60] sm:$0xff]
        %v2790 = vld [vmem:[%s2776 + $0x68] sm:$0xff]
        %v2791 = vld [vmem:[%s2776 + $0x70] sm:$0xff]
        %v2792 = vld [vmem:[%s2776 + $0x78] sm:$0xff]
        %v2793 = vld [vmem:[%s2776 + $0x80] sm:$0xff]
        %v2794 = vld [vmem:[%s2776 + $0x88] sm:$0xff]
        %v2795 = vld [vmem:[%s2776 + $0x90] sm:$0xff]
        %v2796 = vld [vmem:[%s2776 + $0x98] sm:$0xff]
        %v2797 = vld [vmem:[%s2776 + $0xa0] sm:$0xff]
        %v2798 = vld [vmem:[%s2776 + $0xa8] sm:$0xff]
        %v2799 = vld [vmem:[%s2776 + $0xb0] sm:$0xff]
        %v2800 = vld [vmem:[%s2776 + $0xb8] sm:$0xff]
        %v2801 = vld [vmem:[%s2776 + $0xc0] sm:$0xff]
        %v2802 = vld [vmem:[%s2776 + $0xc8] sm:$0xff]
        %v2803 = vld [vmem:[%s2776 + $0xd0] sm:$0xff]
        %v2804 = vld [vmem:[%s2776 + $0xd8] sm:$0xff]
        %v2805 = vld [vmem:[%s2776 + $0xe0] sm:$0xff]
        %v2806 = vld [vmem:[%s2776 + $0xe8] sm:$0xff]
        %v2807 = vld [vmem:[%s2776 + $0xf0] sm:$0xff]
        %v2808 = vld [vmem:[%s2776 + $0xf8] sm:$0xff]
        %2809 = vmatpush.msra.mxu0 %v2792
        %2810 = vmatpush.msra.mxu0 %v2791
        %2811 = vmatpush.msra.mxu0 %v2790
        %2812 = vmatpush.msra.mxu0 %v2789
        %2813 = vmatpush.msra.mxu0 %v2788
        %2814 = vmatpush.msra.mxu0 %v2787
        %2815 = vmatpush.msra.mxu0 %v2786
        %2816 = vmatpush.msra.mxu0 %v2785
        %2817 = vmatpush.msra.mxu0 %v2784
        %2818 = vmatpush.msra.mxu0 %v2783
        %2819 = vmatpush.msra.mxu0 %v2782
        %2820 = vmatpush.msra.mxu0 %v2781
        %2821 = vmatpush.msra.mxu0 %v2780
        %2822 = vmatpush.msra.mxu0 %v2779
        %2823 = vmatpush.msra.mxu0 %v2778
        %2824 = vmatpush.msra.mxu0 %v2777
        %2825 = vmatmul.f32.gmra.mxu0 %v2207
        %v2826 = vpop.f32.mrf.mxu0
        %v2827 = vadd.f32 0.0, %v2826
        %2828 = vmatmul.f32.gmra.mxu0 %v2210
        %v2829 = vpop.f32.mrf.mxu0
        %v2830 = vadd.f32 0.0, %v2829
        %2831 = vdwg.mxu0
        %2832 = vmatpush.msra.mxu0 %v2808
        %2833 = vmatpush.msra.mxu0 %v2807
        %2834 = vmatpush.msra.mxu0 %v2806
        %2835 = vmatpush.msra.mxu0 %v2805
        %2836 = vmatpush.msra.mxu0 %v2804
        %2837 = vmatpush.msra.mxu0 %v2803
        %2838 = vmatpush.msra.mxu0 %v2802
        %2839 = vmatpush.msra.mxu0 %v2801
        %2840 = vmatpush.msra.mxu0 %v2800
        %2841 = vmatpush.msra.mxu0 %v2799
        %2842 = vmatpush.msra.mxu0 %v2798
        %2843 = vmatpush.msra.mxu0 %v2797
        %2844 = vmatpush.msra.mxu0 %v2796
        %2845 = vmatpush.msra.mxu0 %v2795
        %2846 = vmatpush.msra.mxu0 %v2794
        %2847 = vmatpush.msra.mxu0 %v2793
        %2848 = vmatmul.f32.gmra.mxu0 %v2278
        %v2849 = vpop.f32.mrf.mxu0
        %v2850 = vadd.f32 %v2827, %v2849
        %2851 = vmatmul.f32.gmra.mxu0 %v2281
        %v2852 = vpop.f32.mrf.mxu0
        %v2853 = vadd.f32 %v2830, %v2852
        %2854 = vdwg.mxu0
        %v2855 = vadd.f32 %v2774, %v2850
        %v2856 = vadd.f32 %v2775, %v2853
        %s2857 = scalar_lea.vmem [#allocation2], 1792
        %v2858 = vld [vmem:[%s2857] sm:$0xff]
        %v2859 = vld [vmem:[%s2857 + $0x8] sm:$0xff]
        %v2860 = vld [vmem:[%s2857 + $0x10] sm:$0xff]
        %v2861 = vld [vmem:[%s2857 + $0x18] sm:$0xff]
        %v2862 = vld [vmem:[%s2857 + $0x20] sm:$0xff]
        %v2863 = vld [vmem:[%s2857 + $0x28] sm:$0xff]
        %v2864 = vld [vmem:[%s2857 + $0x30] sm:$0xff]
        %v2865 = vld [vmem:[%s2857 + $0x38] sm:$0xff]
        %v2866 = vld [vmem:[%s2857 + $0x40] sm:$0xff]
        %v2867 = vld [vmem:[%s2857 + $0x48] sm:$0xff]
        %v2868 = vld [vmem:[%s2857 + $0x50] sm:$0xff]
        %v2869 = vld [vmem:[%s2857 + $0x58] sm:$0xff]
        %v2870 = vld [vmem:[%s2857 + $0x60] sm:$0xff]
        %v2871 = vld [vmem:[%s2857 + $0x68] sm:$0xff]
        %v2872 = vld [vmem:[%s2857 + $0x70] sm:$0xff]
        %v2873 = vld [vmem:[%s2857 + $0x78] sm:$0xff]
        %v2874 = vld [vmem:[%s2857 + $0x80] sm:$0xff]
        %v2875 = vld [vmem:[%s2857 + $0x88] sm:$0xff]
        %v2876 = vld [vmem:[%s2857 + $0x90] sm:$0xff]
        %v2877 = vld [vmem:[%s2857 + $0x98] sm:$0xff]
        %v2878 = vld [vmem:[%s2857 + $0xa0] sm:$0xff]
        %v2879 = vld [vmem:[%s2857 + $0xa8] sm:$0xff]
        %v2880 = vld [vmem:[%s2857 + $0xb0] sm:$0xff]
        %v2881 = vld [vmem:[%s2857 + $0xb8] sm:$0xff]
        %v2882 = vld [vmem:[%s2857 + $0xc0] sm:$0xff]
        %v2883 = vld [vmem:[%s2857 + $0xc8] sm:$0xff]
        %v2884 = vld [vmem:[%s2857 + $0xd0] sm:$0xff]
        %v2885 = vld [vmem:[%s2857 + $0xd8] sm:$0xff]
        %v2886 = vld [vmem:[%s2857 + $0xe0] sm:$0xff]
        %v2887 = vld [vmem:[%s2857 + $0xe8] sm:$0xff]
        %v2888 = vld [vmem:[%s2857 + $0xf0] sm:$0xff]
        %v2889 = vld [vmem:[%s2857 + $0xf8] sm:$0xff]
        %2890 = vmatpush.msra.mxu0 %v2873
        %2891 = vmatpush.msra.mxu0 %v2872
        %2892 = vmatpush.msra.mxu0 %v2871
        %2893 = vmatpush.msra.mxu0 %v2870
        %2894 = vmatpush.msra.mxu0 %v2869
        %2895 = vmatpush.msra.mxu0 %v2868
        %2896 = vmatpush.msra.mxu0 %v2867
        %2897 = vmatpush.msra.mxu0 %v2866
        %2898 = vmatpush.msra.mxu0 %v2865
        %2899 = vmatpush.msra.mxu0 %v2864
        %2900 = vmatpush.msra.mxu0 %v2863
        %2901 = vmatpush.msra.mxu0 %v2862
        %2902 = vmatpush.msra.mxu0 %v2861
        %2903 = vmatpush.msra.mxu0 %v2860
        %2904 = vmatpush.msra.mxu0 %v2859
        %2905 = vmatpush.msra.mxu0 %v2858
        %2906 = vmatmul.f32.gmra.mxu0 %v2213
        %v2907 = vpop.f32.mrf.mxu0
        %v2908 = vadd.f32 0.0, %v2907
        %2909 = vmatmul.f32.gmra.mxu0 %v2216
        %v2910 = vpop.f32.mrf.mxu0
        %v2911 = vadd.f32 0.0, %v2910
        %2912 = vdwg.mxu0
        %2913 = vmatpush.msra.mxu0 %v2889
        %2914 = vmatpush.msra.mxu0 %v2888
        %2915 = vmatpush.msra.mxu0 %v2887
        %2916 = vmatpush.msra.mxu0 %v2886
        %2917 = vmatpush.msra.mxu0 %v2885
        %2918 = vmatpush.msra.mxu0 %v2884
        %2919 = vmatpush.msra.mxu0 %v2883
        %2920 = vmatpush.msra.mxu0 %v2882
        %2921 = vmatpush.msra.mxu0 %v2881
        %2922 = vmatpush.msra.mxu0 %v2880
        %2923 = vmatpush.msra.mxu0 %v2879
        %2924 = vmatpush.msra.mxu0 %v2878
        %2925 = vmatpush.msra.mxu0 %v2877
        %2926 = vmatpush.msra.mxu0 %v2876
        %2927 = vmatpush.msra.mxu0 %v2875
        %2928 = vmatpush.msra.mxu0 %v2874
        %2929 = vmatmul.f32.gmra.mxu0 %v2284
        %v2930 = vpop.f32.mrf.mxu0
        %v2931 = vadd.f32 %v2908, %v2930
        %2932 = vmatmul.f32.gmra.mxu0 %v2287
        %v2933 = vpop.f32.mrf.mxu0
        %v2934 = vadd.f32 %v2911, %v2933
        %2935 = vdwg.mxu0
        %v2936 = vadd.f32 %v2855, %v2931
        %v2937 = vadd.f32 %v2856, %v2934
        %s2938 = scalar_lea.vmem [#allocation2], 2048
        %v2939 = vld [vmem:[%s2938] sm:$0xff]
        %v2940 = vld [vmem:[%s2938 + $0x8] sm:$0xff]
        %v2941 = vld [vmem:[%s2938 + $0x10] sm:$0xff]
        %v2942 = vld [vmem:[%s2938 + $0x18] sm:$0xff]
        %v2943 = vld [vmem:[%s2938 + $0x20] sm:$0xff]
        %v2944 = vld [vmem:[%s2938 + $0x28] sm:$0xff]
        %v2945 = vld [vmem:[%s2938 + $0x30] sm:$0xff]
        %v2946 = vld [vmem:[%s2938 + $0x38] sm:$0xff]
        %v2947 = vld [vmem:[%s2938 + $0x40] sm:$0xff]
        %v2948 = vld [vmem:[%s2938 + $0x48] sm:$0xff]
        %v2949 = vld [vmem:[%s2938 + $0x50] sm:$0xff]
        %v2950 = vld [vmem:[%s2938 + $0x58] sm:$0xff]
        %v2951 = vld [vmem:[%s2938 + $0x60] sm:$0xff]
        %v2952 = vld [vmem:[%s2938 + $0x68] sm:$0xff]
        %v2953 = vld [vmem:[%s2938 + $0x70] sm:$0xff]
        %v2954 = vld [vmem:[%s2938 + $0x78] sm:$0xff]
        %v2955 = vld [vmem:[%s2938 + $0x80] sm:$0xff]
        %v2956 = vld [vmem:[%s2938 + $0x88] sm:$0xff]
        %v2957 = vld [vmem:[%s2938 + $0x90] sm:$0xff]
        %v2958 = vld [vmem:[%s2938 + $0x98] sm:$0xff]
        %v2959 = vld [vmem:[%s2938 + $0xa0] sm:$0xff]
        %v2960 = vld [vmem:[%s2938 + $0xa8] sm:$0xff]
        %v2961 = vld [vmem:[%s2938 + $0xb0] sm:$0xff]
        %v2962 = vld [vmem:[%s2938 + $0xb8] sm:$0xff]
        %v2963 = vld [vmem:[%s2938 + $0xc0] sm:$0xff]
        %v2964 = vld [vmem:[%s2938 + $0xc8] sm:$0xff]
        %v2965 = vld [vmem:[%s2938 + $0xd0] sm:$0xff]
        %v2966 = vld [vmem:[%s2938 + $0xd8] sm:$0xff]
        %v2967 = vld [vmem:[%s2938 + $0xe0] sm:$0xff]
        %v2968 = vld [vmem:[%s2938 + $0xe8] sm:$0xff]
        %v2969 = vld [vmem:[%s2938 + $0xf0] sm:$0xff]
        %v2970 = vld [vmem:[%s2938 + $0xf8] sm:$0xff]
        %2971 = vmatpush.msra.mxu0 %v2954
        %2972 = vmatpush.msra.mxu0 %v2953
        %2973 = vmatpush.msra.mxu0 %v2952
        %2974 = vmatpush.msra.mxu0 %v2951
        %2975 = vmatpush.msra.mxu0 %v2950
        %2976 = vmatpush.msra.mxu0 %v2949
        %2977 = vmatpush.msra.mxu0 %v2948
        %2978 = vmatpush.msra.mxu0 %v2947
        %2979 = vmatpush.msra.mxu0 %v2946
        %2980 = vmatpush.msra.mxu0 %v2945
        %2981 = vmatpush.msra.mxu0 %v2944
        %2982 = vmatpush.msra.mxu0 %v2943
        %2983 = vmatpush.msra.mxu0 %v2942
        %2984 = vmatpush.msra.mxu0 %v2941
        %2985 = vmatpush.msra.mxu0 %v2940
        %2986 = vmatpush.msra.mxu0 %v2939
        %2987 = vmatmul.f32.gmra.mxu0 %v2219
        %v2988 = vpop.f32.mrf.mxu0
        %v2989 = vadd.f32 0.0, %v2988
        %2990 = vmatmul.f32.gmra.mxu0 %v2222
        %v2991 = vpop.f32.mrf.mxu0
        %v2992 = vadd.f32 0.0, %v2991
        %2993 = vdwg.mxu0
        %2994 = vmatpush.msra.mxu0 %v2970
        %2995 = vmatpush.msra.mxu0 %v2969
        %2996 = vmatpush.msra.mxu0 %v2968
        %2997 = vmatpush.msra.mxu0 %v2967
        %2998 = vmatpush.msra.mxu0 %v2966
        %2999 = vmatpush.msra.mxu0 %v2965
        %3000 = vmatpush.msra.mxu0 %v2964
        %3001 = vmatpush.msra.mxu0 %v2963
        %3002 = vmatpush.msra.mxu0 %v2962
        %3003 = vmatpush.msra.mxu0 %v2961
        %3004 = vmatpush.msra.mxu0 %v2960
        %3005 = vmatpush.msra.mxu0 %v2959
        %3006 = vmatpush.msra.mxu0 %v2958
        %3007 = vmatpush.msra.mxu0 %v2957
        %3008 = vmatpush.msra.mxu0 %v2956
        %3009 = vmatpush.msra.mxu0 %v2955
        %3010 = vmatmul.f32.gmra.mxu0 %v2290
        %v3011 = vpop.f32.mrf.mxu0
        %v3012 = vadd.f32 %v2989, %v3011
        %3013 = vmatmul.f32.gmra.mxu0 %v2293
        %v3014 = vpop.f32.mrf.mxu0
        %v3015 = vadd.f32 %v2992, %v3014
        %3016 = vdwg.mxu0
        %v3017 = vadd.f32 %v2936, %v3012
        %v3018 = vadd.f32 %v2937, %v3015
        %v3019 = vld [vmem:[%s11] sm:$0xff]
        %v3020 = vld [vmem:[%s11 + $0x8] sm:$0xff]
        %3022 = vset.pattern.permute.xlu0 0
        %3023 = vperm.xlu0 %3022, %v3019
        %v3024 = vpop.permute.xlu0 %3023
        %3027 = vset.pattern.permute.xlu0 0
        %3028 = vperm.xlu0 %3027, %v3020
        %v3029 = vpop.permute.xlu0 %3028
        %v3031 = vadd.f32 %v3017, %v3024
        %v3032 = vadd.f32 %v3018, %v3029
        %vm3033 = vcmp.ge.f32.partialorder %v3031, 0.0
        %vm3034 = vcmp.ge.f32.partialorder %v3032, 0.0
        %v3035 = vmul.f32 %v3031, 0.2
        %v3036 = vmul.f32 %v3032, 0.2
        %v3037 = vsel %vm3033, %v3031, %v3035
        %v3038 = vsel %vm3034, %v3032, %v3036
        %v3039 = vld [vmem:[%s13] sm:$0xff]
        %v3040 = vld [vmem:[%s13 + $0x8] sm:$0xff]
        %v3041 = vld [vmem:[%s13 + $0x10] sm:$0xff]
        %v3042 = vld [vmem:[%s13 + $0x18] sm:$0xff]
        %v3043 = vld [vmem:[%s13 + $0x20] sm:$0xff]
        %v3044 = vld [vmem:[%s13 + $0x28] sm:$0xff]
        %v3045 = vld [vmem:[%s13 + $0x30] sm:$0xff]
        %v3046 = vld [vmem:[%s13 + $0x38] sm:$0xff]
        %v3047 = vld [vmem:[%s13 + $0x40] sm:$0xff]
        %v3048 = vld [vmem:[%s13 + $0x48] sm:$0xff]
        %v3049 = vld [vmem:[%s13 + $0x50] sm:$0xff]
        %v3050 = vld [vmem:[%s13 + $0x58] sm:$0xff]
        %v3051 = vld [vmem:[%s13 + $0x60] sm:$0xff]
        %v3052 = vld [vmem:[%s13 + $0x68] sm:$0xff]
        %v3053 = vld [vmem:[%s13 + $0x70] sm:$0xff]
        %v3054 = vld [vmem:[%s13 + $0x78] sm:$0xff]
        %v3055 = vld [vmem:[%s13 + $0x80] sm:$0xff]
        %v3056 = vld [vmem:[%s13 + $0x88] sm:$0xff]
        %v3057 = vld [vmem:[%s13 + $0x90] sm:$0xff]
        %v3058 = vld [vmem:[%s13 + $0x98] sm:$0xff]
        %v3059 = vld [vmem:[%s13 + $0xa0] sm:$0xff]
        %v3060 = vld [vmem:[%s13 + $0xa8] sm:$0xff]
        %v3061 = vld [vmem:[%s13 + $0xb0] sm:$0xff]
        %v3062 = vld [vmem:[%s13 + $0xb8] sm:$0xff]
        %v3063 = vld [vmem:[%s13 + $0xc0] sm:$0xff]
        %v3064 = vld [vmem:[%s13 + $0xc8] sm:$0xff]
        %v3065 = vld [vmem:[%s13 + $0xd0] sm:$0xff]
        %v3066 = vld [vmem:[%s13 + $0xd8] sm:$0xff]
        %v3067 = vld [vmem:[%s13 + $0xe0] sm:$0xff]
        %v3068 = vld [vmem:[%s13 + $0xe8] sm:$0xff]
        %v3069 = vld [vmem:[%s13 + $0xf0] sm:$0xff]
        %v3070 = vld [vmem:[%s13 + $0xf8] sm:$0xff]
        %v3071 = vld [vmem:[%s13 + $0x100] sm:$0xff]
        %v3072 = vld [vmem:[%s13 + $0x108] sm:$0xff]
        %v3073 = vld [vmem:[%s13 + $0x110] sm:$0xff]
        %v3074 = vld [vmem:[%s13 + $0x118] sm:$0xff]
        %vm3075 = vcmask 130048
        %v3077 = vsel %vm3075, %v3039, 0
        %v3080 = vsel %vm3075, %v3040, 0
        %v3083 = vsel %vm3075, %v3041, 0
        %v3086 = vsel %vm3075, %v3042, 0
        %v3089 = vsel %vm3075, %v3043, 0
        %v3092 = vsel %vm3075, %v3044, 0
        %v3095 = vsel %vm3075, %v3045, 0
        %v3098 = vsel %vm3075, %v3046, 0
        %v3101 = vsel %vm3075, %v3047, 0
        %v3104 = vsel %vm3075, %v3048, 0
        %v3107 = vsel %vm3075, %v3049, 0
        %v3110 = vsel %vm3075, %v3050, 0
        %v3113 = vsel %vm3075, %v3051, 0
        %v3116 = vsel %vm3075, %v3052, 0
        %v3119 = vsel %vm3075, %v3053, 0
        %v3122 = vsel %vm3075, %v3054, 0
        %v3125 = vsel %vm3075, %v3055, 0
        %v3128 = vsel %vm3075, %v3056, 0
        %v3131 = vsel %vm3075, %v3057, 0
        %v3134 = vsel %vm3075, %v3058, 0
        %v3137 = vsel %vm3075, %v3059, 0
        %v3140 = vsel %vm3075, %v3060, 0
        %v3143 = vsel %vm3075, %v3061, 0
        %v3146 = vsel %vm3075, %v3062, 0
        %v3149 = vsel %vm3075, %v3063, 0
        %v3152 = vsel %vm3075, %v3064, 0
        %v3155 = vsel %vm3075, %v3065, 0
        %v3158 = vsel %vm3075, %v3066, 0
        %v3161 = vsel %vm3075, %v3067, 0
        %v3164 = vsel %vm3075, %v3068, 0
        %v3167 = vsel %vm3075, %v3069, 0
        %v3170 = vsel %vm3075, %v3070, 0
        %v3173 = vsel %vm3075, %v3071, 0
        %v3176 = vsel %vm3075, %v3072, 0
        %v3179 = vsel %vm3075, %v3073, 0
        %v3182 = vsel %vm3075, %v3074, 0
        %3184 = vmatpush.msra.mxu0 0.0
        %3185 = vmatpush.msra.mxu0 0.0
        %3186 = vmatpush.msra.mxu0 0.0
        %3187 = vmatpush.msra.mxu0 0.0
        %3188 = vmatpush.msra.mxu0 0.0
        %3189 = vmatpush.msra.mxu0 0.0
        %3190 = vmatpush.msra.mxu0 0.0
        %3191 = vmatpush.msra.mxu0 0.0
        %3192 = vmatpush.msra.mxu0 0.0
        %3193 = vmatpush.msra.mxu0 0.0
        %3194 = vmatpush.msra.mxu0 0.0
        %3195 = vmatpush.msra.mxu0 0.0
        %3196 = vmatpush.msra.mxu0 0.0
        %3197 = vmatpush.msra.mxu0 0.0
        %3198 = vmatpush.msra.mxu0 %v3038
        %3199 = vmatpush.msra.mxu0 %v3037
        %3200 = vmatmul.f32.gmra.mxu0 %v3077
        %v3201 = vpop.f32.mrf.mxu0
        %v3202 = vadd.f32 0.0, %v3201
        %3203 = vmatmul.f32.gmra.mxu0 %v3080
        %v3204 = vpop.f32.mrf.mxu0
        %v3205 = vadd.f32 0.0, %v3204
        %3206 = vmatmul.f32.gmra.mxu0 %v3083
        %v3207 = vpop.f32.mrf.mxu0
        %v3208 = vadd.f32 0.0, %v3207
        %3209 = vmatmul.f32.gmra.mxu0 %v3086
        %v3210 = vpop.f32.mrf.mxu0
        %v3211 = vadd.f32 0.0, %v3210
        %3212 = vmatmul.f32.gmra.mxu0 %v3089
        %v3213 = vpop.f32.mrf.mxu0
        %v3214 = vadd.f32 0.0, %v3213
        %3215 = vmatmul.f32.gmra.mxu0 %v3092
        %v3216 = vpop.f32.mrf.mxu0
        %v3217 = vadd.f32 0.0, %v3216
        %3218 = vmatmul.f32.gmra.mxu0 %v3095
        %v3219 = vpop.f32.mrf.mxu0
        %v3220 = vadd.f32 0.0, %v3219
        %3221 = vmatmul.f32.gmra.mxu0 %v3098
        %v3222 = vpop.f32.mrf.mxu0
        %v3223 = vadd.f32 0.0, %v3222
        %3224 = vmatmul.f32.gmra.mxu0 %v3101
        %v3225 = vpop.f32.mrf.mxu0
        %v3226 = vadd.f32 0.0, %v3225
        %3227 = vmatmul.f32.gmra.mxu0 %v3104
        %v3228 = vpop.f32.mrf.mxu0
        %v3229 = vadd.f32 0.0, %v3228
        %3230 = vmatmul.f32.gmra.mxu0 %v3107
        %v3231 = vpop.f32.mrf.mxu0
        %v3232 = vadd.f32 0.0, %v3231
        %3233 = vmatmul.f32.gmra.mxu0 %v3110
        %v3234 = vpop.f32.mrf.mxu0
        %v3235 = vadd.f32 0.0, %v3234
        %3236 = vmatmul.f32.gmra.mxu0 %v3113
        %v3237 = vpop.f32.mrf.mxu0
        %v3238 = vadd.f32 0.0, %v3237
        %3239 = vmatmul.f32.gmra.mxu0 %v3116
        %v3240 = vpop.f32.mrf.mxu0
        %v3241 = vadd.f32 0.0, %v3240
        %3242 = vmatmul.f32.gmra.mxu0 %v3119
        %v3243 = vpop.f32.mrf.mxu0
        %v3244 = vadd.f32 0.0, %v3243
        %3245 = vmatmul.f32.gmra.mxu0 %v3122
        %v3246 = vpop.f32.mrf.mxu0
        %v3247 = vadd.f32 0.0, %v3246
        %3248 = vmatmul.f32.gmra.mxu0 %v3125
        %v3249 = vpop.f32.mrf.mxu0
        %v3250 = vadd.f32 0.0, %v3249
        %3251 = vmatmul.f32.gmra.mxu0 %v3128
        %v3252 = vpop.f32.mrf.mxu0
        %v3253 = vadd.f32 0.0, %v3252
        %3254 = vmatmul.f32.gmra.mxu0 %v3131
        %v3255 = vpop.f32.mrf.mxu0
        %v3256 = vadd.f32 0.0, %v3255
        %3257 = vmatmul.f32.gmra.mxu0 %v3134
        %v3258 = vpop.f32.mrf.mxu0
        %v3259 = vadd.f32 0.0, %v3258
        %3260 = vmatmul.f32.gmra.mxu0 %v3137
        %v3261 = vpop.f32.mrf.mxu0
        %v3262 = vadd.f32 0.0, %v3261
        %3263 = vmatmul.f32.gmra.mxu0 %v3140
        %v3264 = vpop.f32.mrf.mxu0
        %v3265 = vadd.f32 0.0, %v3264
        %3266 = vmatmul.f32.gmra.mxu0 %v3143
        %v3267 = vpop.f32.mrf.mxu0
        %v3268 = vadd.f32 0.0, %v3267
        %3269 = vmatmul.f32.gmra.mxu0 %v3146
        %v3270 = vpop.f32.mrf.mxu0
        %v3271 = vadd.f32 0.0, %v3270
        %3272 = vmatmul.f32.gmra.mxu0 %v3149
        %v3273 = vpop.f32.mrf.mxu0
        %v3274 = vadd.f32 0.0, %v3273
        %3275 = vmatmul.f32.gmra.mxu0 %v3152
        %v3276 = vpop.f32.mrf.mxu0
        %v3277 = vadd.f32 0.0, %v3276
        %3278 = vmatmul.f32.gmra.mxu0 %v3155
        %v3279 = vpop.f32.mrf.mxu0
        %v3280 = vadd.f32 0.0, %v3279
        %3281 = vmatmul.f32.gmra.mxu0 %v3158
        %v3282 = vpop.f32.mrf.mxu0
        %v3283 = vadd.f32 0.0, %v3282
        %3284 = vmatmul.f32.gmra.mxu0 %v3161
        %v3285 = vpop.f32.mrf.mxu0
        %v3286 = vadd.f32 0.0, %v3285
        %3287 = vmatmul.f32.gmra.mxu0 %v3164
        %v3288 = vpop.f32.mrf.mxu0
        %v3289 = vadd.f32 0.0, %v3288
        %3290 = vmatmul.f32.gmra.mxu0 %v3167
        %v3291 = vpop.f32.mrf.mxu0
        %v3292 = vadd.f32 0.0, %v3291
        %3293 = vmatmul.f32.gmra.mxu0 %v3170
        %v3294 = vpop.f32.mrf.mxu0
        %v3295 = vadd.f32 0.0, %v3294
        %3296 = vmatmul.f32.gmra.mxu0 %v3173
        %v3297 = vpop.f32.mrf.mxu0
        %v3298 = vadd.f32 0.0, %v3297
        %3299 = vmatmul.f32.gmra.mxu0 %v3176
        %v3300 = vpop.f32.mrf.mxu0
        %v3301 = vadd.f32 0.0, %v3300
        %3302 = vmatmul.f32.gmra.mxu0 %v3179
        %v3303 = vpop.f32.mrf.mxu0
        %v3304 = vadd.f32 0.0, %v3303
        %3305 = vmatmul.f32.gmra.mxu0 %v3182
        %v3306 = vpop.f32.mrf.mxu0
        %v3307 = vadd.f32 0.0, %v3306
        %3308 = vdwg.mxu0
        %v3309 = vld [vmem:[%s15] sm:$0xff]
        %v3310 = vld [vmem:[%s15 + $0x8] sm:$0xff]
        %v3311 = vld [vmem:[%s15 + $0x10] sm:$0xff]
        %v3312 = vld [vmem:[%s15 + $0x18] sm:$0xff]
        %v3313 = vld [vmem:[%s15 + $0x20] sm:$0xff]
        %v3314 = vld [vmem:[%s15 + $0x28] sm:$0xff]
        %v3315 = vld [vmem:[%s15 + $0x30] sm:$0xff]
        %v3316 = vld [vmem:[%s15 + $0x38] sm:$0xff]
        %s3317 = scalar_lea.vmem %s15, 64
        %v3318 = vld [vmem:[%s3317] sm:$0xff]
        %v3319 = vld [vmem:[%s3317 + $0x8] sm:$0xff]
        %v3320 = vld [vmem:[%s3317 + $0x10] sm:$0xff]
        %v3321 = vld [vmem:[%s3317 + $0x18] sm:$0xff]
        %v3322 = vld [vmem:[%s3317 + $0x20] sm:$0xff]
        %v3323 = vld [vmem:[%s3317 + $0x28] sm:$0xff]
        %v3324 = vld [vmem:[%s3317 + $0x30] sm:$0xff]
        %v3325 = vld [vmem:[%s3317 + $0x38] sm:$0xff]
        %vm3326 = vcmask 523264
        %v3328 = vsel %vm3326, %v3214, 0
        %v3331 = vsel %vm3326, %v3217, 0
        %v3334 = vsel %vm3326, %v3220, 0
        %v3337 = vsel %vm3326, %v3223, 0
        %3339 = vmatpush.msra.mxu0 0.0
        %3340 = vmatpush.msra.mxu0 0.0
        %3341 = vmatpush.msra.mxu0 0.0
        %3342 = vmatpush.msra.mxu0 0.0
        %3343 = vmatpush.msra.mxu0 0.0
        %3344 = vmatpush.msra.mxu0 0.0
        %3345 = vmatpush.msra.mxu0 0.0
        %3346 = vmatpush.msra.mxu0 0.0
        %3347 = vmatpush.msra.mxu0 %v3325
        %3348 = vmatpush.msra.mxu0 %v3324
        %3349 = vmatpush.msra.mxu0 %v3323
        %3350 = vmatpush.msra.mxu0 %v3322
        %3351 = vmatpush.msra.mxu0 %v3321
        %3352 = vmatpush.msra.mxu0 %v3320
        %3353 = vmatpush.msra.mxu0 %v3319
        %3354 = vmatpush.msra.mxu0 %v3318
        %3355 = vmatmul.f32.gmra.mxu0 %v3328
        %v3356 = vpop.f32.mrf.mxu0
        %v3357 = vadd.f32 0.0, %v3356
        %3358 = vmatmul.f32.gmra.mxu0 %v3331
        %v3359 = vpop.f32.mrf.mxu0
        %v3360 = vadd.f32 0.0, %v3359
        %3361 = vmatmul.f32.gmra.mxu0 %v3334
        %v3362 = vpop.f32.mrf.mxu0
        %v3363 = vadd.f32 0.0, %v3362
        %3364 = vmatmul.f32.gmra.mxu0 %v3337
        %v3365 = vpop.f32.mrf.mxu0
        %v3366 = vadd.f32 0.0, %v3365
        %3367 = vdwg.mxu0
        %v3369 = vsel %vm3326, %v3202, 0
        %v3372 = vsel %vm3326, %v3205, 0
        %v3375 = vsel %vm3326, %v3208, 0
        %v3378 = vsel %vm3326, %v3211, 0
        %3380 = vmatpush.msra.mxu0 0.0
        %3381 = vmatpush.msra.mxu0 0.0
        %3382 = vmatpush.msra.mxu0 0.0
        %3383 = vmatpush.msra.mxu0 0.0
        %3384 = vmatpush.msra.mxu0 0.0
        %3385 = vmatpush.msra.mxu0 0.0
        %3386 = vmatpush.msra.mxu0 0.0
        %3387 = vmatpush.msra.mxu0 0.0
        %3388 = vmatpush.msra.mxu0 %v3316
        %3389 = vmatpush.msra.mxu0 %v3315
        %3390 = vmatpush.msra.mxu0 %v3314
        %3391 = vmatpush.msra.mxu0 %v3313
        %3392 = vmatpush.msra.mxu0 %v3312
        %3393 = vmatpush.msra.mxu0 %v3311
        %3394 = vmatpush.msra.mxu0 %v3310
        %3395 = vmatpush.msra.mxu0 %v3309
        %3396 = vmatmul.f32.gmra.mxu0 %v3369
        %v3397 = vpop.f32.mrf.mxu0
        %v3398 = vadd.f32 %v3357, %v3397
        %3399 = vmatmul.f32.gmra.mxu0 %v3372
        %v3400 = vpop.f32.mrf.mxu0
        %v3401 = vadd.f32 %v3360, %v3400
        %3402 = vmatmul.f32.gmra.mxu0 %v3375
        %v3403 = vpop.f32.mrf.mxu0
        %v3404 = vadd.f32 %v3363, %v3403
        %3405 = vmatmul.f32.gmra.mxu0 %v3378
        %v3406 = vpop.f32.mrf.mxu0
        %v3407 = vadd.f32 %v3366, %v3406
        %3408 = vdwg.mxu0
        %s3409 = scalar_lea.vmem %s15, 128
        %v3410 = vld [vmem:[%s3409] sm:$0xff]
        %v3411 = vld [vmem:[%s3409 + $0x8] sm:$0xff]
        %v3412 = vld [vmem:[%s3409 + $0x10] sm:$0xff]
        %v3413 = vld [vmem:[%s3409 + $0x18] sm:$0xff]
        %v3414 = vld [vmem:[%s3409 + $0x20] sm:$0xff]
        %v3415 = vld [vmem:[%s3409 + $0x28] sm:$0xff]
        %v3416 = vld [vmem:[%s3409 + $0x30] sm:$0xff]
        %v3417 = vld [vmem:[%s3409 + $0x38] sm:$0xff]
        %v3419 = vsel %vm3326, %v3226, 0
        %v3422 = vsel %vm3326, %v3229, 0
        %v3425 = vsel %vm3326, %v3232, 0
        %v3428 = vsel %vm3326, %v3235, 0
        %3430 = vmatpush.msra.mxu0 0.0
        %3431 = vmatpush.msra.mxu0 0.0
        %3432 = vmatpush.msra.mxu0 0.0
        %3433 = vmatpush.msra.mxu0 0.0
        %3434 = vmatpush.msra.mxu0 0.0
        %3435 = vmatpush.msra.mxu0 0.0
        %3436 = vmatpush.msra.mxu0 0.0
        %3437 = vmatpush.msra.mxu0 0.0
        %3438 = vmatpush.msra.mxu0 %v3417
        %3439 = vmatpush.msra.mxu0 %v3416
        %3440 = vmatpush.msra.mxu0 %v3415
        %3441 = vmatpush.msra.mxu0 %v3414
        %3442 = vmatpush.msra.mxu0 %v3413
        %3443 = vmatpush.msra.mxu0 %v3412
        %3444 = vmatpush.msra.mxu0 %v3411
        %3445 = vmatpush.msra.mxu0 %v3410
        %3446 = vmatmul.f32.gmra.mxu0 %v3419
        %v3447 = vpop.f32.mrf.mxu0
        %v3448 = vadd.f32 0.0, %v3447
        %3449 = vmatmul.f32.gmra.mxu0 %v3422
        %v3450 = vpop.f32.mrf.mxu0
        %v3451 = vadd.f32 0.0, %v3450
        %3452 = vmatmul.f32.gmra.mxu0 %v3425
        %v3453 = vpop.f32.mrf.mxu0
        %v3454 = vadd.f32 0.0, %v3453
        %3455 = vmatmul.f32.gmra.mxu0 %v3428
        %v3456 = vpop.f32.mrf.mxu0
        %v3457 = vadd.f32 0.0, %v3456
        %3458 = vdwg.mxu0
        %v3459 = vadd.f32 %v3398, %v3448
        %v3460 = vadd.f32 %v3401, %v3451
        %v3461 = vadd.f32 %v3404, %v3454
        %v3462 = vadd.f32 %v3407, %v3457
        %s3463 = scalar_lea.vmem %s15, 192
        %v3464 = vld [vmem:[%s3463] sm:$0xff]
        %v3465 = vld [vmem:[%s3463 + $0x8] sm:$0xff]
        %v3466 = vld [vmem:[%s3463 + $0x10] sm:$0xff]
        %v3467 = vld [vmem:[%s3463 + $0x18] sm:$0xff]
        %v3468 = vld [vmem:[%s3463 + $0x20] sm:$0xff]
        %v3469 = vld [vmem:[%s3463 + $0x28] sm:$0xff]
        %v3470 = vld [vmem:[%s3463 + $0x30] sm:$0xff]
        %v3471 = vld [vmem:[%s3463 + $0x38] sm:$0xff]
        %v3473 = vsel %vm3326, %v3238, 0
        %v3476 = vsel %vm3326, %v3241, 0
        %v3479 = vsel %vm3326, %v3244, 0
        %v3482 = vsel %vm3326, %v3247, 0
        %3484 = vmatpush.msra.mxu0 0.0
        %3485 = vmatpush.msra.mxu0 0.0
        %3486 = vmatpush.msra.mxu0 0.0
        %3487 = vmatpush.msra.mxu0 0.0
        %3488 = vmatpush.msra.mxu0 0.0
        %3489 = vmatpush.msra.mxu0 0.0
        %3490 = vmatpush.msra.mxu0 0.0
        %3491 = vmatpush.msra.mxu0 0.0
        %3492 = vmatpush.msra.mxu0 %v3471
        %3493 = vmatpush.msra.mxu0 %v3470
        %3494 = vmatpush.msra.mxu0 %v3469
        %3495 = vmatpush.msra.mxu0 %v3468
        %3496 = vmatpush.msra.mxu0 %v3467
        %3497 = vmatpush.msra.mxu0 %v3466
        %3498 = vmatpush.msra.mxu0 %v3465
        %3499 = vmatpush.msra.mxu0 %v3464
        %3500 = vmatmul.f32.gmra.mxu0 %v3473
        %v3501 = vpop.f32.mrf.mxu0
        %v3502 = vadd.f32 0.0, %v3501
        %3503 = vmatmul.f32.gmra.mxu0 %v3476
        %v3504 = vpop.f32.mrf.mxu0
        %v3505 = vadd.f32 0.0, %v3504
        %3506 = vmatmul.f32.gmra.mxu0 %v3479
        %v3507 = vpop.f32.mrf.mxu0
        %v3508 = vadd.f32 0.0, %v3507
        %3509 = vmatmul.f32.gmra.mxu0 %v3482
        %v3510 = vpop.f32.mrf.mxu0
        %v3511 = vadd.f32 0.0, %v3510
        %3512 = vdwg.mxu0
        %v3513 = vadd.f32 %v3459, %v3502
        %v3514 = vadd.f32 %v3460, %v3505
        %v3515 = vadd.f32 %v3461, %v3508
        %v3516 = vadd.f32 %v3462, %v3511
        %s3517 = scalar_lea.vmem %s15, 256
        %v3518 = vld [vmem:[%s3517] sm:$0xff]
        %v3519 = vld [vmem:[%s3517 + $0x8] sm:$0xff]
        %v3520 = vld [vmem:[%s3517 + $0x10] sm:$0xff]
        %v3521 = vld [vmem:[%s3517 + $0x18] sm:$0xff]
        %v3522 = vld [vmem:[%s3517 + $0x20] sm:$0xff]
        %v3523 = vld [vmem:[%s3517 + $0x28] sm:$0xff]
        %v3524 = vld [vmem:[%s3517 + $0x30] sm:$0xff]
        %v3525 = vld [vmem:[%s3517 + $0x38] sm:$0xff]
        %v3527 = vsel %vm3326, %v3250, 0
        %v3530 = vsel %vm3326, %v3253, 0
        %v3533 = vsel %vm3326, %v3256, 0
        %v3536 = vsel %vm3326, %v3259, 0
        %3538 = vmatpush.msra.mxu0 0.0
        %3539 = vmatpush.msra.mxu0 0.0
        %3540 = vmatpush.msra.mxu0 0.0
        %3541 = vmatpush.msra.mxu0 0.0
        %3542 = vmatpush.msra.mxu0 0.0
        %3543 = vmatpush.msra.mxu0 0.0
        %3544 = vmatpush.msra.mxu0 0.0
        %3545 = vmatpush.msra.mxu0 0.0
        %3546 = vmatpush.msra.mxu0 %v3525
        %3547 = vmatpush.msra.mxu0 %v3524
        %3548 = vmatpush.msra.mxu0 %v3523
        %3549 = vmatpush.msra.mxu0 %v3522
        %3550 = vmatpush.msra.mxu0 %v3521
        %3551 = vmatpush.msra.mxu0 %v3520
        %3552 = vmatpush.msra.mxu0 %v3519
        %3553 = vmatpush.msra.mxu0 %v3518
        %3554 = vmatmul.f32.gmra.mxu0 %v3527
        %v3555 = vpop.f32.mrf.mxu0
        %v3556 = vadd.f32 0.0, %v3555
        %3557 = vmatmul.f32.gmra.mxu0 %v3530
        %v3558 = vpop.f32.mrf.mxu0
        %v3559 = vadd.f32 0.0, %v3558
        %3560 = vmatmul.f32.gmra.mxu0 %v3533
        %v3561 = vpop.f32.mrf.mxu0
        %v3562 = vadd.f32 0.0, %v3561
        %3563 = vmatmul.f32.gmra.mxu0 %v3536
        %v3564 = vpop.f32.mrf.mxu0
        %v3565 = vadd.f32 0.0, %v3564
        %3566 = vdwg.mxu0
        %v3567 = vadd.f32 %v3513, %v3556
        %v3568 = vadd.f32 %v3514, %v3559
        %v3569 = vadd.f32 %v3515, %v3562
        %v3570 = vadd.f32 %v3516, %v3565
        %s3571 = scalar_lea.vmem %s15, 320
        %v3572 = vld [vmem:[%s3571] sm:$0xff]
        %v3573 = vld [vmem:[%s3571 + $0x8] sm:$0xff]
        %v3574 = vld [vmem:[%s3571 + $0x10] sm:$0xff]
        %v3575 = vld [vmem:[%s3571 + $0x18] sm:$0xff]
        %v3576 = vld [vmem:[%s3571 + $0x20] sm:$0xff]
        %v3577 = vld [vmem:[%s3571 + $0x28] sm:$0xff]
        %v3578 = vld [vmem:[%s3571 + $0x30] sm:$0xff]
        %v3579 = vld [vmem:[%s3571 + $0x38] sm:$0xff]
        %v3581 = vsel %vm3326, %v3262, 0
        %v3584 = vsel %vm3326, %v3265, 0
        %v3587 = vsel %vm3326, %v3268, 0
        %v3590 = vsel %vm3326, %v3271, 0
        %3592 = vmatpush.msra.mxu0 0.0
        %3593 = vmatpush.msra.mxu0 0.0
        %3594 = vmatpush.msra.mxu0 0.0
        %3595 = vmatpush.msra.mxu0 0.0
        %3596 = vmatpush.msra.mxu0 0.0
        %3597 = vmatpush.msra.mxu0 0.0
        %3598 = vmatpush.msra.mxu0 0.0
        %3599 = vmatpush.msra.mxu0 0.0
        %3600 = vmatpush.msra.mxu0 %v3579
        %3601 = vmatpush.msra.mxu0 %v3578
        %3602 = vmatpush.msra.mxu0 %v3577
        %3603 = vmatpush.msra.mxu0 %v3576
        %3604 = vmatpush.msra.mxu0 %v3575
        %3605 = vmatpush.msra.mxu0 %v3574
        %3606 = vmatpush.msra.mxu0 %v3573
        %3607 = vmatpush.msra.mxu0 %v3572
        %3608 = vmatmul.f32.gmra.mxu0 %v3581
        %v3609 = vpop.f32.mrf.mxu0
        %v3610 = vadd.f32 0.0, %v3609
        %3611 = vmatmul.f32.gmra.mxu0 %v3584
        %v3612 = vpop.f32.mrf.mxu0
        %v3613 = vadd.f32 0.0, %v3612
        %3614 = vmatmul.f32.gmra.mxu0 %v3587
        %v3615 = vpop.f32.mrf.mxu0
        %v3616 = vadd.f32 0.0, %v3615
        %3617 = vmatmul.f32.gmra.mxu0 %v3590
        %v3618 = vpop.f32.mrf.mxu0
        %v3619 = vadd.f32 0.0, %v3618
        %3620 = vdwg.mxu0
        %v3621 = vadd.f32 %v3567, %v3610
        %v3622 = vadd.f32 %v3568, %v3613
        %v3623 = vadd.f32 %v3569, %v3616
        %v3624 = vadd.f32 %v3570, %v3619
        %s3625 = scalar_lea.vmem %s15, 384
        %v3626 = vld [vmem:[%s3625] sm:$0xff]
        %v3627 = vld [vmem:[%s3625 + $0x8] sm:$0xff]
        %v3628 = vld [vmem:[%s3625 + $0x10] sm:$0xff]
        %v3629 = vld [vmem:[%s3625 + $0x18] sm:$0xff]
        %v3630 = vld [vmem:[%s3625 + $0x20] sm:$0xff]
        %v3631 = vld [vmem:[%s3625 + $0x28] sm:$0xff]
        %v3632 = vld [vmem:[%s3625 + $0x30] sm:$0xff]
        %v3633 = vld [vmem:[%s3625 + $0x38] sm:$0xff]
        %v3635 = vsel %vm3326, %v3274, 0
        %v3638 = vsel %vm3326, %v3277, 0
        %v3641 = vsel %vm3326, %v3280, 0
        %v3644 = vsel %vm3326, %v3283, 0
        %3646 = vmatpush.msra.mxu0 0.0
        %3647 = vmatpush.msra.mxu0 0.0
        %3648 = vmatpush.msra.mxu0 0.0
        %3649 = vmatpush.msra.mxu0 0.0
        %3650 = vmatpush.msra.mxu0 0.0
        %3651 = vmatpush.msra.mxu0 0.0
        %3652 = vmatpush.msra.mxu0 0.0
        %3653 = vmatpush.msra.mxu0 0.0
        %3654 = vmatpush.msra.mxu0 %v3633
        %3655 = vmatpush.msra.mxu0 %v3632
        %3656 = vmatpush.msra.mxu0 %v3631
        %3657 = vmatpush.msra.mxu0 %v3630
        %3658 = vmatpush.msra.mxu0 %v3629
        %3659 = vmatpush.msra.mxu0 %v3628
        %3660 = vmatpush.msra.mxu0 %v3627
        %3661 = vmatpush.msra.mxu0 %v3626
        %3662 = vmatmul.f32.gmra.mxu0 %v3635
        %v3663 = vpop.f32.mrf.mxu0
        %v3664 = vadd.f32 0.0, %v3663
        %3665 = vmatmul.f32.gmra.mxu0 %v3638
        %v3666 = vpop.f32.mrf.mxu0
        %v3667 = vadd.f32 0.0, %v3666
        %3668 = vmatmul.f32.gmra.mxu0 %v3641
        %v3669 = vpop.f32.mrf.mxu0
        %v3670 = vadd.f32 0.0, %v3669
        %3671 = vmatmul.f32.gmra.mxu0 %v3644
        %v3672 = vpop.f32.mrf.mxu0
        %v3673 = vadd.f32 0.0, %v3672
        %3674 = vdwg.mxu0
        %v3675 = vadd.f32 %v3621, %v3664
        %v3676 = vadd.f32 %v3622, %v3667
        %v3677 = vadd.f32 %v3623, %v3670
        %v3678 = vadd.f32 %v3624, %v3673
        %s3679 = scalar_lea.vmem %s15, 448
        %v3680 = vld [vmem:[%s3679] sm:$0xff]
        %v3681 = vld [vmem:[%s3679 + $0x8] sm:$0xff]
        %v3682 = vld [vmem:[%s3679 + $0x10] sm:$0xff]
        %v3683 = vld [vmem:[%s3679 + $0x18] sm:$0xff]
        %v3684 = vld [vmem:[%s3679 + $0x20] sm:$0xff]
        %v3685 = vld [vmem:[%s3679 + $0x28] sm:$0xff]
        %v3686 = vld [vmem:[%s3679 + $0x30] sm:$0xff]
        %v3687 = vld [vmem:[%s3679 + $0x38] sm:$0xff]
        %v3689 = vsel %vm3326, %v3286, 0
        %v3692 = vsel %vm3326, %v3289, 0
        %v3695 = vsel %vm3326, %v3292, 0
        %v3698 = vsel %vm3326, %v3295, 0
        %3700 = vmatpush.msra.mxu0 0.0
        %3701 = vmatpush.msra.mxu0 0.0
        %3702 = vmatpush.msra.mxu0 0.0
        %3703 = vmatpush.msra.mxu0 0.0
        %3704 = vmatpush.msra.mxu0 0.0
        %3705 = vmatpush.msra.mxu0 0.0
        %3706 = vmatpush.msra.mxu0 0.0
        %3707 = vmatpush.msra.mxu0 0.0
        %3708 = vmatpush.msra.mxu0 %v3687
        %3709 = vmatpush.msra.mxu0 %v3686
        %3710 = vmatpush.msra.mxu0 %v3685
        %3711 = vmatpush.msra.mxu0 %v3684
        %3712 = vmatpush.msra.mxu0 %v3683
        %3713 = vmatpush.msra.mxu0 %v3682
        %3714 = vmatpush.msra.mxu0 %v3681
        %3715 = vmatpush.msra.mxu0 %v3680
        %3716 = vmatmul.f32.gmra.mxu0 %v3689
        %v3717 = vpop.f32.mrf.mxu0
        %v3718 = vadd.f32 0.0, %v3717
        %3719 = vmatmul.f32.gmra.mxu0 %v3692
        %v3720 = vpop.f32.mrf.mxu0
        %v3721 = vadd.f32 0.0, %v3720
        %3722 = vmatmul.f32.gmra.mxu0 %v3695
        %v3723 = vpop.f32.mrf.mxu0
        %v3724 = vadd.f32 0.0, %v3723
        %3725 = vmatmul.f32.gmra.mxu0 %v3698
        %v3726 = vpop.f32.mrf.mxu0
        %v3727 = vadd.f32 0.0, %v3726
        %3728 = vdwg.mxu0
        %v3729 = vadd.f32 %v3675, %v3718
        %v3730 = vadd.f32 %v3676, %v3721
        %v3731 = vadd.f32 %v3677, %v3724
        %v3732 = vadd.f32 %v3678, %v3727
        %s3733 = scalar_lea.vmem %s15, 512
        %v3734 = vld [vmem:[%s3733] sm:$0xff]
        %v3735 = vld [vmem:[%s3733 + $0x8] sm:$0xff]
        %v3736 = vld [vmem:[%s3733 + $0x10] sm:$0xff]
        %v3737 = vld [vmem:[%s3733 + $0x18] sm:$0xff]
        %v3738 = vld [vmem:[%s3733 + $0x20] sm:$0xff]
        %v3739 = vld [vmem:[%s3733 + $0x28] sm:$0xff]
        %v3740 = vld [vmem:[%s3733 + $0x30] sm:$0xff]
        %v3741 = vld [vmem:[%s3733 + $0x38] sm:$0xff]
        %v3743 = vsel %vm3326, %v3298, 0
        %v3746 = vsel %vm3326, %v3301, 0
        %v3749 = vsel %vm3326, %v3304, 0
        %v3752 = vsel %vm3326, %v3307, 0
        %3754 = vmatpush.msra.mxu0 0.0
        %3755 = vmatpush.msra.mxu0 0.0
        %3756 = vmatpush.msra.mxu0 0.0
        %3757 = vmatpush.msra.mxu0 0.0
        %3758 = vmatpush.msra.mxu0 0.0
        %3759 = vmatpush.msra.mxu0 0.0
        %3760 = vmatpush.msra.mxu0 0.0
        %3761 = vmatpush.msra.mxu0 0.0
        %3762 = vmatpush.msra.mxu0 %v3741
        %3763 = vmatpush.msra.mxu0 %v3740
        %3764 = vmatpush.msra.mxu0 %v3739
        %3765 = vmatpush.msra.mxu0 %v3738
        %3766 = vmatpush.msra.mxu0 %v3737
        %3767 = vmatpush.msra.mxu0 %v3736
        %3768 = vmatpush.msra.mxu0 %v3735
        %3769 = vmatpush.msra.mxu0 %v3734
        %3770 = vmatmul.f32.gmra.mxu0 %v3743
        %v3771 = vpop.f32.mrf.mxu0
        %v3772 = vadd.f32 0.0, %v3771
        %3773 = vmatmul.f32.gmra.mxu0 %v3746
        %v3774 = vpop.f32.mrf.mxu0
        %v3775 = vadd.f32 0.0, %v3774
        %3776 = vmatmul.f32.gmra.mxu0 %v3749
        %v3777 = vpop.f32.mrf.mxu0
        %v3778 = vadd.f32 0.0, %v3777
        %3779 = vmatmul.f32.gmra.mxu0 %v3752
        %v3780 = vpop.f32.mrf.mxu0
        %v3781 = vadd.f32 0.0, %v3780
        %3782 = vdwg.mxu0
        %v3783 = vadd.f32 %v3729, %v3772
        %v3784 = vadd.f32 %v3730, %v3775
        %v3785 = vadd.f32 %v3731, %v3778
        %v3786 = vadd.f32 %v3732, %v3781
        %v3787 = vld [vmem:[%s14] sm:$0xff]
        %v3788 = vld [vmem:[%s14 + $0x8] sm:$0xff]
        %v3789 = vld [vmem:[%s14 + $0x10] sm:$0xff]
        %v3790 = vld [vmem:[%s14 + $0x18] sm:$0xff]
        %3792 = vset.pattern.permute.xlu0 0
        %3793 = vperm.xlu0 %3792, %v3787
        %v3794 = vpop.permute.xlu0 %3793
        %3797 = vset.pattern.permute.xlu0 0
        %3798 = vperm.xlu0 %3797, %v3788
        %v3799 = vpop.permute.xlu0 %3798
        %3802 = vset.pattern.permute.xlu0 0
        %3803 = vperm.xlu0 %3802, %v3789
        %v3804 = vpop.permute.xlu0 %3803
        %3807 = vset.pattern.permute.xlu0 0
        %3808 = vperm.xlu0 %3807, %v3790
        %v3809 = vpop.permute.xlu0 %3808
        %v3811 = vadd.f32 %v3783, %v3794
        %v3812 = vadd.f32 %v3784, %v3799
        %v3813 = vadd.f32 %v3785, %v3804
        %v3814 = vadd.f32 %v3786, %v3809
        %v3815 = vsel %vm3075, %v3811, 0.0
        %3816 = vadd.xlane.f32.xlu0 %v3815
        %v3817 = vpop.xlane.xlu0 %3816
        %v3818 = vsel %vm3075, %v3812, 0.0
        %3819 = vadd.xlane.f32.xlu0 %v3818
        %v3820 = vpop.xlane.xlu0 %3819
        %v3821 = vsel %vm3075, %v3813, 0.0
        %3822 = vadd.xlane.f32.xlu0 %v3821
        %v3823 = vpop.xlane.xlu0 %3822
        %v3824 = vsel %vm3075, %v3814, 0.0
        %3825 = vadd.xlane.f32.xlu0 %v3824
        %v3826 = vpop.xlane.xlu0 %3825
        %v3827 = vrcp.pop 16.0
        %v3828 = vmul.f32 16.0, %v3827
        %v3829 = vsub.f32 1.0, %v3828
        %v3830 = vmul.f32 %v3827, %v3829
        %v3831 = vadd.f32 %v3827, %v3830
        %vm3832 = vweird.f32 %v3827
        %v3833 = vsel %vm3832, %v3827, %v3831
        %v3834 = vmul.f32 %v3817, %v3833
        %v3835 = vmul.f32 %v3820, %v3833
        %v3836 = vmul.f32 %v3823, %v3833
        %v3837 = vmul.f32 %v3826, %v3833
        %v3838 = vsub.f32 %v3811, %v3834
        %v3839 = vsub.f32 %v3812, %v3835
        %v3840 = vsub.f32 %v3813, %v3836
        %v3841 = vsub.f32 %v3814, %v3837
        %v3842 = vmul.f32 %v3838, %v3838
        %v3843 = vmul.f32 %v3839, %v3839
        %v3844 = vmul.f32 %v3840, %v3840
        %v3845 = vmul.f32 %v3841, %v3841
        %v3846 = vsel %vm3075, %v3842, 0.0
        %3847 = vadd.xlane.f32.xlu0 %v3846
        %v3848 = vpop.xlane.xlu0 %3847
        %v3849 = vsel %vm3075, %v3843, 0.0
        %3850 = vadd.xlane.f32.xlu0 %v3849
        %v3851 = vpop.xlane.xlu0 %3850
        %v3852 = vsel %vm3075, %v3844, 0.0
        %3853 = vadd.xlane.f32.xlu0 %v3852
        %v3854 = vpop.xlane.xlu0 %3853
        %v3855 = vsel %vm3075, %v3845, 0.0
        %3856 = vadd.xlane.f32.xlu0 %v3855
        %v3857 = vpop.xlane.xlu0 %3856
        %v3858 = vmul.f32 %v3848, %v3833
        %v3859 = vmul.f32 %v3851, %v3833
        %v3860 = vmul.f32 %v3854, %v3833
        %v3861 = vmul.f32 %v3857, %v3833
        %v3862 = vadd.f32 %v3858, 1e-05
        %v3863 = vadd.f32 %v3859, 1e-05
        %v3864 = vadd.f32 %v3860, 1e-05
        %v3865 = vadd.f32 %v3861, 1e-05
        %v3866 = vrsqrt.pop %v3862
        %v3867 = vmul.f32 %v3866, %v3862
        %v3868 = vmul.f32 %v3867, %v3866
        %v3869 = vmul.f32 0.5, %v3868
        %v3870 = vsub.f32 1.5, %v3869
        %v3871 = vmul.f32 %v3866, %v3870
        %vm3872 = vweird.f32 %v3862
        %vm3873 = vweird.f32 %v3866
        %vm3874 = vmor %vm3872, %vm3873
        %v3875 = vsel %vm3874, %v3866, %v3871
        %v3876 = vrsqrt.pop %v3863
        %v3877 = vmul.f32 %v3876, %v3863
        %v3878 = vmul.f32 %v3877, %v3876
        %v3879 = vmul.f32 0.5, %v3878
        %v3880 = vsub.f32 1.5, %v3879
        %v3881 = vmul.f32 %v3876, %v3880
        %vm3882 = vweird.f32 %v3863
        %vm3883 = vweird.f32 %v3876
        %vm3884 = vmor %vm3882, %vm3883
        %v3885 = vsel %vm3884, %v3876, %v3881
        %v3886 = vrsqrt.pop %v3864
        %v3887 = vmul.f32 %v3886, %v3864
        %v3888 = vmul.f32 %v3887, %v3886
        %v3889 = vmul.f32 0.5, %v3888
        %v3890 = vsub.f32 1.5, %v3889
        %v3891 = vmul.f32 %v3886, %v3890
        %vm3892 = vweird.f32 %v3864
        %vm3893 = vweird.f32 %v3886
        %vm3894 = vmor %vm3892, %vm3893
        %v3895 = vsel %vm3894, %v3886, %v3891
        %v3896 = vrsqrt.pop %v3865
        %v3897 = vmul.f32 %v3896, %v3865
        %v3898 = vmul.f32 %v3897, %v3896
        %v3899 = vmul.f32 0.5, %v3898
        %v3900 = vsub.f32 1.5, %v3899
        %v3901 = vmul.f32 %v3896, %v3900
        %vm3902 = vweird.f32 %v3865
        %vm3903 = vweird.f32 %v3896
        %vm3904 = vmor %vm3902, %vm3903
        %v3905 = vsel %vm3904, %v3896, %v3901
        %v3906 = vmul.f32 %v3838, %v3875
        %v3907 = vmul.f32 %v3839, %v3885
        %v3908 = vmul.f32 %v3840, %v3895
        %v3909 = vmul.f32 %v3841, %v3905
        %3911 = vset.pattern.permute.xlu0 0
        %3912 = vperm.xlu0 %3911, %v2067
        %v3913 = vpop.permute.xlu0 %3912
        %3916 = vset.pattern.permute.xlu0 0
        %3917 = vperm.xlu0 %3916, %v2070
        %v3918 = vpop.permute.xlu0 %3917
        %3921 = vset.pattern.permute.xlu0 0
        %3922 = vperm.xlu0 %3921, %v2073
        %v3923 = vpop.permute.xlu0 %3922
        %3926 = vset.pattern.permute.xlu0 0
        %3927 = vperm.xlu0 %3926, %v2076
        %v3928 = vpop.permute.xlu0 %3927
        %v3930 = vmul.f32 %v3906, %v3913
        %v3931 = vmul.f32 %v3907, %v3918
        %v3932 = vmul.f32 %v3908, %v3923
        %v3933 = vmul.f32 %v3909, %v3928
        %3935 = vset.pattern.permute.xlu0 0
        %3936 = vperm.xlu0 %3935, %v1997
        %v3937 = vpop.permute.xlu0 %3936
        %3940 = vset.pattern.permute.xlu0 0
        %3941 = vperm.xlu0 %3940, %v2000
        %v3942 = vpop.permute.xlu0 %3941
        %3945 = vset.pattern.permute.xlu0 0
        %3946 = vperm.xlu0 %3945, %v2003
        %v3947 = vpop.permute.xlu0 %3946
        %3950 = vset.pattern.permute.xlu0 0
        %3951 = vperm.xlu0 %3950, %v2006
        %v3952 = vpop.permute.xlu0 %3951
        %v3954 = vadd.f32 %v3930, %v3937
        %v3955 = vadd.f32 %v3931, %v3942
        %v3956 = vadd.f32 %v3932, %v3947
        %v3957 = vadd.f32 %v3933, %v3952
        %vm3958 = vcmp.ge.f32.partialorder %v3954, 0.0
        %vm3959 = vcmp.ge.f32.partialorder %v3955, 0.0
        %vm3960 = vcmp.ge.f32.partialorder %v3956, 0.0
        %vm3961 = vcmp.ge.f32.partialorder %v3957, 0.0
        %v3962 = vmul.f32 %v3954, 0.2
        %v3963 = vmul.f32 %v3955, 0.2
        %v3964 = vmul.f32 %v3956, 0.2
        %v3965 = vmul.f32 %v3957, 0.2
        %v3966 = vsel %vm3958, %v3954, %v3962
        %v3967 = vsel %vm3959, %v3955, %v3963
        %v3968 = vsel %vm3960, %v3956, %v3964
        %v3969 = vsel %vm3961, %v3957, %v3965
        %v3970 = vld [vmem:[%s16] sm:$0xff]
        %v3971 = vld [vmem:[%s16 + $0x8] sm:$0xff]
        %v3972 = vld [vmem:[%s16 + $0x10] sm:$0xff]
        %v3973 = vld [vmem:[%s16 + $0x18] sm:$0xff]
        %v3974 = vld [vmem:[%s16 + $0x20] sm:$0xff]
        %v3975 = vld [vmem:[%s16 + $0x28] sm:$0xff]
        %v3976 = vld [vmem:[%s16 + $0x30] sm:$0xff]
        %v3977 = vld [vmem:[%s16 + $0x38] sm:$0xff]
        %v3978 = vld [vmem:[%s16 + $0x40] sm:$0xff]
        %v3979 = vld [vmem:[%s16 + $0x48] sm:$0xff]
        %v3980 = vld [vmem:[%s16 + $0x50] sm:$0xff]
        %v3981 = vld [vmem:[%s16 + $0x58] sm:$0xff]
        %v3982 = vld [vmem:[%s16 + $0x60] sm:$0xff]
        %v3983 = vld [vmem:[%s16 + $0x68] sm:$0xff]
        %v3984 = vld [vmem:[%s16 + $0x70] sm:$0xff]
        %v3985 = vld [vmem:[%s16 + $0x78] sm:$0xff]
        %v3986 = vld [vmem:[%s16 + $0x80] sm:$0xff]
        %v3987 = vld [vmem:[%s16 + $0x88] sm:$0xff]
        %v3988 = vld [vmem:[%s16 + $0x90] sm:$0xff]
        %v3989 = vld [vmem:[%s16 + $0x98] sm:$0xff]
        %v3990 = vld [vmem:[%s16 + $0xa0] sm:$0xff]
        %v3991 = vld [vmem:[%s16 + $0xa8] sm:$0xff]
        %v3992 = vld [vmem:[%s16 + $0xb0] sm:$0xff]
        %v3993 = vld [vmem:[%s16 + $0xb8] sm:$0xff]
        %v3994 = vld [vmem:[%s16 + $0xc0] sm:$0xff]
        %v3995 = vld [vmem:[%s16 + $0xc8] sm:$0xff]
        %v3996 = vld [vmem:[%s16 + $0xd0] sm:$0xff]
        %v3997 = vld [vmem:[%s16 + $0xd8] sm:$0xff]
        %v3998 = vld [vmem:[%s16 + $0xe0] sm:$0xff]
        %v3999 = vld [vmem:[%s16 + $0xe8] sm:$0xff]
        %v4000 = vld [vmem:[%s16 + $0xf0] sm:$0xff]
        %v4001 = vld [vmem:[%s16 + $0xf8] sm:$0xff]
        %vm4002 = vcmask 261120
        %v4004 = vsel %vm4002, %v3970, 0
        %v4007 = vsel %vm4002, %v3971, 0
        %v4010 = vsel %vm4002, %v3972, 0
        %v4013 = vsel %vm4002, %v3973, 0
        %v4016 = vsel %vm4002, %v3974, 0
        %v4019 = vsel %vm4002, %v3975, 0
        %v4022 = vsel %vm4002, %v3976, 0
        %v4025 = vsel %vm4002, %v3977, 0
        %v4028 = vsel %vm4002, %v3978, 0
        %v4031 = vsel %vm4002, %v3979, 0
        %v4034 = vsel %vm4002, %v3980, 0
        %v4037 = vsel %vm4002, %v3981, 0
        %v4040 = vsel %vm4002, %v3982, 0
        %v4043 = vsel %vm4002, %v3983, 0
        %v4046 = vsel %vm4002, %v3984, 0
        %v4049 = vsel %vm4002, %v3985, 0
        %v4052 = vsel %vm4002, %v3986, 0
        %v4055 = vsel %vm4002, %v3987, 0
        %v4058 = vsel %vm4002, %v3988, 0
        %v4061 = vsel %vm4002, %v3989, 0
        %v4064 = vsel %vm4002, %v3990, 0
        %v4067 = vsel %vm4002, %v3991, 0
        %v4070 = vsel %vm4002, %v3992, 0
        %v4073 = vsel %vm4002, %v3993, 0
        %v4076 = vsel %vm4002, %v3994, 0
        %v4079 = vsel %vm4002, %v3995, 0
        %v4082 = vsel %vm4002, %v3996, 0
        %v4085 = vsel %vm4002, %v3997, 0
        %v4088 = vsel %vm4002, %v3998, 0
        %v4091 = vsel %vm4002, %v3999, 0
        %v4094 = vsel %vm4002, %v4000, 0
        %v4097 = vsel %vm4002, %v4001, 0
        %4099 = vmatpush.msra.mxu0 0.0
        %4100 = vmatpush.msra.mxu0 0.0
        %4101 = vmatpush.msra.mxu0 0.0
        %4102 = vmatpush.msra.mxu0 0.0
        %4103 = vmatpush.msra.mxu0 0.0
        %4104 = vmatpush.msra.mxu0 0.0
        %4105 = vmatpush.msra.mxu0 0.0
        %4106 = vmatpush.msra.mxu0 0.0
        %4107 = vmatpush.msra.mxu0 0.0
        %4108 = vmatpush.msra.mxu0 0.0
        %4109 = vmatpush.msra.mxu0 0.0
        %4110 = vmatpush.msra.mxu0 0.0
        %4111 = vmatpush.msra.mxu0 %v3969
        %4112 = vmatpush.msra.mxu0 %v3968
        %4113 = vmatpush.msra.mxu0 %v3967
        %4114 = vmatpush.msra.mxu0 %v3966
        %4115 = vmatmul.f32.gmra.mxu0 %v4004
        %v4116 = vpop.f32.mrf.mxu0
        %v4117 = vadd.f32 0.0, %v4116
        %4118 = vmatmul.f32.gmra.mxu0 %v4007
        %v4119 = vpop.f32.mrf.mxu0
        %v4120 = vadd.f32 0.0, %v4119
        %4121 = vmatmul.f32.gmra.mxu0 %v4010
        %v4122 = vpop.f32.mrf.mxu0
        %v4123 = vadd.f32 0.0, %v4122
        %4124 = vmatmul.f32.gmra.mxu0 %v4013
        %v4125 = vpop.f32.mrf.mxu0
        %v4126 = vadd.f32 0.0, %v4125
        %4127 = vmatmul.f32.gmra.mxu0 %v4016
        %v4128 = vpop.f32.mrf.mxu0
        %v4129 = vadd.f32 0.0, %v4128
        %4130 = vmatmul.f32.gmra.mxu0 %v4019
        %v4131 = vpop.f32.mrf.mxu0
        %v4132 = vadd.f32 0.0, %v4131
        %4133 = vmatmul.f32.gmra.mxu0 %v4022
        %v4134 = vpop.f32.mrf.mxu0
        %v4135 = vadd.f32 0.0, %v4134
        %4136 = vmatmul.f32.gmra.mxu0 %v4025
        %v4137 = vpop.f32.mrf.mxu0
        %v4138 = vadd.f32 0.0, %v4137
        %4139 = vmatmul.f32.gmra.mxu0 %v4028
        %v4140 = vpop.f32.mrf.mxu0
        %v4141 = vadd.f32 0.0, %v4140
        %4142 = vmatmul.f32.gmra.mxu0 %v4031
        %v4143 = vpop.f32.mrf.mxu0
        %v4144 = vadd.f32 0.0, %v4143
        %4145 = vmatmul.f32.gmra.mxu0 %v4034
        %v4146 = vpop.f32.mrf.mxu0
        %v4147 = vadd.f32 0.0, %v4146
        %4148 = vmatmul.f32.gmra.mxu0 %v4037
        %v4149 = vpop.f32.mrf.mxu0
        %v4150 = vadd.f32 0.0, %v4149
        %4151 = vmatmul.f32.gmra.mxu0 %v4040
        %v4152 = vpop.f32.mrf.mxu0
        %v4153 = vadd.f32 0.0, %v4152
        %4154 = vmatmul.f32.gmra.mxu0 %v4043
        %v4155 = vpop.f32.mrf.mxu0
        %v4156 = vadd.f32 0.0, %v4155
        %4157 = vmatmul.f32.gmra.mxu0 %v4046
        %v4158 = vpop.f32.mrf.mxu0
        %v4159 = vadd.f32 0.0, %v4158
        %4160 = vmatmul.f32.gmra.mxu0 %v4049
        %v4161 = vpop.f32.mrf.mxu0
        %v4162 = vadd.f32 0.0, %v4161
        %4163 = vmatmul.f32.gmra.mxu0 %v4052
        %v4164 = vpop.f32.mrf.mxu0
        %v4165 = vadd.f32 0.0, %v4164
        %4166 = vmatmul.f32.gmra.mxu0 %v4055
        %v4167 = vpop.f32.mrf.mxu0
        %v4168 = vadd.f32 0.0, %v4167
        %4169 = vmatmul.f32.gmra.mxu0 %v4058
        %v4170 = vpop.f32.mrf.mxu0
        %v4171 = vadd.f32 0.0, %v4170
        %4172 = vmatmul.f32.gmra.mxu0 %v4061
        %v4173 = vpop.f32.mrf.mxu0
        %v4174 = vadd.f32 0.0, %v4173
        %4175 = vmatmul.f32.gmra.mxu0 %v4064
        %v4176 = vpop.f32.mrf.mxu0
        %v4177 = vadd.f32 0.0, %v4176
        %4178 = vmatmul.f32.gmra.mxu0 %v4067
        %v4179 = vpop.f32.mrf.mxu0
        %v4180 = vadd.f32 0.0, %v4179
        %4181 = vmatmul.f32.gmra.mxu0 %v4070
        %v4182 = vpop.f32.mrf.mxu0
        %v4183 = vadd.f32 0.0, %v4182
        %4184 = vmatmul.f32.gmra.mxu0 %v4073
        %v4185 = vpop.f32.mrf.mxu0
        %v4186 = vadd.f32 0.0, %v4185
        %4187 = vmatmul.f32.gmra.mxu0 %v4076
        %v4188 = vpop.f32.mrf.mxu0
        %v4189 = vadd.f32 0.0, %v4188
        %4190 = vmatmul.f32.gmra.mxu0 %v4079
        %v4191 = vpop.f32.mrf.mxu0
        %v4192 = vadd.f32 0.0, %v4191
        %4193 = vmatmul.f32.gmra.mxu0 %v4082
        %v4194 = vpop.f32.mrf.mxu0
        %v4195 = vadd.f32 0.0, %v4194
        %4196 = vmatmul.f32.gmra.mxu0 %v4085
        %v4197 = vpop.f32.mrf.mxu0
        %v4198 = vadd.f32 0.0, %v4197
        %4199 = vmatmul.f32.gmra.mxu0 %v4088
        %v4200 = vpop.f32.mrf.mxu0
        %v4201 = vadd.f32 0.0, %v4200
        %4202 = vmatmul.f32.gmra.mxu0 %v4091
        %v4203 = vpop.f32.mrf.mxu0
        %v4204 = vadd.f32 0.0, %v4203
        %4205 = vmatmul.f32.gmra.mxu0 %v4094
        %v4206 = vpop.f32.mrf.mxu0
        %v4207 = vadd.f32 0.0, %v4206
        %4208 = vmatmul.f32.gmra.mxu0 %v4097
        %v4209 = vpop.f32.mrf.mxu0
        %v4210 = vadd.f32 0.0, %v4209
        %4211 = vdwg.mxu0
        %v4212 = vld [vmem:[%s18] sm:$0xff]
        %v4213 = vld [vmem:[%s18 + $0x8] sm:$0xff]
        %s4214 = scalar_lea.vmem %s18, 16
        %v4215 = vld [vmem:[%s4214] sm:$0xff]
        %v4216 = vld [vmem:[%s4214 + $0x8] sm:$0xff]
        %v4218 = vsel %vm3075, %v4123, 0
        %v4221 = vsel %vm3075, %v4126, 0
        %4223 = vmatpush.msra.mxu0 0.0
        %4224 = vmatpush.msra.mxu0 0.0
        %4225 = vmatpush.msra.mxu0 0.0
        %4226 = vmatpush.msra.mxu0 0.0
        %4227 = vmatpush.msra.mxu0 0.0
        %4228 = vmatpush.msra.mxu0 0.0
        %4229 = vmatpush.msra.mxu0 0.0
        %4230 = vmatpush.msra.mxu0 0.0
        %4231 = vmatpush.msra.mxu0 0.0
        %4232 = vmatpush.msra.mxu0 0.0
        %4233 = vmatpush.msra.mxu0 0.0
        %4234 = vmatpush.msra.mxu0 0.0
        %4235 = vmatpush.msra.mxu0 0.0
        %4236 = vmatpush.msra.mxu0 0.0
        %4237 = vmatpush.msra.mxu0 %v4216
        %4238 = vmatpush.msra.mxu0 %v4215
        %4239 = vmatmul.f32.gmra.mxu0 %v4218
        %v4240 = vpop.f32.mrf.mxu0
        %v4241 = vadd.f32 0.0, %v4240
        %4242 = vmatmul.f32.gmra.mxu0 %v4221
        %v4243 = vpop.f32.mrf.mxu0
        %v4244 = vadd.f32 0.0, %v4243
        %4245 = vdwg.mxu0
        %v4247 = vsel %vm3075, %v4117, 0
        %v4250 = vsel %vm3075, %v4120, 0
        %4252 = vmatpush.msra.mxu0 0.0
        %4253 = vmatpush.msra.mxu0 0.0
        %4254 = vmatpush.msra.mxu0 0.0
        %4255 = vmatpush.msra.mxu0 0.0
        %4256 = vmatpush.msra.mxu0 0.0
        %4257 = vmatpush.msra.mxu0 0.0
        %4258 = vmatpush.msra.mxu0 0.0
        %4259 = vmatpush.msra.mxu0 0.0
        %4260 = vmatpush.msra.mxu0 0.0
        %4261 = vmatpush.msra.mxu0 0.0
        %4262 = vmatpush.msra.mxu0 0.0
        %4263 = vmatpush.msra.mxu0 0.0
        %4264 = vmatpush.msra.mxu0 0.0
        %4265 = vmatpush.msra.mxu0 0.0
        %4266 = vmatpush.msra.mxu0 %v4213
        %4267 = vmatpush.msra.mxu0 %v4212
        %4268 = vmatmul.f32.gmra.mxu0 %v4247
        %v4269 = vpop.f32.mrf.mxu0
        %v4270 = vadd.f32 %v4241, %v4269
        %4271 = vmatmul.f32.gmra.mxu0 %v4250
        %v4272 = vpop.f32.mrf.mxu0
        %v4273 = vadd.f32 %v4244, %v4272
        %4274 = vdwg.mxu0
        %s4275 = scalar_lea.vmem %s18, 32
        %v4276 = vld [vmem:[%s4275] sm:$0xff]
        %v4277 = vld [vmem:[%s4275 + $0x8] sm:$0xff]
        %v4279 = vsel %vm3075, %v4129, 0
        %v4282 = vsel %vm3075, %v4132, 0
        %4284 = vmatpush.msra.mxu0 0.0
        %4285 = vmatpush.msra.mxu0 0.0
        %4286 = vmatpush.msra.mxu0 0.0
        %4287 = vmatpush.msra.mxu0 0.0
        %4288 = vmatpush.msra.mxu0 0.0
        %4289 = vmatpush.msra.mxu0 0.0
        %4290 = vmatpush.msra.mxu0 0.0
        %4291 = vmatpush.msra.mxu0 0.0
        %4292 = vmatpush.msra.mxu0 0.0
        %4293 = vmatpush.msra.mxu0 0.0
        %4294 = vmatpush.msra.mxu0 0.0
        %4295 = vmatpush.msra.mxu0 0.0
        %4296 = vmatpush.msra.mxu0 0.0
        %4297 = vmatpush.msra.mxu0 0.0
        %4298 = vmatpush.msra.mxu0 %v4277
        %4299 = vmatpush.msra.mxu0 %v4276
        %4300 = vmatmul.f32.gmra.mxu0 %v4279
        %v4301 = vpop.f32.mrf.mxu0
        %v4302 = vadd.f32 0.0, %v4301
        %4303 = vmatmul.f32.gmra.mxu0 %v4282
        %v4304 = vpop.f32.mrf.mxu0
        %v4305 = vadd.f32 0.0, %v4304
        %4306 = vdwg.mxu0
        %v4307 = vadd.f32 %v4270, %v4302
        %v4308 = vadd.f32 %v4273, %v4305
        %s4309 = scalar_lea.vmem %s18, 48
        %v4310 = vld [vmem:[%s4309] sm:$0xff]
        %v4311 = vld [vmem:[%s4309 + $0x8] sm:$0xff]
        %v4313 = vsel %vm3075, %v4135, 0
        %v4316 = vsel %vm3075, %v4138, 0
        %4318 = vmatpush.msra.mxu0 0.0
        %4319 = vmatpush.msra.mxu0 0.0
        %4320 = vmatpush.msra.mxu0 0.0
        %4321 = vmatpush.msra.mxu0 0.0
        %4322 = vmatpush.msra.mxu0 0.0
        %4323 = vmatpush.msra.mxu0 0.0
        %4324 = vmatpush.msra.mxu0 0.0
        %4325 = vmatpush.msra.mxu0 0.0
        %4326 = vmatpush.msra.mxu0 0.0
        %4327 = vmatpush.msra.mxu0 0.0
        %4328 = vmatpush.msra.mxu0 0.0
        %4329 = vmatpush.msra.mxu0 0.0
        %4330 = vmatpush.msra.mxu0 0.0
        %4331 = vmatpush.msra.mxu0 0.0
        %4332 = vmatpush.msra.mxu0 %v4311
        %4333 = vmatpush.msra.mxu0 %v4310
        %4334 = vmatmul.f32.gmra.mxu0 %v4313
        %v4335 = vpop.f32.mrf.mxu0
        %v4336 = vadd.f32 0.0, %v4335
        %4337 = vmatmul.f32.gmra.mxu0 %v4316
        %v4338 = vpop.f32.mrf.mxu0
        %v4339 = vadd.f32 0.0, %v4338
        %4340 = vdwg.mxu0
        %v4341 = vadd.f32 %v4307, %v4336
        %v4342 = vadd.f32 %v4308, %v4339
        %s4343 = scalar_lea.vmem %s18, 64
        %v4344 = vld [vmem:[%s4343] sm:$0xff]
        %v4345 = vld [vmem:[%s4343 + $0x8] sm:$0xff]
        %v4347 = vsel %vm3075, %v4141, 0
        %v4350 = vsel %vm3075, %v4144, 0
        %4352 = vmatpush.msra.mxu0 0.0
        %4353 = vmatpush.msra.mxu0 0.0
        %4354 = vmatpush.msra.mxu0 0.0
        %4355 = vmatpush.msra.mxu0 0.0
        %4356 = vmatpush.msra.mxu0 0.0
        %4357 = vmatpush.msra.mxu0 0.0
        %4358 = vmatpush.msra.mxu0 0.0
        %4359 = vmatpush.msra.mxu0 0.0
        %4360 = vmatpush.msra.mxu0 0.0
        %4361 = vmatpush.msra.mxu0 0.0
        %4362 = vmatpush.msra.mxu0 0.0
        %4363 = vmatpush.msra.mxu0 0.0
        %4364 = vmatpush.msra.mxu0 0.0
        %4365 = vmatpush.msra.mxu0 0.0
        %4366 = vmatpush.msra.mxu0 %v4345
        %4367 = vmatpush.msra.mxu0 %v4344
        %4368 = vmatmul.f32.gmra.mxu0 %v4347
        %v4369 = vpop.f32.mrf.mxu0
        %v4370 = vadd.f32 0.0, %v4369
        %4371 = vmatmul.f32.gmra.mxu0 %v4350
        %v4372 = vpop.f32.mrf.mxu0
        %v4373 = vadd.f32 0.0, %v4372
        %4374 = vdwg.mxu0
        %v4375 = vadd.f32 %v4341, %v4370
        %v4376 = vadd.f32 %v4342, %v4373
        %s4377 = scalar_lea.vmem %s18, 80
        %v4378 = vld [vmem:[%s4377] sm:$0xff]
        %v4379 = vld [vmem:[%s4377 + $0x8] sm:$0xff]
        %v4381 = vsel %vm3075, %v4147, 0
        %v4384 = vsel %vm3075, %v4150, 0
        %4386 = vmatpush.msra.mxu0 0.0
        %4387 = vmatpush.msra.mxu0 0.0
        %4388 = vmatpush.msra.mxu0 0.0
        %4389 = vmatpush.msra.mxu0 0.0
        %4390 = vmatpush.msra.mxu0 0.0
        %4391 = vmatpush.msra.mxu0 0.0
        %4392 = vmatpush.msra.mxu0 0.0
        %4393 = vmatpush.msra.mxu0 0.0
        %4394 = vmatpush.msra.mxu0 0.0
        %4395 = vmatpush.msra.mxu0 0.0
        %4396 = vmatpush.msra.mxu0 0.0
        %4397 = vmatpush.msra.mxu0 0.0
        %4398 = vmatpush.msra.mxu0 0.0
        %4399 = vmatpush.msra.mxu0 0.0
        %4400 = vmatpush.msra.mxu0 %v4379
        %4401 = vmatpush.msra.mxu0 %v4378
        %4402 = vmatmul.f32.gmra.mxu0 %v4381
        %v4403 = vpop.f32.mrf.mxu0
        %v4404 = vadd.f32 0.0, %v4403
        %4405 = vmatmul.f32.gmra.mxu0 %v4384
        %v4406 = vpop.f32.mrf.mxu0
        %v4407 = vadd.f32 0.0, %v4406
        %4408 = vdwg.mxu0
        %v4409 = vadd.f32 %v4375, %v4404
        %v4410 = vadd.f32 %v4376, %v4407
        %s4411 = scalar_lea.vmem %s18, 96
        %v4412 = vld [vmem:[%s4411] sm:$0xff]
        %v4413 = vld [vmem:[%s4411 + $0x8] sm:$0xff]
        %v4415 = vsel %vm3075, %v4153, 0
        %v4418 = vsel %vm3075, %v4156, 0
        %4420 = vmatpush.msra.mxu0 0.0
        %4421 = vmatpush.msra.mxu0 0.0
        %4422 = vmatpush.msra.mxu0 0.0
        %4423 = vmatpush.msra.mxu0 0.0
        %4424 = vmatpush.msra.mxu0 0.0
        %4425 = vmatpush.msra.mxu0 0.0
        %4426 = vmatpush.msra.mxu0 0.0
        %4427 = vmatpush.msra.mxu0 0.0
        %4428 = vmatpush.msra.mxu0 0.0
        %4429 = vmatpush.msra.mxu0 0.0
        %4430 = vmatpush.msra.mxu0 0.0
        %4431 = vmatpush.msra.mxu0 0.0
        %4432 = vmatpush.msra.mxu0 0.0
        %4433 = vmatpush.msra.mxu0 0.0
        %4434 = vmatpush.msra.mxu0 %v4413
        %4435 = vmatpush.msra.mxu0 %v4412
        %4436 = vmatmul.f32.gmra.mxu0 %v4415
        %v4437 = vpop.f32.mrf.mxu0
        %v4438 = vadd.f32 0.0, %v4437
        %4439 = vmatmul.f32.gmra.mxu0 %v4418
        %v4440 = vpop.f32.mrf.mxu0
        %v4441 = vadd.f32 0.0, %v4440
        %4442 = vdwg.mxu0
        %v4443 = vadd.f32 %v4409, %v4438
        %v4444 = vadd.f32 %v4410, %v4441
        %s4445 = scalar_lea.vmem %s18, 112
        %v4446 = vld [vmem:[%s4445] sm:$0xff]
        %v4447 = vld [vmem:[%s4445 + $0x8] sm:$0xff]
        %v4449 = vsel %vm3075, %v4159, 0
        %v4452 = vsel %vm3075, %v4162, 0
        %4454 = vmatpush.msra.mxu0 0.0
        %4455 = vmatpush.msra.mxu0 0.0
        %4456 = vmatpush.msra.mxu0 0.0
        %4457 = vmatpush.msra.mxu0 0.0
        %4458 = vmatpush.msra.mxu0 0.0
        %4459 = vmatpush.msra.mxu0 0.0
        %4460 = vmatpush.msra.mxu0 0.0
        %4461 = vmatpush.msra.mxu0 0.0
        %4462 = vmatpush.msra.mxu0 0.0
        %4463 = vmatpush.msra.mxu0 0.0
        %4464 = vmatpush.msra.mxu0 0.0
        %4465 = vmatpush.msra.mxu0 0.0
        %4466 = vmatpush.msra.mxu0 0.0
        %4467 = vmatpush.msra.mxu0 0.0
        %4468 = vmatpush.msra.mxu0 %v4447
        %4469 = vmatpush.msra.mxu0 %v4446
        %4470 = vmatmul.f32.gmra.mxu0 %v4449
        %v4471 = vpop.f32.mrf.mxu0
        %v4472 = vadd.f32 0.0, %v4471
        %4473 = vmatmul.f32.gmra.mxu0 %v4452
        %v4474 = vpop.f32.mrf.mxu0
        %v4475 = vadd.f32 0.0, %v4474
        %4476 = vdwg.mxu0
        %v4477 = vadd.f32 %v4443, %v4472
        %v4478 = vadd.f32 %v4444, %v4475
        %s4479 = scalar_lea.vmem %s18, 128
        %v4480 = vld [vmem:[%s4479] sm:$0xff]
        %v4481 = vld [vmem:[%s4479 + $0x8] sm:$0xff]
        %v4483 = vsel %vm3075, %v4165, 0
        %v4486 = vsel %vm3075, %v4168, 0
        %4488 = vmatpush.msra.mxu0 0.0
        %4489 = vmatpush.msra.mxu0 0.0
        %4490 = vmatpush.msra.mxu0 0.0
        %4491 = vmatpush.msra.mxu0 0.0
        %4492 = vmatpush.msra.mxu0 0.0
        %4493 = vmatpush.msra.mxu0 0.0
        %4494 = vmatpush.msra.mxu0 0.0
        %4495 = vmatpush.msra.mxu0 0.0
        %4496 = vmatpush.msra.mxu0 0.0
        %4497 = vmatpush.msra.mxu0 0.0
        %4498 = vmatpush.msra.mxu0 0.0
        %4499 = vmatpush.msra.mxu0 0.0
        %4500 = vmatpush.msra.mxu0 0.0
        %4501 = vmatpush.msra.mxu0 0.0
        %4502 = vmatpush.msra.mxu0 %v4481
        %4503 = vmatpush.msra.mxu0 %v4480
        %4504 = vmatmul.f32.gmra.mxu0 %v4483
        %v4505 = vpop.f32.mrf.mxu0
        %v4506 = vadd.f32 0.0, %v4505
        %4507 = vmatmul.f32.gmra.mxu0 %v4486
        %v4508 = vpop.f32.mrf.mxu0
        %v4509 = vadd.f32 0.0, %v4508
        %4510 = vdwg.mxu0
        %v4511 = vadd.f32 %v4477, %v4506
        %v4512 = vadd.f32 %v4478, %v4509
        %s4513 = scalar_lea.vmem %s18, 144
        %v4514 = vld [vmem:[%s4513] sm:$0xff]
        %v4515 = vld [vmem:[%s4513 + $0x8] sm:$0xff]
        %v4517 = vsel %vm3075, %v4171, 0
        %v4520 = vsel %vm3075, %v4174, 0
        %4522 = vmatpush.msra.mxu0 0.0
        %4523 = vmatpush.msra.mxu0 0.0
        %4524 = vmatpush.msra.mxu0 0.0
        %4525 = vmatpush.msra.mxu0 0.0
        %4526 = vmatpush.msra.mxu0 0.0
        %4527 = vmatpush.msra.mxu0 0.0
        %4528 = vmatpush.msra.mxu0 0.0
        %4529 = vmatpush.msra.mxu0 0.0
        %4530 = vmatpush.msra.mxu0 0.0
        %4531 = vmatpush.msra.mxu0 0.0
        %4532 = vmatpush.msra.mxu0 0.0
        %4533 = vmatpush.msra.mxu0 0.0
        %4534 = vmatpush.msra.mxu0 0.0
        %4535 = vmatpush.msra.mxu0 0.0
        %4536 = vmatpush.msra.mxu0 %v4515
        %4537 = vmatpush.msra.mxu0 %v4514
        %4538 = vmatmul.f32.gmra.mxu0 %v4517
        %v4539 = vpop.f32.mrf.mxu0
        %v4540 = vadd.f32 0.0, %v4539
        %4541 = vmatmul.f32.gmra.mxu0 %v4520
        %v4542 = vpop.f32.mrf.mxu0
        %v4543 = vadd.f32 0.0, %v4542
        %4544 = vdwg.mxu0
        %v4545 = vadd.f32 %v4511, %v4540
        %v4546 = vadd.f32 %v4512, %v4543
        %s4547 = scalar_lea.vmem %s18, 160
        %v4548 = vld [vmem:[%s4547] sm:$0xff]
        %v4549 = vld [vmem:[%s4547 + $0x8] sm:$0xff]
        %v4551 = vsel %vm3075, %v4177, 0
        %v4554 = vsel %vm3075, %v4180, 0
        %4556 = vmatpush.msra.mxu0 0.0
        %4557 = vmatpush.msra.mxu0 0.0
        %4558 = vmatpush.msra.mxu0 0.0
        %4559 = vmatpush.msra.mxu0 0.0
        %4560 = vmatpush.msra.mxu0 0.0
        %4561 = vmatpush.msra.mxu0 0.0
        %4562 = vmatpush.msra.mxu0 0.0
        %4563 = vmatpush.msra.mxu0 0.0
        %4564 = vmatpush.msra.mxu0 0.0
        %4565 = vmatpush.msra.mxu0 0.0
        %4566 = vmatpush.msra.mxu0 0.0
        %4567 = vmatpush.msra.mxu0 0.0
        %4568 = vmatpush.msra.mxu0 0.0
        %4569 = vmatpush.msra.mxu0 0.0
        %4570 = vmatpush.msra.mxu0 %v4549
        %4571 = vmatpush.msra.mxu0 %v4548
        %4572 = vmatmul.f32.gmra.mxu0 %v4551
        %v4573 = vpop.f32.mrf.mxu0
        %v4574 = vadd.f32 0.0, %v4573
        %4575 = vmatmul.f32.gmra.mxu0 %v4554
        %v4576 = vpop.f32.mrf.mxu0
        %v4577 = vadd.f32 0.0, %v4576
        %4578 = vdwg.mxu0
        %v4579 = vadd.f32 %v4545, %v4574
        %v4580 = vadd.f32 %v4546, %v4577
        %s4581 = scalar_lea.vmem %s18, 176
        %v4582 = vld [vmem:[%s4581] sm:$0xff]
        %v4583 = vld [vmem:[%s4581 + $0x8] sm:$0xff]
        %v4585 = vsel %vm3075, %v4183, 0
        %v4588 = vsel %vm3075, %v4186, 0
        %4590 = vmatpush.msra.mxu0 0.0
        %4591 = vmatpush.msra.mxu0 0.0
        %4592 = vmatpush.msra.mxu0 0.0
        %4593 = vmatpush.msra.mxu0 0.0
        %4594 = vmatpush.msra.mxu0 0.0
        %4595 = vmatpush.msra.mxu0 0.0
        %4596 = vmatpush.msra.mxu0 0.0
        %4597 = vmatpush.msra.mxu0 0.0
        %4598 = vmatpush.msra.mxu0 0.0
        %4599 = vmatpush.msra.mxu0 0.0
        %4600 = vmatpush.msra.mxu0 0.0
        %4601 = vmatpush.msra.mxu0 0.0
        %4602 = vmatpush.msra.mxu0 0.0
        %4603 = vmatpush.msra.mxu0 0.0
        %4604 = vmatpush.msra.mxu0 %v4583
        %4605 = vmatpush.msra.mxu0 %v4582
        %4606 = vmatmul.f32.gmra.mxu0 %v4585
        %v4607 = vpop.f32.mrf.mxu0
        %v4608 = vadd.f32 0.0, %v4607
        %4609 = vmatmul.f32.gmra.mxu0 %v4588
        %v4610 = vpop.f32.mrf.mxu0
        %v4611 = vadd.f32 0.0, %v4610
        %4612 = vdwg.mxu0
        %v4613 = vadd.f32 %v4579, %v4608
        %v4614 = vadd.f32 %v4580, %v4611
        %s4615 = scalar_lea.vmem %s18, 192
        %v4616 = vld [vmem:[%s4615] sm:$0xff]
        %v4617 = vld [vmem:[%s4615 + $0x8] sm:$0xff]
        %v4619 = vsel %vm3075, %v4189, 0
        %v4622 = vsel %vm3075, %v4192, 0
        %4624 = vmatpush.msra.mxu0 0.0
        %4625 = vmatpush.msra.mxu0 0.0
        %4626 = vmatpush.msra.mxu0 0.0
        %4627 = vmatpush.msra.mxu0 0.0
        %4628 = vmatpush.msra.mxu0 0.0
        %4629 = vmatpush.msra.mxu0 0.0
        %4630 = vmatpush.msra.mxu0 0.0
        %4631 = vmatpush.msra.mxu0 0.0
        %4632 = vmatpush.msra.mxu0 0.0
        %4633 = vmatpush.msra.mxu0 0.0
        %4634 = vmatpush.msra.mxu0 0.0
        %4635 = vmatpush.msra.mxu0 0.0
        %4636 = vmatpush.msra.mxu0 0.0
        %4637 = vmatpush.msra.mxu0 0.0
        %4638 = vmatpush.msra.mxu0 %v4617
        %4639 = vmatpush.msra.mxu0 %v4616
        %4640 = vmatmul.f32.gmra.mxu0 %v4619
        %v4641 = vpop.f32.mrf.mxu0
        %v4642 = vadd.f32 0.0, %v4641
        %4643 = vmatmul.f32.gmra.mxu0 %v4622
        %v4644 = vpop.f32.mrf.mxu0
        %v4645 = vadd.f32 0.0, %v4644
        %4646 = vdwg.mxu0
        %v4647 = vadd.f32 %v4613, %v4642
        %v4648 = vadd.f32 %v4614, %v4645
        %s4649 = scalar_lea.vmem %s18, 208
        %v4650 = vld [vmem:[%s4649] sm:$0xff]
        %v4651 = vld [vmem:[%s4649 + $0x8] sm:$0xff]
        %v4653 = vsel %vm3075, %v4195, 0
        %v4656 = vsel %vm3075, %v4198, 0
        %4658 = vmatpush.msra.mxu0 0.0
        %4659 = vmatpush.msra.mxu0 0.0
        %4660 = vmatpush.msra.mxu0 0.0
        %4661 = vmatpush.msra.mxu0 0.0
        %4662 = vmatpush.msra.mxu0 0.0
        %4663 = vmatpush.msra.mxu0 0.0
        %4664 = vmatpush.msra.mxu0 0.0
        %4665 = vmatpush.msra.mxu0 0.0
        %4666 = vmatpush.msra.mxu0 0.0
        %4667 = vmatpush.msra.mxu0 0.0
        %4668 = vmatpush.msra.mxu0 0.0
        %4669 = vmatpush.msra.mxu0 0.0
        %4670 = vmatpush.msra.mxu0 0.0
        %4671 = vmatpush.msra.mxu0 0.0
        %4672 = vmatpush.msra.mxu0 %v4651
        %4673 = vmatpush.msra.mxu0 %v4650
        %4674 = vmatmul.f32.gmra.mxu0 %v4653
        %v4675 = vpop.f32.mrf.mxu0
        %v4676 = vadd.f32 0.0, %v4675
        %4677 = vmatmul.f32.gmra.mxu0 %v4656
        %v4678 = vpop.f32.mrf.mxu0
        %v4679 = vadd.f32 0.0, %v4678
        %4680 = vdwg.mxu0
        %v4681 = vadd.f32 %v4647, %v4676
        %v4682 = vadd.f32 %v4648, %v4679
        %s4683 = scalar_lea.vmem %s18, 224
        %v4684 = vld [vmem:[%s4683] sm:$0xff]
        %v4685 = vld [vmem:[%s4683 + $0x8] sm:$0xff]
        %v4687 = vsel %vm3075, %v4201, 0
        %v4690 = vsel %vm3075, %v4204, 0
        %4692 = vmatpush.msra.mxu0 0.0
        %4693 = vmatpush.msra.mxu0 0.0
        %4694 = vmatpush.msra.mxu0 0.0
        %4695 = vmatpush.msra.mxu0 0.0
        %4696 = vmatpush.msra.mxu0 0.0
        %4697 = vmatpush.msra.mxu0 0.0
        %4698 = vmatpush.msra.mxu0 0.0
        %4699 = vmatpush.msra.mxu0 0.0
        %4700 = vmatpush.msra.mxu0 0.0
        %4701 = vmatpush.msra.mxu0 0.0
        %4702 = vmatpush.msra.mxu0 0.0
        %4703 = vmatpush.msra.mxu0 0.0
        %4704 = vmatpush.msra.mxu0 0.0
        %4705 = vmatpush.msra.mxu0 0.0
        %4706 = vmatpush.msra.mxu0 %v4685
        %4707 = vmatpush.msra.mxu0 %v4684
        %4708 = vmatmul.f32.gmra.mxu0 %v4687
        %v4709 = vpop.f32.mrf.mxu0
        %v4710 = vadd.f32 0.0, %v4709
        %4711 = vmatmul.f32.gmra.mxu0 %v4690
        %v4712 = vpop.f32.mrf.mxu0
        %v4713 = vadd.f32 0.0, %v4712
        %4714 = vdwg.mxu0
        %v4715 = vadd.f32 %v4681, %v4710
        %v4716 = vadd.f32 %v4682, %v4713
        %s4717 = scalar_lea.vmem %s18, 240
        %v4718 = vld [vmem:[%s4717] sm:$0xff]
        %v4719 = vld [vmem:[%s4717 + $0x8] sm:$0xff]
        %v4721 = vsel %vm3075, %v4207, 0
        %v4724 = vsel %vm3075, %v4210, 0
        %4726 = vmatpush.msra.mxu0 0.0
        %4727 = vmatpush.msra.mxu0 0.0
        %4728 = vmatpush.msra.mxu0 0.0
        %4729 = vmatpush.msra.mxu0 0.0
        %4730 = vmatpush.msra.mxu0 0.0
        %4731 = vmatpush.msra.mxu0 0.0
        %4732 = vmatpush.msra.mxu0 0.0
        %4733 = vmatpush.msra.mxu0 0.0
        %4734 = vmatpush.msra.mxu0 0.0
        %4735 = vmatpush.msra.mxu0 0.0
        %4736 = vmatpush.msra.mxu0 0.0
        %4737 = vmatpush.msra.mxu0 0.0
        %4738 = vmatpush.msra.mxu0 0.0
        %4739 = vmatpush.msra.mxu0 0.0
        %4740 = vmatpush.msra.mxu0 %v4719
        %4741 = vmatpush.msra.mxu0 %v4718
        %4742 = vmatmul.f32.gmra.mxu0 %v4721
        %v4743 = vpop.f32.mrf.mxu0
        %v4744 = vadd.f32 0.0, %v4743
        %4745 = vmatmul.f32.gmra.mxu0 %v4724
        %v4746 = vpop.f32.mrf.mxu0
        %v4747 = vadd.f32 0.0, %v4746
        %4748 = vdwg.mxu0
        %v4749 = vadd.f32 %v4715, %v4744
        %v4750 = vadd.f32 %v4716, %v4747
        %v4751 = vld [vmem:[%s17] sm:$0xff]
        %v4752 = vld [vmem:[%s17 + $0x8] sm:$0xff]
        %4754 = vset.pattern.permute.xlu0 0
        %4755 = vperm.xlu0 %4754, %v4751
        %v4756 = vpop.permute.xlu0 %4755
        %4759 = vset.pattern.permute.xlu0 0
        %4760 = vperm.xlu0 %4759, %v4752
        %v4761 = vpop.permute.xlu0 %4760
        %v4763 = vadd.f32 %v4749, %v4756
        %v4764 = vadd.f32 %v4750, %v4761
        %vm4765 = vcmp.ge.f32.partialorder %v4763, 0.0
        %vm4766 = vcmp.ge.f32.partialorder %v4764, 0.0
        %v4767 = vmul.f32 %v4763, 0.2
        %v4768 = vmul.f32 %v4764, 0.2
        %v4769 = vsel %vm4765, %v4763, %v4767
        %v4770 = vsel %vm4766, %v4764, %v4768
        %v4771 = vld [vmem:[%s19] sm:$0xff]
        %v4772 = vld [vmem:[%s19 + $0x8] sm:$0xff]
        %v4773 = vld [vmem:[%s19 + $0x10] sm:$0xff]
        %v4774 = vld [vmem:[%s19 + $0x18] sm:$0xff]
        %v4775 = vld [vmem:[%s19 + $0x20] sm:$0xff]
        %v4776 = vld [vmem:[%s19 + $0x28] sm:$0xff]
        %v4777 = vld [vmem:[%s19 + $0x30] sm:$0xff]
        %v4778 = vld [vmem:[%s19 + $0x38] sm:$0xff]
        %v4779 = vld [vmem:[%s19 + $0x40] sm:$0xff]
        %v4780 = vld [vmem:[%s19 + $0x48] sm:$0xff]
        %v4781 = vld [vmem:[%s19 + $0x50] sm:$0xff]
        %v4782 = vld [vmem:[%s19 + $0x58] sm:$0xff]
        %v4783 = vld [vmem:[%s19 + $0x60] sm:$0xff]
        %v4784 = vld [vmem:[%s19 + $0x68] sm:$0xff]
        %v4785 = vld [vmem:[%s19 + $0x70] sm:$0xff]
        %v4786 = vld [vmem:[%s19 + $0x78] sm:$0xff]
        %v4788 = vsel %vm3075, %v4771, 0
        %v4791 = vsel %vm3075, %v4772, 0
        %v4794 = vsel %vm3075, %v4773, 0
        %v4797 = vsel %vm3075, %v4774, 0
        %v4800 = vsel %vm3075, %v4775, 0
        %v4803 = vsel %vm3075, %v4776, 0
        %v4806 = vsel %vm3075, %v4777, 0
        %v4809 = vsel %vm3075, %v4778, 0
        %v4812 = vsel %vm3075, %v4779, 0
        %v4815 = vsel %vm3075, %v4780, 0
        %v4818 = vsel %vm3075, %v4781, 0
        %v4821 = vsel %vm3075, %v4782, 0
        %v4824 = vsel %vm3075, %v4783, 0
        %v4827 = vsel %vm3075, %v4784, 0
        %v4830 = vsel %vm3075, %v4785, 0
        %v4833 = vsel %vm3075, %v4786, 0
        %4835 = vmatpush.msra.mxu0 0.0
        %4836 = vmatpush.msra.mxu0 0.0
        %4837 = vmatpush.msra.mxu0 0.0
        %4838 = vmatpush.msra.mxu0 0.0
        %4839 = vmatpush.msra.mxu0 0.0
        %4840 = vmatpush.msra.mxu0 0.0
        %4841 = vmatpush.msra.mxu0 0.0
        %4842 = vmatpush.msra.mxu0 0.0
        %4843 = vmatpush.msra.mxu0 0.0
        %4844 = vmatpush.msra.mxu0 0.0
        %4845 = vmatpush.msra.mxu0 0.0
        %4846 = vmatpush.msra.mxu0 0.0
        %4847 = vmatpush.msra.mxu0 0.0
        %4848 = vmatpush.msra.mxu0 0.0
        %4849 = vmatpush.msra.mxu0 %v4770
        %4850 = vmatpush.msra.mxu0 %v4769
        %4851 = vmatmul.f32.gmra.mxu0 %v4788
        %v4852 = vpop.f32.mrf.mxu0
        %v4853 = vadd.f32 0.0, %v4852
        %4854 = vmatmul.f32.gmra.mxu0 %v4791
        %v4855 = vpop.f32.mrf.mxu0
        %v4856 = vadd.f32 0.0, %v4855
        %4857 = vmatmul.f32.gmra.mxu0 %v4794
        %v4858 = vpop.f32.mrf.mxu0
        %v4859 = vadd.f32 0.0, %v4858
        %4860 = vmatmul.f32.gmra.mxu0 %v4797
        %v4861 = vpop.f32.mrf.mxu0
        %v4862 = vadd.f32 0.0, %v4861
        %4863 = vmatmul.f32.gmra.mxu0 %v4800
        %v4864 = vpop.f32.mrf.mxu0
        %v4865 = vadd.f32 0.0, %v4864
        %4866 = vmatmul.f32.gmra.mxu0 %v4803
        %v4867 = vpop.f32.mrf.mxu0
        %v4868 = vadd.f32 0.0, %v4867
        %4869 = vmatmul.f32.gmra.mxu0 %v4806
        %v4870 = vpop.f32.mrf.mxu0
        %v4871 = vadd.f32 0.0, %v4870
        %4872 = vmatmul.f32.gmra.mxu0 %v4809
        %v4873 = vpop.f32.mrf.mxu0
        %v4874 = vadd.f32 0.0, %v4873
        %4875 = vmatmul.f32.gmra.mxu0 %v4812
        %v4876 = vpop.f32.mrf.mxu0
        %v4877 = vadd.f32 0.0, %v4876
        %4878 = vmatmul.f32.gmra.mxu0 %v4815
        %v4879 = vpop.f32.mrf.mxu0
        %v4880 = vadd.f32 0.0, %v4879
        %4881 = vmatmul.f32.gmra.mxu0 %v4818
        %v4882 = vpop.f32.mrf.mxu0
        %v4883 = vadd.f32 0.0, %v4882
        %4884 = vmatmul.f32.gmra.mxu0 %v4821
        %v4885 = vpop.f32.mrf.mxu0
        %v4886 = vadd.f32 0.0, %v4885
        %4887 = vmatmul.f32.gmra.mxu0 %v4824
        %v4888 = vpop.f32.mrf.mxu0
        %v4889 = vadd.f32 0.0, %v4888
        %4890 = vmatmul.f32.gmra.mxu0 %v4827
        %v4891 = vpop.f32.mrf.mxu0
        %v4892 = vadd.f32 0.0, %v4891
        %4893 = vmatmul.f32.gmra.mxu0 %v4830
        %v4894 = vpop.f32.mrf.mxu0
        %v4895 = vadd.f32 0.0, %v4894
        %4896 = vmatmul.f32.gmra.mxu0 %v4833
        %v4897 = vpop.f32.mrf.mxu0
        %v4898 = vadd.f32 0.0, %v4897
        %4899 = vdwg.mxu0
        %v4900 = vld [vmem:[#allocation4] sm:$0xff]
        %v4901 = vld [vmem:[#allocation4 + $0x8] sm:$0xff]
        %v4902 = vld [vmem:[#allocation4 + $0x10] sm:$0xff]
        %v4903 = vld [vmem:[#allocation4 + $0x18] sm:$0xff]
        %v4904 = vld [vmem:[#allocation4 + $0x20] sm:$0xff]
        %v4905 = vld [vmem:[#allocation4 + $0x28] sm:$0xff]
        %v4906 = vld [vmem:[#allocation4 + $0x30] sm:$0xff]
        %v4907 = vld [vmem:[#allocation4 + $0x38] sm:$0xff]
        %v4908 = vld [vmem:[#allocation4 + $0x40] sm:$0xff]
        %v4909 = vld [vmem:[#allocation4 + $0x48] sm:$0xff]
        %v4910 = vld [vmem:[#allocation4 + $0x50] sm:$0xff]
        %v4911 = vld [vmem:[#allocation4 + $0x58] sm:$0xff]
        %v4912 = vld [vmem:[#allocation4 + $0x60] sm:$0xff]
        %v4913 = vld [vmem:[#allocation4 + $0x68] sm:$0xff]
        %v4914 = vld [vmem:[#allocation4 + $0x70] sm:$0xff]
        %v4915 = vld [vmem:[#allocation4 + $0x78] sm:$0xff]
        %s4916 = scalar_lea.vmem [#allocation4], 128
        %v4917 = vld [vmem:[%s4916] sm:$0xff]
        %v4918 = vld [vmem:[%s4916 + $0x8] sm:$0xff]
        %v4919 = vld [vmem:[%s4916 + $0x10] sm:$0xff]
        %v4920 = vld [vmem:[%s4916 + $0x18] sm:$0xff]
        %v4921 = vld [vmem:[%s4916 + $0x20] sm:$0xff]
        %v4922 = vld [vmem:[%s4916 + $0x28] sm:$0xff]
        %v4923 = vld [vmem:[%s4916 + $0x30] sm:$0xff]
        %v4924 = vld [vmem:[%s4916 + $0x38] sm:$0xff]
        %v4925 = vld [vmem:[%s4916 + $0x40] sm:$0xff]
        %v4926 = vld [vmem:[%s4916 + $0x48] sm:$0xff]
        %v4927 = vld [vmem:[%s4916 + $0x50] sm:$0xff]
        %v4928 = vld [vmem:[%s4916 + $0x58] sm:$0xff]
        %v4929 = vld [vmem:[%s4916 + $0x60] sm:$0xff]
        %v4930 = vld [vmem:[%s4916 + $0x68] sm:$0xff]
        %v4931 = vld [vmem:[%s4916 + $0x70] sm:$0xff]
        %v4932 = vld [vmem:[%s4916 + $0x78] sm:$0xff]
        %v4934 = vsel %vm3326, %v4856, 0
        %4936 = vmatpush.msra.mxu0 0.0
        %4937 = vmatpush.msra.mxu0 0.0
        %4938 = vmatpush.msra.mxu0 0.0
        %4939 = vmatpush.msra.mxu0 0.0
        %4940 = vmatpush.msra.mxu0 0.0
        %4941 = vmatpush.msra.mxu0 0.0
        %4942 = vmatpush.msra.mxu0 0.0
        %4943 = vmatpush.msra.mxu0 0.0
        %4944 = vmatpush.msra.mxu0 %v4931
        %4945 = vmatpush.msra.mxu0 %v4929
        %4946 = vmatpush.msra.mxu0 %v4927
        %4947 = vmatpush.msra.mxu0 %v4925
        %4948 = vmatpush.msra.mxu0 %v4923
        %4949 = vmatpush.msra.mxu0 %v4921
        %4950 = vmatpush.msra.mxu0 %v4919
        %4951 = vmatpush.msra.mxu0 %v4917
        %4952 = vmatmul.f32.gmra.mxu0 %v4934
        %v4953 = vpop.f32.mrf.mxu0
        %v4954 = vadd.f32 0.0, %v4953
        %4955 = vdwg.mxu0
        %4956 = vmatpush.msra.mxu0 0.0
        %4957 = vmatpush.msra.mxu0 0.0
        %4958 = vmatpush.msra.mxu0 0.0
        %4959 = vmatpush.msra.mxu0 0.0
        %4960 = vmatpush.msra.mxu0 0.0
        %4961 = vmatpush.msra.mxu0 0.0
        %4962 = vmatpush.msra.mxu0 0.0
        %4963 = vmatpush.msra.mxu0 0.0
        %4964 = vmatpush.msra.mxu0 %v4932
        %4965 = vmatpush.msra.mxu0 %v4930
        %4966 = vmatpush.msra.mxu0 %v4928
        %4967 = vmatpush.msra.mxu0 %v4926
        %4968 = vmatpush.msra.mxu0 %v4924
        %4969 = vmatpush.msra.mxu0 %v4922
        %4970 = vmatpush.msra.mxu0 %v4920
        %4971 = vmatpush.msra.mxu0 %v4918
        %4972 = vmatmul.f32.gmra.mxu0 %v4934
        %v4973 = vpop.f32.mrf.mxu0
        %v4974 = vadd.f32 0.0, %v4973
        %4975 = vdwg.mxu0
        %v4977 = vsel %vm3326, %v4853, 0
        %4979 = vmatpush.msra.mxu0 0.0
        %4980 = vmatpush.msra.mxu0 0.0
        %4981 = vmatpush.msra.mxu0 0.0
        %4982 = vmatpush.msra.mxu0 0.0
        %4983 = vmatpush.msra.mxu0 0.0
        %4984 = vmatpush.msra.mxu0 0.0
        %4985 = vmatpush.msra.mxu0 0.0
        %4986 = vmatpush.msra.mxu0 0.0
        %4987 = vmatpush.msra.mxu0 %v4914
        %4988 = vmatpush.msra.mxu0 %v4912
        %4989 = vmatpush.msra.mxu0 %v4910
        %4990 = vmatpush.msra.mxu0 %v4908
        %4991 = vmatpush.msra.mxu0 %v4906
        %4992 = vmatpush.msra.mxu0 %v4904
        %4993 = vmatpush.msra.mxu0 %v4902
        %4994 = vmatpush.msra.mxu0 %v4900
        %4995 = vmatmul.f32.gmra.mxu0 %v4977
        %v4996 = vpop.f32.mrf.mxu0
        %v4997 = vadd.f32 %v4954, %v4996
        %4998 = vdwg.mxu0
        %4999 = vmatpush.msra.mxu0 0.0
        %5000 = vmatpush.msra.mxu0 0.0
        %5001 = vmatpush.msra.mxu0 0.0
        %5002 = vmatpush.msra.mxu0 0.0
        %5003 = vmatpush.msra.mxu0 0.0
        %5004 = vmatpush.msra.mxu0 0.0
        %5005 = vmatpush.msra.mxu0 0.0
        %5006 = vmatpush.msra.mxu0 0.0
        %5007 = vmatpush.msra.mxu0 %v4915
        %5008 = vmatpush.msra.mxu0 %v4913
        %5009 = vmatpush.msra.mxu0 %v4911
        %5010 = vmatpush.msra.mxu0 %v4909
        %5011 = vmatpush.msra.mxu0 %v4907
        %5012 = vmatpush.msra.mxu0 %v4905
        %5013 = vmatpush.msra.mxu0 %v4903
        %5014 = vmatpush.msra.mxu0 %v4901
        %5015 = vmatmul.f32.gmra.mxu0 %v4977
        %v5016 = vpop.f32.mrf.mxu0
        %v5017 = vadd.f32 %v4974, %v5016
        %5018 = vdwg.mxu0
        %s5019 = scalar_lea.vmem [#allocation4], 256
        %v5020 = vld [vmem:[%s5019] sm:$0xff]
        %v5021 = vld [vmem:[%s5019 + $0x8] sm:$0xff]
        %v5022 = vld [vmem:[%s5019 + $0x10] sm:$0xff]
        %v5023 = vld [vmem:[%s5019 + $0x18] sm:$0xff]
        %v5024 = vld [vmem:[%s5019 + $0x20] sm:$0xff]
        %v5025 = vld [vmem:[%s5019 + $0x28] sm:$0xff]
        %v5026 = vld [vmem:[%s5019 + $0x30] sm:$0xff]
        %v5027 = vld [vmem:[%s5019 + $0x38] sm:$0xff]
        %v5028 = vld [vmem:[%s5019 + $0x40] sm:$0xff]
        %v5029 = vld [vmem:[%s5019 + $0x48] sm:$0xff]
        %v5030 = vld [vmem:[%s5019 + $0x50] sm:$0xff]
        %v5031 = vld [vmem:[%s5019 + $0x58] sm:$0xff]
        %v5032 = vld [vmem:[%s5019 + $0x60] sm:$0xff]
        %v5033 = vld [vmem:[%s5019 + $0x68] sm:$0xff]
        %v5034 = vld [vmem:[%s5019 + $0x70] sm:$0xff]
        %v5035 = vld [vmem:[%s5019 + $0x78] sm:$0xff]
        %v5037 = vsel %vm3326, %v4859, 0
        %5039 = vmatpush.msra.mxu0 0.0
        %5040 = vmatpush.msra.mxu0 0.0
        %5041 = vmatpush.msra.mxu0 0.0
        %5042 = vmatpush.msra.mxu0 0.0
        %5043 = vmatpush.msra.mxu0 0.0
        %5044 = vmatpush.msra.mxu0 0.0
        %5045 = vmatpush.msra.mxu0 0.0
        %5046 = vmatpush.msra.mxu0 0.0
        %5047 = vmatpush.msra.mxu0 %v5034
        %5048 = vmatpush.msra.mxu0 %v5032
        %5049 = vmatpush.msra.mxu0 %v5030
        %5050 = vmatpush.msra.mxu0 %v5028
        %5051 = vmatpush.msra.mxu0 %v5026
        %5052 = vmatpush.msra.mxu0 %v5024
        %5053 = vmatpush.msra.mxu0 %v5022
        %5054 = vmatpush.msra.mxu0 %v5020
        %5055 = vmatmul.f32.gmra.mxu0 %v5037
        %v5056 = vpop.f32.mrf.mxu0
        %v5057 = vadd.f32 0.0, %v5056
        %5058 = vdwg.mxu0
        %5059 = vmatpush.msra.mxu0 0.0
        %5060 = vmatpush.msra.mxu0 0.0
        %5061 = vmatpush.msra.mxu0 0.0
        %5062 = vmatpush.msra.mxu0 0.0
        %5063 = vmatpush.msra.mxu0 0.0
        %5064 = vmatpush.msra.mxu0 0.0
        %5065 = vmatpush.msra.mxu0 0.0
        %5066 = vmatpush.msra.mxu0 0.0
        %5067 = vmatpush.msra.mxu0 %v5035
        %5068 = vmatpush.msra.mxu0 %v5033
        %5069 = vmatpush.msra.mxu0 %v5031
        %5070 = vmatpush.msra.mxu0 %v5029
        %5071 = vmatpush.msra.mxu0 %v5027
        %5072 = vmatpush.msra.mxu0 %v5025
        %5073 = vmatpush.msra.mxu0 %v5023
        %5074 = vmatpush.msra.mxu0 %v5021
        %5075 = vmatmul.f32.gmra.mxu0 %v5037
        %v5076 = vpop.f32.mrf.mxu0
        %v5077 = vadd.f32 0.0, %v5076
        %5078 = vdwg.mxu0
        %v5079 = vadd.f32 %v4997, %v5057
        %v5080 = vadd.f32 %v5017, %v5077
        %s5081 = scalar_lea.vmem [#allocation4], 384
        %v5082 = vld [vmem:[%s5081] sm:$0xff]
        %v5083 = vld [vmem:[%s5081 + $0x8] sm:$0xff]
        %v5084 = vld [vmem:[%s5081 + $0x10] sm:$0xff]
        %v5085 = vld [vmem:[%s5081 + $0x18] sm:$0xff]
        %v5086 = vld [vmem:[%s5081 + $0x20] sm:$0xff]
        %v5087 = vld [vmem:[%s5081 + $0x28] sm:$0xff]
        %v5088 = vld [vmem:[%s5081 + $0x30] sm:$0xff]
        %v5089 = vld [vmem:[%s5081 + $0x38] sm:$0xff]
        %v5090 = vld [vmem:[%s5081 + $0x40] sm:$0xff]
        %v5091 = vld [vmem:[%s5081 + $0x48] sm:$0xff]
        %v5092 = vld [vmem:[%s5081 + $0x50] sm:$0xff]
        %v5093 = vld [vmem:[%s5081 + $0x58] sm:$0xff]
        %v5094 = vld [vmem:[%s5081 + $0x60] sm:$0xff]
        %v5095 = vld [vmem:[%s5081 + $0x68] sm:$0xff]
        %v5096 = vld [vmem:[%s5081 + $0x70] sm:$0xff]
        %v5097 = vld [vmem:[%s5081 + $0x78] sm:$0xff]
        %v5099 = vsel %vm3326, %v4862, 0
        %5101 = vmatpush.msra.mxu0 0.0
        %5102 = vmatpush.msra.mxu0 0.0
        %5103 = vmatpush.msra.mxu0 0.0
        %5104 = vmatpush.msra.mxu0 0.0
        %5105 = vmatpush.msra.mxu0 0.0
        %5106 = vmatpush.msra.mxu0 0.0
        %5107 = vmatpush.msra.mxu0 0.0
        %5108 = vmatpush.msra.mxu0 0.0
        %5109 = vmatpush.msra.mxu0 %v5096
        %5110 = vmatpush.msra.mxu0 %v5094
        %5111 = vmatpush.msra.mxu0 %v5092
        %5112 = vmatpush.msra.mxu0 %v5090
        %5113 = vmatpush.msra.mxu0 %v5088
        %5114 = vmatpush.msra.mxu0 %v5086
        %5115 = vmatpush.msra.mxu0 %v5084
        %5116 = vmatpush.msra.mxu0 %v5082
        %5117 = vmatmul.f32.gmra.mxu0 %v5099
        %v5118 = vpop.f32.mrf.mxu0
        %v5119 = vadd.f32 0.0, %v5118
        %5120 = vdwg.mxu0
        %5121 = vmatpush.msra.mxu0 0.0
        %5122 = vmatpush.msra.mxu0 0.0
        %5123 = vmatpush.msra.mxu0 0.0
        %5124 = vmatpush.msra.mxu0 0.0
        %5125 = vmatpush.msra.mxu0 0.0
        %5126 = vmatpush.msra.mxu0 0.0
        %5127 = vmatpush.msra.mxu0 0.0
        %5128 = vmatpush.msra.mxu0 0.0
        %5129 = vmatpush.msra.mxu0 %v5097
        %5130 = vmatpush.msra.mxu0 %v5095
        %5131 = vmatpush.msra.mxu0 %v5093
        %5132 = vmatpush.msra.mxu0 %v5091
        %5133 = vmatpush.msra.mxu0 %v5089
        %5134 = vmatpush.msra.mxu0 %v5087
        %5135 = vmatpush.msra.mxu0 %v5085
        %5136 = vmatpush.msra.mxu0 %v5083
        %5137 = vmatmul.f32.gmra.mxu0 %v5099
        %v5138 = vpop.f32.mrf.mxu0
        %v5139 = vadd.f32 0.0, %v5138
        %5140 = vdwg.mxu0
        %v5141 = vadd.f32 %v5079, %v5119
        %v5142 = vadd.f32 %v5080, %v5139
        %s5143 = scalar_lea.vmem [#allocation4], 512
        %v5144 = vld [vmem:[%s5143] sm:$0xff]
        %v5145 = vld [vmem:[%s5143 + $0x8] sm:$0xff]
        %v5146 = vld [vmem:[%s5143 + $0x10] sm:$0xff]
        %v5147 = vld [vmem:[%s5143 + $0x18] sm:$0xff]
        %v5148 = vld [vmem:[%s5143 + $0x20] sm:$0xff]
        %v5149 = vld [vmem:[%s5143 + $0x28] sm:$0xff]
        %v5150 = vld [vmem:[%s5143 + $0x30] sm:$0xff]
        %v5151 = vld [vmem:[%s5143 + $0x38] sm:$0xff]
        %v5152 = vld [vmem:[%s5143 + $0x40] sm:$0xff]
        %v5153 = vld [vmem:[%s5143 + $0x48] sm:$0xff]
        %v5154 = vld [vmem:[%s5143 + $0x50] sm:$0xff]
        %v5155 = vld [vmem:[%s5143 + $0x58] sm:$0xff]
        %v5156 = vld [vmem:[%s5143 + $0x60] sm:$0xff]
        %v5157 = vld [vmem:[%s5143 + $0x68] sm:$0xff]
        %v5158 = vld [vmem:[%s5143 + $0x70] sm:$0xff]
        %v5159 = vld [vmem:[%s5143 + $0x78] sm:$0xff]
        %v5161 = vsel %vm3326, %v4865, 0
        %5163 = vmatpush.msra.mxu0 0.0
        %5164 = vmatpush.msra.mxu0 0.0
        %5165 = vmatpush.msra.mxu0 0.0
        %5166 = vmatpush.msra.mxu0 0.0
        %5167 = vmatpush.msra.mxu0 0.0
        %5168 = vmatpush.msra.mxu0 0.0
        %5169 = vmatpush.msra.mxu0 0.0
        %5170 = vmatpush.msra.mxu0 0.0
        %5171 = vmatpush.msra.mxu0 %v5158
        %5172 = vmatpush.msra.mxu0 %v5156
        %5173 = vmatpush.msra.mxu0 %v5154
        %5174 = vmatpush.msra.mxu0 %v5152
        %5175 = vmatpush.msra.mxu0 %v5150
        %5176 = vmatpush.msra.mxu0 %v5148
        %5177 = vmatpush.msra.mxu0 %v5146
        %5178 = vmatpush.msra.mxu0 %v5144
        %5179 = vmatmul.f32.gmra.mxu0 %v5161
        %v5180 = vpop.f32.mrf.mxu0
        %v5181 = vadd.f32 0.0, %v5180
        %5182 = vdwg.mxu0
        %5183 = vmatpush.msra.mxu0 0.0
        %5184 = vmatpush.msra.mxu0 0.0
        %5185 = vmatpush.msra.mxu0 0.0
        %5186 = vmatpush.msra.mxu0 0.0
        %5187 = vmatpush.msra.mxu0 0.0
        %5188 = vmatpush.msra.mxu0 0.0
        %5189 = vmatpush.msra.mxu0 0.0
        %5190 = vmatpush.msra.mxu0 0.0
        %5191 = vmatpush.msra.mxu0 %v5159
        %5192 = vmatpush.msra.mxu0 %v5157
        %5193 = vmatpush.msra.mxu0 %v5155
        %5194 = vmatpush.msra.mxu0 %v5153
        %5195 = vmatpush.msra.mxu0 %v5151
        %5196 = vmatpush.msra.mxu0 %v5149
        %5197 = vmatpush.msra.mxu0 %v5147
        %5198 = vmatpush.msra.mxu0 %v5145
        %5199 = vmatmul.f32.gmra.mxu0 %v5161
        %v5200 = vpop.f32.mrf.mxu0
        %v5201 = vadd.f32 0.0, %v5200
        %5202 = vdwg.mxu0
        %v5203 = vadd.f32 %v5141, %v5181
        %v5204 = vadd.f32 %v5142, %v5201
        %s5205 = scalar_lea.vmem [#allocation4], 640
        %v5206 = vld [vmem:[%s5205] sm:$0xff]
        %v5207 = vld [vmem:[%s5205 + $0x8] sm:$0xff]
        %v5208 = vld [vmem:[%s5205 + $0x10] sm:$0xff]
        %v5209 = vld [vmem:[%s5205 + $0x18] sm:$0xff]
        %v5210 = vld [vmem:[%s5205 + $0x20] sm:$0xff]
        %v5211 = vld [vmem:[%s5205 + $0x28] sm:$0xff]
        %v5212 = vld [vmem:[%s5205 + $0x30] sm:$0xff]
        %v5213 = vld [vmem:[%s5205 + $0x38] sm:$0xff]
        %v5214 = vld [vmem:[%s5205 + $0x40] sm:$0xff]
        %v5215 = vld [vmem:[%s5205 + $0x48] sm:$0xff]
        %v5216 = vld [vmem:[%s5205 + $0x50] sm:$0xff]
        %v5217 = vld [vmem:[%s5205 + $0x58] sm:$0xff]
        %v5218 = vld [vmem:[%s5205 + $0x60] sm:$0xff]
        %v5219 = vld [vmem:[%s5205 + $0x68] sm:$0xff]
        %v5220 = vld [vmem:[%s5205 + $0x70] sm:$0xff]
        %v5221 = vld [vmem:[%s5205 + $0x78] sm:$0xff]
        %v5223 = vsel %vm3326, %v4868, 0
        %5225 = vmatpush.msra.mxu0 0.0
        %5226 = vmatpush.msra.mxu0 0.0
        %5227 = vmatpush.msra.mxu0 0.0
        %5228 = vmatpush.msra.mxu0 0.0
        %5229 = vmatpush.msra.mxu0 0.0
        %5230 = vmatpush.msra.mxu0 0.0
        %5231 = vmatpush.msra.mxu0 0.0
        %5232 = vmatpush.msra.mxu0 0.0
        %5233 = vmatpush.msra.mxu0 %v5220
        %5234 = vmatpush.msra.mxu0 %v5218
        %5235 = vmatpush.msra.mxu0 %v5216
        %5236 = vmatpush.msra.mxu0 %v5214
        %5237 = vmatpush.msra.mxu0 %v5212
        %5238 = vmatpush.msra.mxu0 %v5210
        %5239 = vmatpush.msra.mxu0 %v5208
        %5240 = vmatpush.msra.mxu0 %v5206
        %5241 = vmatmul.f32.gmra.mxu0 %v5223
        %v5242 = vpop.f32.mrf.mxu0
        %v5243 = vadd.f32 0.0, %v5242
        %5244 = vdwg.mxu0
        %5245 = vmatpush.msra.mxu0 0.0
        %5246 = vmatpush.msra.mxu0 0.0
        %5247 = vmatpush.msra.mxu0 0.0
        %5248 = vmatpush.msra.mxu0 0.0
        %5249 = vmatpush.msra.mxu0 0.0
        %5250 = vmatpush.msra.mxu0 0.0
        %5251 = vmatpush.msra.mxu0 0.0
        %5252 = vmatpush.msra.mxu0 0.0
        %5253 = vmatpush.msra.mxu0 %v5221
        %5254 = vmatpush.msra.mxu0 %v5219
        %5255 = vmatpush.msra.mxu0 %v5217
        %5256 = vmatpush.msra.mxu0 %v5215
        %5257 = vmatpush.msra.mxu0 %v5213
        %5258 = vmatpush.msra.mxu0 %v5211
        %5259 = vmatpush.msra.mxu0 %v5209
        %5260 = vmatpush.msra.mxu0 %v5207
        %5261 = vmatmul.f32.gmra.mxu0 %v5223
        %v5262 = vpop.f32.mrf.mxu0
        %v5263 = vadd.f32 0.0, %v5262
        %5264 = vdwg.mxu0
        %v5265 = vadd.f32 %v5203, %v5243
        %v5266 = vadd.f32 %v5204, %v5263
        %s5267 = scalar_lea.vmem [#allocation4], 768
        %v5268 = vld [vmem:[%s5267] sm:$0xff]
        %v5269 = vld [vmem:[%s5267 + $0x8] sm:$0xff]
        %v5270 = vld [vmem:[%s5267 + $0x10] sm:$0xff]
        %v5271 = vld [vmem:[%s5267 + $0x18] sm:$0xff]
        %v5272 = vld [vmem:[%s5267 + $0x20] sm:$0xff]
        %v5273 = vld [vmem:[%s5267 + $0x28] sm:$0xff]
        %v5274 = vld [vmem:[%s5267 + $0x30] sm:$0xff]
        %v5275 = vld [vmem:[%s5267 + $0x38] sm:$0xff]
        %v5276 = vld [vmem:[%s5267 + $0x40] sm:$0xff]
        %v5277 = vld [vmem:[%s5267 + $0x48] sm:$0xff]
        %v5278 = vld [vmem:[%s5267 + $0x50] sm:$0xff]
        %v5279 = vld [vmem:[%s5267 + $0x58] sm:$0xff]
        %v5280 = vld [vmem:[%s5267 + $0x60] sm:$0xff]
        %v5281 = vld [vmem:[%s5267 + $0x68] sm:$0xff]
        %v5282 = vld [vmem:[%s5267 + $0x70] sm:$0xff]
        %v5283 = vld [vmem:[%s5267 + $0x78] sm:$0xff]
        %v5285 = vsel %vm3326, %v4871, 0
        %5287 = vmatpush.msra.mxu0 0.0
        %5288 = vmatpush.msra.mxu0 0.0
        %5289 = vmatpush.msra.mxu0 0.0
        %5290 = vmatpush.msra.mxu0 0.0
        %5291 = vmatpush.msra.mxu0 0.0
        %5292 = vmatpush.msra.mxu0 0.0
        %5293 = vmatpush.msra.mxu0 0.0
        %5294 = vmatpush.msra.mxu0 0.0
        %5295 = vmatpush.msra.mxu0 %v5282
        %5296 = vmatpush.msra.mxu0 %v5280
        %5297 = vmatpush.msra.mxu0 %v5278
        %5298 = vmatpush.msra.mxu0 %v5276
        %5299 = vmatpush.msra.mxu0 %v5274
        %5300 = vmatpush.msra.mxu0 %v5272
        %5301 = vmatpush.msra.mxu0 %v5270
        %5302 = vmatpush.msra.mxu0 %v5268
        %5303 = vmatmul.f32.gmra.mxu0 %v5285
        %v5304 = vpop.f32.mrf.mxu0
        %v5305 = vadd.f32 0.0, %v5304
        %5306 = vdwg.mxu0
        %5307 = vmatpush.msra.mxu0 0.0
        %5308 = vmatpush.msra.mxu0 0.0
        %5309 = vmatpush.msra.mxu0 0.0
        %5310 = vmatpush.msra.mxu0 0.0
        %5311 = vmatpush.msra.mxu0 0.0
        %5312 = vmatpush.msra.mxu0 0.0
        %5313 = vmatpush.msra.mxu0 0.0
        %5314 = vmatpush.msra.mxu0 0.0
        %5315 = vmatpush.msra.mxu0 %v5283
        %5316 = vmatpush.msra.mxu0 %v5281
        %5317 = vmatpush.msra.mxu0 %v5279
        %5318 = vmatpush.msra.mxu0 %v5277
        %5319 = vmatpush.msra.mxu0 %v5275
        %5320 = vmatpush.msra.mxu0 %v5273
        %5321 = vmatpush.msra.mxu0 %v5271
        %5322 = vmatpush.msra.mxu0 %v5269
        %5323 = vmatmul.f32.gmra.mxu0 %v5285
        %v5324 = vpop.f32.mrf.mxu0
        %v5325 = vadd.f32 0.0, %v5324
        %5326 = vdwg.mxu0
        %v5327 = vadd.f32 %v5265, %v5305
        %v5328 = vadd.f32 %v5266, %v5325
        %s5329 = scalar_lea.vmem [#allocation4], 896
        %v5330 = vld [vmem:[%s5329] sm:$0xff]
        %v5331 = vld [vmem:[%s5329 + $0x8] sm:$0xff]
        %v5332 = vld [vmem:[%s5329 + $0x10] sm:$0xff]
        %v5333 = vld [vmem:[%s5329 + $0x18] sm:$0xff]
        %v5334 = vld [vmem:[%s5329 + $0x20] sm:$0xff]
        %v5335 = vld [vmem:[%s5329 + $0x28] sm:$0xff]
        %v5336 = vld [vmem:[%s5329 + $0x30] sm:$0xff]
        %v5337 = vld [vmem:[%s5329 + $0x38] sm:$0xff]
        %v5338 = vld [vmem:[%s5329 + $0x40] sm:$0xff]
        %v5339 = vld [vmem:[%s5329 + $0x48] sm:$0xff]
        %v5340 = vld [vmem:[%s5329 + $0x50] sm:$0xff]
        %v5341 = vld [vmem:[%s5329 + $0x58] sm:$0xff]
        %v5342 = vld [vmem:[%s5329 + $0x60] sm:$0xff]
        %v5343 = vld [vmem:[%s5329 + $0x68] sm:$0xff]
        %v5344 = vld [vmem:[%s5329 + $0x70] sm:$0xff]
        %v5345 = vld [vmem:[%s5329 + $0x78] sm:$0xff]
        %v5347 = vsel %vm3326, %v4874, 0
        %5349 = vmatpush.msra.mxu0 0.0
        %5350 = vmatpush.msra.mxu0 0.0
        %5351 = vmatpush.msra.mxu0 0.0
        %5352 = vmatpush.msra.mxu0 0.0
        %5353 = vmatpush.msra.mxu0 0.0
        %5354 = vmatpush.msra.mxu0 0.0
        %5355 = vmatpush.msra.mxu0 0.0
        %5356 = vmatpush.msra.mxu0 0.0
        %5357 = vmatpush.msra.mxu0 %v5344
        %5358 = vmatpush.msra.mxu0 %v5342
        %5359 = vmatpush.msra.mxu0 %v5340
        %5360 = vmatpush.msra.mxu0 %v5338
        %5361 = vmatpush.msra.mxu0 %v5336
        %5362 = vmatpush.msra.mxu0 %v5334
        %5363 = vmatpush.msra.mxu0 %v5332
        %5364 = vmatpush.msra.mxu0 %v5330
        %5365 = vmatmul.f32.gmra.mxu0 %v5347
        %v5366 = vpop.f32.mrf.mxu0
        %v5367 = vadd.f32 0.0, %v5366
        %5368 = vdwg.mxu0
        %5369 = vmatpush.msra.mxu0 0.0
        %5370 = vmatpush.msra.mxu0 0.0
        %5371 = vmatpush.msra.mxu0 0.0
        %5372 = vmatpush.msra.mxu0 0.0
        %5373 = vmatpush.msra.mxu0 0.0
        %5374 = vmatpush.msra.mxu0 0.0
        %5375 = vmatpush.msra.mxu0 0.0
        %5376 = vmatpush.msra.mxu0 0.0
        %5377 = vmatpush.msra.mxu0 %v5345
        %5378 = vmatpush.msra.mxu0 %v5343
        %5379 = vmatpush.msra.mxu0 %v5341
        %5380 = vmatpush.msra.mxu0 %v5339
        %5381 = vmatpush.msra.mxu0 %v5337
        %5382 = vmatpush.msra.mxu0 %v5335
        %5383 = vmatpush.msra.mxu0 %v5333
        %5384 = vmatpush.msra.mxu0 %v5331
        %5385 = vmatmul.f32.gmra.mxu0 %v5347
        %v5386 = vpop.f32.mrf.mxu0
        %v5387 = vadd.f32 0.0, %v5386
        %5388 = vdwg.mxu0
        %v5389 = vadd.f32 %v5327, %v5367
        %v5390 = vadd.f32 %v5328, %v5387
        %s5391 = scalar_lea.vmem [#allocation4], 1024
        %v5392 = vld [vmem:[%s5391] sm:$0xff]
        %v5393 = vld [vmem:[%s5391 + $0x8] sm:$0xff]
        %v5394 = vld [vmem:[%s5391 + $0x10] sm:$0xff]
        %v5395 = vld [vmem:[%s5391 + $0x18] sm:$0xff]
        %v5396 = vld [vmem:[%s5391 + $0x20] sm:$0xff]
        %v5397 = vld [vmem:[%s5391 + $0x28] sm:$0xff]
        %v5398 = vld [vmem:[%s5391 + $0x30] sm:$0xff]
        %v5399 = vld [vmem:[%s5391 + $0x38] sm:$0xff]
        %v5400 = vld [vmem:[%s5391 + $0x40] sm:$0xff]
        %v5401 = vld [vmem:[%s5391 + $0x48] sm:$0xff]
        %v5402 = vld [vmem:[%s5391 + $0x50] sm:$0xff]
        %v5403 = vld [vmem:[%s5391 + $0x58] sm:$0xff]
        %v5404 = vld [vmem:[%s5391 + $0x60] sm:$0xff]
        %v5405 = vld [vmem:[%s5391 + $0x68] sm:$0xff]
        %v5406 = vld [vmem:[%s5391 + $0x70] sm:$0xff]
        %v5407 = vld [vmem:[%s5391 + $0x78] sm:$0xff]
        %v5409 = vsel %vm3326, %v4877, 0
        %5411 = vmatpush.msra.mxu0 0.0
        %5412 = vmatpush.msra.mxu0 0.0
        %5413 = vmatpush.msra.mxu0 0.0
        %5414 = vmatpush.msra.mxu0 0.0
        %5415 = vmatpush.msra.mxu0 0.0
        %5416 = vmatpush.msra.mxu0 0.0
        %5417 = vmatpush.msra.mxu0 0.0
        %5418 = vmatpush.msra.mxu0 0.0
        %5419 = vmatpush.msra.mxu0 %v5406
        %5420 = vmatpush.msra.mxu0 %v5404
        %5421 = vmatpush.msra.mxu0 %v5402
        %5422 = vmatpush.msra.mxu0 %v5400
        %5423 = vmatpush.msra.mxu0 %v5398
        %5424 = vmatpush.msra.mxu0 %v5396
        %5425 = vmatpush.msra.mxu0 %v5394
        %5426 = vmatpush.msra.mxu0 %v5392
        %5427 = vmatmul.f32.gmra.mxu0 %v5409
        %v5428 = vpop.f32.mrf.mxu0
        %v5429 = vadd.f32 0.0, %v5428
        %5430 = vdwg.mxu0
        %5431 = vmatpush.msra.mxu0 0.0
        %5432 = vmatpush.msra.mxu0 0.0
        %5433 = vmatpush.msra.mxu0 0.0
        %5434 = vmatpush.msra.mxu0 0.0
        %5435 = vmatpush.msra.mxu0 0.0
        %5436 = vmatpush.msra.mxu0 0.0
        %5437 = vmatpush.msra.mxu0 0.0
        %5438 = vmatpush.msra.mxu0 0.0
        %5439 = vmatpush.msra.mxu0 %v5407
        %5440 = vmatpush.msra.mxu0 %v5405
        %5441 = vmatpush.msra.mxu0 %v5403
        %5442 = vmatpush.msra.mxu0 %v5401
        %5443 = vmatpush.msra.mxu0 %v5399
        %5444 = vmatpush.msra.mxu0 %v5397
        %5445 = vmatpush.msra.mxu0 %v5395
        %5446 = vmatpush.msra.mxu0 %v5393
        %5447 = vmatmul.f32.gmra.mxu0 %v5409
        %v5448 = vpop.f32.mrf.mxu0
        %v5449 = vadd.f32 0.0, %v5448
        %5450 = vdwg.mxu0
        %v5451 = vadd.f32 %v5389, %v5429
        %v5452 = vadd.f32 %v5390, %v5449
        %s5453 = scalar_lea.vmem [#allocation4], 1152
        %v5454 = vld [vmem:[%s5453] sm:$0xff]
        %v5455 = vld [vmem:[%s5453 + $0x8] sm:$0xff]
        %v5456 = vld [vmem:[%s5453 + $0x10] sm:$0xff]
        %v5457 = vld [vmem:[%s5453 + $0x18] sm:$0xff]
        %v5458 = vld [vmem:[%s5453 + $0x20] sm:$0xff]
        %v5459 = vld [vmem:[%s5453 + $0x28] sm:$0xff]
        %v5460 = vld [vmem:[%s5453 + $0x30] sm:$0xff]
        %v5461 = vld [vmem:[%s5453 + $0x38] sm:$0xff]
        %v5462 = vld [vmem:[%s5453 + $0x40] sm:$0xff]
        %v5463 = vld [vmem:[%s5453 + $0x48] sm:$0xff]
        %v5464 = vld [vmem:[%s5453 + $0x50] sm:$0xff]
        %v5465 = vld [vmem:[%s5453 + $0x58] sm:$0xff]
        %v5466 = vld [vmem:[%s5453 + $0x60] sm:$0xff]
        %v5467 = vld [vmem:[%s5453 + $0x68] sm:$0xff]
        %v5468 = vld [vmem:[%s5453 + $0x70] sm:$0xff]
        %v5469 = vld [vmem:[%s5453 + $0x78] sm:$0xff]
        %v5471 = vsel %vm3326, %v4880, 0
        %5473 = vmatpush.msra.mxu0 0.0
        %5474 = vmatpush.msra.mxu0 0.0
        %5475 = vmatpush.msra.mxu0 0.0
        %5476 = vmatpush.msra.mxu0 0.0
        %5477 = vmatpush.msra.mxu0 0.0
        %5478 = vmatpush.msra.mxu0 0.0
        %5479 = vmatpush.msra.mxu0 0.0
        %5480 = vmatpush.msra.mxu0 0.0
        %5481 = vmatpush.msra.mxu0 %v5468
        %5482 = vmatpush.msra.mxu0 %v5466
        %5483 = vmatpush.msra.mxu0 %v5464
        %5484 = vmatpush.msra.mxu0 %v5462
        %5485 = vmatpush.msra.mxu0 %v5460
        %5486 = vmatpush.msra.mxu0 %v5458
        %5487 = vmatpush.msra.mxu0 %v5456
        %5488 = vmatpush.msra.mxu0 %v5454
        %5489 = vmatmul.f32.gmra.mxu0 %v5471
        %v5490 = vpop.f32.mrf.mxu0
        %v5491 = vadd.f32 0.0, %v5490
        %5492 = vdwg.mxu0
        %5493 = vmatpush.msra.mxu0 0.0
        %5494 = vmatpush.msra.mxu0 0.0
        %5495 = vmatpush.msra.mxu0 0.0
        %5496 = vmatpush.msra.mxu0 0.0
        %5497 = vmatpush.msra.mxu0 0.0
        %5498 = vmatpush.msra.mxu0 0.0
        %5499 = vmatpush.msra.mxu0 0.0
        %5500 = vmatpush.msra.mxu0 0.0
        %5501 = vmatpush.msra.mxu0 %v5469
        %5502 = vmatpush.msra.mxu0 %v5467
        %5503 = vmatpush.msra.mxu0 %v5465
        %5504 = vmatpush.msra.mxu0 %v5463
        %5505 = vmatpush.msra.mxu0 %v5461
        %5506 = vmatpush.msra.mxu0 %v5459
        %5507 = vmatpush.msra.mxu0 %v5457
        %5508 = vmatpush.msra.mxu0 %v5455
        %5509 = vmatmul.f32.gmra.mxu0 %v5471
        %v5510 = vpop.f32.mrf.mxu0
        %v5511 = vadd.f32 0.0, %v5510
        %5512 = vdwg.mxu0
        %v5513 = vadd.f32 %v5451, %v5491
        %v5514 = vadd.f32 %v5452, %v5511
        %s5515 = scalar_lea.vmem [#allocation4], 1280
        %v5516 = vld [vmem:[%s5515] sm:$0xff]
        %v5517 = vld [vmem:[%s5515 + $0x8] sm:$0xff]
        %v5518 = vld [vmem:[%s5515 + $0x10] sm:$0xff]
        %v5519 = vld [vmem:[%s5515 + $0x18] sm:$0xff]
        %v5520 = vld [vmem:[%s5515 + $0x20] sm:$0xff]
        %v5521 = vld [vmem:[%s5515 + $0x28] sm:$0xff]
        %v5522 = vld [vmem:[%s5515 + $0x30] sm:$0xff]
        %v5523 = vld [vmem:[%s5515 + $0x38] sm:$0xff]
        %v5524 = vld [vmem:[%s5515 + $0x40] sm:$0xff]
        %v5525 = vld [vmem:[%s5515 + $0x48] sm:$0xff]
        %v5526 = vld [vmem:[%s5515 + $0x50] sm:$0xff]
        %v5527 = vld [vmem:[%s5515 + $0x58] sm:$0xff]
        %v5528 = vld [vmem:[%s5515 + $0x60] sm:$0xff]
        %v5529 = vld [vmem:[%s5515 + $0x68] sm:$0xff]
        %v5530 = vld [vmem:[%s5515 + $0x70] sm:$0xff]
        %v5531 = vld [vmem:[%s5515 + $0x78] sm:$0xff]
        %v5533 = vsel %vm3326, %v4883, 0
        %5535 = vmatpush.msra.mxu0 0.0
        %5536 = vmatpush.msra.mxu0 0.0
        %5537 = vmatpush.msra.mxu0 0.0
        %5538 = vmatpush.msra.mxu0 0.0
        %5539 = vmatpush.msra.mxu0 0.0
        %5540 = vmatpush.msra.mxu0 0.0
        %5541 = vmatpush.msra.mxu0 0.0
        %5542 = vmatpush.msra.mxu0 0.0
        %5543 = vmatpush.msra.mxu0 %v5530
        %5544 = vmatpush.msra.mxu0 %v5528
        %5545 = vmatpush.msra.mxu0 %v5526
        %5546 = vmatpush.msra.mxu0 %v5524
        %5547 = vmatpush.msra.mxu0 %v5522
        %5548 = vmatpush.msra.mxu0 %v5520
        %5549 = vmatpush.msra.mxu0 %v5518
        %5550 = vmatpush.msra.mxu0 %v5516
        %5551 = vmatmul.f32.gmra.mxu0 %v5533
        %v5552 = vpop.f32.mrf.mxu0
        %v5553 = vadd.f32 0.0, %v5552
        %5554 = vdwg.mxu0
        %5555 = vmatpush.msra.mxu0 0.0
        %5556 = vmatpush.msra.mxu0 0.0
        %5557 = vmatpush.msra.mxu0 0.0
        %5558 = vmatpush.msra.mxu0 0.0
        %5559 = vmatpush.msra.mxu0 0.0
        %5560 = vmatpush.msra.mxu0 0.0
        %5561 = vmatpush.msra.mxu0 0.0
        %5562 = vmatpush.msra.mxu0 0.0
        %5563 = vmatpush.msra.mxu0 %v5531
        %5564 = vmatpush.msra.mxu0 %v5529
        %5565 = vmatpush.msra.mxu0 %v5527
        %5566 = vmatpush.msra.mxu0 %v5525
        %5567 = vmatpush.msra.mxu0 %v5523
        %5568 = vmatpush.msra.mxu0 %v5521
        %5569 = vmatpush.msra.mxu0 %v5519
        %5570 = vmatpush.msra.mxu0 %v5517
        %5571 = vmatmul.f32.gmra.mxu0 %v5533
        %v5572 = vpop.f32.mrf.mxu0
        %v5573 = vadd.f32 0.0, %v5572
        %5574 = vdwg.mxu0
        %v5575 = vadd.f32 %v5513, %v5553
        %v5576 = vadd.f32 %v5514, %v5573
        %s5577 = scalar_lea.vmem [#allocation4], 1408
        %v5578 = vld [vmem:[%s5577] sm:$0xff]
        %v5579 = vld [vmem:[%s5577 + $0x8] sm:$0xff]
        %v5580 = vld [vmem:[%s5577 + $0x10] sm:$0xff]
        %v5581 = vld [vmem:[%s5577 + $0x18] sm:$0xff]
        %v5582 = vld [vmem:[%s5577 + $0x20] sm:$0xff]
        %v5583 = vld [vmem:[%s5577 + $0x28] sm:$0xff]
        %v5584 = vld [vmem:[%s5577 + $0x30] sm:$0xff]
        %v5585 = vld [vmem:[%s5577 + $0x38] sm:$0xff]
        %v5586 = vld [vmem:[%s5577 + $0x40] sm:$0xff]
        %v5587 = vld [vmem:[%s5577 + $0x48] sm:$0xff]
        %v5588 = vld [vmem:[%s5577 + $0x50] sm:$0xff]
        %v5589 = vld [vmem:[%s5577 + $0x58] sm:$0xff]
        %v5590 = vld [vmem:[%s5577 + $0x60] sm:$0xff]
        %v5591 = vld [vmem:[%s5577 + $0x68] sm:$0xff]
        %v5592 = vld [vmem:[%s5577 + $0x70] sm:$0xff]
        %v5593 = vld [vmem:[%s5577 + $0x78] sm:$0xff]
        %v5595 = vsel %vm3326, %v4886, 0
        %5597 = vmatpush.msra.mxu0 0.0
        %5598 = vmatpush.msra.mxu0 0.0
        %5599 = vmatpush.msra.mxu0 0.0
        %5600 = vmatpush.msra.mxu0 0.0
        %5601 = vmatpush.msra.mxu0 0.0
        %5602 = vmatpush.msra.mxu0 0.0
        %5603 = vmatpush.msra.mxu0 0.0
        %5604 = vmatpush.msra.mxu0 0.0
        %5605 = vmatpush.msra.mxu0 %v5592
        %5606 = vmatpush.msra.mxu0 %v5590
        %5607 = vmatpush.msra.mxu0 %v5588
        %5608 = vmatpush.msra.mxu0 %v5586
        %5609 = vmatpush.msra.mxu0 %v5584
        %5610 = vmatpush.msra.mxu0 %v5582
        %5611 = vmatpush.msra.mxu0 %v5580
        %5612 = vmatpush.msra.mxu0 %v5578
        %5613 = vmatmul.f32.gmra.mxu0 %v5595
        %v5614 = vpop.f32.mrf.mxu0
        %v5615 = vadd.f32 0.0, %v5614
        %5616 = vdwg.mxu0
        %5617 = vmatpush.msra.mxu0 0.0
        %5618 = vmatpush.msra.mxu0 0.0
        %5619 = vmatpush.msra.mxu0 0.0
        %5620 = vmatpush.msra.mxu0 0.0
        %5621 = vmatpush.msra.mxu0 0.0
        %5622 = vmatpush.msra.mxu0 0.0
        %5623 = vmatpush.msra.mxu0 0.0
        %5624 = vmatpush.msra.mxu0 0.0
        %5625 = vmatpush.msra.mxu0 %v5593
        %5626 = vmatpush.msra.mxu0 %v5591
        %5627 = vmatpush.msra.mxu0 %v5589
        %5628 = vmatpush.msra.mxu0 %v5587
        %5629 = vmatpush.msra.mxu0 %v5585
        %5630 = vmatpush.msra.mxu0 %v5583
        %5631 = vmatpush.msra.mxu0 %v5581
        %5632 = vmatpush.msra.mxu0 %v5579
        %5633 = vmatmul.f32.gmra.mxu0 %v5595
        %v5634 = vpop.f32.mrf.mxu0
        %v5635 = vadd.f32 0.0, %v5634
        %5636 = vdwg.mxu0
        %v5637 = vadd.f32 %v5575, %v5615
        %v5638 = vadd.f32 %v5576, %v5635
        %s5639 = scalar_lea.vmem [#allocation4], 1536
        %v5640 = vld [vmem:[%s5639] sm:$0xff]
        %v5641 = vld [vmem:[%s5639 + $0x8] sm:$0xff]
        %v5642 = vld [vmem:[%s5639 + $0x10] sm:$0xff]
        %v5643 = vld [vmem:[%s5639 + $0x18] sm:$0xff]
        %v5644 = vld [vmem:[%s5639 + $0x20] sm:$0xff]
        %v5645 = vld [vmem:[%s5639 + $0x28] sm:$0xff]
        %v5646 = vld [vmem:[%s5639 + $0x30] sm:$0xff]
        %v5647 = vld [vmem:[%s5639 + $0x38] sm:$0xff]
        %v5648 = vld [vmem:[%s5639 + $0x40] sm:$0xff]
        %v5649 = vld [vmem:[%s5639 + $0x48] sm:$0xff]
        %v5650 = vld [vmem:[%s5639 + $0x50] sm:$0xff]
        %v5651 = vld [vmem:[%s5639 + $0x58] sm:$0xff]
        %v5652 = vld [vmem:[%s5639 + $0x60] sm:$0xff]
        %v5653 = vld [vmem:[%s5639 + $0x68] sm:$0xff]
        %v5654 = vld [vmem:[%s5639 + $0x70] sm:$0xff]
        %v5655 = vld [vmem:[%s5639 + $0x78] sm:$0xff]
        %v5657 = vsel %vm3326, %v4889, 0
        %5659 = vmatpush.msra.mxu0 0.0
        %5660 = vmatpush.msra.mxu0 0.0
        %5661 = vmatpush.msra.mxu0 0.0
        %5662 = vmatpush.msra.mxu0 0.0
        %5663 = vmatpush.msra.mxu0 0.0
        %5664 = vmatpush.msra.mxu0 0.0
        %5665 = vmatpush.msra.mxu0 0.0
        %5666 = vmatpush.msra.mxu0 0.0
        %5667 = vmatpush.msra.mxu0 %v5654
        %5668 = vmatpush.msra.mxu0 %v5652
        %5669 = vmatpush.msra.mxu0 %v5650
        %5670 = vmatpush.msra.mxu0 %v5648
        %5671 = vmatpush.msra.mxu0 %v5646
        %5672 = vmatpush.msra.mxu0 %v5644
        %5673 = vmatpush.msra.mxu0 %v5642
        %5674 = vmatpush.msra.mxu0 %v5640
        %5675 = vmatmul.f32.gmra.mxu0 %v5657
        %v5676 = vpop.f32.mrf.mxu0
        %v5677 = vadd.f32 0.0, %v5676
        %5678 = vdwg.mxu0
        %5679 = vmatpush.msra.mxu0 0.0
        %5680 = vmatpush.msra.mxu0 0.0
        %5681 = vmatpush.msra.mxu0 0.0
        %5682 = vmatpush.msra.mxu0 0.0
        %5683 = vmatpush.msra.mxu0 0.0
        %5684 = vmatpush.msra.mxu0 0.0
        %5685 = vmatpush.msra.mxu0 0.0
        %5686 = vmatpush.msra.mxu0 0.0
        %5687 = vmatpush.msra.mxu0 %v5655
        %5688 = vmatpush.msra.mxu0 %v5653
        %5689 = vmatpush.msra.mxu0 %v5651
        %5690 = vmatpush.msra.mxu0 %v5649
        %5691 = vmatpush.msra.mxu0 %v5647
        %5692 = vmatpush.msra.mxu0 %v5645
        %5693 = vmatpush.msra.mxu0 %v5643
        %5694 = vmatpush.msra.mxu0 %v5641
        %5695 = vmatmul.f32.gmra.mxu0 %v5657
        %v5696 = vpop.f32.mrf.mxu0
        %v5697 = vadd.f32 0.0, %v5696
        %5698 = vdwg.mxu0
        %v5699 = vadd.f32 %v5637, %v5677
        %v5700 = vadd.f32 %v5638, %v5697
        %s5701 = scalar_lea.vmem [#allocation4], 1664
        %v5702 = vld [vmem:[%s5701] sm:$0xff]
        %v5703 = vld [vmem:[%s5701 + $0x8] sm:$0xff]
        %v5704 = vld [vmem:[%s5701 + $0x10] sm:$0xff]
        %v5705 = vld [vmem:[%s5701 + $0x18] sm:$0xff]
        %v5706 = vld [vmem:[%s5701 + $0x20] sm:$0xff]
        %v5707 = vld [vmem:[%s5701 + $0x28] sm:$0xff]
        %v5708 = vld [vmem:[%s5701 + $0x30] sm:$0xff]
        %v5709 = vld [vmem:[%s5701 + $0x38] sm:$0xff]
        %v5710 = vld [vmem:[%s5701 + $0x40] sm:$0xff]
        %v5711 = vld [vmem:[%s5701 + $0x48] sm:$0xff]
        %v5712 = vld [vmem:[%s5701 + $0x50] sm:$0xff]
        %v5713 = vld [vmem:[%s5701 + $0x58] sm:$0xff]
        %v5714 = vld [vmem:[%s5701 + $0x60] sm:$0xff]
        %v5715 = vld [vmem:[%s5701 + $0x68] sm:$0xff]
        %v5716 = vld [vmem:[%s5701 + $0x70] sm:$0xff]
        %v5717 = vld [vmem:[%s5701 + $0x78] sm:$0xff]
        %v5719 = vsel %vm3326, %v4892, 0
        %5721 = vmatpush.msra.mxu0 0.0
        %5722 = vmatpush.msra.mxu0 0.0
        %5723 = vmatpush.msra.mxu0 0.0
        %5724 = vmatpush.msra.mxu0 0.0
        %5725 = vmatpush.msra.mxu0 0.0
        %5726 = vmatpush.msra.mxu0 0.0
        %5727 = vmatpush.msra.mxu0 0.0
        %5728 = vmatpush.msra.mxu0 0.0
        %5729 = vmatpush.msra.mxu0 %v5716
        %5730 = vmatpush.msra.mxu0 %v5714
        %5731 = vmatpush.msra.mxu0 %v5712
        %5732 = vmatpush.msra.mxu0 %v5710
        %5733 = vmatpush.msra.mxu0 %v5708
        %5734 = vmatpush.msra.mxu0 %v5706
        %5735 = vmatpush.msra.mxu0 %v5704
        %5736 = vmatpush.msra.mxu0 %v5702
        %5737 = vmatmul.f32.gmra.mxu0 %v5719
        %v5738 = vpop.f32.mrf.mxu0
        %v5739 = vadd.f32 0.0, %v5738
        %5740 = vdwg.mxu0
        %5741 = vmatpush.msra.mxu0 0.0
        %5742 = vmatpush.msra.mxu0 0.0
        %5743 = vmatpush.msra.mxu0 0.0
        %5744 = vmatpush.msra.mxu0 0.0
        %5745 = vmatpush.msra.mxu0 0.0
        %5746 = vmatpush.msra.mxu0 0.0
        %5747 = vmatpush.msra.mxu0 0.0
        %5748 = vmatpush.msra.mxu0 0.0
        %5749 = vmatpush.msra.mxu0 %v5717
        %5750 = vmatpush.msra.mxu0 %v5715
        %5751 = vmatpush.msra.mxu0 %v5713
        %5752 = vmatpush.msra.mxu0 %v5711
        %5753 = vmatpush.msra.mxu0 %v5709
        %5754 = vmatpush.msra.mxu0 %v5707
        %5755 = vmatpush.msra.mxu0 %v5705
        %5756 = vmatpush.msra.mxu0 %v5703
        %5757 = vmatmul.f32.gmra.mxu0 %v5719
        %v5758 = vpop.f32.mrf.mxu0
        %v5759 = vadd.f32 0.0, %v5758
        %5760 = vdwg.mxu0
        %v5761 = vadd.f32 %v5699, %v5739
        %v5762 = vadd.f32 %v5700, %v5759
        %s5763 = scalar_lea.vmem [#allocation4], 1792
        %v5764 = vld [vmem:[%s5763] sm:$0xff]
        %v5765 = vld [vmem:[%s5763 + $0x8] sm:$0xff]
        %v5766 = vld [vmem:[%s5763 + $0x10] sm:$0xff]
        %v5767 = vld [vmem:[%s5763 + $0x18] sm:$0xff]
        %v5768 = vld [vmem:[%s5763 + $0x20] sm:$0xff]
        %v5769 = vld [vmem:[%s5763 + $0x28] sm:$0xff]
        %v5770 = vld [vmem:[%s5763 + $0x30] sm:$0xff]
        %v5771 = vld [vmem:[%s5763 + $0x38] sm:$0xff]
        %v5772 = vld [vmem:[%s5763 + $0x40] sm:$0xff]
        %v5773 = vld [vmem:[%s5763 + $0x48] sm:$0xff]
        %v5774 = vld [vmem:[%s5763 + $0x50] sm:$0xff]
        %v5775 = vld [vmem:[%s5763 + $0x58] sm:$0xff]
        %v5776 = vld [vmem:[%s5763 + $0x60] sm:$0xff]
        %v5777 = vld [vmem:[%s5763 + $0x68] sm:$0xff]
        %v5778 = vld [vmem:[%s5763 + $0x70] sm:$0xff]
        %v5779 = vld [vmem:[%s5763 + $0x78] sm:$0xff]
        %v5781 = vsel %vm3326, %v4895, 0
        %5783 = vmatpush.msra.mxu0 0.0
        %5784 = vmatpush.msra.mxu0 0.0
        %5785 = vmatpush.msra.mxu0 0.0
        %5786 = vmatpush.msra.mxu0 0.0
        %5787 = vmatpush.msra.mxu0 0.0
        %5788 = vmatpush.msra.mxu0 0.0
        %5789 = vmatpush.msra.mxu0 0.0
        %5790 = vmatpush.msra.mxu0 0.0
        %5791 = vmatpush.msra.mxu0 %v5778
        %5792 = vmatpush.msra.mxu0 %v5776
        %5793 = vmatpush.msra.mxu0 %v5774
        %5794 = vmatpush.msra.mxu0 %v5772
        %5795 = vmatpush.msra.mxu0 %v5770
        %5796 = vmatpush.msra.mxu0 %v5768
        %5797 = vmatpush.msra.mxu0 %v5766
        %5798 = vmatpush.msra.mxu0 %v5764
        %5799 = vmatmul.f32.gmra.mxu0 %v5781
        %v5800 = vpop.f32.mrf.mxu0
        %v5801 = vadd.f32 0.0, %v5800
        %5802 = vdwg.mxu0
        %5803 = vmatpush.msra.mxu0 0.0
        %5804 = vmatpush.msra.mxu0 0.0
        %5805 = vmatpush.msra.mxu0 0.0
        %5806 = vmatpush.msra.mxu0 0.0
        %5807 = vmatpush.msra.mxu0 0.0
        %5808 = vmatpush.msra.mxu0 0.0
        %5809 = vmatpush.msra.mxu0 0.0
        %5810 = vmatpush.msra.mxu0 0.0
        %5811 = vmatpush.msra.mxu0 %v5779
        %5812 = vmatpush.msra.mxu0 %v5777
        %5813 = vmatpush.msra.mxu0 %v5775
        %5814 = vmatpush.msra.mxu0 %v5773
        %5815 = vmatpush.msra.mxu0 %v5771
        %5816 = vmatpush.msra.mxu0 %v5769
        %5817 = vmatpush.msra.mxu0 %v5767
        %5818 = vmatpush.msra.mxu0 %v5765
        %5819 = vmatmul.f32.gmra.mxu0 %v5781
        %v5820 = vpop.f32.mrf.mxu0
        %v5821 = vadd.f32 0.0, %v5820
        %5822 = vdwg.mxu0
        %v5823 = vadd.f32 %v5761, %v5801
        %v5824 = vadd.f32 %v5762, %v5821
        %s5825 = scalar_lea.vmem [#allocation4], 1920
        %v5826 = vld [vmem:[%s5825] sm:$0xff]
        %v5827 = vld [vmem:[%s5825 + $0x8] sm:$0xff]
        %v5828 = vld [vmem:[%s5825 + $0x10] sm:$0xff]
        %v5829 = vld [vmem:[%s5825 + $0x18] sm:$0xff]
        %v5830 = vld [vmem:[%s5825 + $0x20] sm:$0xff]
        %v5831 = vld [vmem:[%s5825 + $0x28] sm:$0xff]
        %v5832 = vld [vmem:[%s5825 + $0x30] sm:$0xff]
        %v5833 = vld [vmem:[%s5825 + $0x38] sm:$0xff]
        %v5834 = vld [vmem:[%s5825 + $0x40] sm:$0xff]
        %v5835 = vld [vmem:[%s5825 + $0x48] sm:$0xff]
        %v5836 = vld [vmem:[%s5825 + $0x50] sm:$0xff]
        %v5837 = vld [vmem:[%s5825 + $0x58] sm:$0xff]
        %v5838 = vld [vmem:[%s5825 + $0x60] sm:$0xff]
        %v5839 = vld [vmem:[%s5825 + $0x68] sm:$0xff]
        %v5840 = vld [vmem:[%s5825 + $0x70] sm:$0xff]
        %v5841 = vld [vmem:[%s5825 + $0x78] sm:$0xff]
        %v5843 = vsel %vm3326, %v4898, 0
        %5845 = vmatpush.msra.mxu0 0.0
        %5846 = vmatpush.msra.mxu0 0.0
        %5847 = vmatpush.msra.mxu0 0.0
        %5848 = vmatpush.msra.mxu0 0.0
        %5849 = vmatpush.msra.mxu0 0.0
        %5850 = vmatpush.msra.mxu0 0.0
        %5851 = vmatpush.msra.mxu0 0.0
        %5852 = vmatpush.msra.mxu0 0.0
        %5853 = vmatpush.msra.mxu0 %v5840
        %5854 = vmatpush.msra.mxu0 %v5838
        %5855 = vmatpush.msra.mxu0 %v5836
        %5856 = vmatpush.msra.mxu0 %v5834
        %5857 = vmatpush.msra.mxu0 %v5832
        %5858 = vmatpush.msra.mxu0 %v5830
        %5859 = vmatpush.msra.mxu0 %v5828
        %5860 = vmatpush.msra.mxu0 %v5826
        %5861 = vmatmul.f32.gmra.mxu0 %v5843
        %v5862 = vpop.f32.mrf.mxu0
        %v5863 = vadd.f32 0.0, %v5862
        %5864 = vdwg.mxu0
        %5865 = vmatpush.msra.mxu0 0.0
        %5866 = vmatpush.msra.mxu0 0.0
        %5867 = vmatpush.msra.mxu0 0.0
        %5868 = vmatpush.msra.mxu0 0.0
        %5869 = vmatpush.msra.mxu0 0.0
        %5870 = vmatpush.msra.mxu0 0.0
        %5871 = vmatpush.msra.mxu0 0.0
        %5872 = vmatpush.msra.mxu0 0.0
        %5873 = vmatpush.msra.mxu0 %v5841
        %5874 = vmatpush.msra.mxu0 %v5839
        %5875 = vmatpush.msra.mxu0 %v5837
        %5876 = vmatpush.msra.mxu0 %v5835
        %5877 = vmatpush.msra.mxu0 %v5833
        %5878 = vmatpush.msra.mxu0 %v5831
        %5879 = vmatpush.msra.mxu0 %v5829
        %5880 = vmatpush.msra.mxu0 %v5827
        %5881 = vmatmul.f32.gmra.mxu0 %v5843
        %v5882 = vpop.f32.mrf.mxu0
        %v5883 = vadd.f32 0.0, %v5882
        %5884 = vdwg.mxu0
        %v5885 = vadd.f32 %v5823, %v5863
        %v5886 = vadd.f32 %v5824, %v5883
        %v5887 = vld [vmem:[%s20] sm:$0xff]
        %5889 = vset.pattern.permute.xlu0 0
        %5890 = vperm.xlu0 %5889, %v5887
        %v5891 = vpop.permute.xlu0 %5890
        %v5893 = vadd.f32 %v5885, %v5891
        %v5894 = vadd.f32 %v5886, %v5891
        %vm5895 = vcmp.ge.f32.partialorder %v5893, 0.0
        %vm5896 = vcmp.ge.f32.partialorder %v5894, 0.0
        %v5897 = vmul.f32 %v5893, 0.2
        %v5898 = vmul.f32 %v5894, 0.2
        %v5899 = vsel %vm5895, %v5893, %v5897
        %v5900 = vsel %vm5896, %v5894, %v5898
        %v5901 = vld [vmem:[%s22] sm:$0xff]
        %v5902 = vld [vmem:[%s22 + $0x8] sm:$0xff]
        %v5903 = vld [vmem:[%s22 + $0x10] sm:$0xff]
        %v5904 = vld [vmem:[%s22 + $0x18] sm:$0xff]
        %v5905 = vld [vmem:[%s22 + $0x20] sm:$0xff]
        %v5906 = vld [vmem:[%s22 + $0x28] sm:$0xff]
        %v5907 = vld [vmem:[%s22 + $0x30] sm:$0xff]
        %v5908 = vld [vmem:[%s22 + $0x38] sm:$0xff]
        %v5909 = vld [vmem:[%s22 + $0x40] sm:$0xff]
        %v5910 = vld [vmem:[%s22 + $0x48] sm:$0xff]
        %v5911 = vld [vmem:[%s22 + $0x50] sm:$0xff]
        %v5912 = vld [vmem:[%s22 + $0x58] sm:$0xff]
        %v5913 = vld [vmem:[%s22 + $0x60] sm:$0xff]
        %v5914 = vld [vmem:[%s22 + $0x68] sm:$0xff]
        %v5915 = vld [vmem:[%s22 + $0x70] sm:$0xff]
        %v5916 = vld [vmem:[%s22 + $0x78] sm:$0xff]
        %v5917 = vld [vmem:[%s22 + $0x80] sm:$0xff]
        %v5918 = vld [vmem:[%s22 + $0x88] sm:$0xff]
        %v5920 = vsel %vm2098, %v5901, 0
        %v5923 = vsel %vm2098, %v5902, 0
        %v5926 = vsel %vm2098, %v5903, 0
        %v5929 = vsel %vm2098, %v5904, 0
        %v5932 = vsel %vm2098, %v5905, 0
        %v5935 = vsel %vm2098, %v5906, 0
        %v5938 = vsel %vm2098, %v5907, 0
        %v5941 = vsel %vm2098, %v5908, 0
        %v5944 = vsel %vm2098, %v5909, 0
        %v5947 = vsel %vm2098, %v5910, 0
        %v5950 = vsel %vm2098, %v5911, 0
        %v5953 = vsel %vm2098, %v5912, 0
        %v5956 = vsel %vm2098, %v5913, 0
        %v5959 = vsel %vm2098, %v5914, 0
        %v5962 = vsel %vm2098, %v5915, 0
        %v5965 = vsel %vm2098, %v5916, 0
        %v5968 = vsel %vm2098, %v5917, 0
        %v5971 = vsel %vm2098, %v5918, 0
        %5973 = vmatpush.msra.mxu0 0.0
        %5974 = vmatpush.msra.mxu0 0.0
        %5975 = vmatpush.msra.mxu0 0.0
        %5976 = vmatpush.msra.mxu0 0.0
        %5977 = vmatpush.msra.mxu0 0.0
        %5978 = vmatpush.msra.mxu0 0.0
        %5979 = vmatpush.msra.mxu0 0.0
        %5980 = vmatpush.msra.mxu0 0.0
        %5981 = vmatpush.msra.mxu0 0.0
        %5982 = vmatpush.msra.mxu0 0.0
        %5983 = vmatpush.msra.mxu0 0.0
        %5984 = vmatpush.msra.mxu0 0.0
        %5985 = vmatpush.msra.mxu0 0.0
        %5986 = vmatpush.msra.mxu0 0.0
        %5987 = vmatpush.msra.mxu0 0.0
        %5988 = vmatpush.msra.mxu0 %v5899
        %5989 = vmatmul.f32.gmra.mxu0 %v5920
        %v5990 = vpop.f32.mrf.mxu0
        %v5991 = vadd.f32 0.0, %v5990
        %5992 = vmatmul.f32.gmra.mxu0 %v5923
        %v5993 = vpop.f32.mrf.mxu0
        %v5994 = vadd.f32 0.0, %v5993
        %5995 = vmatmul.f32.gmra.mxu0 %v5926
        %v5996 = vpop.f32.mrf.mxu0
        %v5997 = vadd.f32 0.0, %v5996
        %5998 = vmatmul.f32.gmra.mxu0 %v5929
        %v5999 = vpop.f32.mrf.mxu0
        %v6000 = vadd.f32 0.0, %v5999
        %6001 = vmatmul.f32.gmra.mxu0 %v5932
        %v6002 = vpop.f32.mrf.mxu0
        %v6003 = vadd.f32 0.0, %v6002
        %6004 = vmatmul.f32.gmra.mxu0 %v5935
        %v6005 = vpop.f32.mrf.mxu0
        %v6006 = vadd.f32 0.0, %v6005
        %6007 = vmatmul.f32.gmra.mxu0 %v5938
        %v6008 = vpop.f32.mrf.mxu0
        %v6009 = vadd.f32 0.0, %v6008
        %6010 = vmatmul.f32.gmra.mxu0 %v5941
        %v6011 = vpop.f32.mrf.mxu0
        %v6012 = vadd.f32 0.0, %v6011
        %6013 = vmatmul.f32.gmra.mxu0 %v5944
        %v6014 = vpop.f32.mrf.mxu0
        %v6015 = vadd.f32 0.0, %v6014
        %6016 = vmatmul.f32.gmra.mxu0 %v5947
        %v6017 = vpop.f32.mrf.mxu0
        %v6018 = vadd.f32 0.0, %v6017
        %6019 = vmatmul.f32.gmra.mxu0 %v5950
        %v6020 = vpop.f32.mrf.mxu0
        %v6021 = vadd.f32 0.0, %v6020
        %6022 = vmatmul.f32.gmra.mxu0 %v5953
        %v6023 = vpop.f32.mrf.mxu0
        %v6024 = vadd.f32 0.0, %v6023
        %6025 = vmatmul.f32.gmra.mxu0 %v5956
        %v6026 = vpop.f32.mrf.mxu0
        %v6027 = vadd.f32 0.0, %v6026
        %6028 = vmatmul.f32.gmra.mxu0 %v5959
        %v6029 = vpop.f32.mrf.mxu0
        %v6030 = vadd.f32 0.0, %v6029
        %6031 = vmatmul.f32.gmra.mxu0 %v5962
        %v6032 = vpop.f32.mrf.mxu0
        %v6033 = vadd.f32 0.0, %v6032
        %6034 = vmatmul.f32.gmra.mxu0 %v5965
        %v6035 = vpop.f32.mrf.mxu0
        %v6036 = vadd.f32 0.0, %v6035
        %6037 = vmatmul.f32.gmra.mxu0 %v5968
        %v6038 = vpop.f32.mrf.mxu0
        %v6039 = vadd.f32 0.0, %v6038
        %6040 = vmatmul.f32.gmra.mxu0 %v5971
        %v6041 = vpop.f32.mrf.mxu0
        %v6042 = vadd.f32 0.0, %v6041
        %6043 = vdwg.mxu0
        %6044 = vmatpush.msra.mxu0 0.0
        %6045 = vmatpush.msra.mxu0 0.0
        %6046 = vmatpush.msra.mxu0 0.0
        %6047 = vmatpush.msra.mxu0 0.0
        %6048 = vmatpush.msra.mxu0 0.0
        %6049 = vmatpush.msra.mxu0 0.0
        %6050 = vmatpush.msra.mxu0 0.0
        %6051 = vmatpush.msra.mxu0 0.0
        %6052 = vmatpush.msra.mxu0 0.0
        %6053 = vmatpush.msra.mxu0 0.0
        %6054 = vmatpush.msra.mxu0 0.0
        %6055 = vmatpush.msra.mxu0 0.0
        %6056 = vmatpush.msra.mxu0 0.0
        %6057 = vmatpush.msra.mxu0 0.0
        %6058 = vmatpush.msra.mxu0 0.0
        %6059 = vmatpush.msra.mxu0 %v5900
        %6060 = vmatmul.f32.gmra.mxu0 %v5920
        %v6061 = vpop.f32.mrf.mxu0
        %v6062 = vadd.f32 0.0, %v6061
        %6063 = vmatmul.f32.gmra.mxu0 %v5923
        %v6064 = vpop.f32.mrf.mxu0
        %v6065 = vadd.f32 0.0, %v6064
        %6066 = vmatmul.f32.gmra.mxu0 %v5926
        %v6067 = vpop.f32.mrf.mxu0
        %v6068 = vadd.f32 0.0, %v6067
        %6069 = vmatmul.f32.gmra.mxu0 %v5929
        %v6070 = vpop.f32.mrf.mxu0
        %v6071 = vadd.f32 0.0, %v6070
        %6072 = vmatmul.f32.gmra.mxu0 %v5932
        %v6073 = vpop.f32.mrf.mxu0
        %v6074 = vadd.f32 0.0, %v6073
        %6075 = vmatmul.f32.gmra.mxu0 %v5935
        %v6076 = vpop.f32.mrf.mxu0
        %v6077 = vadd.f32 0.0, %v6076
        %6078 = vmatmul.f32.gmra.mxu0 %v5938
        %v6079 = vpop.f32.mrf.mxu0
        %v6080 = vadd.f32 0.0, %v6079
        %6081 = vmatmul.f32.gmra.mxu0 %v5941
        %v6082 = vpop.f32.mrf.mxu0
        %v6083 = vadd.f32 0.0, %v6082
        %6084 = vmatmul.f32.gmra.mxu0 %v5944
        %v6085 = vpop.f32.mrf.mxu0
        %v6086 = vadd.f32 0.0, %v6085
        %6087 = vmatmul.f32.gmra.mxu0 %v5947
        %v6088 = vpop.f32.mrf.mxu0
        %v6089 = vadd.f32 0.0, %v6088
        %6090 = vmatmul.f32.gmra.mxu0 %v5950
        %v6091 = vpop.f32.mrf.mxu0
        %v6092 = vadd.f32 0.0, %v6091
        %6093 = vmatmul.f32.gmra.mxu0 %v5953
        %v6094 = vpop.f32.mrf.mxu0
        %v6095 = vadd.f32 0.0, %v6094
        %6096 = vmatmul.f32.gmra.mxu0 %v5956
        %v6097 = vpop.f32.mrf.mxu0
        %v6098 = vadd.f32 0.0, %v6097
        %6099 = vmatmul.f32.gmra.mxu0 %v5959
        %v6100 = vpop.f32.mrf.mxu0
        %v6101 = vadd.f32 0.0, %v6100
        %6102 = vmatmul.f32.gmra.mxu0 %v5962
        %v6103 = vpop.f32.mrf.mxu0
        %v6104 = vadd.f32 0.0, %v6103
        %6105 = vmatmul.f32.gmra.mxu0 %v5965
        %v6106 = vpop.f32.mrf.mxu0
        %v6107 = vadd.f32 0.0, %v6106
        %6108 = vmatmul.f32.gmra.mxu0 %v5968
        %v6109 = vpop.f32.mrf.mxu0
        %v6110 = vadd.f32 0.0, %v6109
        %6111 = vmatmul.f32.gmra.mxu0 %v5971
        %v6112 = vpop.f32.mrf.mxu0
        %v6113 = vadd.f32 0.0, %v6112
        %6114 = vdwg.mxu0
        %v6115 = vld [vmem:[%s24] sm:$0xff]
        %v6116 = vld [vmem:[%s24 + $0x8] sm:$0xff]
        %v6117 = vld [vmem:[%s24 + $0x10] sm:$0xff]
        %v6118 = vld [vmem:[%s24 + $0x18] sm:$0xff]
        %v6119 = vld [vmem:[%s24 + $0x20] sm:$0xff]
        %v6120 = vld [vmem:[%s24 + $0x28] sm:$0xff]
        %v6121 = vld [vmem:[%s24 + $0x30] sm:$0xff]
        %v6122 = vld [vmem:[%s24 + $0x38] sm:$0xff]
        %v6123 = vld [vmem:[%s24 + $0x40] sm:$0xff]
        %v6124 = vld [vmem:[%s24 + $0x48] sm:$0xff]
        %v6125 = vld [vmem:[%s24 + $0x50] sm:$0xff]
        %v6126 = vld [vmem:[%s24 + $0x58] sm:$0xff]
        %v6127 = vld [vmem:[%s24 + $0x60] sm:$0xff]
        %v6128 = vld [vmem:[%s24 + $0x68] sm:$0xff]
        %v6129 = vld [vmem:[%s24 + $0x70] sm:$0xff]
        %v6130 = vld [vmem:[%s24 + $0x78] sm:$0xff]
        %v6131 = vld [vmem:[%s24 + $0x80] sm:$0xff]
        %v6132 = vld [vmem:[%s24 + $0x88] sm:$0xff]
        %v6133 = vld [vmem:[%s24 + $0x90] sm:$0xff]
        %v6134 = vld [vmem:[%s24 + $0x98] sm:$0xff]
        %v6135 = vld [vmem:[%s24 + $0xa0] sm:$0xff]
        %v6136 = vld [vmem:[%s24 + $0xa8] sm:$0xff]
        %v6137 = vld [vmem:[%s24 + $0xb0] sm:$0xff]
        %v6138 = vld [vmem:[%s24 + $0xb8] sm:$0xff]
        %v6139 = vld [vmem:[%s24 + $0xc0] sm:$0xff]
        %v6140 = vld [vmem:[%s24 + $0xc8] sm:$0xff]
        %v6141 = vld [vmem:[%s24 + $0xd0] sm:$0xff]
        %v6142 = vld [vmem:[%s24 + $0xd8] sm:$0xff]
        %v6143 = vld [vmem:[%s24 + $0xe0] sm:$0xff]
        %v6144 = vld [vmem:[%s24 + $0xe8] sm:$0xff]
        %v6145 = vld [vmem:[%s24 + $0xf0] sm:$0xff]
        %v6146 = vld [vmem:[%s24 + $0xf8] sm:$0xff]
        %v6147 = vld [vmem:[%s24 + $0x100] sm:$0xff]
        %v6148 = vld [vmem:[%s24 + $0x108] sm:$0xff]
        %v6149 = vld [vmem:[%s24 + $0x110] sm:$0xff]
        %v6150 = vld [vmem:[%s24 + $0x118] sm:$0xff]
        %v6151 = vld [vmem:[%s24 + $0x120] sm:$0xff]
        %v6152 = vld [vmem:[%s24 + $0x128] sm:$0xff]
        %v6153 = vld [vmem:[%s24 + $0x130] sm:$0xff]
        %v6154 = vld [vmem:[%s24 + $0x138] sm:$0xff]
        %v6155 = vld [vmem:[%s24 + $0x140] sm:$0xff]
        %v6156 = vld [vmem:[%s24 + $0x148] sm:$0xff]
        %v6157 = vld [vmem:[%s24 + $0x150] sm:$0xff]
        %v6158 = vld [vmem:[%s24 + $0x158] sm:$0xff]
        %v6159 = vld [vmem:[%s24 + $0x160] sm:$0xff]
        %v6160 = vld [vmem:[%s24 + $0x168] sm:$0xff]
        %v6161 = vld [vmem:[%s24 + $0x170] sm:$0xff]
        %v6162 = vld [vmem:[%s24 + $0x178] sm:$0xff]
        %v6163 = vld [vmem:[%s24 + $0x180] sm:$0xff]
        %v6164 = vld [vmem:[%s24 + $0x188] sm:$0xff]
        %v6165 = vld [vmem:[%s24 + $0x190] sm:$0xff]
        %v6166 = vld [vmem:[%s24 + $0x198] sm:$0xff]
        %v6167 = vld [vmem:[%s24 + $0x1a0] sm:$0xff]
        %v6168 = vld [vmem:[%s24 + $0x1a8] sm:$0xff]
        %v6169 = vld [vmem:[%s24 + $0x1b0] sm:$0xff]
        %v6170 = vld [vmem:[%s24 + $0x1b8] sm:$0xff]
        %v6171 = vld [vmem:[%s24 + $0x1c0] sm:$0xff]
        %v6172 = vld [vmem:[%s24 + $0x1c8] sm:$0xff]
        %v6173 = vld [vmem:[%s24 + $0x1d0] sm:$0xff]
        %v6174 = vld [vmem:[%s24 + $0x1d8] sm:$0xff]
        %v6175 = vld [vmem:[%s24 + $0x1e0] sm:$0xff]
        %v6176 = vld [vmem:[%s24 + $0x1e8] sm:$0xff]
        %v6177 = vld [vmem:[%s24 + $0x1f0] sm:$0xff]
        %v6178 = vld [vmem:[%s24 + $0x1f8] sm:$0xff]
        %s6179 = scalar_lea.vmem %s24, 512
        %v6180 = vld [vmem:[%s6179] sm:$0xff]
        %v6181 = vld [vmem:[%s6179 + $0x8] sm:$0xff]
        %v6182 = vld [vmem:[%s6179 + $0x10] sm:$0xff]
        %v6183 = vld [vmem:[%s6179 + $0x18] sm:$0xff]
        %v6184 = vld [vmem:[%s6179 + $0x20] sm:$0xff]
        %v6185 = vld [vmem:[%s6179 + $0x28] sm:$0xff]
        %v6186 = vld [vmem:[%s6179 + $0x30] sm:$0xff]
        %v6187 = vld [vmem:[%s6179 + $0x38] sm:$0xff]
        %v6188 = vld [vmem:[%s6179 + $0x40] sm:$0xff]
        %v6189 = vld [vmem:[%s6179 + $0x48] sm:$0xff]
        %v6190 = vld [vmem:[%s6179 + $0x50] sm:$0xff]
        %v6191 = vld [vmem:[%s6179 + $0x58] sm:$0xff]
        %v6192 = vld [vmem:[%s6179 + $0x60] sm:$0xff]
        %v6193 = vld [vmem:[%s6179 + $0x68] sm:$0xff]
        %v6194 = vld [vmem:[%s6179 + $0x70] sm:$0xff]
        %v6195 = vld [vmem:[%s6179 + $0x78] sm:$0xff]
        %v6196 = vld [vmem:[%s6179 + $0x80] sm:$0xff]
        %v6197 = vld [vmem:[%s6179 + $0x88] sm:$0xff]
        %v6198 = vld [vmem:[%s6179 + $0x90] sm:$0xff]
        %v6199 = vld [vmem:[%s6179 + $0x98] sm:$0xff]
        %v6200 = vld [vmem:[%s6179 + $0xa0] sm:$0xff]
        %v6201 = vld [vmem:[%s6179 + $0xa8] sm:$0xff]
        %v6202 = vld [vmem:[%s6179 + $0xb0] sm:$0xff]
        %v6203 = vld [vmem:[%s6179 + $0xb8] sm:$0xff]
        %v6204 = vld [vmem:[%s6179 + $0xc0] sm:$0xff]
        %v6205 = vld [vmem:[%s6179 + $0xc8] sm:$0xff]
        %v6206 = vld [vmem:[%s6179 + $0xd0] sm:$0xff]
        %v6207 = vld [vmem:[%s6179 + $0xd8] sm:$0xff]
        %v6208 = vld [vmem:[%s6179 + $0xe0] sm:$0xff]
        %v6209 = vld [vmem:[%s6179 + $0xe8] sm:$0xff]
        %v6210 = vld [vmem:[%s6179 + $0xf0] sm:$0xff]
        %v6211 = vld [vmem:[%s6179 + $0xf8] sm:$0xff]
        %v6212 = vld [vmem:[%s6179 + $0x100] sm:$0xff]
        %v6213 = vld [vmem:[%s6179 + $0x108] sm:$0xff]
        %v6214 = vld [vmem:[%s6179 + $0x110] sm:$0xff]
        %v6215 = vld [vmem:[%s6179 + $0x118] sm:$0xff]
        %v6216 = vld [vmem:[%s6179 + $0x120] sm:$0xff]
        %v6217 = vld [vmem:[%s6179 + $0x128] sm:$0xff]
        %v6218 = vld [vmem:[%s6179 + $0x130] sm:$0xff]
        %v6219 = vld [vmem:[%s6179 + $0x138] sm:$0xff]
        %v6220 = vld [vmem:[%s6179 + $0x140] sm:$0xff]
        %v6221 = vld [vmem:[%s6179 + $0x148] sm:$0xff]
        %v6222 = vld [vmem:[%s6179 + $0x150] sm:$0xff]
        %v6223 = vld [vmem:[%s6179 + $0x158] sm:$0xff]
        %v6224 = vld [vmem:[%s6179 + $0x160] sm:$0xff]
        %v6225 = vld [vmem:[%s6179 + $0x168] sm:$0xff]
        %v6226 = vld [vmem:[%s6179 + $0x170] sm:$0xff]
        %v6227 = vld [vmem:[%s6179 + $0x178] sm:$0xff]
        %v6228 = vld [vmem:[%s6179 + $0x180] sm:$0xff]
        %v6229 = vld [vmem:[%s6179 + $0x188] sm:$0xff]
        %v6230 = vld [vmem:[%s6179 + $0x190] sm:$0xff]
        %v6231 = vld [vmem:[%s6179 + $0x198] sm:$0xff]
        %v6232 = vld [vmem:[%s6179 + $0x1a0] sm:$0xff]
        %v6233 = vld [vmem:[%s6179 + $0x1a8] sm:$0xff]
        %v6234 = vld [vmem:[%s6179 + $0x1b0] sm:$0xff]
        %v6235 = vld [vmem:[%s6179 + $0x1b8] sm:$0xff]
        %v6236 = vld [vmem:[%s6179 + $0x1c0] sm:$0xff]
        %v6237 = vld [vmem:[%s6179 + $0x1c8] sm:$0xff]
        %v6238 = vld [vmem:[%s6179 + $0x1d0] sm:$0xff]
        %v6239 = vld [vmem:[%s6179 + $0x1d8] sm:$0xff]
        %v6240 = vld [vmem:[%s6179 + $0x1e0] sm:$0xff]
        %v6241 = vld [vmem:[%s6179 + $0x1e8] sm:$0xff]
        %v6242 = vld [vmem:[%s6179 + $0x1f0] sm:$0xff]
        %v6243 = vld [vmem:[%s6179 + $0x1f8] sm:$0xff]
        %6244 = vmatpush.msra.mxu0 %v6210
        %6245 = vmatpush.msra.mxu0 %v6208
        %6246 = vmatpush.msra.mxu0 %v6206
        %6247 = vmatpush.msra.mxu0 %v6204
        %6248 = vmatpush.msra.mxu0 %v6202
        %6249 = vmatpush.msra.mxu0 %v6200
        %6250 = vmatpush.msra.mxu0 %v6198
        %6251 = vmatpush.msra.mxu0 %v6196
        %6252 = vmatpush.msra.mxu0 %v6194
        %6253 = vmatpush.msra.mxu0 %v6192
        %6254 = vmatpush.msra.mxu0 %v6190
        %6255 = vmatpush.msra.mxu0 %v6188
        %6256 = vmatpush.msra.mxu0 %v6186
        %6257 = vmatpush.msra.mxu0 %v6184
        %6258 = vmatpush.msra.mxu0 %v6182
        %6259 = vmatpush.msra.mxu0 %v6180
        %6260 = vmatmul.f32.gmra.mxu0 %v5997
        %v6261 = vpop.f32.mrf.mxu0
        %v6262 = vadd.f32 0.0, %v6261
        %6263 = vmatmul.f32.gmra.mxu0 %v6000
        %v6264 = vpop.f32.mrf.mxu0
        %v6265 = vadd.f32 0.0, %v6264
        %6266 = vdwg.mxu0
        %6267 = vmatpush.msra.mxu0 %v6242
        %6268 = vmatpush.msra.mxu0 %v6240
        %6269 = vmatpush.msra.mxu0 %v6238
        %6270 = vmatpush.msra.mxu0 %v6236
        %6271 = vmatpush.msra.mxu0 %v6234
        %6272 = vmatpush.msra.mxu0 %v6232
        %6273 = vmatpush.msra.mxu0 %v6230
        %6274 = vmatpush.msra.mxu0 %v6228
        %6275 = vmatpush.msra.mxu0 %v6226
        %6276 = vmatpush.msra.mxu0 %v6224
        %6277 = vmatpush.msra.mxu0 %v6222
        %6278 = vmatpush.msra.mxu0 %v6220
        %6279 = vmatpush.msra.mxu0 %v6218
        %6280 = vmatpush.msra.mxu0 %v6216
        %6281 = vmatpush.msra.mxu0 %v6214
        %6282 = vmatpush.msra.mxu0 %v6212
        %6283 = vmatmul.f32.gmra.mxu0 %v6068
        %v6284 = vpop.f32.mrf.mxu0
        %v6285 = vadd.f32 %v6262, %v6284
        %6286 = vmatmul.f32.gmra.mxu0 %v6071
        %v6287 = vpop.f32.mrf.mxu0
        %v6288 = vadd.f32 %v6265, %v6287
        %6289 = vdwg.mxu0
        %6290 = vmatpush.msra.mxu0 %v6211
        %6291 = vmatpush.msra.mxu0 %v6209
        %6292 = vmatpush.msra.mxu0 %v6207
        %6293 = vmatpush.msra.mxu0 %v6205
        %6294 = vmatpush.msra.mxu0 %v6203
        %6295 = vmatpush.msra.mxu0 %v6201
        %6296 = vmatpush.msra.mxu0 %v6199
        %6297 = vmatpush.msra.mxu0 %v6197
        %6298 = vmatpush.msra.mxu0 %v6195
        %6299 = vmatpush.msra.mxu0 %v6193
        %6300 = vmatpush.msra.mxu0 %v6191
        %6301 = vmatpush.msra.mxu0 %v6189
        %6302 = vmatpush.msra.mxu0 %v6187
        %6303 = vmatpush.msra.mxu0 %v6185
        %6304 = vmatpush.msra.mxu0 %v6183
        %6305 = vmatpush.msra.mxu0 %v6181
        %6306 = vmatmul.f32.gmra.mxu0 %v5997
        %v6307 = vpop.f32.mrf.mxu0
        %v6308 = vadd.f32 0.0, %v6307
        %6309 = vmatmul.f32.gmra.mxu0 %v6000
        %v6310 = vpop.f32.mrf.mxu0
        %v6311 = vadd.f32 0.0, %v6310
        %6312 = vdwg.mxu0
        %6313 = vmatpush.msra.mxu0 %v6243
        %6314 = vmatpush.msra.mxu0 %v6241
        %6315 = vmatpush.msra.mxu0 %v6239
        %6316 = vmatpush.msra.mxu0 %v6237
        %6317 = vmatpush.msra.mxu0 %v6235
        %6318 = vmatpush.msra.mxu0 %v6233
        %6319 = vmatpush.msra.mxu0 %v6231
        %6320 = vmatpush.msra.mxu0 %v6229
        %6321 = vmatpush.msra.mxu0 %v6227
        %6322 = vmatpush.msra.mxu0 %v6225
        %6323 = vmatpush.msra.mxu0 %v6223
        %6324 = vmatpush.msra.mxu0 %v6221
        %6325 = vmatpush.msra.mxu0 %v6219
        %6326 = vmatpush.msra.mxu0 %v6217
        %6327 = vmatpush.msra.mxu0 %v6215
        %6328 = vmatpush.msra.mxu0 %v6213
        %6329 = vmatmul.f32.gmra.mxu0 %v6068
        %v6330 = vpop.f32.mrf.mxu0
        %v6331 = vadd.f32 %v6308, %v6330
        %6332 = vmatmul.f32.gmra.mxu0 %v6071
        %v6333 = vpop.f32.mrf.mxu0
        %v6334 = vadd.f32 %v6311, %v6333
        %6335 = vdwg.mxu0
        %6336 = vmatpush.msra.mxu0 %v6145
        %6337 = vmatpush.msra.mxu0 %v6143
        %6338 = vmatpush.msra.mxu0 %v6141
        %6339 = vmatpush.msra.mxu0 %v6139
        %6340 = vmatpush.msra.mxu0 %v6137
        %6341 = vmatpush.msra.mxu0 %v6135
        %6342 = vmatpush.msra.mxu0 %v6133
        %6343 = vmatpush.msra.mxu0 %v6131
        %6344 = vmatpush.msra.mxu0 %v6129
        %6345 = vmatpush.msra.mxu0 %v6127
        %6346 = vmatpush.msra.mxu0 %v6125
        %6347 = vmatpush.msra.mxu0 %v6123
        %6348 = vmatpush.msra.mxu0 %v6121
        %6349 = vmatpush.msra.mxu0 %v6119
        %6350 = vmatpush.msra.mxu0 %v6117
        %6351 = vmatpush.msra.mxu0 %v6115
        %6352 = vmatmul.f32.gmra.mxu0 %v5991
        %v6353 = vpop.f32.mrf.mxu0
        %v6354 = vadd.f32 %v6285, %v6353
        %6355 = vmatmul.f32.gmra.mxu0 %v5994
        %v6356 = vpop.f32.mrf.mxu0
        %v6357 = vadd.f32 %v6288, %v6356
        %6358 = vdwg.mxu0
        %6359 = vmatpush.msra.mxu0 %v6177
        %6360 = vmatpush.msra.mxu0 %v6175
        %6361 = vmatpush.msra.mxu0 %v6173
        %6362 = vmatpush.msra.mxu0 %v6171
        %6363 = vmatpush.msra.mxu0 %v6169
        %6364 = vmatpush.msra.mxu0 %v6167
        %6365 = vmatpush.msra.mxu0 %v6165
        %6366 = vmatpush.msra.mxu0 %v6163
        %6367 = vmatpush.msra.mxu0 %v6161
        %6368 = vmatpush.msra.mxu0 %v6159
        %6369 = vmatpush.msra.mxu0 %v6157
        %6370 = vmatpush.msra.mxu0 %v6155
        %6371 = vmatpush.msra.mxu0 %v6153
        %6372 = vmatpush.msra.mxu0 %v6151
        %6373 = vmatpush.msra.mxu0 %v6149
        %6374 = vmatpush.msra.mxu0 %v6147
        %6375 = vmatmul.f32.gmra.mxu0 %v6062
        %v6376 = vpop.f32.mrf.mxu0
        %v6377 = vadd.f32 %v6354, %v6376
        %6378 = vmatmul.f32.gmra.mxu0 %v6065
        %v6379 = vpop.f32.mrf.mxu0
        %v6380 = vadd.f32 %v6357, %v6379
        %6381 = vdwg.mxu0
        %6382 = vmatpush.msra.mxu0 %v6146
        %6383 = vmatpush.msra.mxu0 %v6144
        %6384 = vmatpush.msra.mxu0 %v6142
        %6385 = vmatpush.msra.mxu0 %v6140
        %6386 = vmatpush.msra.mxu0 %v6138
        %6387 = vmatpush.msra.mxu0 %v6136
        %6388 = vmatpush.msra.mxu0 %v6134
        %6389 = vmatpush.msra.mxu0 %v6132
        %6390 = vmatpush.msra.mxu0 %v6130
        %6391 = vmatpush.msra.mxu0 %v6128
        %6392 = vmatpush.msra.mxu0 %v6126
        %6393 = vmatpush.msra.mxu0 %v6124
        %6394 = vmatpush.msra.mxu0 %v6122
        %6395 = vmatpush.msra.mxu0 %v6120
        %6396 = vmatpush.msra.mxu0 %v6118
        %6397 = vmatpush.msra.mxu0 %v6116
        %6398 = vmatmul.f32.gmra.mxu0 %v5991
        %v6399 = vpop.f32.mrf.mxu0
        %v6400 = vadd.f32 %v6331, %v6399
        %6401 = vmatmul.f32.gmra.mxu0 %v5994
        %v6402 = vpop.f32.mrf.mxu0
        %v6403 = vadd.f32 %v6334, %v6402
        %6404 = vdwg.mxu0
        %6405 = vmatpush.msra.mxu0 %v6178
        %6406 = vmatpush.msra.mxu0 %v6176
        %6407 = vmatpush.msra.mxu0 %v6174
        %6408 = vmatpush.msra.mxu0 %v6172
        %6409 = vmatpush.msra.mxu0 %v6170
        %6410 = vmatpush.msra.mxu0 %v6168
        %6411 = vmatpush.msra.mxu0 %v6166
        %6412 = vmatpush.msra.mxu0 %v6164
        %6413 = vmatpush.msra.mxu0 %v6162
        %6414 = vmatpush.msra.mxu0 %v6160
        %6415 = vmatpush.msra.mxu0 %v6158
        %6416 = vmatpush.msra.mxu0 %v6156
        %6417 = vmatpush.msra.mxu0 %v6154
        %6418 = vmatpush.msra.mxu0 %v6152
        %6419 = vmatpush.msra.mxu0 %v6150
        %6420 = vmatpush.msra.mxu0 %v6148
        %6421 = vmatmul.f32.gmra.mxu0 %v6062
        %v6422 = vpop.f32.mrf.mxu0
        %v6423 = vadd.f32 %v6400, %v6422
        %6424 = vmatmul.f32.gmra.mxu0 %v6065
        %v6425 = vpop.f32.mrf.mxu0
        %v6426 = vadd.f32 %v6403, %v6425
        %6427 = vdwg.mxu0
        %s6428 = scalar_lea.vmem %s24, 1024
        %v6429 = vld [vmem:[%s6428] sm:$0xff]
        %v6430 = vld [vmem:[%s6428 + $0x8] sm:$0xff]
        %v6431 = vld [vmem:[%s6428 + $0x10] sm:$0xff]
        %v6432 = vld [vmem:[%s6428 + $0x18] sm:$0xff]
        %v6433 = vld [vmem:[%s6428 + $0x20] sm:$0xff]
        %v6434 = vld [vmem:[%s6428 + $0x28] sm:$0xff]
        %v6435 = vld [vmem:[%s6428 + $0x30] sm:$0xff]
        %v6436 = vld [vmem:[%s6428 + $0x38] sm:$0xff]
        %v6437 = vld [vmem:[%s6428 + $0x40] sm:$0xff]
        %v6438 = vld [vmem:[%s6428 + $0x48] sm:$0xff]
        %v6439 = vld [vmem:[%s6428 + $0x50] sm:$0xff]
        %v6440 = vld [vmem:[%s6428 + $0x58] sm:$0xff]
        %v6441 = vld [vmem:[%s6428 + $0x60] sm:$0xff]
        %v6442 = vld [vmem:[%s6428 + $0x68] sm:$0xff]
        %v6443 = vld [vmem:[%s6428 + $0x70] sm:$0xff]
        %v6444 = vld [vmem:[%s6428 + $0x78] sm:$0xff]
        %v6445 = vld [vmem:[%s6428 + $0x80] sm:$0xff]
        %v6446 = vld [vmem:[%s6428 + $0x88] sm:$0xff]
        %v6447 = vld [vmem:[%s6428 + $0x90] sm:$0xff]
        %v6448 = vld [vmem:[%s6428 + $0x98] sm:$0xff]
        %v6449 = vld [vmem:[%s6428 + $0xa0] sm:$0xff]
        %v6450 = vld [vmem:[%s6428 + $0xa8] sm:$0xff]
        %v6451 = vld [vmem:[%s6428 + $0xb0] sm:$0xff]
        %v6452 = vld [vmem:[%s6428 + $0xb8] sm:$0xff]
        %v6453 = vld [vmem:[%s6428 + $0xc0] sm:$0xff]
        %v6454 = vld [vmem:[%s6428 + $0xc8] sm:$0xff]
        %v6455 = vld [vmem:[%s6428 + $0xd0] sm:$0xff]
        %v6456 = vld [vmem:[%s6428 + $0xd8] sm:$0xff]
        %v6457 = vld [vmem:[%s6428 + $0xe0] sm:$0xff]
        %v6458 = vld [vmem:[%s6428 + $0xe8] sm:$0xff]
        %v6459 = vld [vmem:[%s6428 + $0xf0] sm:$0xff]
        %v6460 = vld [vmem:[%s6428 + $0xf8] sm:$0xff]
        %v6461 = vld [vmem:[%s6428 + $0x100] sm:$0xff]
        %v6462 = vld [vmem:[%s6428 + $0x108] sm:$0xff]
        %v6463 = vld [vmem:[%s6428 + $0x110] sm:$0xff]
        %v6464 = vld [vmem:[%s6428 + $0x118] sm:$0xff]
        %v6465 = vld [vmem:[%s6428 + $0x120] sm:$0xff]
        %v6466 = vld [vmem:[%s6428 + $0x128] sm:$0xff]
        %v6467 = vld [vmem:[%s6428 + $0x130] sm:$0xff]
        %v6468 = vld [vmem:[%s6428 + $0x138] sm:$0xff]
        %v6469 = vld [vmem:[%s6428 + $0x140] sm:$0xff]
        %v6470 = vld [vmem:[%s6428 + $0x148] sm:$0xff]
        %v6471 = vld [vmem:[%s6428 + $0x150] sm:$0xff]
        %v6472 = vld [vmem:[%s6428 + $0x158] sm:$0xff]
        %v6473 = vld [vmem:[%s6428 + $0x160] sm:$0xff]
        %v6474 = vld [vmem:[%s6428 + $0x168] sm:$0xff]
        %v6475 = vld [vmem:[%s6428 + $0x170] sm:$0xff]
        %v6476 = vld [vmem:[%s6428 + $0x178] sm:$0xff]
        %v6477 = vld [vmem:[%s6428 + $0x180] sm:$0xff]
        %v6478 = vld [vmem:[%s6428 + $0x188] sm:$0xff]
        %v6479 = vld [vmem:[%s6428 + $0x190] sm:$0xff]
        %v6480 = vld [vmem:[%s6428 + $0x198] sm:$0xff]
        %v6481 = vld [vmem:[%s6428 + $0x1a0] sm:$0xff]
        %v6482 = vld [vmem:[%s6428 + $0x1a8] sm:$0xff]
        %v6483 = vld [vmem:[%s6428 + $0x1b0] sm:$0xff]
        %v6484 = vld [vmem:[%s6428 + $0x1b8] sm:$0xff]
        %v6485 = vld [vmem:[%s6428 + $0x1c0] sm:$0xff]
        %v6486 = vld [vmem:[%s6428 + $0x1c8] sm:$0xff]
        %v6487 = vld [vmem:[%s6428 + $0x1d0] sm:$0xff]
        %v6488 = vld [vmem:[%s6428 + $0x1d8] sm:$0xff]
        %v6489 = vld [vmem:[%s6428 + $0x1e0] sm:$0xff]
        %v6490 = vld [vmem:[%s6428 + $0x1e8] sm:$0xff]
        %v6491 = vld [vmem:[%s6428 + $0x1f0] sm:$0xff]
        %v6492 = vld [vmem:[%s6428 + $0x1f8] sm:$0xff]
        %6493 = vmatpush.msra.mxu0 %v6459
        %6494 = vmatpush.msra.mxu0 %v6457
        %6495 = vmatpush.msra.mxu0 %v6455
        %6496 = vmatpush.msra.mxu0 %v6453
        %6497 = vmatpush.msra.mxu0 %v6451
        %6498 = vmatpush.msra.mxu0 %v6449
        %6499 = vmatpush.msra.mxu0 %v6447
        %6500 = vmatpush.msra.mxu0 %v6445
        %6501 = vmatpush.msra.mxu0 %v6443
        %6502 = vmatpush.msra.mxu0 %v6441
        %6503 = vmatpush.msra.mxu0 %v6439
        %6504 = vmatpush.msra.mxu0 %v6437
        %6505 = vmatpush.msra.mxu0 %v6435
        %6506 = vmatpush.msra.mxu0 %v6433
        %6507 = vmatpush.msra.mxu0 %v6431
        %6508 = vmatpush.msra.mxu0 %v6429
        %6509 = vmatmul.f32.gmra.mxu0 %v6003
        %v6510 = vpop.f32.mrf.mxu0
        %v6511 = vadd.f32 0.0, %v6510
        %6512 = vmatmul.f32.gmra.mxu0 %v6006
        %v6513 = vpop.f32.mrf.mxu0
        %v6514 = vadd.f32 0.0, %v6513
        %6515 = vdwg.mxu0
        %6516 = vmatpush.msra.mxu0 %v6491
        %6517 = vmatpush.msra.mxu0 %v6489
        %6518 = vmatpush.msra.mxu0 %v6487
        %6519 = vmatpush.msra.mxu0 %v6485
        %6520 = vmatpush.msra.mxu0 %v6483
        %6521 = vmatpush.msra.mxu0 %v6481
        %6522 = vmatpush.msra.mxu0 %v6479
        %6523 = vmatpush.msra.mxu0 %v6477
        %6524 = vmatpush.msra.mxu0 %v6475
        %6525 = vmatpush.msra.mxu0 %v6473
        %6526 = vmatpush.msra.mxu0 %v6471
        %6527 = vmatpush.msra.mxu0 %v6469
        %6528 = vmatpush.msra.mxu0 %v6467
        %6529 = vmatpush.msra.mxu0 %v6465
        %6530 = vmatpush.msra.mxu0 %v6463
        %6531 = vmatpush.msra.mxu0 %v6461
        %6532 = vmatmul.f32.gmra.mxu0 %v6074
        %v6533 = vpop.f32.mrf.mxu0
        %v6534 = vadd.f32 %v6511, %v6533
        %6535 = vmatmul.f32.gmra.mxu0 %v6077
        %v6536 = vpop.f32.mrf.mxu0
        %v6537 = vadd.f32 %v6514, %v6536
        %6538 = vdwg.mxu0
        %6539 = vmatpush.msra.mxu0 %v6460
        %6540 = vmatpush.msra.mxu0 %v6458
        %6541 = vmatpush.msra.mxu0 %v6456
        %6542 = vmatpush.msra.mxu0 %v6454
        %6543 = vmatpush.msra.mxu0 %v6452
        %6544 = vmatpush.msra.mxu0 %v6450
        %6545 = vmatpush.msra.mxu0 %v6448
        %6546 = vmatpush.msra.mxu0 %v6446
        %6547 = vmatpush.msra.mxu0 %v6444
        %6548 = vmatpush.msra.mxu0 %v6442
        %6549 = vmatpush.msra.mxu0 %v6440
        %6550 = vmatpush.msra.mxu0 %v6438
        %6551 = vmatpush.msra.mxu0 %v6436
        %6552 = vmatpush.msra.mxu0 %v6434
        %6553 = vmatpush.msra.mxu0 %v6432
        %6554 = vmatpush.msra.mxu0 %v6430
        %6555 = vmatmul.f32.gmra.mxu0 %v6003
        %v6556 = vpop.f32.mrf.mxu0
        %v6557 = vadd.f32 0.0, %v6556
        %6558 = vmatmul.f32.gmra.mxu0 %v6006
        %v6559 = vpop.f32.mrf.mxu0
        %v6560 = vadd.f32 0.0, %v6559
        %6561 = vdwg.mxu0
        %6562 = vmatpush.msra.mxu0 %v6492
        %6563 = vmatpush.msra.mxu0 %v6490
        %6564 = vmatpush.msra.mxu0 %v6488
        %6565 = vmatpush.msra.mxu0 %v6486
        %6566 = vmatpush.msra.mxu0 %v6484
        %6567 = vmatpush.msra.mxu0 %v6482
        %6568 = vmatpush.msra.mxu0 %v6480
        %6569 = vmatpush.msra.mxu0 %v6478
        %6570 = vmatpush.msra.mxu0 %v6476
        %6571 = vmatpush.msra.mxu0 %v6474
        %6572 = vmatpush.msra.mxu0 %v6472
        %6573 = vmatpush.msra.mxu0 %v6470
        %6574 = vmatpush.msra.mxu0 %v6468
        %6575 = vmatpush.msra.mxu0 %v6466
        %6576 = vmatpush.msra.mxu0 %v6464
        %6577 = vmatpush.msra.mxu0 %v6462
        %6578 = vmatmul.f32.gmra.mxu0 %v6074
        %v6579 = vpop.f32.mrf.mxu0
        %v6580 = vadd.f32 %v6557, %v6579
        %6581 = vmatmul.f32.gmra.mxu0 %v6077
        %v6582 = vpop.f32.mrf.mxu0
        %v6583 = vadd.f32 %v6560, %v6582
        %6584 = vdwg.mxu0
        %v6585 = vadd.f32 %v6377, %v6534
        %v6586 = vadd.f32 %v6423, %v6580
        %v6587 = vadd.f32 %v6380, %v6537
        %v6588 = vadd.f32 %v6426, %v6583
        %s6589 = scalar_lea.vmem %s24, 1536
        %v6590 = vld [vmem:[%s6589] sm:$0xff]
        %v6591 = vld [vmem:[%s6589 + $0x8] sm:$0xff]
        %v6592 = vld [vmem:[%s6589 + $0x10] sm:$0xff]
        %v6593 = vld [vmem:[%s6589 + $0x18] sm:$0xff]
        %v6594 = vld [vmem:[%s6589 + $0x20] sm:$0xff]
        %v6595 = vld [vmem:[%s6589 + $0x28] sm:$0xff]
        %v6596 = vld [vmem:[%s6589 + $0x30] sm:$0xff]
        %v6597 = vld [vmem:[%s6589 + $0x38] sm:$0xff]
        %v6598 = vld [vmem:[%s6589 + $0x40] sm:$0xff]
        %v6599 = vld [vmem:[%s6589 + $0x48] sm:$0xff]
        %v6600 = vld [vmem:[%s6589 + $0x50] sm:$0xff]
        %v6601 = vld [vmem:[%s6589 + $0x58] sm:$0xff]
        %v6602 = vld [vmem:[%s6589 + $0x60] sm:$0xff]
        %v6603 = vld [vmem:[%s6589 + $0x68] sm:$0xff]
        %v6604 = vld [vmem:[%s6589 + $0x70] sm:$0xff]
        %v6605 = vld [vmem:[%s6589 + $0x78] sm:$0xff]
        %v6606 = vld [vmem:[%s6589 + $0x80] sm:$0xff]
        %v6607 = vld [vmem:[%s6589 + $0x88] sm:$0xff]
        %v6608 = vld [vmem:[%s6589 + $0x90] sm:$0xff]
        %v6609 = vld [vmem:[%s6589 + $0x98] sm:$0xff]
        %v6610 = vld [vmem:[%s6589 + $0xa0] sm:$0xff]
        %v6611 = vld [vmem:[%s6589 + $0xa8] sm:$0xff]
        %v6612 = vld [vmem:[%s6589 + $0xb0] sm:$0xff]
        %v6613 = vld [vmem:[%s6589 + $0xb8] sm:$0xff]
        %v6614 = vld [vmem:[%s6589 + $0xc0] sm:$0xff]
        %v6615 = vld [vmem:[%s6589 + $0xc8] sm:$0xff]
        %v6616 = vld [vmem:[%s6589 + $0xd0] sm:$0xff]
        %v6617 = vld [vmem:[%s6589 + $0xd8] sm:$0xff]
        %v6618 = vld [vmem:[%s6589 + $0xe0] sm:$0xff]
        %v6619 = vld [vmem:[%s6589 + $0xe8] sm:$0xff]
        %v6620 = vld [vmem:[%s6589 + $0xf0] sm:$0xff]
        %v6621 = vld [vmem:[%s6589 + $0xf8] sm:$0xff]
        %v6622 = vld [vmem:[%s6589 + $0x100] sm:$0xff]
        %v6623 = vld [vmem:[%s6589 + $0x108] sm:$0xff]
        %v6624 = vld [vmem:[%s6589 + $0x110] sm:$0xff]
        %v6625 = vld [vmem:[%s6589 + $0x118] sm:$0xff]
        %v6626 = vld [vmem:[%s6589 + $0x120] sm:$0xff]
        %v6627 = vld [vmem:[%s6589 + $0x128] sm:$0xff]
        %v6628 = vld [vmem:[%s6589 + $0x130] sm:$0xff]
        %v6629 = vld [vmem:[%s6589 + $0x138] sm:$0xff]
        %v6630 = vld [vmem:[%s6589 + $0x140] sm:$0xff]
        %v6631 = vld [vmem:[%s6589 + $0x148] sm:$0xff]
        %v6632 = vld [vmem:[%s6589 + $0x150] sm:$0xff]
        %v6633 = vld [vmem:[%s6589 + $0x158] sm:$0xff]
        %v6634 = vld [vmem:[%s6589 + $0x160] sm:$0xff]
        %v6635 = vld [vmem:[%s6589 + $0x168] sm:$0xff]
        %v6636 = vld [vmem:[%s6589 + $0x170] sm:$0xff]
        %v6637 = vld [vmem:[%s6589 + $0x178] sm:$0xff]
        %v6638 = vld [vmem:[%s6589 + $0x180] sm:$0xff]
        %v6639 = vld [vmem:[%s6589 + $0x188] sm:$0xff]
        %v6640 = vld [vmem:[%s6589 + $0x190] sm:$0xff]
        %v6641 = vld [vmem:[%s6589 + $0x198] sm:$0xff]
        %v6642 = vld [vmem:[%s6589 + $0x1a0] sm:$0xff]
        %v6643 = vld [vmem:[%s6589 + $0x1a8] sm:$0xff]
        %v6644 = vld [vmem:[%s6589 + $0x1b0] sm:$0xff]
        %v6645 = vld [vmem:[%s6589 + $0x1b8] sm:$0xff]
        %v6646 = vld [vmem:[%s6589 + $0x1c0] sm:$0xff]
        %v6647 = vld [vmem:[%s6589 + $0x1c8] sm:$0xff]
        %v6648 = vld [vmem:[%s6589 + $0x1d0] sm:$0xff]
        %v6649 = vld [vmem:[%s6589 + $0x1d8] sm:$0xff]
        %v6650 = vld [vmem:[%s6589 + $0x1e0] sm:$0xff]
        %v6651 = vld [vmem:[%s6589 + $0x1e8] sm:$0xff]
        %v6652 = vld [vmem:[%s6589 + $0x1f0] sm:$0xff]
        %v6653 = vld [vmem:[%s6589 + $0x1f8] sm:$0xff]
        %6654 = vmatpush.msra.mxu0 %v6620
        %6655 = vmatpush.msra.mxu0 %v6618
        %6656 = vmatpush.msra.mxu0 %v6616
        %6657 = vmatpush.msra.mxu0 %v6614
        %6658 = vmatpush.msra.mxu0 %v6612
        %6659 = vmatpush.msra.mxu0 %v6610
        %6660 = vmatpush.msra.mxu0 %v6608
        %6661 = vmatpush.msra.mxu0 %v6606
        %6662 = vmatpush.msra.mxu0 %v6604
        %6663 = vmatpush.msra.mxu0 %v6602
        %6664 = vmatpush.msra.mxu0 %v6600
        %6665 = vmatpush.msra.mxu0 %v6598
        %6666 = vmatpush.msra.mxu0 %v6596
        %6667 = vmatpush.msra.mxu0 %v6594
        %6668 = vmatpush.msra.mxu0 %v6592
        %6669 = vmatpush.msra.mxu0 %v6590
        %6670 = vmatmul.f32.gmra.mxu0 %v6009
        %v6671 = vpop.f32.mrf.mxu0
        %v6672 = vadd.f32 0.0, %v6671
        %6673 = vmatmul.f32.gmra.mxu0 %v6012
        %v6674 = vpop.f32.mrf.mxu0
        %v6675 = vadd.f32 0.0, %v6674
        %6676 = vdwg.mxu0
        %6677 = vmatpush.msra.mxu0 %v6652
        %6678 = vmatpush.msra.mxu0 %v6650
        %6679 = vmatpush.msra.mxu0 %v6648
        %6680 = vmatpush.msra.mxu0 %v6646
        %6681 = vmatpush.msra.mxu0 %v6644
        %6682 = vmatpush.msra.mxu0 %v6642
        %6683 = vmatpush.msra.mxu0 %v6640
        %6684 = vmatpush.msra.mxu0 %v6638
        %6685 = vmatpush.msra.mxu0 %v6636
        %6686 = vmatpush.msra.mxu0 %v6634
        %6687 = vmatpush.msra.mxu0 %v6632
        %6688 = vmatpush.msra.mxu0 %v6630
        %6689 = vmatpush.msra.mxu0 %v6628
        %6690 = vmatpush.msra.mxu0 %v6626
        %6691 = vmatpush.msra.mxu0 %v6624
        %6692 = vmatpush.msra.mxu0 %v6622
        %6693 = vmatmul.f32.gmra.mxu0 %v6080
        %v6694 = vpop.f32.mrf.mxu0
        %v6695 = vadd.f32 %v6672, %v6694
        %6696 = vmatmul.f32.gmra.mxu0 %v6083
        %v6697 = vpop.f32.mrf.mxu0
        %v6698 = vadd.f32 %v6675, %v6697
        %6699 = vdwg.mxu0
        %6700 = vmatpush.msra.mxu0 %v6621
        %6701 = vmatpush.msra.mxu0 %v6619
        %6702 = vmatpush.msra.mxu0 %v6617
        %6703 = vmatpush.msra.mxu0 %v6615
        %6704 = vmatpush.msra.mxu0 %v6613
        %6705 = vmatpush.msra.mxu0 %v6611
        %6706 = vmatpush.msra.mxu0 %v6609
        %6707 = vmatpush.msra.mxu0 %v6607
        %6708 = vmatpush.msra.mxu0 %v6605
        %6709 = vmatpush.msra.mxu0 %v6603
        %6710 = vmatpush.msra.mxu0 %v6601
        %6711 = vmatpush.msra.mxu0 %v6599
        %6712 = vmatpush.msra.mxu0 %v6597
        %6713 = vmatpush.msra.mxu0 %v6595
        %6714 = vmatpush.msra.mxu0 %v6593
        %6715 = vmatpush.msra.mxu0 %v6591
        %6716 = vmatmul.f32.gmra.mxu0 %v6009
        %v6717 = vpop.f32.mrf.mxu0
        %v6718 = vadd.f32 0.0, %v6717
        %6719 = vmatmul.f32.gmra.mxu0 %v6012
        %v6720 = vpop.f32.mrf.mxu0
        %v6721 = vadd.f32 0.0, %v6720
        %6722 = vdwg.mxu0
        %6723 = vmatpush.msra.mxu0 %v6653
        %6724 = vmatpush.msra.mxu0 %v6651
        %6725 = vmatpush.msra.mxu0 %v6649
        %6726 = vmatpush.msra.mxu0 %v6647
        %6727 = vmatpush.msra.mxu0 %v6645
        %6728 = vmatpush.msra.mxu0 %v6643
        %6729 = vmatpush.msra.mxu0 %v6641
        %6730 = vmatpush.msra.mxu0 %v6639
        %6731 = vmatpush.msra.mxu0 %v6637
        %6732 = vmatpush.msra.mxu0 %v6635
        %6733 = vmatpush.msra.mxu0 %v6633
        %6734 = vmatpush.msra.mxu0 %v6631
        %6735 = vmatpush.msra.mxu0 %v6629
        %6736 = vmatpush.msra.mxu0 %v6627
        %6737 = vmatpush.msra.mxu0 %v6625
        %6738 = vmatpush.msra.mxu0 %v6623
        %6739 = vmatmul.f32.gmra.mxu0 %v6080
        %v6740 = vpop.f32.mrf.mxu0
        %v6741 = vadd.f32 %v6718, %v6740
        %6742 = vmatmul.f32.gmra.mxu0 %v6083
        %v6743 = vpop.f32.mrf.mxu0
        %v6744 = vadd.f32 %v6721, %v6743
        %6745 = vdwg.mxu0
        %v6746 = vadd.f32 %v6585, %v6695
        %v6747 = vadd.f32 %v6586, %v6741
        %v6748 = vadd.f32 %v6587, %v6698
        %v6749 = vadd.f32 %v6588, %v6744
        %s6750 = scalar_lea.vmem %s24, 2048
        %v6751 = vld [vmem:[%s6750] sm:$0xff]
        %v6752 = vld [vmem:[%s6750 + $0x8] sm:$0xff]
        %v6753 = vld [vmem:[%s6750 + $0x10] sm:$0xff]
        %v6754 = vld [vmem:[%s6750 + $0x18] sm:$0xff]
        %v6755 = vld [vmem:[%s6750 + $0x20] sm:$0xff]
        %v6756 = vld [vmem:[%s6750 + $0x28] sm:$0xff]
        %v6757 = vld [vmem:[%s6750 + $0x30] sm:$0xff]
        %v6758 = vld [vmem:[%s6750 + $0x38] sm:$0xff]
        %v6759 = vld [vmem:[%s6750 + $0x40] sm:$0xff]
        %v6760 = vld [vmem:[%s6750 + $0x48] sm:$0xff]
        %v6761 = vld [vmem:[%s6750 + $0x50] sm:$0xff]
        %v6762 = vld [vmem:[%s6750 + $0x58] sm:$0xff]
        %v6763 = vld [vmem:[%s6750 + $0x60] sm:$0xff]
        %v6764 = vld [vmem:[%s6750 + $0x68] sm:$0xff]
        %v6765 = vld [vmem:[%s6750 + $0x70] sm:$0xff]
        %v6766 = vld [vmem:[%s6750 + $0x78] sm:$0xff]
        %v6767 = vld [vmem:[%s6750 + $0x80] sm:$0xff]
        %v6768 = vld [vmem:[%s6750 + $0x88] sm:$0xff]
        %v6769 = vld [vmem:[%s6750 + $0x90] sm:$0xff]
        %v6770 = vld [vmem:[%s6750 + $0x98] sm:$0xff]
        %v6771 = vld [vmem:[%s6750 + $0xa0] sm:$0xff]
        %v6772 = vld [vmem:[%s6750 + $0xa8] sm:$0xff]
        %v6773 = vld [vmem:[%s6750 + $0xb0] sm:$0xff]
        %v6774 = vld [vmem:[%s6750 + $0xb8] sm:$0xff]
        %v6775 = vld [vmem:[%s6750 + $0xc0] sm:$0xff]
        %v6776 = vld [vmem:[%s6750 + $0xc8] sm:$0xff]
        %v6777 = vld [vmem:[%s6750 + $0xd0] sm:$0xff]
        %v6778 = vld [vmem:[%s6750 + $0xd8] sm:$0xff]
        %v6779 = vld [vmem:[%s6750 + $0xe0] sm:$0xff]
        %v6780 = vld [vmem:[%s6750 + $0xe8] sm:$0xff]
        %v6781 = vld [vmem:[%s6750 + $0xf0] sm:$0xff]
        %v6782 = vld [vmem:[%s6750 + $0xf8] sm:$0xff]
        %v6783 = vld [vmem:[%s6750 + $0x100] sm:$0xff]
        %v6784 = vld [vmem:[%s6750 + $0x108] sm:$0xff]
        %v6785 = vld [vmem:[%s6750 + $0x110] sm:$0xff]
        %v6786 = vld [vmem:[%s6750 + $0x118] sm:$0xff]
        %v6787 = vld [vmem:[%s6750 + $0x120] sm:$0xff]
        %v6788 = vld [vmem:[%s6750 + $0x128] sm:$0xff]
        %v6789 = vld [vmem:[%s6750 + $0x130] sm:$0xff]
        %v6790 = vld [vmem:[%s6750 + $0x138] sm:$0xff]
        %v6791 = vld [vmem:[%s6750 + $0x140] sm:$0xff]
        %v6792 = vld [vmem:[%s6750 + $0x148] sm:$0xff]
        %v6793 = vld [vmem:[%s6750 + $0x150] sm:$0xff]
        %v6794 = vld [vmem:[%s6750 + $0x158] sm:$0xff]
        %v6795 = vld [vmem:[%s6750 + $0x160] sm:$0xff]
        %v6796 = vld [vmem:[%s6750 + $0x168] sm:$0xff]
        %v6797 = vld [vmem:[%s6750 + $0x170] sm:$0xff]
        %v6798 = vld [vmem:[%s6750 + $0x178] sm:$0xff]
        %v6799 = vld [vmem:[%s6750 + $0x180] sm:$0xff]
        %v6800 = vld [vmem:[%s6750 + $0x188] sm:$0xff]
        %v6801 = vld [vmem:[%s6750 + $0x190] sm:$0xff]
        %v6802 = vld [vmem:[%s6750 + $0x198] sm:$0xff]
        %v6803 = vld [vmem:[%s6750 + $0x1a0] sm:$0xff]
        %v6804 = vld [vmem:[%s6750 + $0x1a8] sm:$0xff]
        %v6805 = vld [vmem:[%s6750 + $0x1b0] sm:$0xff]
        %v6806 = vld [vmem:[%s6750 + $0x1b8] sm:$0xff]
        %v6807 = vld [vmem:[%s6750 + $0x1c0] sm:$0xff]
        %v6808 = vld [vmem:[%s6750 + $0x1c8] sm:$0xff]
        %v6809 = vld [vmem:[%s6750 + $0x1d0] sm:$0xff]
        %v6810 = vld [vmem:[%s6750 + $0x1d8] sm:$0xff]
        %v6811 = vld [vmem:[%s6750 + $0x1e0] sm:$0xff]
        %v6812 = vld [vmem:[%s6750 + $0x1e8] sm:$0xff]
        %v6813 = vld [vmem:[%s6750 + $0x1f0] sm:$0xff]
        %v6814 = vld [vmem:[%s6750 + $0x1f8] sm:$0xff]
        %6815 = vmatpush.msra.mxu0 %v6781
        %6816 = vmatpush.msra.mxu0 %v6779
        %6817 = vmatpush.msra.mxu0 %v6777
        %6818 = vmatpush.msra.mxu0 %v6775
        %6819 = vmatpush.msra.mxu0 %v6773
        %6820 = vmatpush.msra.mxu0 %v6771
        %6821 = vmatpush.msra.mxu0 %v6769
        %6822 = vmatpush.msra.mxu0 %v6767
        %6823 = vmatpush.msra.mxu0 %v6765
        %6824 = vmatpush.msra.mxu0 %v6763
        %6825 = vmatpush.msra.mxu0 %v6761
        %6826 = vmatpush.msra.mxu0 %v6759
        %6827 = vmatpush.msra.mxu0 %v6757
        %6828 = vmatpush.msra.mxu0 %v6755
        %6829 = vmatpush.msra.mxu0 %v6753
        %6830 = vmatpush.msra.mxu0 %v6751
        %6831 = vmatmul.f32.gmra.mxu0 %v6015
        %v6832 = vpop.f32.mrf.mxu0
        %v6833 = vadd.f32 0.0, %v6832
        %6834 = vmatmul.f32.gmra.mxu0 %v6018
        %v6835 = vpop.f32.mrf.mxu0
        %v6836 = vadd.f32 0.0, %v6835
        %6837 = vdwg.mxu0
        %6838 = vmatpush.msra.mxu0 %v6813
        %6839 = vmatpush.msra.mxu0 %v6811
        %6840 = vmatpush.msra.mxu0 %v6809
        %6841 = vmatpush.msra.mxu0 %v6807
        %6842 = vmatpush.msra.mxu0 %v6805
        %6843 = vmatpush.msra.mxu0 %v6803
        %6844 = vmatpush.msra.mxu0 %v6801
        %6845 = vmatpush.msra.mxu0 %v6799
        %6846 = vmatpush.msra.mxu0 %v6797
        %6847 = vmatpush.msra.mxu0 %v6795
        %6848 = vmatpush.msra.mxu0 %v6793
        %6849 = vmatpush.msra.mxu0 %v6791
        %6850 = vmatpush.msra.mxu0 %v6789
        %6851 = vmatpush.msra.mxu0 %v6787
        %6852 = vmatpush.msra.mxu0 %v6785
        %6853 = vmatpush.msra.mxu0 %v6783
        %6854 = vmatmul.f32.gmra.mxu0 %v6086
        %v6855 = vpop.f32.mrf.mxu0
        %v6856 = vadd.f32 %v6833, %v6855
        %6857 = vmatmul.f32.gmra.mxu0 %v6089
        %v6858 = vpop.f32.mrf.mxu0
        %v6859 = vadd.f32 %v6836, %v6858
        %6860 = vdwg.mxu0
        %6861 = vmatpush.msra.mxu0 %v6782
        %6862 = vmatpush.msra.mxu0 %v6780
        %6863 = vmatpush.msra.mxu0 %v6778
        %6864 = vmatpush.msra.mxu0 %v6776
        %6865 = vmatpush.msra.mxu0 %v6774
        %6866 = vmatpush.msra.mxu0 %v6772
        %6867 = vmatpush.msra.mxu0 %v6770
        %6868 = vmatpush.msra.mxu0 %v6768
        %6869 = vmatpush.msra.mxu0 %v6766
        %6870 = vmatpush.msra.mxu0 %v6764
        %6871 = vmatpush.msra.mxu0 %v6762
        %6872 = vmatpush.msra.mxu0 %v6760
        %6873 = vmatpush.msra.mxu0 %v6758
        %6874 = vmatpush.msra.mxu0 %v6756
        %6875 = vmatpush.msra.mxu0 %v6754
        %6876 = vmatpush.msra.mxu0 %v6752
        %6877 = vmatmul.f32.gmra.mxu0 %v6015
        %v6878 = vpop.f32.mrf.mxu0
        %v6879 = vadd.f32 0.0, %v6878
        %6880 = vmatmul.f32.gmra.mxu0 %v6018
        %v6881 = vpop.f32.mrf.mxu0
        %v6882 = vadd.f32 0.0, %v6881
        %6883 = vdwg.mxu0
        %6884 = vmatpush.msra.mxu0 %v6814
        %6885 = vmatpush.msra.mxu0 %v6812
        %6886 = vmatpush.msra.mxu0 %v6810
        %6887 = vmatpush.msra.mxu0 %v6808
        %6888 = vmatpush.msra.mxu0 %v6806
        %6889 = vmatpush.msra.mxu0 %v6804
        %6890 = vmatpush.msra.mxu0 %v6802
        %6891 = vmatpush.msra.mxu0 %v6800
        %6892 = vmatpush.msra.mxu0 %v6798
        %6893 = vmatpush.msra.mxu0 %v6796
        %6894 = vmatpush.msra.mxu0 %v6794
        %6895 = vmatpush.msra.mxu0 %v6792
        %6896 = vmatpush.msra.mxu0 %v6790
        %6897 = vmatpush.msra.mxu0 %v6788
        %6898 = vmatpush.msra.mxu0 %v6786
        %6899 = vmatpush.msra.mxu0 %v6784
        %6900 = vmatmul.f32.gmra.mxu0 %v6086
        %v6901 = vpop.f32.mrf.mxu0
        %v6902 = vadd.f32 %v6879, %v6901
        %6903 = vmatmul.f32.gmra.mxu0 %v6089
        %v6904 = vpop.f32.mrf.mxu0
        %v6905 = vadd.f32 %v6882, %v6904
        %6906 = vdwg.mxu0
        %v6907 = vadd.f32 %v6746, %v6856
        %v6908 = vadd.f32 %v6747, %v6902
        %v6909 = vadd.f32 %v6748, %v6859
        %v6910 = vadd.f32 %v6749, %v6905
        %s6911 = scalar_lea.vmem %s24, 2560
        %v6912 = vld [vmem:[%s6911] sm:$0xff]
        %v6913 = vld [vmem:[%s6911 + $0x8] sm:$0xff]
        %v6914 = vld [vmem:[%s6911 + $0x10] sm:$0xff]
        %v6915 = vld [vmem:[%s6911 + $0x18] sm:$0xff]
        %v6916 = vld [vmem:[%s6911 + $0x20] sm:$0xff]
        %v6917 = vld [vmem:[%s6911 + $0x28] sm:$0xff]
        %v6918 = vld [vmem:[%s6911 + $0x30] sm:$0xff]
        %v6919 = vld [vmem:[%s6911 + $0x38] sm:$0xff]
        %v6920 = vld [vmem:[%s6911 + $0x40] sm:$0xff]
        %v6921 = vld [vmem:[%s6911 + $0x48] sm:$0xff]
        %v6922 = vld [vmem:[%s6911 + $0x50] sm:$0xff]
        %v6923 = vld [vmem:[%s6911 + $0x58] sm:$0xff]
        %v6924 = vld [vmem:[%s6911 + $0x60] sm:$0xff]
        %v6925 = vld [vmem:[%s6911 + $0x68] sm:$0xff]
        %v6926 = vld [vmem:[%s6911 + $0x70] sm:$0xff]
        %v6927 = vld [vmem:[%s6911 + $0x78] sm:$0xff]
        %v6928 = vld [vmem:[%s6911 + $0x80] sm:$0xff]
        %v6929 = vld [vmem:[%s6911 + $0x88] sm:$0xff]
        %v6930 = vld [vmem:[%s6911 + $0x90] sm:$0xff]
        %v6931 = vld [vmem:[%s6911 + $0x98] sm:$0xff]
        %v6932 = vld [vmem:[%s6911 + $0xa0] sm:$0xff]
        %v6933 = vld [vmem:[%s6911 + $0xa8] sm:$0xff]
        %v6934 = vld [vmem:[%s6911 + $0xb0] sm:$0xff]
        %v6935 = vld [vmem:[%s6911 + $0xb8] sm:$0xff]
        %v6936 = vld [vmem:[%s6911 + $0xc0] sm:$0xff]
        %v6937 = vld [vmem:[%s6911 + $0xc8] sm:$0xff]
        %v6938 = vld [vmem:[%s6911 + $0xd0] sm:$0xff]
        %v6939 = vld [vmem:[%s6911 + $0xd8] sm:$0xff]
        %v6940 = vld [vmem:[%s6911 + $0xe0] sm:$0xff]
        %v6941 = vld [vmem:[%s6911 + $0xe8] sm:$0xff]
        %v6942 = vld [vmem:[%s6911 + $0xf0] sm:$0xff]
        %v6943 = vld [vmem:[%s6911 + $0xf8] sm:$0xff]
        %v6944 = vld [vmem:[%s6911 + $0x100] sm:$0xff]
        %v6945 = vld [vmem:[%s6911 + $0x108] sm:$0xff]
        %v6946 = vld [vmem:[%s6911 + $0x110] sm:$0xff]
        %v6947 = vld [vmem:[%s6911 + $0x118] sm:$0xff]
        %v6948 = vld [vmem:[%s6911 + $0x120] sm:$0xff]
        %v6949 = vld [vmem:[%s6911 + $0x128] sm:$0xff]
        %v6950 = vld [vmem:[%s6911 + $0x130] sm:$0xff]
        %v6951 = vld [vmem:[%s6911 + $0x138] sm:$0xff]
        %v6952 = vld [vmem:[%s6911 + $0x140] sm:$0xff]
        %v6953 = vld [vmem:[%s6911 + $0x148] sm:$0xff]
        %v6954 = vld [vmem:[%s6911 + $0x150] sm:$0xff]
        %v6955 = vld [vmem:[%s6911 + $0x158] sm:$0xff]
        %v6956 = vld [vmem:[%s6911 + $0x160] sm:$0xff]
        %v6957 = vld [vmem:[%s6911 + $0x168] sm:$0xff]
        %v6958 = vld [vmem:[%s6911 + $0x170] sm:$0xff]
        %v6959 = vld [vmem:[%s6911 + $0x178] sm:$0xff]
        %v6960 = vld [vmem:[%s6911 + $0x180] sm:$0xff]
        %v6961 = vld [vmem:[%s6911 + $0x188] sm:$0xff]
        %v6962 = vld [vmem:[%s6911 + $0x190] sm:$0xff]
        %v6963 = vld [vmem:[%s6911 + $0x198] sm:$0xff]
        %v6964 = vld [vmem:[%s6911 + $0x1a0] sm:$0xff]
        %v6965 = vld [vmem:[%s6911 + $0x1a8] sm:$0xff]
        %v6966 = vld [vmem:[%s6911 + $0x1b0] sm:$0xff]
        %v6967 = vld [vmem:[%s6911 + $0x1b8] sm:$0xff]
        %v6968 = vld [vmem:[%s6911 + $0x1c0] sm:$0xff]
        %v6969 = vld [vmem:[%s6911 + $0x1c8] sm:$0xff]
        %v6970 = vld [vmem:[%s6911 + $0x1d0] sm:$0xff]
        %v6971 = vld [vmem:[%s6911 + $0x1d8] sm:$0xff]
        %v6972 = vld [vmem:[%s6911 + $0x1e0] sm:$0xff]
        %v6973 = vld [vmem:[%s6911 + $0x1e8] sm:$0xff]
        %v6974 = vld [vmem:[%s6911 + $0x1f0] sm:$0xff]
        %v6975 = vld [vmem:[%s6911 + $0x1f8] sm:$0xff]
        %6976 = vmatpush.msra.mxu0 %v6942
        %6977 = vmatpush.msra.mxu0 %v6940
        %6978 = vmatpush.msra.mxu0 %v6938
        %6979 = vmatpush.msra.mxu0 %v6936
        %6980 = vmatpush.msra.mxu0 %v6934
        %6981 = vmatpush.msra.mxu0 %v6932
        %6982 = vmatpush.msra.mxu0 %v6930
        %6983 = vmatpush.msra.mxu0 %v6928
        %6984 = vmatpush.msra.mxu0 %v6926
        %6985 = vmatpush.msra.mxu0 %v6924
        %6986 = vmatpush.msra.mxu0 %v6922
        %6987 = vmatpush.msra.mxu0 %v6920
        %6988 = vmatpush.msra.mxu0 %v6918
        %6989 = vmatpush.msra.mxu0 %v6916
        %6990 = vmatpush.msra.mxu0 %v6914
        %6991 = vmatpush.msra.mxu0 %v6912
        %6992 = vmatmul.f32.gmra.mxu0 %v6021
        %v6993 = vpop.f32.mrf.mxu0
        %v6994 = vadd.f32 0.0, %v6993
        %6995 = vmatmul.f32.gmra.mxu0 %v6024
        %v6996 = vpop.f32.mrf.mxu0
        %v6997 = vadd.f32 0.0, %v6996
        %6998 = vdwg.mxu0
        %6999 = vmatpush.msra.mxu0 %v6974
        %7000 = vmatpush.msra.mxu0 %v6972
        %7001 = vmatpush.msra.mxu0 %v6970
        %7002 = vmatpush.msra.mxu0 %v6968
        %7003 = vmatpush.msra.mxu0 %v6966
        %7004 = vmatpush.msra.mxu0 %v6964
        %7005 = vmatpush.msra.mxu0 %v6962
        %7006 = vmatpush.msra.mxu0 %v6960
        %7007 = vmatpush.msra.mxu0 %v6958
        %7008 = vmatpush.msra.mxu0 %v6956
        %7009 = vmatpush.msra.mxu0 %v6954
        %7010 = vmatpush.msra.mxu0 %v6952
        %7011 = vmatpush.msra.mxu0 %v6950
        %7012 = vmatpush.msra.mxu0 %v6948
        %7013 = vmatpush.msra.mxu0 %v6946
        %7014 = vmatpush.msra.mxu0 %v6944
        %7015 = vmatmul.f32.gmra.mxu0 %v6092
        %v7016 = vpop.f32.mrf.mxu0
        %v7017 = vadd.f32 %v6994, %v7016
        %7018 = vmatmul.f32.gmra.mxu0 %v6095
        %v7019 = vpop.f32.mrf.mxu0
        %v7020 = vadd.f32 %v6997, %v7019
        %7021 = vdwg.mxu0
        %7022 = vmatpush.msra.mxu0 %v6943
        %7023 = vmatpush.msra.mxu0 %v6941
        %7024 = vmatpush.msra.mxu0 %v6939
        %7025 = vmatpush.msra.mxu0 %v6937
        %7026 = vmatpush.msra.mxu0 %v6935
        %7027 = vmatpush.msra.mxu0 %v6933
        %7028 = vmatpush.msra.mxu0 %v6931
        %7029 = vmatpush.msra.mxu0 %v6929
        %7030 = vmatpush.msra.mxu0 %v6927
        %7031 = vmatpush.msra.mxu0 %v6925
        %7032 = vmatpush.msra.mxu0 %v6923
        %7033 = vmatpush.msra.mxu0 %v6921
        %7034 = vmatpush.msra.mxu0 %v6919
        %7035 = vmatpush.msra.mxu0 %v6917
        %7036 = vmatpush.msra.mxu0 %v6915
        %7037 = vmatpush.msra.mxu0 %v6913
        %7038 = vmatmul.f32.gmra.mxu0 %v6021
        %v7039 = vpop.f32.mrf.mxu0
        %v7040 = vadd.f32 0.0, %v7039
        %7041 = vmatmul.f32.gmra.mxu0 %v6024
        %v7042 = vpop.f32.mrf.mxu0
        %v7043 = vadd.f32 0.0, %v7042
        %7044 = vdwg.mxu0
        %7045 = vmatpush.msra.mxu0 %v6975
        %7046 = vmatpush.msra.mxu0 %v6973
        %7047 = vmatpush.msra.mxu0 %v6971
        %7048 = vmatpush.msra.mxu0 %v6969
        %7049 = vmatpush.msra.mxu0 %v6967
        %7050 = vmatpush.msra.mxu0 %v6965
        %7051 = vmatpush.msra.mxu0 %v6963
        %7052 = vmatpush.msra.mxu0 %v6961
        %7053 = vmatpush.msra.mxu0 %v6959
        %7054 = vmatpush.msra.mxu0 %v6957
        %7055 = vmatpush.msra.mxu0 %v6955
        %7056 = vmatpush.msra.mxu0 %v6953
        %7057 = vmatpush.msra.mxu0 %v6951
        %7058 = vmatpush.msra.mxu0 %v6949
        %7059 = vmatpush.msra.mxu0 %v6947
        %7060 = vmatpush.msra.mxu0 %v6945
        %7061 = vmatmul.f32.gmra.mxu0 %v6092
        %v7062 = vpop.f32.mrf.mxu0
        %v7063 = vadd.f32 %v7040, %v7062
        %7064 = vmatmul.f32.gmra.mxu0 %v6095
        %v7065 = vpop.f32.mrf.mxu0
        %v7066 = vadd.f32 %v7043, %v7065
        %7067 = vdwg.mxu0
        %v7068 = vadd.f32 %v6907, %v7017
        %v7069 = vadd.f32 %v6908, %v7063
        %v7070 = vadd.f32 %v6909, %v7020
        %v7071 = vadd.f32 %v6910, %v7066
        %s7072 = scalar_lea.vmem %s24, 3072
        %v7073 = vld [vmem:[%s7072] sm:$0xff]
        %v7074 = vld [vmem:[%s7072 + $0x8] sm:$0xff]
        %v7075 = vld [vmem:[%s7072 + $0x10] sm:$0xff]
        %v7076 = vld [vmem:[%s7072 + $0x18] sm:$0xff]
        %v7077 = vld [vmem:[%s7072 + $0x20] sm:$0xff]
        %v7078 = vld [vmem:[%s7072 + $0x28] sm:$0xff]
        %v7079 = vld [vmem:[%s7072 + $0x30] sm:$0xff]
        %v7080 = vld [vmem:[%s7072 + $0x38] sm:$0xff]
        %v7081 = vld [vmem:[%s7072 + $0x40] sm:$0xff]
        %v7082 = vld [vmem:[%s7072 + $0x48] sm:$0xff]
        %v7083 = vld [vmem:[%s7072 + $0x50] sm:$0xff]
        %v7084 = vld [vmem:[%s7072 + $0x58] sm:$0xff]
        %v7085 = vld [vmem:[%s7072 + $0x60] sm:$0xff]
        %v7086 = vld [vmem:[%s7072 + $0x68] sm:$0xff]
        %v7087 = vld [vmem:[%s7072 + $0x70] sm:$0xff]
        %v7088 = vld [vmem:[%s7072 + $0x78] sm:$0xff]
        %v7089 = vld [vmem:[%s7072 + $0x80] sm:$0xff]
        %v7090 = vld [vmem:[%s7072 + $0x88] sm:$0xff]
        %v7091 = vld [vmem:[%s7072 + $0x90] sm:$0xff]
        %v7092 = vld [vmem:[%s7072 + $0x98] sm:$0xff]
        %v7093 = vld [vmem:[%s7072 + $0xa0] sm:$0xff]
        %v7094 = vld [vmem:[%s7072 + $0xa8] sm:$0xff]
        %v7095 = vld [vmem:[%s7072 + $0xb0] sm:$0xff]
        %v7096 = vld [vmem:[%s7072 + $0xb8] sm:$0xff]
        %v7097 = vld [vmem:[%s7072 + $0xc0] sm:$0xff]
        %v7098 = vld [vmem:[%s7072 + $0xc8] sm:$0xff]
        %v7099 = vld [vmem:[%s7072 + $0xd0] sm:$0xff]
        %v7100 = vld [vmem:[%s7072 + $0xd8] sm:$0xff]
        %v7101 = vld [vmem:[%s7072 + $0xe0] sm:$0xff]
        %v7102 = vld [vmem:[%s7072 + $0xe8] sm:$0xff]
        %v7103 = vld [vmem:[%s7072 + $0xf0] sm:$0xff]
        %v7104 = vld [vmem:[%s7072 + $0xf8] sm:$0xff]
        %v7105 = vld [vmem:[%s7072 + $0x100] sm:$0xff]
        %v7106 = vld [vmem:[%s7072 + $0x108] sm:$0xff]
        %v7107 = vld [vmem:[%s7072 + $0x110] sm:$0xff]
        %v7108 = vld [vmem:[%s7072 + $0x118] sm:$0xff]
        %v7109 = vld [vmem:[%s7072 + $0x120] sm:$0xff]
        %v7110 = vld [vmem:[%s7072 + $0x128] sm:$0xff]
        %v7111 = vld [vmem:[%s7072 + $0x130] sm:$0xff]
        %v7112 = vld [vmem:[%s7072 + $0x138] sm:$0xff]
        %v7113 = vld [vmem:[%s7072 + $0x140] sm:$0xff]
        %v7114 = vld [vmem:[%s7072 + $0x148] sm:$0xff]
        %v7115 = vld [vmem:[%s7072 + $0x150] sm:$0xff]
        %v7116 = vld [vmem:[%s7072 + $0x158] sm:$0xff]
        %v7117 = vld [vmem:[%s7072 + $0x160] sm:$0xff]
        %v7118 = vld [vmem:[%s7072 + $0x168] sm:$0xff]
        %v7119 = vld [vmem:[%s7072 + $0x170] sm:$0xff]
        %v7120 = vld [vmem:[%s7072 + $0x178] sm:$0xff]
        %v7121 = vld [vmem:[%s7072 + $0x180] sm:$0xff]
        %v7122 = vld [vmem:[%s7072 + $0x188] sm:$0xff]
        %v7123 = vld [vmem:[%s7072 + $0x190] sm:$0xff]
        %v7124 = vld [vmem:[%s7072 + $0x198] sm:$0xff]
        %v7125 = vld [vmem:[%s7072 + $0x1a0] sm:$0xff]
        %v7126 = vld [vmem:[%s7072 + $0x1a8] sm:$0xff]
        %v7127 = vld [vmem:[%s7072 + $0x1b0] sm:$0xff]
        %v7128 = vld [vmem:[%s7072 + $0x1b8] sm:$0xff]
        %v7129 = vld [vmem:[%s7072 + $0x1c0] sm:$0xff]
        %v7130 = vld [vmem:[%s7072 + $0x1c8] sm:$0xff]
        %v7131 = vld [vmem:[%s7072 + $0x1d0] sm:$0xff]
        %v7132 = vld [vmem:[%s7072 + $0x1d8] sm:$0xff]
        %v7133 = vld [vmem:[%s7072 + $0x1e0] sm:$0xff]
        %v7134 = vld [vmem:[%s7072 + $0x1e8] sm:$0xff]
        %v7135 = vld [vmem:[%s7072 + $0x1f0] sm:$0xff]
        %v7136 = vld [vmem:[%s7072 + $0x1f8] sm:$0xff]
        %7137 = vmatpush.msra.mxu0 %v7103
        %7138 = vmatpush.msra.mxu0 %v7101
        %7139 = vmatpush.msra.mxu0 %v7099
        %7140 = vmatpush.msra.mxu0 %v7097
        %7141 = vmatpush.msra.mxu0 %v7095
        %7142 = vmatpush.msra.mxu0 %v7093
        %7143 = vmatpush.msra.mxu0 %v7091
        %7144 = vmatpush.msra.mxu0 %v7089
        %7145 = vmatpush.msra.mxu0 %v7087
        %7146 = vmatpush.msra.mxu0 %v7085
        %7147 = vmatpush.msra.mxu0 %v7083
        %7148 = vmatpush.msra.mxu0 %v7081
        %7149 = vmatpush.msra.mxu0 %v7079
        %7150 = vmatpush.msra.mxu0 %v7077
        %7151 = vmatpush.msra.mxu0 %v7075
        %7152 = vmatpush.msra.mxu0 %v7073
        %7153 = vmatmul.f32.gmra.mxu0 %v6027
        %v7154 = vpop.f32.mrf.mxu0
        %v7155 = vadd.f32 0.0, %v7154
        %7156 = vmatmul.f32.gmra.mxu0 %v6030
        %v7157 = vpop.f32.mrf.mxu0
        %v7158 = vadd.f32 0.0, %v7157
        %7159 = vdwg.mxu0
        %7160 = vmatpush.msra.mxu0 %v7135
        %7161 = vmatpush.msra.mxu0 %v7133
        %7162 = vmatpush.msra.mxu0 %v7131
        %7163 = vmatpush.msra.mxu0 %v7129
        %7164 = vmatpush.msra.mxu0 %v7127
        %7165 = vmatpush.msra.mxu0 %v7125
        %7166 = vmatpush.msra.mxu0 %v7123
        %7167 = vmatpush.msra.mxu0 %v7121
        %7168 = vmatpush.msra.mxu0 %v7119
        %7169 = vmatpush.msra.mxu0 %v7117
        %7170 = vmatpush.msra.mxu0 %v7115
        %7171 = vmatpush.msra.mxu0 %v7113
        %7172 = vmatpush.msra.mxu0 %v7111
        %7173 = vmatpush.msra.mxu0 %v7109
        %7174 = vmatpush.msra.mxu0 %v7107
        %7175 = vmatpush.msra.mxu0 %v7105
        %7176 = vmatmul.f32.gmra.mxu0 %v6098
        %v7177 = vpop.f32.mrf.mxu0
        %v7178 = vadd.f32 %v7155, %v7177
        %7179 = vmatmul.f32.gmra.mxu0 %v6101
        %v7180 = vpop.f32.mrf.mxu0
        %v7181 = vadd.f32 %v7158, %v7180
        %7182 = vdwg.mxu0
        %7183 = vmatpush.msra.mxu0 %v7104
        %7184 = vmatpush.msra.mxu0 %v7102
        %7185 = vmatpush.msra.mxu0 %v7100
        %7186 = vmatpush.msra.mxu0 %v7098
        %7187 = vmatpush.msra.mxu0 %v7096
        %7188 = vmatpush.msra.mxu0 %v7094
        %7189 = vmatpush.msra.mxu0 %v7092
        %7190 = vmatpush.msra.mxu0 %v7090
        %7191 = vmatpush.msra.mxu0 %v7088
        %7192 = vmatpush.msra.mxu0 %v7086
        %7193 = vmatpush.msra.mxu0 %v7084
        %7194 = vmatpush.msra.mxu0 %v7082
        %7195 = vmatpush.msra.mxu0 %v7080
        %7196 = vmatpush.msra.mxu0 %v7078
        %7197 = vmatpush.msra.mxu0 %v7076
        %7198 = vmatpush.msra.mxu0 %v7074
        %7199 = vmatmul.f32.gmra.mxu0 %v6027
        %v7200 = vpop.f32.mrf.mxu0
        %v7201 = vadd.f32 0.0, %v7200
        %7202 = vmatmul.f32.gmra.mxu0 %v6030
        %v7203 = vpop.f32.mrf.mxu0
        %v7204 = vadd.f32 0.0, %v7203
        %7205 = vdwg.mxu0
        %7206 = vmatpush.msra.mxu0 %v7136
        %7207 = vmatpush.msra.mxu0 %v7134
        %7208 = vmatpush.msra.mxu0 %v7132
        %7209 = vmatpush.msra.mxu0 %v7130
        %7210 = vmatpush.msra.mxu0 %v7128
        %7211 = vmatpush.msra.mxu0 %v7126
        %7212 = vmatpush.msra.mxu0 %v7124
        %7213 = vmatpush.msra.mxu0 %v7122
        %7214 = vmatpush.msra.mxu0 %v7120
        %7215 = vmatpush.msra.mxu0 %v7118
        %7216 = vmatpush.msra.mxu0 %v7116
        %7217 = vmatpush.msra.mxu0 %v7114
        %7218 = vmatpush.msra.mxu0 %v7112
        %7219 = vmatpush.msra.mxu0 %v7110
        %7220 = vmatpush.msra.mxu0 %v7108
        %7221 = vmatpush.msra.mxu0 %v7106
        %7222 = vmatmul.f32.gmra.mxu0 %v6098
        %v7223 = vpop.f32.mrf.mxu0
        %v7224 = vadd.f32 %v7201, %v7223
        %7225 = vmatmul.f32.gmra.mxu0 %v6101
        %v7226 = vpop.f32.mrf.mxu0
        %v7227 = vadd.f32 %v7204, %v7226
        %7228 = vdwg.mxu0
        %v7229 = vadd.f32 %v7068, %v7178
        %v7230 = vadd.f32 %v7069, %v7224
        %v7231 = vadd.f32 %v7070, %v7181
        %v7232 = vadd.f32 %v7071, %v7227
        %s7233 = scalar_lea.vmem %s24, 3584
        %v7234 = vld [vmem:[%s7233] sm:$0xff]
        %v7235 = vld [vmem:[%s7233 + $0x8] sm:$0xff]
        %v7236 = vld [vmem:[%s7233 + $0x10] sm:$0xff]
        %v7237 = vld [vmem:[%s7233 + $0x18] sm:$0xff]
        %v7238 = vld [vmem:[%s7233 + $0x20] sm:$0xff]
        %v7239 = vld [vmem:[%s7233 + $0x28] sm:$0xff]
        %v7240 = vld [vmem:[%s7233 + $0x30] sm:$0xff]
        %v7241 = vld [vmem:[%s7233 + $0x38] sm:$0xff]
        %v7242 = vld [vmem:[%s7233 + $0x40] sm:$0xff]
        %v7243 = vld [vmem:[%s7233 + $0x48] sm:$0xff]
        %v7244 = vld [vmem:[%s7233 + $0x50] sm:$0xff]
        %v7245 = vld [vmem:[%s7233 + $0x58] sm:$0xff]
        %v7246 = vld [vmem:[%s7233 + $0x60] sm:$0xff]
        %v7247 = vld [vmem:[%s7233 + $0x68] sm:$0xff]
        %v7248 = vld [vmem:[%s7233 + $0x70] sm:$0xff]
        %v7249 = vld [vmem:[%s7233 + $0x78] sm:$0xff]
        %v7250 = vld [vmem:[%s7233 + $0x80] sm:$0xff]
        %v7251 = vld [vmem:[%s7233 + $0x88] sm:$0xff]
        %v7252 = vld [vmem:[%s7233 + $0x90] sm:$0xff]
        %v7253 = vld [vmem:[%s7233 + $0x98] sm:$0xff]
        %v7254 = vld [vmem:[%s7233 + $0xa0] sm:$0xff]
        %v7255 = vld [vmem:[%s7233 + $0xa8] sm:$0xff]
        %v7256 = vld [vmem:[%s7233 + $0xb0] sm:$0xff]
        %v7257 = vld [vmem:[%s7233 + $0xb8] sm:$0xff]
        %v7258 = vld [vmem:[%s7233 + $0xc0] sm:$0xff]
        %v7259 = vld [vmem:[%s7233 + $0xc8] sm:$0xff]
        %v7260 = vld [vmem:[%s7233 + $0xd0] sm:$0xff]
        %v7261 = vld [vmem:[%s7233 + $0xd8] sm:$0xff]
        %v7262 = vld [vmem:[%s7233 + $0xe0] sm:$0xff]
        %v7263 = vld [vmem:[%s7233 + $0xe8] sm:$0xff]
        %v7264 = vld [vmem:[%s7233 + $0xf0] sm:$0xff]
        %v7265 = vld [vmem:[%s7233 + $0xf8] sm:$0xff]
        %v7266 = vld [vmem:[%s7233 + $0x100] sm:$0xff]
        %v7267 = vld [vmem:[%s7233 + $0x108] sm:$0xff]
        %v7268 = vld [vmem:[%s7233 + $0x110] sm:$0xff]
        %v7269 = vld [vmem:[%s7233 + $0x118] sm:$0xff]
        %v7270 = vld [vmem:[%s7233 + $0x120] sm:$0xff]
        %v7271 = vld [vmem:[%s7233 + $0x128] sm:$0xff]
        %v7272 = vld [vmem:[%s7233 + $0x130] sm:$0xff]
        %v7273 = vld [vmem:[%s7233 + $0x138] sm:$0xff]
        %v7274 = vld [vmem:[%s7233 + $0x140] sm:$0xff]
        %v7275 = vld [vmem:[%s7233 + $0x148] sm:$0xff]
        %v7276 = vld [vmem:[%s7233 + $0x150] sm:$0xff]
        %v7277 = vld [vmem:[%s7233 + $0x158] sm:$0xff]
        %v7278 = vld [vmem:[%s7233 + $0x160] sm:$0xff]
        %v7279 = vld [vmem:[%s7233 + $0x168] sm:$0xff]
        %v7280 = vld [vmem:[%s7233 + $0x170] sm:$0xff]
        %v7281 = vld [vmem:[%s7233 + $0x178] sm:$0xff]
        %v7282 = vld [vmem:[%s7233 + $0x180] sm:$0xff]
        %v7283 = vld [vmem:[%s7233 + $0x188] sm:$0xff]
        %v7284 = vld [vmem:[%s7233 + $0x190] sm:$0xff]
        %v7285 = vld [vmem:[%s7233 + $0x198] sm:$0xff]
        %v7286 = vld [vmem:[%s7233 + $0x1a0] sm:$0xff]
        %v7287 = vld [vmem:[%s7233 + $0x1a8] sm:$0xff]
        %v7288 = vld [vmem:[%s7233 + $0x1b0] sm:$0xff]
        %v7289 = vld [vmem:[%s7233 + $0x1b8] sm:$0xff]
        %v7290 = vld [vmem:[%s7233 + $0x1c0] sm:$0xff]
        %v7291 = vld [vmem:[%s7233 + $0x1c8] sm:$0xff]
        %v7292 = vld [vmem:[%s7233 + $0x1d0] sm:$0xff]
        %v7293 = vld [vmem:[%s7233 + $0x1d8] sm:$0xff]
        %v7294 = vld [vmem:[%s7233 + $0x1e0] sm:$0xff]
        %v7295 = vld [vmem:[%s7233 + $0x1e8] sm:$0xff]
        %v7296 = vld [vmem:[%s7233 + $0x1f0] sm:$0xff]
        %v7297 = vld [vmem:[%s7233 + $0x1f8] sm:$0xff]
        %7298 = vmatpush.msra.mxu0 %v7264
        %7299 = vmatpush.msra.mxu0 %v7262
        %7300 = vmatpush.msra.mxu0 %v7260
        %7301 = vmatpush.msra.mxu0 %v7258
        %7302 = vmatpush.msra.mxu0 %v7256
        %7303 = vmatpush.msra.mxu0 %v7254
        %7304 = vmatpush.msra.mxu0 %v7252
        %7305 = vmatpush.msra.mxu0 %v7250
        %7306 = vmatpush.msra.mxu0 %v7248
        %7307 = vmatpush.msra.mxu0 %v7246
        %7308 = vmatpush.msra.mxu0 %v7244
        %7309 = vmatpush.msra.mxu0 %v7242
        %7310 = vmatpush.msra.mxu0 %v7240
        %7311 = vmatpush.msra.mxu0 %v7238
        %7312 = vmatpush.msra.mxu0 %v7236
        %7313 = vmatpush.msra.mxu0 %v7234
        %7314 = vmatmul.f32.gmra.mxu0 %v6033
        %v7315 = vpop.f32.mrf.mxu0
        %v7316 = vadd.f32 0.0, %v7315
        %7317 = vmatmul.f32.gmra.mxu0 %v6036
        %v7318 = vpop.f32.mrf.mxu0
        %v7319 = vadd.f32 0.0, %v7318
        %7320 = vdwg.mxu0
        %7321 = vmatpush.msra.mxu0 %v7296
        %7322 = vmatpush.msra.mxu0 %v7294
        %7323 = vmatpush.msra.mxu0 %v7292
        %7324 = vmatpush.msra.mxu0 %v7290
        %7325 = vmatpush.msra.mxu0 %v7288
        %7326 = vmatpush.msra.mxu0 %v7286
        %7327 = vmatpush.msra.mxu0 %v7284
        %7328 = vmatpush.msra.mxu0 %v7282
        %7329 = vmatpush.msra.mxu0 %v7280
        %7330 = vmatpush.msra.mxu0 %v7278
        %7331 = vmatpush.msra.mxu0 %v7276
        %7332 = vmatpush.msra.mxu0 %v7274
        %7333 = vmatpush.msra.mxu0 %v7272
        %7334 = vmatpush.msra.mxu0 %v7270
        %7335 = vmatpush.msra.mxu0 %v7268
        %7336 = vmatpush.msra.mxu0 %v7266
        %7337 = vmatmul.f32.gmra.mxu0 %v6104
        %v7338 = vpop.f32.mrf.mxu0
        %v7339 = vadd.f32 %v7316, %v7338
        %7340 = vmatmul.f32.gmra.mxu0 %v6107
        %v7341 = vpop.f32.mrf.mxu0
        %v7342 = vadd.f32 %v7319, %v7341
        %7343 = vdwg.mxu0
        %7344 = vmatpush.msra.mxu0 %v7265
        %7345 = vmatpush.msra.mxu0 %v7263
        %7346 = vmatpush.msra.mxu0 %v7261
        %7347 = vmatpush.msra.mxu0 %v7259
        %7348 = vmatpush.msra.mxu0 %v7257
        %7349 = vmatpush.msra.mxu0 %v7255
        %7350 = vmatpush.msra.mxu0 %v7253
        %7351 = vmatpush.msra.mxu0 %v7251
        %7352 = vmatpush.msra.mxu0 %v7249
        %7353 = vmatpush.msra.mxu0 %v7247
        %7354 = vmatpush.msra.mxu0 %v7245
        %7355 = vmatpush.msra.mxu0 %v7243
        %7356 = vmatpush.msra.mxu0 %v7241
        %7357 = vmatpush.msra.mxu0 %v7239
        %7358 = vmatpush.msra.mxu0 %v7237
        %7359 = vmatpush.msra.mxu0 %v7235
        %7360 = vmatmul.f32.gmra.mxu0 %v6033
        %v7361 = vpop.f32.mrf.mxu0
        %v7362 = vadd.f32 0.0, %v7361
        %7363 = vmatmul.f32.gmra.mxu0 %v6036
        %v7364 = vpop.f32.mrf.mxu0
        %v7365 = vadd.f32 0.0, %v7364
        %7366 = vdwg.mxu0
        %7367 = vmatpush.msra.mxu0 %v7297
        %7368 = vmatpush.msra.mxu0 %v7295
        %7369 = vmatpush.msra.mxu0 %v7293
        %7370 = vmatpush.msra.mxu0 %v7291
        %7371 = vmatpush.msra.mxu0 %v7289
        %7372 = vmatpush.msra.mxu0 %v7287
        %7373 = vmatpush.msra.mxu0 %v7285
        %7374 = vmatpush.msra.mxu0 %v7283
        %7375 = vmatpush.msra.mxu0 %v7281
        %7376 = vmatpush.msra.mxu0 %v7279
        %7377 = vmatpush.msra.mxu0 %v7277
        %7378 = vmatpush.msra.mxu0 %v7275
        %7379 = vmatpush.msra.mxu0 %v7273
        %7380 = vmatpush.msra.mxu0 %v7271
        %7381 = vmatpush.msra.mxu0 %v7269
        %7382 = vmatpush.msra.mxu0 %v7267
        %7383 = vmatmul.f32.gmra.mxu0 %v6104
        %v7384 = vpop.f32.mrf.mxu0
        %v7385 = vadd.f32 %v7362, %v7384
        %7386 = vmatmul.f32.gmra.mxu0 %v6107
        %v7387 = vpop.f32.mrf.mxu0
        %v7388 = vadd.f32 %v7365, %v7387
        %7389 = vdwg.mxu0
        %v7390 = vadd.f32 %v7229, %v7339
        %v7391 = vadd.f32 %v7230, %v7385
        %v7392 = vadd.f32 %v7231, %v7342
        %v7393 = vadd.f32 %v7232, %v7388
        %s7394 = scalar_lea.vmem %s24, 4096
        %v7395 = vld [vmem:[%s7394] sm:$0xff]
        %v7396 = vld [vmem:[%s7394 + $0x8] sm:$0xff]
        %v7397 = vld [vmem:[%s7394 + $0x10] sm:$0xff]
        %v7398 = vld [vmem:[%s7394 + $0x18] sm:$0xff]
        %v7399 = vld [vmem:[%s7394 + $0x20] sm:$0xff]
        %v7400 = vld [vmem:[%s7394 + $0x28] sm:$0xff]
        %v7401 = vld [vmem:[%s7394 + $0x30] sm:$0xff]
        %v7402 = vld [vmem:[%s7394 + $0x38] sm:$0xff]
        %v7403 = vld [vmem:[%s7394 + $0x40] sm:$0xff]
        %v7404 = vld [vmem:[%s7394 + $0x48] sm:$0xff]
        %v7405 = vld [vmem:[%s7394 + $0x50] sm:$0xff]
        %v7406 = vld [vmem:[%s7394 + $0x58] sm:$0xff]
        %v7407 = vld [vmem:[%s7394 + $0x60] sm:$0xff]
        %v7408 = vld [vmem:[%s7394 + $0x68] sm:$0xff]
        %v7409 = vld [vmem:[%s7394 + $0x70] sm:$0xff]
        %v7410 = vld [vmem:[%s7394 + $0x78] sm:$0xff]
        %v7411 = vld [vmem:[%s7394 + $0x80] sm:$0xff]
        %v7412 = vld [vmem:[%s7394 + $0x88] sm:$0xff]
        %v7413 = vld [vmem:[%s7394 + $0x90] sm:$0xff]
        %v7414 = vld [vmem:[%s7394 + $0x98] sm:$0xff]
        %v7415 = vld [vmem:[%s7394 + $0xa0] sm:$0xff]
        %v7416 = vld [vmem:[%s7394 + $0xa8] sm:$0xff]
        %v7417 = vld [vmem:[%s7394 + $0xb0] sm:$0xff]
        %v7418 = vld [vmem:[%s7394 + $0xb8] sm:$0xff]
        %v7419 = vld [vmem:[%s7394 + $0xc0] sm:$0xff]
        %v7420 = vld [vmem:[%s7394 + $0xc8] sm:$0xff]
        %v7421 = vld [vmem:[%s7394 + $0xd0] sm:$0xff]
        %v7422 = vld [vmem:[%s7394 + $0xd8] sm:$0xff]
        %v7423 = vld [vmem:[%s7394 + $0xe0] sm:$0xff]
        %v7424 = vld [vmem:[%s7394 + $0xe8] sm:$0xff]
        %v7425 = vld [vmem:[%s7394 + $0xf0] sm:$0xff]
        %v7426 = vld [vmem:[%s7394 + $0xf8] sm:$0xff]
        %v7427 = vld [vmem:[%s7394 + $0x100] sm:$0xff]
        %v7428 = vld [vmem:[%s7394 + $0x108] sm:$0xff]
        %v7429 = vld [vmem:[%s7394 + $0x110] sm:$0xff]
        %v7430 = vld [vmem:[%s7394 + $0x118] sm:$0xff]
        %v7431 = vld [vmem:[%s7394 + $0x120] sm:$0xff]
        %v7432 = vld [vmem:[%s7394 + $0x128] sm:$0xff]
        %v7433 = vld [vmem:[%s7394 + $0x130] sm:$0xff]
        %v7434 = vld [vmem:[%s7394 + $0x138] sm:$0xff]
        %v7435 = vld [vmem:[%s7394 + $0x140] sm:$0xff]
        %v7436 = vld [vmem:[%s7394 + $0x148] sm:$0xff]
        %v7437 = vld [vmem:[%s7394 + $0x150] sm:$0xff]
        %v7438 = vld [vmem:[%s7394 + $0x158] sm:$0xff]
        %v7439 = vld [vmem:[%s7394 + $0x160] sm:$0xff]
        %v7440 = vld [vmem:[%s7394 + $0x168] sm:$0xff]
        %v7441 = vld [vmem:[%s7394 + $0x170] sm:$0xff]
        %v7442 = vld [vmem:[%s7394 + $0x178] sm:$0xff]
        %v7443 = vld [vmem:[%s7394 + $0x180] sm:$0xff]
        %v7444 = vld [vmem:[%s7394 + $0x188] sm:$0xff]
        %v7445 = vld [vmem:[%s7394 + $0x190] sm:$0xff]
        %v7446 = vld [vmem:[%s7394 + $0x198] sm:$0xff]
        %v7447 = vld [vmem:[%s7394 + $0x1a0] sm:$0xff]
        %v7448 = vld [vmem:[%s7394 + $0x1a8] sm:$0xff]
        %v7449 = vld [vmem:[%s7394 + $0x1b0] sm:$0xff]
        %v7450 = vld [vmem:[%s7394 + $0x1b8] sm:$0xff]
        %v7451 = vld [vmem:[%s7394 + $0x1c0] sm:$0xff]
        %v7452 = vld [vmem:[%s7394 + $0x1c8] sm:$0xff]
        %v7453 = vld [vmem:[%s7394 + $0x1d0] sm:$0xff]
        %v7454 = vld [vmem:[%s7394 + $0x1d8] sm:$0xff]
        %v7455 = vld [vmem:[%s7394 + $0x1e0] sm:$0xff]
        %v7456 = vld [vmem:[%s7394 + $0x1e8] sm:$0xff]
        %v7457 = vld [vmem:[%s7394 + $0x1f0] sm:$0xff]
        %v7458 = vld [vmem:[%s7394 + $0x1f8] sm:$0xff]
        %7459 = vmatpush.msra.mxu0 %v7425
        %7460 = vmatpush.msra.mxu0 %v7423
        %7461 = vmatpush.msra.mxu0 %v7421
        %7462 = vmatpush.msra.mxu0 %v7419
        %7463 = vmatpush.msra.mxu0 %v7417
        %7464 = vmatpush.msra.mxu0 %v7415
        %7465 = vmatpush.msra.mxu0 %v7413
        %7466 = vmatpush.msra.mxu0 %v7411
        %7467 = vmatpush.msra.mxu0 %v7409
        %7468 = vmatpush.msra.mxu0 %v7407
        %7469 = vmatpush.msra.mxu0 %v7405
        %7470 = vmatpush.msra.mxu0 %v7403
        %7471 = vmatpush.msra.mxu0 %v7401
        %7472 = vmatpush.msra.mxu0 %v7399
        %7473 = vmatpush.msra.mxu0 %v7397
        %7474 = vmatpush.msra.mxu0 %v7395
        %7475 = vmatmul.f32.gmra.mxu0 %v6039
        %v7476 = vpop.f32.mrf.mxu0
        %v7477 = vadd.f32 0.0, %v7476
        %7478 = vmatmul.f32.gmra.mxu0 %v6042
        %v7479 = vpop.f32.mrf.mxu0
        %v7480 = vadd.f32 0.0, %v7479
        %7481 = vdwg.mxu0
        %7482 = vmatpush.msra.mxu0 %v7457
        %7483 = vmatpush.msra.mxu0 %v7455
        %7484 = vmatpush.msra.mxu0 %v7453
        %7485 = vmatpush.msra.mxu0 %v7451
        %7486 = vmatpush.msra.mxu0 %v7449
        %7487 = vmatpush.msra.mxu0 %v7447
        %7488 = vmatpush.msra.mxu0 %v7445
        %7489 = vmatpush.msra.mxu0 %v7443
        %7490 = vmatpush.msra.mxu0 %v7441
        %7491 = vmatpush.msra.mxu0 %v7439
        %7492 = vmatpush.msra.mxu0 %v7437
        %7493 = vmatpush.msra.mxu0 %v7435
        %7494 = vmatpush.msra.mxu0 %v7433
        %7495 = vmatpush.msra.mxu0 %v7431
        %7496 = vmatpush.msra.mxu0 %v7429
        %7497 = vmatpush.msra.mxu0 %v7427
        %7498 = vmatmul.f32.gmra.mxu0 %v6110
        %v7499 = vpop.f32.mrf.mxu0
        %v7500 = vadd.f32 %v7477, %v7499
        %7501 = vmatmul.f32.gmra.mxu0 %v6113
        %v7502 = vpop.f32.mrf.mxu0
        %v7503 = vadd.f32 %v7480, %v7502
        %7504 = vdwg.mxu0
        %7505 = vmatpush.msra.mxu0 %v7426
        %7506 = vmatpush.msra.mxu0 %v7424
        %7507 = vmatpush.msra.mxu0 %v7422
        %7508 = vmatpush.msra.mxu0 %v7420
        %7509 = vmatpush.msra.mxu0 %v7418
        %7510 = vmatpush.msra.mxu0 %v7416
        %7511 = vmatpush.msra.mxu0 %v7414
        %7512 = vmatpush.msra.mxu0 %v7412
        %7513 = vmatpush.msra.mxu0 %v7410
        %7514 = vmatpush.msra.mxu0 %v7408
        %7515 = vmatpush.msra.mxu0 %v7406
        %7516 = vmatpush.msra.mxu0 %v7404
        %7517 = vmatpush.msra.mxu0 %v7402
        %7518 = vmatpush.msra.mxu0 %v7400
        %7519 = vmatpush.msra.mxu0 %v7398
        %7520 = vmatpush.msra.mxu0 %v7396
        %7521 = vmatmul.f32.gmra.mxu0 %v6039
        %v7522 = vpop.f32.mrf.mxu0
        %v7523 = vadd.f32 0.0, %v7522
        %7524 = vmatmul.f32.gmra.mxu0 %v6042
        %v7525 = vpop.f32.mrf.mxu0
        %v7526 = vadd.f32 0.0, %v7525
        %7527 = vdwg.mxu0
        %7528 = vmatpush.msra.mxu0 %v7458
        %7529 = vmatpush.msra.mxu0 %v7456
        %7530 = vmatpush.msra.mxu0 %v7454
        %7531 = vmatpush.msra.mxu0 %v7452
        %7532 = vmatpush.msra.mxu0 %v7450
        %7533 = vmatpush.msra.mxu0 %v7448
        %7534 = vmatpush.msra.mxu0 %v7446
        %7535 = vmatpush.msra.mxu0 %v7444
        %7536 = vmatpush.msra.mxu0 %v7442
        %7537 = vmatpush.msra.mxu0 %v7440
        %7538 = vmatpush.msra.mxu0 %v7438
        %7539 = vmatpush.msra.mxu0 %v7436
        %7540 = vmatpush.msra.mxu0 %v7434
        %7541 = vmatpush.msra.mxu0 %v7432
        %7542 = vmatpush.msra.mxu0 %v7430
        %7543 = vmatpush.msra.mxu0 %v7428
        %7544 = vmatmul.f32.gmra.mxu0 %v6110
        %v7545 = vpop.f32.mrf.mxu0
        %v7546 = vadd.f32 %v7523, %v7545
        %7547 = vmatmul.f32.gmra.mxu0 %v6113
        %v7548 = vpop.f32.mrf.mxu0
        %v7549 = vadd.f32 %v7526, %v7548
        %7550 = vdwg.mxu0
        %v7551 = vadd.f32 %v7390, %v7500
        %v7552 = vadd.f32 %v7391, %v7546
        %v7553 = vadd.f32 %v7392, %v7503
        %v7554 = vadd.f32 %v7393, %v7549
        %v7555 = vld [vmem:[%s23] sm:$0xff]
        %v7556 = vld [vmem:[%s23 + $0x8] sm:$0xff]
        %7558 = vset.pattern.permute.xlu0 0
        %7559 = vperm.xlu0 %7558, %v7555
        %v7560 = vpop.permute.xlu0 %7559
        %7563 = vset.pattern.permute.xlu0 0
        %7564 = vperm.xlu0 %7563, %v7556
        %v7565 = vpop.permute.xlu0 %7564
        %v7567 = vadd.f32 %v7551, %v7560
        %v7568 = vadd.f32 %v7552, %v7560
        %v7569 = vadd.f32 %v7553, %v7565
        %v7570 = vadd.f32 %v7554, %v7565
        %v7571 = vsub.f32 0.0, %v7567
        %v7572 = vsub.f32 0.0, %v7568
        %v7573 = vmul.f32 %v7571, 1.442695
        %v7574 = vpow.pop %v7573
        %v7575 = vmul.f32 %v7572, 1.442695
        %v7576 = vpow.pop %v7575
        %v7577 = vadd.f32 %v7574, 1.0
        %v7578 = vadd.f32 %v7576, 1.0
        %v7579 = vrcp.pop %v7577
        %v7580 = vmul.f32 %v7577, %v7579
        %v7581 = vsub.f32 1.0, %v7580
        %v7582 = vmul.f32 %v7579, %v7581
        %v7583 = vadd.f32 %v7579, %v7582
        %vm7584 = vweird.f32 %v7577
        %vm7585 = vweird.f32 %v7579
        %vm7586 = vmor %vm7584, %vm7585
        %v7587 = vsel %vm7586, %v7579, %v7583
        %v7588 = vand.u32 2147483647, %v7577
        %vm7589 = vcmp.eq.f32.partialorder %v7588, 8.507059e+37
        %v7590 = vand.u32 %v7577, 2147483648
        %v7591 = vor.u32 1.1754944e-38, %v7590
        %v7592 = vsel %vm7589, %v7591, %v7587
        %v7593 = vmul.f32 1.0, %v7592
        %v7594 = vrcp.pop %v7578
        %v7595 = vmul.f32 %v7578, %v7594
        %v7596 = vsub.f32 1.0, %v7595
        %v7597 = vmul.f32 %v7594, %v7596
        %v7598 = vadd.f32 %v7594, %v7597
        %vm7599 = vweird.f32 %v7578
        %vm7600 = vweird.f32 %v7594
        %vm7601 = vmor %vm7599, %vm7600
        %v7602 = vsel %vm7601, %v7594, %v7598
        %v7603 = vand.u32 2147483647, %v7578
        %vm7604 = vcmp.eq.f32.partialorder %v7603, 8.507059e+37
        %v7605 = vand.u32 %v7578, 2147483648
        %v7606 = vor.u32 1.1754944e-38, %v7605
        %v7607 = vsel %vm7604, %v7606, %v7602
        %v7608 = vmul.f32 1.0, %v7607
        %v7609 = vmul.f32 %v7593, %v2078
        %v7610 = vmul.f32 %v7608, %v2079
        %v7611 = vadd.f32 %v7609, %v7569
        %v7612 = vadd.f32 %v7610, %v7570
        %7613 = vst [vmem:[%s818] sm:$0xff] %v7611
        %7614 = vst [vmem:[%s818 + $0x8] sm:$0xff] %v7612
        %p7615 = scmp.lt.s32.totalorder %s38, 1
        %s7616 = scalar_select %p7615, %s38, 1
        %s7617 = smul.addr %s7616, 2
        %s7618 = smul.addr %s7617, 8
        %s7619 = scalar_lea.vmem %s25, %s7618
        // Predicated region
        $region129: #{ker_adp_block_forward.1} parent=119 // pred_check
          %p7620 = pneg %p591
        $region130: #{ker_adp_block_forward.1} parent=119 // pred_check_branch
          %7622 = sbr.rel (%p7620) target = $region132
        $region131: #{ker_adp_block_forward.1} parent=119 // pred_region
          _
        $region132: #{ker_adp_block_forward.1} parent=119 // pred_fallthru
          _
      $region120: #{ker_adp_block_forward.1} parent=5 // pred_fallthru
        _
      %p7623 = scmp.le.s32.totalorder 2, %s33
      // Predicated region
      $region133: #{ker_adp_block_forward.1} parent=5 // pred_check
        %p7624 = pneg %p7623
      $region134: #{ker_adp_block_forward.1} parent=5 // pred_check_branch
        %7626 = sbr.rel (%p7624) target = $region136
      $region135: #{ker_adp_block_forward.1} parent=5 // pred_region
        %s7627 = ssub.s32 %s33, 2
        // Predicated region
        $region137: #{ker_adp_block_forward.1} parent=135 // pred_check
          %p7628 = pneg %p597
        $region138: #{ker_adp_block_forward.1} parent=135 // pred_check_branch
          %7630 = sbr.rel (%p7628) target = $region140
        $region139: #{ker_adp_block_forward.1} parent=135 // pred_region
          %p7631 = scmp.lt.s32.totalorder %s39, 1
          %s7632 = scalar_select %p7631, %s39, 1
          %s7633 = smul.addr %s7632, 2
          %s7634 = smul.addr %s7633, 8
          %s7635 = scalar_lea.vmem %s25, %s7634
        $region140: #{ker_adp_block_forward.1} parent=135 // pred_fallthru
          _
      $region136: #{ker_adp_block_forward.1} parent=5 // pred_fallthru
        _
    $region6: #{ker_adp_block_forward.1} parent=1 // loop_footer
      %s37 = sadd.s32 1, %s33
    $region7: #{ker_adp_block_forward.1} parent=1 // loop_footer_branch
      %32 = sbr.rel target = $region3
    $region8: #{ker_adp_block_forward.1} parent=1 // loop_exit
      _
    %7636 = vsyncpa [#allocation3], 1
    %s7637 = scalar_lea.sflag [#allocation3], 1
    %7638 = vsyncpa %s7637, 1
    %7639 = vsyncpa [#allocation5], 1

</llo_original>
